<compile_context>
chip_gen: v7x
topology: tpu7x:2x2x1
jax: 0.10.0
libtpu: 0.0.40
codegen_flags: <defaults>
</compile_context>

<pallas_src>
import jax
import jax.numpy as jnp
from jax.experimental import pallas as pl
from jax.experimental.pallas import tpu as pltpu

EPS = 1e-5
IN_F = 3706
PAD_IN = 3712                         # 3706 rounded up to a multiple of 128
SEPARATE_L = (64, 128, 256, 256)
COMMON_L = (512, 512, 256, 256, 128, 128)


# ------------------------- packed scalar-vector layout -----------------------

def _round128(n):
    return ((n + 127) // 128) * 128


def _build_vec_layout():
    """Offsets (all multiples of 128) for biases / BN params / output head."""
    layout = {}
    off = 0

    def add(name, width):
        nonlocal off
        layout[name] = (off, width)
        off += _round128(width)

    add("ba", 64)                       # first Linear(3706,64) bias, branch a
    add("bc", 64)                       # first Linear(3706,64) bias, branch c
    for i, w in enumerate(2 * jnp.array(SEPARATE_L[1:])):     # joint widths
        w = int(w)
        for nm in ("g1", "b1", "g2", "b2"):
            add(f"br{i}_{nm}", w)
    for i, w in enumerate(COMMON_L[1:]):
        for nm in ("g1", "b1", "g2", "b2"):
            add(f"co{i}_{nm}", w)
    add("w_out", 128)                   # Linear(128,1) weight as a row vector
    add("b_out", 1)
    return layout, off


_VEC_LAYOUT, _VEC_SIZE = _build_vec_layout()


# ---------------------------------- kernel -----------------------------------

def _d_kernel(a_ref, c_ref, vec_ref, wf_ref, s64_128, s128_128, s128_256,
              s256_256, s512_512, s512_256, s256_128, o_ref):
    def V(name):
        off, width = _VEC_LAYOUT[name]
        return vec_ref[:, off:off + width]           # static, 128-aligned slice

    def dot(x, w):
        # bf16 x bf16 on the MXU with f32 accumulation.
        return jnp.dot(x.astype(jnp.bfloat16), w,
                       preferred_element_type=jnp.float32)

    def bn(h, prefix, which):
        # Training-mode BatchNorm1d: batch mean, biased variance, eps=1e-5.
        # sum(h) and sum(h*h) are independent reductions (shorter crit path).
        inv_n = 1.0 / h.shape[0]
        s1 = jnp.sum(h, axis=0, keepdims=True)
        s2 = jnp.sum(h * h, axis=0, keepdims=True)
        mu = s1 * inv_n
        var = jnp.maximum(s2 * inv_n - mu * mu, 0.0)
        return (h - mu) * jax.lax.rsqrt(var + EPS) * V(f"{prefix}_g{which}") \
            + V(f"{prefix}_b{which}")

    relu = lambda t: jnp.maximum(t, 0.0)
    cat = lambda u, v: jnp.concatenate([u, v], axis=1)

    # ---- first (separate) Linear(3706, 64) layers, with bias --------------
    xa = dot(a_ref[...], wf_ref[0]) + V("ba")          # (B, 64)
    xc = dot(c_ref[...], wf_ref[1]) + V("bc")          # (B, 64)

    # ---- branch resblock 0: 64 -> 128 (joint slab width 256) --------------
    identity = cat(dot(xa, s64_128[2]), dot(xc, s64_128[3]))       # scale
    h = cat(dot(xa, s64_128[0]), dot(xc, s64_128[1]))              # l1
    h = relu(bn(h, "br0", 1))
    h = cat(dot(h[:, :128], s128_128[0]), dot(h[:, 128:], s128_128[1]))  # l2
    x = relu(bn(h, "br0", 2) + identity)                           # (B, 256)

    # ---- branch resblock 1: 128 -> 256 (joint slab width 512) -------------
    xa, xc = x[:, :128], x[:, 128:]
    identity = cat(dot(xa, s128_256[2]), dot(xc, s128_256[3]))
    h = cat(dot(xa, s128_256[0]), dot(xc, s128_256[1]))
    h = relu(bn(h, "br1", 1))
    h = cat(dot(h[:, :256], s256_256[0]), dot(h[:, 256:], s256_256[1]))
    x = relu(bn(h, "br1", 2) + identity)                           # (B, 512)

    # ---- branch resblock 2: 256 -> 256 (identity passthrough) -------------
    xa, xc = x[:, :256], x[:, 256:]
    h = cat(dot(xa, s256_256[2]), dot(xc, s256_256[3]))
    h = relu(bn(h, "br2", 1))
    h = cat(dot(h[:, :256], s256_256[4]), dot(h[:, 256:], s256_256[5]))
    x = relu(bn(h, "br2", 2) + x)        # (B, 512) == torch.cat([a, c], dim=1)

    # ---- common resblock 0: 512 -> 512 -------------------------------------
    h = relu(bn(dot(x, s512_512[0]), "co0", 1))
    x = relu(bn(dot(h, s512_512[1]), "co0", 2) + x)

    # ---- common resblock 1: 512 -> 256 (scaled identity) -------------------
    identity = dot(x, s512_256[1])
    h = relu(bn(dot(x, s512_256[0]), "co1", 1))
    x = relu(bn(dot(h, s256_256[6]), "co1", 2) + identity)

    # ---- common resblock 2: 256 -> 256 -------------------------------------
    h = relu(bn(dot(x, s256_256[7]), "co2", 1))
    x = relu(bn(dot(h, s256_256[8]), "co2", 2) + x)

    # ---- common resblock 3: 256 -> 128 (scaled identity) -------------------
    identity = dot(x, s256_128[1])
    h = relu(bn(dot(x, s256_128[0]), "co3", 1))
    x = relu(bn(dot(h, s128_128[2]), "co3", 2) + identity)

    # ---- common resblock 4: 128 -> 128 -------------------------------------
    h = relu(bn(dot(x, s128_128[3]), "co4", 1))
    x = relu(bn(dot(h, s128_128[4]), "co4", 2) + x)

    # ---- output head: Linear(128, 1); WGAN=True => no sigmoid --------------
    o_ref[...] = jnp.sum(x * V("w_out"), axis=1, keepdims=True) + V("b_out")


# --------------------------------- wrapper -----------------------------------

_PARAM_ORDER = ("vec", "w_first", "s64_128", "s128_128", "s128_256",
                "s256_256", "s512_512", "s512_256", "s256_128")


def _prep(x):
    # bf16 inputs (the kernel feeds the MXU in bf16 anyway), pad 3706 -> 3712.
    x = x.astype(jnp.bfloat16)
    return jnp.pad(x, ((0, 0), (0, PAD_IN - x.shape[1])))


@jax.jit
def d_forward(params, a, c):
    a = _prep(a)
    c = _prep(c)
    vmem = pl.BlockSpec(memory_space=pltpu.MemorySpace.VMEM)
    args = (a, c) + tuple(params[k] for k in _PARAM_ORDER)
    return pl.pallas_call(
        _d_kernel,
        out_shape=jax.ShapeDtypeStruct((a.shape[0], 1), jnp.float32),
        in_specs=[vmem] * len(args),
        out_specs=vmem,
        compiler_params=pltpu.CompilerParams(
            vmem_limit_bytes=48 * 1024 * 1024),   # safe on v5e/v6e/v7x
    )(*args)


# --------------------------- parameter construction --------------------------

def init_D(key):
    ks = jax.random.split(key, 12)

    def u(k, shape, fan_in, dtype=jnp.float32):
        bound = 1.0 / float(fan_in) ** 0.5
        return jax.random.uniform(k, shape, jnp.float32, -bound, bound).astype(dtype)

    # First Linear(3706, 64) weights for branches a / c, stored transposed
    # (in, out), K zero-padded 3706 -> 3712 (matches the padded inputs).
    w_first = u(ks[0], (2, IN_F, 64), IN_F)
    w_first = jnp.pad(w_first, ((0, 0), (0, PAD_IN - IN_F), (0, 0)))
    w_first = w_first.astype(jnp.bfloat16)

    # Same-shape bf16 weight stacks (every entry shares fan_in = first dim).
    # s64_128 : [br0.w1a, br0.w1c, br0.wsa, br0.wsc]
    # s128_128: [br0.w2a, br0.w2c, co3.w2, co4.w1, co4.w2]
    # s128_256: [br1.w1a, br1.w1c, br1.wsa, br1.wsc]
    # s256_256: [br1.w2a, br1.w2c, br2.w1a, br2.w1c, br2.w2a, br2.w2c,
    #            co1.w2, co2.w1, co2.w2]
    # s512_512: [co0.w1, co0.w2]      s512_256: [co1.w1, co1.ws]
    # s256_128: [co3.w1, co3.ws]
    stacks = {
        "s64_128":  u(ks[1], (4, 64, 128), 64, jnp.bfloat16),
        "s128_128": u(ks[2], (5, 128, 128), 128, jnp.bfloat16),
        "s128_256": u(ks[3], (4, 128, 256), 128, jnp.bfloat16),
        "s256_256": u(ks[4], (9, 256, 256), 256, jnp.bfloat16),
        "s512_512": u(ks[5], (2, 512, 512), 512, jnp.bfloat16),
        "s512_256": u(ks[6], (2, 512, 256), 512, jnp.bfloat16),
        "s256_128": u(ks[7], (2, 256, 128), 256, jnp.bfloat16),
    }

    # Packed f32 vector: biases, BatchNorm gammas/betas, output head.
    vec = jnp.zeros((1, _VEC_SIZE), jnp.float32)

    def put(v, name, val):
        off, width = _VEC_LAYOUT[name]
        return v.at[:, off:off + width].set(jnp.reshape(val, (1, width)))

    vec = put(vec, "ba", u(ks[8], (64,), IN_F))
    vec = put(vec, "bc", u(ks[9], (64,), IN_F))
    for name, (off, width) in _VEC_LAYOUT.items():   # BN gamma = 1, beta = 0
        if "_g" in name:
            vec = vec.at[:, off:off + width].set(1.0)
    vec = put(vec, "w_out", u(ks[10], (128,), 128))  # Linear(128,1) weight row
    vec = put(vec, "b_out", u(ks[11], (1,), 128))

    return {"vec": vec, "w_first": w_first, **stacks}


# ----------------------------------- main -------------------------------------

if __name__ == "__main__":
    key = jax.random.PRNGKey(0)
    kp, ka, kc = jax.random.split(key, 3)

    B = 8                               # module hard-codes 3706 input features
    params = init_D(kp)
    a = jax.random.normal(ka, (B, IN_F), jnp.float32)
    c = jax.random.normal(kc, (B, IN_F), jnp.float32)

    out = jax.block_until_ready(d_forward(params, a, c))
    assert out.shape == (B, 1), out.shape
    assert bool(jnp.all(jnp.isfinite(out)))
    print("KERNEL_OK")
</pallas_src>

<mosaic_0001>
module attributes {stable_mosaic.version = 11 : i64} {
  func.func @_d_kernel(%arg0: memref<8x3712xbf16, #tpu.memory_space<vmem>>, %arg1: memref<8x3712xbf16, #tpu.memory_space<vmem>>, %arg2: memref<1x10752xf32, #tpu.memory_space<vmem>>, %arg3: memref<2x3712x64xbf16, #tpu.memory_space<vmem>>, %arg4: memref<4x64x128xbf16, #tpu.memory_space<vmem>>, %arg5: memref<5x128x128xbf16, #tpu.memory_space<vmem>>, %arg6: memref<4x128x256xbf16, #tpu.memory_space<vmem>>, %arg7: memref<9x256x256xbf16, #tpu.memory_space<vmem>>, %arg8: memref<2x512x512xbf16, #tpu.memory_space<vmem>>, %arg9: memref<2x512x256xbf16, #tpu.memory_space<vmem>>, %arg10: memref<2x256x128xbf16, #tpu.memory_space<vmem>>, %arg11: memref<8x1xf32, #tpu.memory_space<vmem>>) attributes {dimension_semantics = [], scalar_prefetch = 0 : i64, scratch_operands = 0 : i64, tpu.core_type = #tpu.core_type<tc>} {
    %c0 = arith.constant 0 : index
    %c0_0 = arith.constant 0 : index
    %0 = vector.load %arg0[%c0, %c0_0] : memref<8x3712xbf16, #tpu.memory_space<vmem>>, vector<8x3712xbf16>
    %c0_1 = arith.constant 0 : index
    %c0_2 = arith.constant 0 : index
    %c0_3 = arith.constant 0 : index
    %1 = vector.load %arg3[%c0_1, %c0_2, %c0_3] : memref<2x3712x64xbf16, #tpu.memory_space<vmem>>, vector<1x3712x64xbf16>
    %2 = vector.shape_cast %1 : vector<1x3712x64xbf16> to vector<3712x64xbf16>
    %cst = arith.constant dense<0.000000e+00> : vector<8x64xf32>
    %3 = tpu.matmul %0, %2, %cst {dimension_numbers = #tpu.dot_dimension_numbers<[1], [0], [0], [1], [0, 0, 1, 1], [], []>} : vector<8x3712xbf16>, vector<3712x64xbf16>, vector<8x64xf32> -> vector<8x64xf32>
    %c0_4 = arith.constant 0 : index
    %c0_5 = arith.constant 0 : index
    %4 = vector.load %arg2[%c0_4, %c0_5] : memref<1x10752xf32, #tpu.memory_space<vmem>>, vector<1x64xf32>
    %5 = vector.broadcast %4 : vector<1x64xf32> to vector<8x64xf32>
    %6 = arith.addf %3, %5 : vector<8x64xf32>
    %c0_6 = arith.constant 0 : index
    %c0_7 = arith.constant 0 : index
    %7 = vector.load %arg1[%c0_6, %c0_7] : memref<8x3712xbf16, #tpu.memory_space<vmem>>, vector<8x3712xbf16>
    %c1 = arith.constant 1 : index
    %c0_8 = arith.constant 0 : index
    %c0_9 = arith.constant 0 : index
    %8 = vector.load %arg3[%c1, %c0_8, %c0_9] : memref<2x3712x64xbf16, #tpu.memory_space<vmem>>, vector<1x3712x64xbf16>
    %9 = vector.shape_cast %8 : vector<1x3712x64xbf16> to vector<3712x64xbf16>
    %cst_10 = arith.constant dense<0.000000e+00> : vector<8x64xf32>
    %10 = tpu.matmul %7, %9, %cst_10 {dimension_numbers = #tpu.dot_dimension_numbers<[1], [0], [0], [1], [0, 0, 1, 1], [], []>} : vector<8x3712xbf16>, vector<3712x64xbf16>, vector<8x64xf32> -> vector<8x64xf32>
    %c0_11 = arith.constant 0 : index
    %c128 = arith.constant 128 : index
    %11 = vector.load %arg2[%c0_11, %c128] : memref<1x10752xf32, #tpu.memory_space<vmem>>, vector<1x64xf32>
    %12 = vector.broadcast %11 : vector<1x64xf32> to vector<8x64xf32>
    %13 = arith.addf %10, %12 : vector<8x64xf32>
    %c2 = arith.constant 2 : index
    %c0_12 = arith.constant 0 : index
    %c0_13 = arith.constant 0 : index
    %14 = vector.load %arg4[%c2, %c0_12, %c0_13] : memref<4x64x128xbf16, #tpu.memory_space<vmem>>, vector<1x64x128xbf16>
    %15 = vector.shape_cast %14 : vector<1x64x128xbf16> to vector<64x128xbf16>
    %16 = arith.truncf %6 : vector<8x64xf32> to vector<8x64xbf16>
    %cst_14 = arith.constant dense<0.000000e+00> : vector<8x128xf32>
    %17 = tpu.matmul %16, %15, %cst_14 {dimension_numbers = #tpu.dot_dimension_numbers<[1], [0], [0], [1], [0, 0, 1, 1], [], []>} : vector<8x64xbf16>, vector<64x128xbf16>, vector<8x128xf32> -> vector<8x128xf32>
    %c3 = arith.constant 3 : index
    %c0_15 = arith.constant 0 : index
    %c0_16 = arith.constant 0 : index
    %18 = vector.load %arg4[%c3, %c0_15, %c0_16] : memref<4x64x128xbf16, #tpu.memory_space<vmem>>, vector<1x64x128xbf16>
    %19 = vector.shape_cast %18 : vector<1x64x128xbf16> to vector<64x128xbf16>
    %20 = arith.truncf %13 : vector<8x64xf32> to vector<8x64xbf16>
    %cst_17 = arith.constant dense<0.000000e+00> : vector<8x128xf32>
    %21 = tpu.matmul %20, %19, %cst_17 {dimension_numbers = #tpu.dot_dimension_numbers<[1], [0], [0], [1], [0, 0, 1, 1], [], []>} : vector<8x64xbf16>, vector<64x128xbf16>, vector<8x128xf32> -> vector<8x128xf32>
    %22 = tpu.concatenate %17, %21 in 1 : vector<8x128xf32>, vector<8x128xf32> -> vector<8x256xf32>
    %c0_18 = arith.constant 0 : index
    %c0_19 = arith.constant 0 : index
    %c0_20 = arith.constant 0 : index
    %23 = vector.load %arg4[%c0_18, %c0_19, %c0_20] : memref<4x64x128xbf16, #tpu.memory_space<vmem>>, vector<1x64x128xbf16>
    %24 = vector.shape_cast %23 : vector<1x64x128xbf16> to vector<64x128xbf16>
    %25 = arith.truncf %6 : vector<8x64xf32> to vector<8x64xbf16>
    %cst_21 = arith.constant dense<0.000000e+00> : vector<8x128xf32>
    %26 = tpu.matmul %25, %24, %cst_21 {dimension_numbers = #tpu.dot_dimension_numbers<[1], [0], [0], [1], [0, 0, 1, 1], [], []>} : vector<8x64xbf16>, vector<64x128xbf16>, vector<8x128xf32> -> vector<8x128xf32>
    %c1_22 = arith.constant 1 : index
    %c0_23 = arith.constant 0 : index
    %c0_24 = arith.constant 0 : index
    %27 = vector.load %arg4[%c1_22, %c0_23, %c0_24] : memref<4x64x128xbf16, #tpu.memory_space<vmem>>, vector<1x64x128xbf16>
    %28 = vector.shape_cast %27 : vector<1x64x128xbf16> to vector<64x128xbf16>
    %29 = arith.truncf %13 : vector<8x64xf32> to vector<8x64xbf16>
    %cst_25 = arith.constant dense<0.000000e+00> : vector<8x128xf32>
    %30 = tpu.matmul %29, %28, %cst_25 {dimension_numbers = #tpu.dot_dimension_numbers<[1], [0], [0], [1], [0, 0, 1, 1], [], []>} : vector<8x64xbf16>, vector<64x128xbf16>, vector<8x128xf32> -> vector<8x128xf32>
    %31 = tpu.concatenate %26, %30 in 1 : vector<8x128xf32>, vector<8x128xf32> -> vector<8x256xf32>
    %cst_26 = arith.constant dense<0.000000e+00> : vector<256xf32>
    %32 = vector.multi_reduction <add>, %31, %cst_26 [0] : vector<8x256xf32> to vector<256xf32>
    %33 = vector.shape_cast %32 : vector<256xf32> to vector<1x256xf32>
    %34 = arith.mulf %31, %31 : vector<8x256xf32>
    %cst_27 = arith.constant dense<0.000000e+00> : vector<256xf32>
    %35 = vector.multi_reduction <add>, %34, %cst_27 [0] : vector<8x256xf32> to vector<256xf32>
    %36 = vector.shape_cast %35 : vector<256xf32> to vector<1x256xf32>
    %cst_28 = arith.constant 1.250000e-01 : f32
    %37 = vector.broadcast %cst_28 : f32 to vector<1x256xf32>
    %38 = arith.mulf %33, %37 : vector<1x256xf32>
    %cst_29 = arith.constant 1.250000e-01 : f32
    %39 = vector.broadcast %cst_29 : f32 to vector<1x256xf32>
    %40 = arith.mulf %36, %39 : vector<1x256xf32>
    %41 = arith.mulf %38, %38 : vector<1x256xf32>
    %42 = arith.subf %40, %41 : vector<1x256xf32>
    %cst_30 = arith.constant 0.000000e+00 : f32
    %43 = vector.broadcast %cst_30 : f32 to vector<1x256xf32>
    %44 = arith.maximumf %42, %43 : vector<1x256xf32>
    %45 = vector.broadcast %38 : vector<1x256xf32> to vector<8x256xf32>
    %46 = arith.subf %31, %45 : vector<8x256xf32>
    %cst_31 = arith.constant 9.99999974E-6 : f32
    %47 = vector.broadcast %cst_31 : f32 to vector<1x256xf32>
    %48 = arith.addf %44, %47 : vector<1x256xf32>
    %49 = math.rsqrt %48 : vector<1x256xf32>
    %50 = vector.broadcast %49 : vector<1x256xf32> to vector<8x256xf32>
    %51 = arith.mulf %46, %50 : vector<8x256xf32>
    %c0_32 = arith.constant 0 : index
    %c256 = arith.constant 256 : index
    %52 = vector.load %arg2[%c0_32, %c256] : memref<1x10752xf32, #tpu.memory_space<vmem>>, vector<1x256xf32>
    %53 = vector.broadcast %52 : vector<1x256xf32> to vector<8x256xf32>
    %54 = arith.mulf %51, %53 : vector<8x256xf32>
    %c0_33 = arith.constant 0 : index
    %c512 = arith.constant 512 : index
    %55 = vector.load %arg2[%c0_33, %c512] : memref<1x10752xf32, #tpu.memory_space<vmem>>, vector<1x256xf32>
    %56 = vector.broadcast %55 : vector<1x256xf32> to vector<8x256xf32>
    %57 = arith.addf %54, %56 : vector<8x256xf32>
    %cst_34 = arith.constant 0.000000e+00 : f32
    %58 = vector.broadcast %cst_34 : f32 to vector<8x256xf32>
    %59 = arith.maximumf %57, %58 : vector<8x256xf32>
    %60 = vector.extract_strided_slice %59 {offsets = [0, 0], sizes = [8, 128], strides = [1, 1]} : vector<8x256xf32> to vector<8x128xf32>
    %c0_35 = arith.constant 0 : index
    %c0_36 = arith.constant 0 : index
    %c0_37 = arith.constant 0 : index
    %61 = vector.load %arg5[%c0_35, %c0_36, %c0_37] : memref<5x128x128xbf16, #tpu.memory_space<vmem>>, vector<1x128x128xbf16>
    %62 = vector.shape_cast %61 : vector<1x128x128xbf16> to vector<128x128xbf16>
    %63 = arith.truncf %60 : vector<8x128xf32> to vector<8x128xbf16>
    %cst_38 = arith.constant dense<0.000000e+00> : vector<8x128xf32>
    %64 = tpu.matmul %63, %62, %cst_38 {dimension_numbers = #tpu.dot_dimension_numbers<[1], [0], [0], [1], [0, 0, 1, 1], [], []>} : vector<8x128xbf16>, vector<128x128xbf16>, vector<8x128xf32> -> vector<8x128xf32>
    %65 = vector.extract_strided_slice %59 {offsets = [0, 128], sizes = [8, 128], strides = [1, 1]} : vector<8x256xf32> to vector<8x128xf32>
    %c1_39 = arith.constant 1 : index
    %c0_40 = arith.constant 0 : index
    %c0_41 = arith.constant 0 : index
    %66 = vector.load %arg5[%c1_39, %c0_40, %c0_41] : memref<5x128x128xbf16, #tpu.memory_space<vmem>>, vector<1x128x128xbf16>
    %67 = vector.shape_cast %66 : vector<1x128x128xbf16> to vector<128x128xbf16>
    %68 = arith.truncf %65 : vector<8x128xf32> to vector<8x128xbf16>
    %cst_42 = arith.constant dense<0.000000e+00> : vector<8x128xf32>
    %69 = tpu.matmul %68, %67, %cst_42 {dimension_numbers = #tpu.dot_dimension_numbers<[1], [0], [0], [1], [0, 0, 1, 1], [], []>} : vector<8x128xbf16>, vector<128x128xbf16>, vector<8x128xf32> -> vector<8x128xf32>
    %70 = tpu.concatenate %64, %69 in 1 : vector<8x128xf32>, vector<8x128xf32> -> vector<8x256xf32>
    %cst_43 = arith.constant dense<0.000000e+00> : vector<256xf32>
    %71 = vector.multi_reduction <add>, %70, %cst_43 [0] : vector<8x256xf32> to vector<256xf32>
    %72 = vector.shape_cast %71 : vector<256xf32> to vector<1x256xf32>
    %73 = arith.mulf %70, %70 : vector<8x256xf32>
    %cst_44 = arith.constant dense<0.000000e+00> : vector<256xf32>
    %74 = vector.multi_reduction <add>, %73, %cst_44 [0] : vector<8x256xf32> to vector<256xf32>
    %75 = vector.shape_cast %74 : vector<256xf32> to vector<1x256xf32>
    %cst_45 = arith.constant 1.250000e-01 : f32
    %76 = vector.broadcast %cst_45 : f32 to vector<1x256xf32>
    %77 = arith.mulf %72, %76 : vector<1x256xf32>
    %cst_46 = arith.constant 1.250000e-01 : f32
    %78 = vector.broadcast %cst_46 : f32 to vector<1x256xf32>
    %79 = arith.mulf %75, %78 : vector<1x256xf32>
    %80 = arith.mulf %77, %77 : vector<1x256xf32>
    %81 = arith.subf %79, %80 : vector<1x256xf32>
    %cst_47 = arith.constant 0.000000e+00 : f32
    %82 = vector.broadcast %cst_47 : f32 to vector<1x256xf32>
    %83 = arith.maximumf %81, %82 : vector<1x256xf32>
    %84 = vector.broadcast %77 : vector<1x256xf32> to vector<8x256xf32>
    %85 = arith.subf %70, %84 : vector<8x256xf32>
    %cst_48 = arith.constant 9.99999974E-6 : f32
    %86 = vector.broadcast %cst_48 : f32 to vector<1x256xf32>
    %87 = arith.addf %83, %86 : vector<1x256xf32>
    %88 = math.rsqrt %87 : vector<1x256xf32>
    %89 = vector.broadcast %88 : vector<1x256xf32> to vector<8x256xf32>
    %90 = arith.mulf %85, %89 : vector<8x256xf32>
    %c0_49 = arith.constant 0 : index
    %c768 = arith.constant 768 : index
    %91 = vector.load %arg2[%c0_49, %c768] : memref<1x10752xf32, #tpu.memory_space<vmem>>, vector<1x256xf32>
    %92 = vector.broadcast %91 : vector<1x256xf32> to vector<8x256xf32>
    %93 = arith.mulf %90, %92 : vector<8x256xf32>
    %c0_50 = arith.constant 0 : index
    %c1024 = arith.constant 1024 : index
    %94 = vector.load %arg2[%c0_50, %c1024] : memref<1x10752xf32, #tpu.memory_space<vmem>>, vector<1x256xf32>
    %95 = vector.broadcast %94 : vector<1x256xf32> to vector<8x256xf32>
    %96 = arith.addf %93, %95 : vector<8x256xf32>
    %97 = arith.addf %96, %22 : vector<8x256xf32>
    %cst_51 = arith.constant 0.000000e+00 : f32
    %98 = vector.broadcast %cst_51 : f32 to vector<8x256xf32>
    %99 = arith.maximumf %97, %98 : vector<8x256xf32>
    %100 = vector.extract_strided_slice %99 {offsets = [0, 0], sizes = [8, 128], strides = [1, 1]} : vector<8x256xf32> to vector<8x128xf32>
    %101 = vector.extract_strided_slice %99 {offsets = [0, 128], sizes = [8, 128], strides = [1, 1]} : vector<8x256xf32> to vector<8x128xf32>
    %c2_52 = arith.constant 2 : index
    %c0_53 = arith.constant 0 : index
    %c0_54 = arith.constant 0 : index
    %102 = vector.load %arg6[%c2_52, %c0_53, %c0_54] : memref<4x128x256xbf16, #tpu.memory_space<vmem>>, vector<1x128x256xbf16>
    %103 = vector.shape_cast %102 : vector<1x128x256xbf16> to vector<128x256xbf16>
    %104 = arith.truncf %100 : vector<8x128xf32> to vector<8x128xbf16>
    %cst_55 = arith.constant dense<0.000000e+00> : vector<8x256xf32>
    %105 = tpu.matmul %104, %103, %cst_55 {dimension_numbers = #tpu.dot_dimension_numbers<[1], [0], [0], [1], [0, 0, 1, 1], [], []>} : vector<8x128xbf16>, vector<128x256xbf16>, vector<8x256xf32> -> vector<8x256xf32>
    %c3_56 = arith.constant 3 : index
    %c0_57 = arith.constant 0 : index
    %c0_58 = arith.constant 0 : index
    %106 = vector.load %arg6[%c3_56, %c0_57, %c0_58] : memref<4x128x256xbf16, #tpu.memory_space<vmem>>, vector<1x128x256xbf16>
    %107 = vector.shape_cast %106 : vector<1x128x256xbf16> to vector<128x256xbf16>
    %108 = arith.truncf %101 : vector<8x128xf32> to vector<8x128xbf16>
    %cst_59 = arith.constant dense<0.000000e+00> : vector<8x256xf32>
    %109 = tpu.matmul %108, %107, %cst_59 {dimension_numbers = #tpu.dot_dimension_numbers<[1], [0], [0], [1], [0, 0, 1, 1], [], []>} : vector<8x128xbf16>, vector<128x256xbf16>, vector<8x256xf32> -> vector<8x256xf32>
    %110 = tpu.concatenate %105, %109 in 1 : vector<8x256xf32>, vector<8x256xf32> -> vector<8x512xf32>
    %c0_60 = arith.constant 0 : index
    %c0_61 = arith.constant 0 : index
    %c0_62 = arith.constant 0 : index
    %111 = vector.load %arg6[%c0_60, %c0_61, %c0_62] : memref<4x128x256xbf16, #tpu.memory_space<vmem>>, vector<1x128x256xbf16>
    %112 = vector.shape_cast %111 : vector<1x128x256xbf16> to vector<128x256xbf16>
    %113 = arith.truncf %100 : vector<8x128xf32> to vector<8x128xbf16>
    %cst_63 = arith.constant dense<0.000000e+00> : vector<8x256xf32>
    %114 = tpu.matmul %113, %112, %cst_63 {dimension_numbers = #tpu.dot_dimension_numbers<[1], [0], [0], [1], [0, 0, 1, 1], [], []>} : vector<8x128xbf16>, vector<128x256xbf16>, vector<8x256xf32> -> vector<8x256xf32>
    %c1_64 = arith.constant 1 : index
    %c0_65 = arith.constant 0 : index
    %c0_66 = arith.constant 0 : index
    %115 = vector.load %arg6[%c1_64, %c0_65, %c0_66] : memref<4x128x256xbf16, #tpu.memory_space<vmem>>, vector<1x128x256xbf16>
    %116 = vector.shape_cast %115 : vector<1x128x256xbf16> to vector<128x256xbf16>
    %117 = arith.truncf %101 : vector<8x128xf32> to vector<8x128xbf16>
    %cst_67 = arith.constant dense<0.000000e+00> : vector<8x256xf32>
    %118 = tpu.matmul %117, %116, %cst_67 {dimension_numbers = #tpu.dot_dimension_numbers<[1], [0], [0], [1], [0, 0, 1, 1], [], []>} : vector<8x128xbf16>, vector<128x256xbf16>, vector<8x256xf32> -> vector<8x256xf32>
    %119 = tpu.concatenate %114, %118 in 1 : vector<8x256xf32>, vector<8x256xf32> -> vector<8x512xf32>
    %cst_68 = arith.constant dense<0.000000e+00> : vector<512xf32>
    %120 = vector.multi_reduction <add>, %119, %cst_68 [0] : vector<8x512xf32> to vector<512xf32>
    %121 = vector.shape_cast %120 : vector<512xf32> to vector<1x512xf32>
    %122 = arith.mulf %119, %119 : vector<8x512xf32>
    %cst_69 = arith.constant dense<0.000000e+00> : vector<512xf32>
    %123 = vector.multi_reduction <add>, %122, %cst_69 [0] : vector<8x512xf32> to vector<512xf32>
    %124 = vector.shape_cast %123 : vector<512xf32> to vector<1x512xf32>
    %cst_70 = arith.constant 1.250000e-01 : f32
    %125 = vector.broadcast %cst_70 : f32 to vector<1x512xf32>
    %126 = arith.mulf %121, %125 : vector<1x512xf32>
    %cst_71 = arith.constant 1.250000e-01 : f32
    %127 = vector.broadcast %cst_71 : f32 to vector<1x512xf32>
    %128 = arith.mulf %124, %127 : vector<1x512xf32>
    %129 = arith.mulf %126, %126 : vector<1x512xf32>
    %130 = arith.subf %128, %129 : vector<1x512xf32>
    %cst_72 = arith.constant 0.000000e+00 : f32
    %131 = vector.broadcast %cst_72 : f32 to vector<1x512xf32>
    %132 = arith.maximumf %130, %131 : vector<1x512xf32>
    %133 = vector.broadcast %126 : vector<1x512xf32> to vector<8x512xf32>
    %134 = arith.subf %119, %133 : vector<8x512xf32>
    %cst_73 = arith.constant 9.99999974E-6 : f32
    %135 = vector.broadcast %cst_73 : f32 to vector<1x512xf32>
    %136 = arith.addf %132, %135 : vector<1x512xf32>
    %137 = math.rsqrt %136 : vector<1x512xf32>
    %138 = vector.broadcast %137 : vector<1x512xf32> to vector<8x512xf32>
    %139 = arith.mulf %134, %138 : vector<8x512xf32>
    %c0_74 = arith.constant 0 : index
    %c1280 = arith.constant 1280 : index
    %140 = vector.load %arg2[%c0_74, %c1280] : memref<1x10752xf32, #tpu.memory_space<vmem>>, vector<1x512xf32>
    %141 = vector.broadcast %140 : vector<1x512xf32> to vector<8x512xf32>
    %142 = arith.mulf %139, %141 : vector<8x512xf32>
    %c0_75 = arith.constant 0 : index
    %c1792 = arith.constant 1792 : index
    %143 = vector.load %arg2[%c0_75, %c1792] : memref<1x10752xf32, #tpu.memory_space<vmem>>, vector<1x512xf32>
    %144 = vector.broadcast %143 : vector<1x512xf32> to vector<8x512xf32>
    %145 = arith.addf %142, %144 : vector<8x512xf32>
    %cst_76 = arith.constant 0.000000e+00 : f32
    %146 = vector.broadcast %cst_76 : f32 to vector<8x512xf32>
    %147 = arith.maximumf %145, %146 : vector<8x512xf32>
    %148 = vector.extract_strided_slice %147 {offsets = [0, 0], sizes = [8, 256], strides = [1, 1]} : vector<8x512xf32> to vector<8x256xf32>
    %c0_77 = arith.constant 0 : index
    %c0_78 = arith.constant 0 : index
    %c0_79 = arith.constant 0 : index
    %149 = vector.load %arg7[%c0_77, %c0_78, %c0_79] : memref<9x256x256xbf16, #tpu.memory_space<vmem>>, vector<1x256x256xbf16>
    %150 = vector.shape_cast %149 : vector<1x256x256xbf16> to vector<256x256xbf16>
    %151 = arith.truncf %148 : vector<8x256xf32> to vector<8x256xbf16>
    %cst_80 = arith.constant dense<0.000000e+00> : vector<8x256xf32>
    %152 = tpu.matmul %151, %150, %cst_80 {dimension_numbers = #tpu.dot_dimension_numbers<[1], [0], [0], [1], [0, 0, 1, 1], [], []>} : vector<8x256xbf16>, vector<256x256xbf16>, vector<8x256xf32> -> vector<8x256xf32>
    %153 = vector.extract_strided_slice %147 {offsets = [0, 256], sizes = [8, 256], strides = [1, 1]} : vector<8x512xf32> to vector<8x256xf32>
    %c1_81 = arith.constant 1 : index
    %c0_82 = arith.constant 0 : index
    %c0_83 = arith.constant 0 : index
    %154 = vector.load %arg7[%c1_81, %c0_82, %c0_83] : memref<9x256x256xbf16, #tpu.memory_space<vmem>>, vector<1x256x256xbf16>
    %155 = vector.shape_cast %154 : vector<1x256x256xbf16> to vector<256x256xbf16>
    %156 = arith.truncf %153 : vector<8x256xf32> to vector<8x256xbf16>
    %cst_84 = arith.constant dense<0.000000e+00> : vector<8x256xf32>
    %157 = tpu.matmul %156, %155, %cst_84 {dimension_numbers = #tpu.dot_dimension_numbers<[1], [0], [0], [1], [0, 0, 1, 1], [], []>} : vector<8x256xbf16>, vector<256x256xbf16>, vector<8x256xf32> -> vector<8x256xf32>
    %158 = tpu.concatenate %152, %157 in 1 : vector<8x256xf32>, vector<8x256xf32> -> vector<8x512xf32>
    %cst_85 = arith.constant dense<0.000000e+00> : vector<512xf32>
    %159 = vector.multi_reduction <add>, %158, %cst_85 [0] : vector<8x512xf32> to vector<512xf32>
    %160 = vector.shape_cast %159 : vector<512xf32> to vector<1x512xf32>
    %161 = arith.mulf %158, %158 : vector<8x512xf32>
    %cst_86 = arith.constant dense<0.000000e+00> : vector<512xf32>
    %162 = vector.multi_reduction <add>, %161, %cst_86 [0] : vector<8x512xf32> to vector<512xf32>
    %163 = vector.shape_cast %162 : vector<512xf32> to vector<1x512xf32>
    %cst_87 = arith.constant 1.250000e-01 : f32
    %164 = vector.broadcast %cst_87 : f32 to vector<1x512xf32>
    %165 = arith.mulf %160, %164 : vector<1x512xf32>
    %cst_88 = arith.constant 1.250000e-01 : f32
    %166 = vector.broadcast %cst_88 : f32 to vector<1x512xf32>
    %167 = arith.mulf %163, %166 : vector<1x512xf32>
    %168 = arith.mulf %165, %165 : vector<1x512xf32>
    %169 = arith.subf %167, %168 : vector<1x512xf32>
    %cst_89 = arith.constant 0.000000e+00 : f32
    %170 = vector.broadcast %cst_89 : f32 to vector<1x512xf32>
    %171 = arith.maximumf %169, %170 : vector<1x512xf32>
    %172 = vector.broadcast %165 : vector<1x512xf32> to vector<8x512xf32>
    %173 = arith.subf %158, %172 : vector<8x512xf32>
    %cst_90 = arith.constant 9.99999974E-6 : f32
    %174 = vector.broadcast %cst_90 : f32 to vector<1x512xf32>
    %175 = arith.addf %171, %174 : vector<1x512xf32>
    %176 = math.rsqrt %175 : vector<1x512xf32>
    %177 = vector.broadcast %176 : vector<1x512xf32> to vector<8x512xf32>
    %178 = arith.mulf %173, %177 : vector<8x512xf32>
    %c0_91 = arith.constant 0 : index
    %c2304 = arith.constant 2304 : index
    %179 = vector.load %arg2[%c0_91, %c2304] : memref<1x10752xf32, #tpu.memory_space<vmem>>, vector<1x512xf32>
    %180 = vector.broadcast %179 : vector<1x512xf32> to vector<8x512xf32>
    %181 = arith.mulf %178, %180 : vector<8x512xf32>
    %c0_92 = arith.constant 0 : index
    %c2816 = arith.constant 2816 : index
    %182 = vector.load %arg2[%c0_92, %c2816] : memref<1x10752xf32, #tpu.memory_space<vmem>>, vector<1x512xf32>
    %183 = vector.broadcast %182 : vector<1x512xf32> to vector<8x512xf32>
    %184 = arith.addf %181, %183 : vector<8x512xf32>
    %185 = arith.addf %184, %110 : vector<8x512xf32>
    %cst_93 = arith.constant 0.000000e+00 : f32
    %186 = vector.broadcast %cst_93 : f32 to vector<8x512xf32>
    %187 = arith.maximumf %185, %186 : vector<8x512xf32>
    %188 = vector.extract_strided_slice %187 {offsets = [0, 0], sizes = [8, 256], strides = [1, 1]} : vector<8x512xf32> to vector<8x256xf32>
    %189 = vector.extract_strided_slice %187 {offsets = [0, 256], sizes = [8, 256], strides = [1, 1]} : vector<8x512xf32> to vector<8x256xf32>
    %c2_94 = arith.constant 2 : index
    %c0_95 = arith.constant 0 : index
    %c0_96 = arith.constant 0 : index
    %190 = vector.load %arg7[%c2_94, %c0_95, %c0_96] : memref<9x256x256xbf16, #tpu.memory_space<vmem>>, vector<1x256x256xbf16>
    %191 = vector.shape_cast %190 : vector<1x256x256xbf16> to vector<256x256xbf16>
    %192 = arith.truncf %188 : vector<8x256xf32> to vector<8x256xbf16>
    %cst_97 = arith.constant dense<0.000000e+00> : vector<8x256xf32>
    %193 = tpu.matmul %192, %191, %cst_97 {dimension_numbers = #tpu.dot_dimension_numbers<[1], [0], [0], [1], [0, 0, 1, 1], [], []>} : vector<8x256xbf16>, vector<256x256xbf16>, vector<8x256xf32> -> vector<8x256xf32>
    %c3_98 = arith.constant 3 : index
    %c0_99 = arith.constant 0 : index
    %c0_100 = arith.constant 0 : index
    %194 = vector.load %arg7[%c3_98, %c0_99, %c0_100] : memref<9x256x256xbf16, #tpu.memory_space<vmem>>, vector<1x256x256xbf16>
    %195 = vector.shape_cast %194 : vector<1x256x256xbf16> to vector<256x256xbf16>
    %196 = arith.truncf %189 : vector<8x256xf32> to vector<8x256xbf16>
    %cst_101 = arith.constant dense<0.000000e+00> : vector<8x256xf32>
    %197 = tpu.matmul %196, %195, %cst_101 {dimension_numbers = #tpu.dot_dimension_numbers<[1], [0], [0], [1], [0, 0, 1, 1], [], []>} : vector<8x256xbf16>, vector<256x256xbf16>, vector<8x256xf32> -> vector<8x256xf32>
    %198 = tpu.concatenate %193, %197 in 1 : vector<8x256xf32>, vector<8x256xf32> -> vector<8x512xf32>
    %cst_102 = arith.constant dense<0.000000e+00> : vector<512xf32>
    %199 = vector.multi_reduction <add>, %198, %cst_102 [0] : vector<8x512xf32> to vector<512xf32>
    %200 = vector.shape_cast %199 : vector<512xf32> to vector<1x512xf32>
    %201 = arith.mulf %198, %198 : vector<8x512xf32>
    %cst_103 = arith.constant dense<0.000000e+00> : vector<512xf32>
    %202 = vector.multi_reduction <add>, %201, %cst_103 [0] : vector<8x512xf32> to vector<512xf32>
    %203 = vector.shape_cast %202 : vector<512xf32> to vector<1x512xf32>
    %cst_104 = arith.constant 1.250000e-01 : f32
    %204 = vector.broadcast %cst_104 : f32 to vector<1x512xf32>
    %205 = arith.mulf %200, %204 : vector<1x512xf32>
    %cst_105 = arith.constant 1.250000e-01 : f32
    %206 = vector.broadcast %cst_105 : f32 to vector<1x512xf32>
    %207 = arith.mulf %203, %206 : vector<1x512xf32>
    %208 = arith.mulf %205, %205 : vector<1x512xf32>
    %209 = arith.subf %207, %208 : vector<1x512xf32>
    %cst_106 = arith.constant 0.000000e+00 : f32
    %210 = vector.broadcast %cst_106 : f32 to vector<1x512xf32>
    %211 = arith.maximumf %209, %210 : vector<1x512xf32>
    %212 = vector.broadcast %205 : vector<1x512xf32> to vector<8x512xf32>
    %213 = arith.subf %198, %212 : vector<8x512xf32>
    %cst_107 = arith.constant 9.99999974E-6 : f32
    %214 = vector.broadcast %cst_107 : f32 to vector<1x512xf32>
    %215 = arith.addf %211, %214 : vector<1x512xf32>
    %216 = math.rsqrt %215 : vector<1x512xf32>
    %217 = vector.broadcast %216 : vector<1x512xf32> to vector<8x512xf32>
    %218 = arith.mulf %213, %217 : vector<8x512xf32>
    %c0_108 = arith.constant 0 : index
    %c3328 = arith.constant 3328 : index
    %219 = vector.load %arg2[%c0_108, %c3328] : memref<1x10752xf32, #tpu.memory_space<vmem>>, vector<1x512xf32>
    %220 = vector.broadcast %219 : vector<1x512xf32> to vector<8x512xf32>
    %221 = arith.mulf %218, %220 : vector<8x512xf32>
    %c0_109 = arith.constant 0 : index
    %c3840 = arith.constant 3840 : index
    %222 = vector.load %arg2[%c0_109, %c3840] : memref<1x10752xf32, #tpu.memory_space<vmem>>, vector<1x512xf32>
    %223 = vector.broadcast %222 : vector<1x512xf32> to vector<8x512xf32>
    %224 = arith.addf %221, %223 : vector<8x512xf32>
    %cst_110 = arith.constant 0.000000e+00 : f32
    %225 = vector.broadcast %cst_110 : f32 to vector<8x512xf32>
    %226 = arith.maximumf %224, %225 : vector<8x512xf32>
    %227 = vector.extract_strided_slice %226 {offsets = [0, 0], sizes = [8, 256], strides = [1, 1]} : vector<8x512xf32> to vector<8x256xf32>
    %c4 = arith.constant 4 : index
    %c0_111 = arith.constant 0 : index
    %c0_112 = arith.constant 0 : index
    %228 = vector.load %arg7[%c4, %c0_111, %c0_112] : memref<9x256x256xbf16, #tpu.memory_space<vmem>>, vector<1x256x256xbf16>
    %229 = vector.shape_cast %228 : vector<1x256x256xbf16> to vector<256x256xbf16>
    %230 = arith.truncf %227 : vector<8x256xf32> to vector<8x256xbf16>
    %cst_113 = arith.constant dense<0.000000e+00> : vector<8x256xf32>
    %231 = tpu.matmul %230, %229, %cst_113 {dimension_numbers = #tpu.dot_dimension_numbers<[1], [0], [0], [1], [0, 0, 1, 1], [], []>} : vector<8x256xbf16>, vector<256x256xbf16>, vector<8x256xf32> -> vector<8x256xf32>
    %232 = vector.extract_strided_slice %226 {offsets = [0, 256], sizes = [8, 256], strides = [1, 1]} : vector<8x512xf32> to vector<8x256xf32>
    %c5 = arith.constant 5 : index
    %c0_114 = arith.constant 0 : index
    %c0_115 = arith.constant 0 : index
    %233 = vector.load %arg7[%c5, %c0_114, %c0_115] : memref<9x256x256xbf16, #tpu.memory_space<vmem>>, vector<1x256x256xbf16>
    %234 = vector.shape_cast %233 : vector<1x256x256xbf16> to vector<256x256xbf16>
    %235 = arith.truncf %232 : vector<8x256xf32> to vector<8x256xbf16>
    %cst_116 = arith.constant dense<0.000000e+00> : vector<8x256xf32>
    %236 = tpu.matmul %235, %234, %cst_116 {dimension_numbers = #tpu.dot_dimension_numbers<[1], [0], [0], [1], [0, 0, 1, 1], [], []>} : vector<8x256xbf16>, vector<256x256xbf16>, vector<8x256xf32> -> vector<8x256xf32>
    %237 = tpu.concatenate %231, %236 in 1 : vector<8x256xf32>, vector<8x256xf32> -> vector<8x512xf32>
    %cst_117 = arith.constant dense<0.000000e+00> : vector<512xf32>
    %238 = vector.multi_reduction <add>, %237, %cst_117 [0] : vector<8x512xf32> to vector<512xf32>
    %239 = vector.shape_cast %238 : vector<512xf32> to vector<1x512xf32>
    %240 = arith.mulf %237, %237 : vector<8x512xf32>
    %cst_118 = arith.constant dense<0.000000e+00> : vector<512xf32>
    %241 = vector.multi_reduction <add>, %240, %cst_118 [0] : vector<8x512xf32> to vector<512xf32>
    %242 = vector.shape_cast %241 : vector<512xf32> to vector<1x512xf32>
    %cst_119 = arith.constant 1.250000e-01 : f32
    %243 = vector.broadcast %cst_119 : f32 to vector<1x512xf32>
    %244 = arith.mulf %239, %243 : vector<1x512xf32>
    %cst_120 = arith.constant 1.250000e-01 : f32
    %245 = vector.broadcast %cst_120 : f32 to vector<1x512xf32>
    %246 = arith.mulf %242, %245 : vector<1x512xf32>
    %247 = arith.mulf %244, %244 : vector<1x512xf32>
    %248 = arith.subf %246, %247 : vector<1x512xf32>
    %cst_121 = arith.constant 0.000000e+00 : f32
    %249 = vector.broadcast %cst_121 : f32 to vector<1x512xf32>
    %250 = arith.maximumf %248, %249 : vector<1x512xf32>
    %251 = vector.broadcast %244 : vector<1x512xf32> to vector<8x512xf32>
    %252 = arith.subf %237, %251 : vector<8x512xf32>
    %cst_122 = arith.constant 9.99999974E-6 : f32
    %253 = vector.broadcast %cst_122 : f32 to vector<1x512xf32>
    %254 = arith.addf %250, %253 : vector<1x512xf32>
    %255 = math.rsqrt %254 : vector<1x512xf32>
    %256 = vector.broadcast %255 : vector<1x512xf32> to vector<8x512xf32>
    %257 = arith.mulf %252, %256 : vector<8x512xf32>
    %c0_123 = arith.constant 0 : index
    %c4352 = arith.constant 4352 : index
    %258 = vector.load %arg2[%c0_123, %c4352] : memref<1x10752xf32, #tpu.memory_space<vmem>>, vector<1x512xf32>
    %259 = vector.broadcast %258 : vector<1x512xf32> to vector<8x512xf32>
    %260 = arith.mulf %257, %259 : vector<8x512xf32>
    %c0_124 = arith.constant 0 : index
    %c4864 = arith.constant 4864 : index
    %261 = vector.load %arg2[%c0_124, %c4864] : memref<1x10752xf32, #tpu.memory_space<vmem>>, vector<1x512xf32>
    %262 = vector.broadcast %261 : vector<1x512xf32> to vector<8x512xf32>
    %263 = arith.addf %260, %262 : vector<8x512xf32>
    %264 = arith.addf %263, %187 : vector<8x512xf32>
    %cst_125 = arith.constant 0.000000e+00 : f32
    %265 = vector.broadcast %cst_125 : f32 to vector<8x512xf32>
    %266 = arith.maximumf %264, %265 : vector<8x512xf32>
    %c0_126 = arith.constant 0 : index
    %c0_127 = arith.constant 0 : index
    %c0_128 = arith.constant 0 : index
    %267 = vector.load %arg8[%c0_126, %c0_127, %c0_128] : memref<2x512x512xbf16, #tpu.memory_space<vmem>>, vector<1x512x512xbf16>
    %268 = vector.shape_cast %267 : vector<1x512x512xbf16> to vector<512x512xbf16>
    %269 = arith.truncf %266 : vector<8x512xf32> to vector<8x512xbf16>
    %cst_129 = arith.constant dense<0.000000e+00> : vector<8x512xf32>
    %270 = tpu.matmul %269, %268, %cst_129 {dimension_numbers = #tpu.dot_dimension_numbers<[1], [0], [0], [1], [0, 0, 1, 1], [], []>} : vector<8x512xbf16>, vector<512x512xbf16>, vector<8x512xf32> -> vector<8x512xf32>
    %cst_130 = arith.constant dense<0.000000e+00> : vector<512xf32>
    %271 = vector.multi_reduction <add>, %270, %cst_130 [0] : vector<8x512xf32> to vector<512xf32>
    %272 = vector.shape_cast %271 : vector<512xf32> to vector<1x512xf32>
    %273 = arith.mulf %270, %270 : vector<8x512xf32>
    %cst_131 = arith.constant dense<0.000000e+00> : vector<512xf32>
    %274 = vector.multi_reduction <add>, %273, %cst_131 [0] : vector<8x512xf32> to vector<512xf32>
    %275 = vector.shape_cast %274 : vector<512xf32> to vector<1x512xf32>
    %cst_132 = arith.constant 1.250000e-01 : f32
    %276 = vector.broadcast %cst_132 : f32 to vector<1x512xf32>
    %277 = arith.mulf %272, %276 : vector<1x512xf32>
    %cst_133 = arith.constant 1.250000e-01 : f32
    %278 = vector.broadcast %cst_133 : f32 to vector<1x512xf32>
    %279 = arith.mulf %275, %278 : vector<1x512xf32>
    %280 = arith.mulf %277, %277 : vector<1x512xf32>
    %281 = arith.subf %279, %280 : vector<1x512xf32>
    %cst_134 = arith.constant 0.000000e+00 : f32
    %282 = vector.broadcast %cst_134 : f32 to vector<1x512xf32>
    %283 = arith.maximumf %281, %282 : vector<1x512xf32>
    %284 = vector.broadcast %277 : vector<1x512xf32> to vector<8x512xf32>
    %285 = arith.subf %270, %284 : vector<8x512xf32>
    %cst_135 = arith.constant 9.99999974E-6 : f32
    %286 = vector.broadcast %cst_135 : f32 to vector<1x512xf32>
    %287 = arith.addf %283, %286 : vector<1x512xf32>
    %288 = math.rsqrt %287 : vector<1x512xf32>
    %289 = vector.broadcast %288 : vector<1x512xf32> to vector<8x512xf32>
    %290 = arith.mulf %285, %289 : vector<8x512xf32>
    %c0_136 = arith.constant 0 : index
    %c5376 = arith.constant 5376 : index
    %291 = vector.load %arg2[%c0_136, %c5376] : memref<1x10752xf32, #tpu.memory_space<vmem>>, vector<1x512xf32>
    %292 = vector.broadcast %291 : vector<1x512xf32> to vector<8x512xf32>
    %293 = arith.mulf %290, %292 : vector<8x512xf32>
    %c0_137 = arith.constant 0 : index
    %c5888 = arith.constant 5888 : index
    %294 = vector.load %arg2[%c0_137, %c5888] : memref<1x10752xf32, #tpu.memory_space<vmem>>, vector<1x512xf32>
    %295 = vector.broadcast %294 : vector<1x512xf32> to vector<8x512xf32>
    %296 = arith.addf %293, %295 : vector<8x512xf32>
    %cst_138 = arith.constant 0.000000e+00 : f32
    %297 = vector.broadcast %cst_138 : f32 to vector<8x512xf32>
    %298 = arith.maximumf %296, %297 : vector<8x512xf32>
    %c1_139 = arith.constant 1 : index
    %c0_140 = arith.constant 0 : index
    %c0_141 = arith.constant 0 : index
    %299 = vector.load %arg8[%c1_139, %c0_140, %c0_141] : memref<2x512x512xbf16, #tpu.memory_space<vmem>>, vector<1x512x512xbf16>
    %300 = vector.shape_cast %299 : vector<1x512x512xbf16> to vector<512x512xbf16>
    %301 = arith.truncf %298 : vector<8x512xf32> to vector<8x512xbf16>
    %cst_142 = arith.constant dense<0.000000e+00> : vector<8x512xf32>
    %302 = tpu.matmul %301, %300, %cst_142 {dimension_numbers = #tpu.dot_dimension_numbers<[1], [0], [0], [1], [0, 0, 1, 1], [], []>} : vector<8x512xbf16>, vector<512x512xbf16>, vector<8x512xf32> -> vector<8x512xf32>
    %cst_143 = arith.constant dense<0.000000e+00> : vector<512xf32>
    %303 = vector.multi_reduction <add>, %302, %cst_143 [0] : vector<8x512xf32> to vector<512xf32>
    %304 = vector.shape_cast %303 : vector<512xf32> to vector<1x512xf32>
    %305 = arith.mulf %302, %302 : vector<8x512xf32>
    %cst_144 = arith.constant dense<0.000000e+00> : vector<512xf32>
    %306 = vector.multi_reduction <add>, %305, %cst_144 [0] : vector<8x512xf32> to vector<512xf32>
    %307 = vector.shape_cast %306 : vector<512xf32> to vector<1x512xf32>
    %cst_145 = arith.constant 1.250000e-01 : f32
    %308 = vector.broadcast %cst_145 : f32 to vector<1x512xf32>
    %309 = arith.mulf %304, %308 : vector<1x512xf32>
    %cst_146 = arith.constant 1.250000e-01 : f32
    %310 = vector.broadcast %cst_146 : f32 to vector<1x512xf32>
    %311 = arith.mulf %307, %310 : vector<1x512xf32>
    %312 = arith.mulf %309, %309 : vector<1x512xf32>
    %313 = arith.subf %311, %312 : vector<1x512xf32>
    %cst_147 = arith.constant 0.000000e+00 : f32
    %314 = vector.broadcast %cst_147 : f32 to vector<1x512xf32>
    %315 = arith.maximumf %313, %314 : vector<1x512xf32>
    %316 = vector.broadcast %309 : vector<1x512xf32> to vector<8x512xf32>
    %317 = arith.subf %302, %316 : vector<8x512xf32>
    %cst_148 = arith.constant 9.99999974E-6 : f32
    %318 = vector.broadcast %cst_148 : f32 to vector<1x512xf32>
    %319 = arith.addf %315, %318 : vector<1x512xf32>
    %320 = math.rsqrt %319 : vector<1x512xf32>
    %321 = vector.broadcast %320 : vector<1x512xf32> to vector<8x512xf32>
    %322 = arith.mulf %317, %321 : vector<8x512xf32>
    %c0_149 = arith.constant 0 : index
    %c6400 = arith.constant 6400 : index
    %323 = vector.load %arg2[%c0_149, %c6400] : memref<1x10752xf32, #tpu.memory_space<vmem>>, vector<1x512xf32>
    %324 = vector.broadcast %323 : vector<1x512xf32> to vector<8x512xf32>
    %325 = arith.mulf %322, %324 : vector<8x512xf32>
    %c0_150 = arith.constant 0 : index
    %c6912 = arith.constant 6912 : index
    %326 = vector.load %arg2[%c0_150, %c6912] : memref<1x10752xf32, #tpu.memory_space<vmem>>, vector<1x512xf32>
    %327 = vector.broadcast %326 : vector<1x512xf32> to vector<8x512xf32>
    %328 = arith.addf %325, %327 : vector<8x512xf32>
    %329 = arith.addf %328, %266 : vector<8x512xf32>
    %cst_151 = arith.constant 0.000000e+00 : f32
    %330 = vector.broadcast %cst_151 : f32 to vector<8x512xf32>
    %331 = arith.maximumf %329, %330 : vector<8x512xf32>
    %c1_152 = arith.constant 1 : index
    %c0_153 = arith.constant 0 : index
    %c0_154 = arith.constant 0 : index
    %332 = vector.load %arg9[%c1_152, %c0_153, %c0_154] : memref<2x512x256xbf16, #tpu.memory_space<vmem>>, vector<1x512x256xbf16>
    %333 = vector.shape_cast %332 : vector<1x512x256xbf16> to vector<512x256xbf16>
    %334 = arith.truncf %331 : vector<8x512xf32> to vector<8x512xbf16>
    %cst_155 = arith.constant dense<0.000000e+00> : vector<8x256xf32>
    %335 = tpu.matmul %334, %333, %cst_155 {dimension_numbers = #tpu.dot_dimension_numbers<[1], [0], [0], [1], [0, 0, 1, 1], [], []>} : vector<8x512xbf16>, vector<512x256xbf16>, vector<8x256xf32> -> vector<8x256xf32>
    %c0_156 = arith.constant 0 : index
    %c0_157 = arith.constant 0 : index
    %c0_158 = arith.constant 0 : index
    %336 = vector.load %arg9[%c0_156, %c0_157, %c0_158] : memref<2x512x256xbf16, #tpu.memory_space<vmem>>, vector<1x512x256xbf16>
    %337 = vector.shape_cast %336 : vector<1x512x256xbf16> to vector<512x256xbf16>
    %338 = arith.truncf %331 : vector<8x512xf32> to vector<8x512xbf16>
    %cst_159 = arith.constant dense<0.000000e+00> : vector<8x256xf32>
    %339 = tpu.matmul %338, %337, %cst_159 {dimension_numbers = #tpu.dot_dimension_numbers<[1], [0], [0], [1], [0, 0, 1, 1], [], []>} : vector<8x512xbf16>, vector<512x256xbf16>, vector<8x256xf32> -> vector<8x256xf32>
    %cst_160 = arith.constant dense<0.000000e+00> : vector<256xf32>
    %340 = vector.multi_reduction <add>, %339, %cst_160 [0] : vector<8x256xf32> to vector<256xf32>
    %341 = vector.shape_cast %340 : vector<256xf32> to vector<1x256xf32>
    %342 = arith.mulf %339, %339 : vector<8x256xf32>
    %cst_161 = arith.constant dense<0.000000e+00> : vector<256xf32>
    %343 = vector.multi_reduction <add>, %342, %cst_161 [0] : vector<8x256xf32> to vector<256xf32>
    %344 = vector.shape_cast %343 : vector<256xf32> to vector<1x256xf32>
    %cst_162 = arith.constant 1.250000e-01 : f32
    %345 = vector.broadcast %cst_162 : f32 to vector<1x256xf32>
    %346 = arith.mulf %341, %345 : vector<1x256xf32>
    %cst_163 = arith.constant 1.250000e-01 : f32
    %347 = vector.broadcast %cst_163 : f32 to vector<1x256xf32>
    %348 = arith.mulf %344, %347 : vector<1x256xf32>
    %349 = arith.mulf %346, %346 : vector<1x256xf32>
    %350 = arith.subf %348, %349 : vector<1x256xf32>
    %cst_164 = arith.constant 0.000000e+00 : f32
    %351 = vector.broadcast %cst_164 : f32 to vector<1x256xf32>
    %352 = arith.maximumf %350, %351 : vector<1x256xf32>
    %353 = vector.broadcast %346 : vector<1x256xf32> to vector<8x256xf32>
    %354 = arith.subf %339, %353 : vector<8x256xf32>
    %cst_165 = arith.constant 9.99999974E-6 : f32
    %355 = vector.broadcast %cst_165 : f32 to vector<1x256xf32>
    %356 = arith.addf %352, %355 : vector<1x256xf32>
    %357 = math.rsqrt %356 : vector<1x256xf32>
    %358 = vector.broadcast %357 : vector<1x256xf32> to vector<8x256xf32>
    %359 = arith.mulf %354, %358 : vector<8x256xf32>
    %c0_166 = arith.constant 0 : index
    %c7424 = arith.constant 7424 : index
    %360 = vector.load %arg2[%c0_166, %c7424] : memref<1x10752xf32, #tpu.memory_space<vmem>>, vector<1x256xf32>
    %361 = vector.broadcast %360 : vector<1x256xf32> to vector<8x256xf32>
    %362 = arith.mulf %359, %361 : vector<8x256xf32>
    %c0_167 = arith.constant 0 : index
    %c7680 = arith.constant 7680 : index
    %363 = vector.load %arg2[%c0_167, %c7680] : memref<1x10752xf32, #tpu.memory_space<vmem>>, vector<1x256xf32>
    %364 = vector.broadcast %363 : vector<1x256xf32> to vector<8x256xf32>
    %365 = arith.addf %362, %364 : vector<8x256xf32>
    %cst_168 = arith.constant 0.000000e+00 : f32
    %366 = vector.broadcast %cst_168 : f32 to vector<8x256xf32>
    %367 = arith.maximumf %365, %366 : vector<8x256xf32>
    %c6 = arith.constant 6 : index
    %c0_169 = arith.constant 0 : index
    %c0_170 = arith.constant 0 : index
    %368 = vector.load %arg7[%c6, %c0_169, %c0_170] : memref<9x256x256xbf16, #tpu.memory_space<vmem>>, vector<1x256x256xbf16>
    %369 = vector.shape_cast %368 : vector<1x256x256xbf16> to vector<256x256xbf16>
    %370 = arith.truncf %367 : vector<8x256xf32> to vector<8x256xbf16>
    %cst_171 = arith.constant dense<0.000000e+00> : vector<8x256xf32>
    %371 = tpu.matmul %370, %369, %cst_171 {dimension_numbers = #tpu.dot_dimension_numbers<[1], [0], [0], [1], [0, 0, 1, 1], [], []>} : vector<8x256xbf16>, vector<256x256xbf16>, vector<8x256xf32> -> vector<8x256xf32>
    %cst_172 = arith.constant dense<0.000000e+00> : vector<256xf32>
    %372 = vector.multi_reduction <add>, %371, %cst_172 [0] : vector<8x256xf32> to vector<256xf32>
    %373 = vector.shape_cast %372 : vector<256xf32> to vector<1x256xf32>
    %374 = arith.mulf %371, %371 : vector<8x256xf32>
    %cst_173 = arith.constant dense<0.000000e+00> : vector<256xf32>
    %375 = vector.multi_reduction <add>, %374, %cst_173 [0] : vector<8x256xf32> to vector<256xf32>
    %376 = vector.shape_cast %375 : vector<256xf32> to vector<1x256xf32>
    %cst_174 = arith.constant 1.250000e-01 : f32
    %377 = vector.broadcast %cst_174 : f32 to vector<1x256xf32>
    %378 = arith.mulf %373, %377 : vector<1x256xf32>
    %cst_175 = arith.constant 1.250000e-01 : f32
    %379 = vector.broadcast %cst_175 : f32 to vector<1x256xf32>
    %380 = arith.mulf %376, %379 : vector<1x256xf32>
    %381 = arith.mulf %378, %378 : vector<1x256xf32>
    %382 = arith.subf %380, %381 : vector<1x256xf32>
    %cst_176 = arith.constant 0.000000e+00 : f32
    %383 = vector.broadcast %cst_176 : f32 to vector<1x256xf32>
    %384 = arith.maximumf %382, %383 : vector<1x256xf32>
    %385 = vector.broadcast %378 : vector<1x256xf32> to vector<8x256xf32>
    %386 = arith.subf %371, %385 : vector<8x256xf32>
    %cst_177 = arith.constant 9.99999974E-6 : f32
    %387 = vector.broadcast %cst_177 : f32 to vector<1x256xf32>
    %388 = arith.addf %384, %387 : vector<1x256xf32>
    %389 = math.rsqrt %388 : vector<1x256xf32>
    %390 = vector.broadcast %389 : vector<1x256xf32> to vector<8x256xf32>
    %391 = arith.mulf %386, %390 : vector<8x256xf32>
    %c0_178 = arith.constant 0 : index
    %c7936 = arith.constant 7936 : index
    %392 = vector.load %arg2[%c0_178, %c7936] : memref<1x10752xf32, #tpu.memory_space<vmem>>, vector<1x256xf32>
    %393 = vector.broadcast %392 : vector<1x256xf32> to vector<8x256xf32>
    %394 = arith.mulf %391, %393 : vector<8x256xf32>
    %c0_179 = arith.constant 0 : index
    %c8192 = arith.constant 8192 : index
    %395 = vector.load %arg2[%c0_179, %c8192] : memref<1x10752xf32, #tpu.memory_space<vmem>>, vector<1x256xf32>
    %396 = vector.broadcast %395 : vector<1x256xf32> to vector<8x256xf32>
    %397 = arith.addf %394, %396 : vector<8x256xf32>
    %398 = arith.addf %397, %335 : vector<8x256xf32>
    %cst_180 = arith.constant 0.000000e+00 : f32
    %399 = vector.broadcast %cst_180 : f32 to vector<8x256xf32>
    %400 = arith.maximumf %398, %399 : vector<8x256xf32>
    %c7 = arith.constant 7 : index
    %c0_181 = arith.constant 0 : index
    %c0_182 = arith.constant 0 : index
    %401 = vector.load %arg7[%c7, %c0_181, %c0_182] : memref<9x256x256xbf16, #tpu.memory_space<vmem>>, vector<1x256x256xbf16>
    %402 = vector.shape_cast %401 : vector<1x256x256xbf16> to vector<256x256xbf16>
    %403 = arith.truncf %400 : vector<8x256xf32> to vector<8x256xbf16>
    %cst_183 = arith.constant dense<0.000000e+00> : vector<8x256xf32>
    %404 = tpu.matmul %403, %402, %cst_183 {dimension_numbers = #tpu.dot_dimension_numbers<[1], [0], [0], [1], [0, 0, 1, 1], [], []>} : vector<8x256xbf16>, vector<256x256xbf16>, vector<8x256xf32> -> vector<8x256xf32>
    %cst_184 = arith.constant dense<0.000000e+00> : vector<256xf32>
    %405 = vector.multi_reduction <add>, %404, %cst_184 [0] : vector<8x256xf32> to vector<256xf32>
    %406 = vector.shape_cast %405 : vector<256xf32> to vector<1x256xf32>
    %407 = arith.mulf %404, %404 : vector<8x256xf32>
    %cst_185 = arith.constant dense<0.000000e+00> : vector<256xf32>
    %408 = vector.multi_reduction <add>, %407, %cst_185 [0] : vector<8x256xf32> to vector<256xf32>
    %409 = vector.shape_cast %408 : vector<256xf32> to vector<1x256xf32>
    %cst_186 = arith.constant 1.250000e-01 : f32
    %410 = vector.broadcast %cst_186 : f32 to vector<1x256xf32>
    %411 = arith.mulf %406, %410 : vector<1x256xf32>
    %cst_187 = arith.constant 1.250000e-01 : f32
    %412 = vector.broadcast %cst_187 : f32 to vector<1x256xf32>
    %413 = arith.mulf %409, %412 : vector<1x256xf32>
    %414 = arith.mulf %411, %411 : vector<1x256xf32>
    %415 = arith.subf %413, %414 : vector<1x256xf32>
    %cst_188 = arith.constant 0.000000e+00 : f32
    %416 = vector.broadcast %cst_188 : f32 to vector<1x256xf32>
    %417 = arith.maximumf %415, %416 : vector<1x256xf32>
    %418 = vector.broadcast %411 : vector<1x256xf32> to vector<8x256xf32>
    %419 = arith.subf %404, %418 : vector<8x256xf32>
    %cst_189 = arith.constant 9.99999974E-6 : f32
    %420 = vector.broadcast %cst_189 : f32 to vector<1x256xf32>
    %421 = arith.addf %417, %420 : vector<1x256xf32>
    %422 = math.rsqrt %421 : vector<1x256xf32>
    %423 = vector.broadcast %422 : vector<1x256xf32> to vector<8x256xf32>
    %424 = arith.mulf %419, %423 : vector<8x256xf32>
    %c0_190 = arith.constant 0 : index
    %c8448 = arith.constant 8448 : index
    %425 = vector.load %arg2[%c0_190, %c8448] : memref<1x10752xf32, #tpu.memory_space<vmem>>, vector<1x256xf32>
    %426 = vector.broadcast %425 : vector<1x256xf32> to vector<8x256xf32>
    %427 = arith.mulf %424, %426 : vector<8x256xf32>
    %c0_191 = arith.constant 0 : index
    %c8704 = arith.constant 8704 : index
    %428 = vector.load %arg2[%c0_191, %c8704] : memref<1x10752xf32, #tpu.memory_space<vmem>>, vector<1x256xf32>
    %429 = vector.broadcast %428 : vector<1x256xf32> to vector<8x256xf32>
    %430 = arith.addf %427, %429 : vector<8x256xf32>
    %cst_192 = arith.constant 0.000000e+00 : f32
    %431 = vector.broadcast %cst_192 : f32 to vector<8x256xf32>
    %432 = arith.maximumf %430, %431 : vector<8x256xf32>
    %c8 = arith.constant 8 : index
    %c0_193 = arith.constant 0 : index
    %c0_194 = arith.constant 0 : index
    %433 = vector.load %arg7[%c8, %c0_193, %c0_194] : memref<9x256x256xbf16, #tpu.memory_space<vmem>>, vector<1x256x256xbf16>
    %434 = vector.shape_cast %433 : vector<1x256x256xbf16> to vector<256x256xbf16>
    %435 = arith.truncf %432 : vector<8x256xf32> to vector<8x256xbf16>
    %cst_195 = arith.constant dense<0.000000e+00> : vector<8x256xf32>
    %436 = tpu.matmul %435, %434, %cst_195 {dimension_numbers = #tpu.dot_dimension_numbers<[1], [0], [0], [1], [0, 0, 1, 1], [], []>} : vector<8x256xbf16>, vector<256x256xbf16>, vector<8x256xf32> -> vector<8x256xf32>
    %cst_196 = arith.constant dense<0.000000e+00> : vector<256xf32>
    %437 = vector.multi_reduction <add>, %436, %cst_196 [0] : vector<8x256xf32> to vector<256xf32>
    %438 = vector.shape_cast %437 : vector<256xf32> to vector<1x256xf32>
    %439 = arith.mulf %436, %436 : vector<8x256xf32>
    %cst_197 = arith.constant dense<0.000000e+00> : vector<256xf32>
    %440 = vector.multi_reduction <add>, %439, %cst_197 [0] : vector<8x256xf32> to vector<256xf32>
    %441 = vector.shape_cast %440 : vector<256xf32> to vector<1x256xf32>
    %cst_198 = arith.constant 1.250000e-01 : f32
    %442 = vector.broadcast %cst_198 : f32 to vector<1x256xf32>
    %443 = arith.mulf %438, %442 : vector<1x256xf32>
    %cst_199 = arith.constant 1.250000e-01 : f32
    %444 = vector.broadcast %cst_199 : f32 to vector<1x256xf32>
    %445 = arith.mulf %441, %444 : vector<1x256xf32>
    %446 = arith.mulf %443, %443 : vector<1x256xf32>
    %447 = arith.subf %445, %446 : vector<1x256xf32>
    %cst_200 = arith.constant 0.000000e+00 : f32
    %448 = vector.broadcast %cst_200 : f32 to vector<1x256xf32>
    %449 = arith.maximumf %447, %448 : vector<1x256xf32>
    %450 = vector.broadcast %443 : vector<1x256xf32> to vector<8x256xf32>
    %451 = arith.subf %436, %450 : vector<8x256xf32>
    %cst_201 = arith.constant 9.99999974E-6 : f32
    %452 = vector.broadcast %cst_201 : f32 to vector<1x256xf32>
    %453 = arith.addf %449, %452 : vector<1x256xf32>
    %454 = math.rsqrt %453 : vector<1x256xf32>
    %455 = vector.broadcast %454 : vector<1x256xf32> to vector<8x256xf32>
    %456 = arith.mulf %451, %455 : vector<8x256xf32>
    %c0_202 = arith.constant 0 : index
    %c8960 = arith.constant 8960 : index
    %457 = vector.load %arg2[%c0_202, %c8960] : memref<1x10752xf32, #tpu.memory_space<vmem>>, vector<1x256xf32>
    %458 = vector.broadcast %457 : vector<1x256xf32> to vector<8x256xf32>
    %459 = arith.mulf %456, %458 : vector<8x256xf32>
    %c0_203 = arith.constant 0 : index
    %c9216 = arith.constant 9216 : index
    %460 = vector.load %arg2[%c0_203, %c9216] : memref<1x10752xf32, #tpu.memory_space<vmem>>, vector<1x256xf32>
    %461 = vector.broadcast %460 : vector<1x256xf32> to vector<8x256xf32>
    %462 = arith.addf %459, %461 : vector<8x256xf32>
    %463 = arith.addf %462, %400 : vector<8x256xf32>
    %cst_204 = arith.constant 0.000000e+00 : f32
    %464 = vector.broadcast %cst_204 : f32 to vector<8x256xf32>
    %465 = arith.maximumf %463, %464 : vector<8x256xf32>
    %c1_205 = arith.constant 1 : index
    %c0_206 = arith.constant 0 : index
    %c0_207 = arith.constant 0 : index
    %466 = vector.load %arg10[%c1_205, %c0_206, %c0_207] : memref<2x256x128xbf16, #tpu.memory_space<vmem>>, vector<1x256x128xbf16>
    %467 = vector.shape_cast %466 : vector<1x256x128xbf16> to vector<256x128xbf16>
    %468 = arith.truncf %465 : vector<8x256xf32> to vector<8x256xbf16>
    %cst_208 = arith.constant dense<0.000000e+00> : vector<8x128xf32>
    %469 = tpu.matmul %468, %467, %cst_208 {dimension_numbers = #tpu.dot_dimension_numbers<[1], [0], [0], [1], [0, 0, 1, 1], [], []>} : vector<8x256xbf16>, vector<256x128xbf16>, vector<8x128xf32> -> vector<8x128xf32>
    %c0_209 = arith.constant 0 : index
    %c0_210 = arith.constant 0 : index
    %c0_211 = arith.constant 0 : index
    %470 = vector.load %arg10[%c0_209, %c0_210, %c0_211] : memref<2x256x128xbf16, #tpu.memory_space<vmem>>, vector<1x256x128xbf16>
    %471 = vector.shape_cast %470 : vector<1x256x128xbf16> to vector<256x128xbf16>
    %472 = arith.truncf %465 : vector<8x256xf32> to vector<8x256xbf16>
    %cst_212 = arith.constant dense<0.000000e+00> : vector<8x128xf32>
    %473 = tpu.matmul %472, %471, %cst_212 {dimension_numbers = #tpu.dot_dimension_numbers<[1], [0], [0], [1], [0, 0, 1, 1], [], []>} : vector<8x256xbf16>, vector<256x128xbf16>, vector<8x128xf32> -> vector<8x128xf32>
    %cst_213 = arith.constant dense<0.000000e+00> : vector<128xf32>
    %474 = vector.multi_reduction <add>, %473, %cst_213 [0] : vector<8x128xf32> to vector<128xf32>
    %475 = vector.shape_cast %474 : vector<128xf32> to vector<1x128xf32>
    %476 = arith.mulf %473, %473 : vector<8x128xf32>
    %cst_214 = arith.constant dense<0.000000e+00> : vector<128xf32>
    %477 = vector.multi_reduction <add>, %476, %cst_214 [0] : vector<8x128xf32> to vector<128xf32>
    %478 = vector.shape_cast %477 : vector<128xf32> to vector<1x128xf32>
    %cst_215 = arith.constant 1.250000e-01 : f32
    %479 = vector.broadcast %cst_215 : f32 to vector<1x128xf32>
    %480 = arith.mulf %475, %479 : vector<1x128xf32>
    %cst_216 = arith.constant 1.250000e-01 : f32
    %481 = vector.broadcast %cst_216 : f32 to vector<1x128xf32>
    %482 = arith.mulf %478, %481 : vector<1x128xf32>
    %483 = arith.mulf %480, %480 : vector<1x128xf32>
    %484 = arith.subf %482, %483 : vector<1x128xf32>
    %cst_217 = arith.constant 0.000000e+00 : f32
    %485 = vector.broadcast %cst_217 : f32 to vector<1x128xf32>
    %486 = arith.maximumf %484, %485 : vector<1x128xf32>
    %487 = vector.broadcast %480 : vector<1x128xf32> to vector<8x128xf32>
    %488 = arith.subf %473, %487 : vector<8x128xf32>
    %cst_218 = arith.constant 9.99999974E-6 : f32
    %489 = vector.broadcast %cst_218 : f32 to vector<1x128xf32>
    %490 = arith.addf %486, %489 : vector<1x128xf32>
    %491 = math.rsqrt %490 : vector<1x128xf32>
    %492 = vector.broadcast %491 : vector<1x128xf32> to vector<8x128xf32>
    %493 = arith.mulf %488, %492 : vector<8x128xf32>
    %c0_219 = arith.constant 0 : index
    %c9472 = arith.constant 9472 : index
    %494 = vector.load %arg2[%c0_219, %c9472] : memref<1x10752xf32, #tpu.memory_space<vmem>>, vector<1x128xf32>
    %495 = vector.broadcast %494 : vector<1x128xf32> to vector<8x128xf32>
    %496 = arith.mulf %493, %495 : vector<8x128xf32>
    %c0_220 = arith.constant 0 : index
    %c9600 = arith.constant 9600 : index
    %497 = vector.load %arg2[%c0_220, %c9600] : memref<1x10752xf32, #tpu.memory_space<vmem>>, vector<1x128xf32>
    %498 = vector.broadcast %497 : vector<1x128xf32> to vector<8x128xf32>
    %499 = arith.addf %496, %498 : vector<8x128xf32>
    %cst_221 = arith.constant 0.000000e+00 : f32
    %500 = vector.broadcast %cst_221 : f32 to vector<8x128xf32>
    %501 = arith.maximumf %499, %500 : vector<8x128xf32>
    %c2_222 = arith.constant 2 : index
    %c0_223 = arith.constant 0 : index
    %c0_224 = arith.constant 0 : index
    %502 = vector.load %arg5[%c2_222, %c0_223, %c0_224] : memref<5x128x128xbf16, #tpu.memory_space<vmem>>, vector<1x128x128xbf16>
    %503 = vector.shape_cast %502 : vector<1x128x128xbf16> to vector<128x128xbf16>
    %504 = arith.truncf %501 : vector<8x128xf32> to vector<8x128xbf16>
    %cst_225 = arith.constant dense<0.000000e+00> : vector<8x128xf32>
    %505 = tpu.matmul %504, %503, %cst_225 {dimension_numbers = #tpu.dot_dimension_numbers<[1], [0], [0], [1], [0, 0, 1, 1], [], []>} : vector<8x128xbf16>, vector<128x128xbf16>, vector<8x128xf32> -> vector<8x128xf32>
    %cst_226 = arith.constant dense<0.000000e+00> : vector<128xf32>
    %506 = vector.multi_reduction <add>, %505, %cst_226 [0] : vector<8x128xf32> to vector<128xf32>
    %507 = vector.shape_cast %506 : vector<128xf32> to vector<1x128xf32>
    %508 = arith.mulf %505, %505 : vector<8x128xf32>
    %cst_227 = arith.constant dense<0.000000e+00> : vector<128xf32>
    %509 = vector.multi_reduction <add>, %508, %cst_227 [0] : vector<8x128xf32> to vector<128xf32>
    %510 = vector.shape_cast %509 : vector<128xf32> to vector<1x128xf32>
    %cst_228 = arith.constant 1.250000e-01 : f32
    %511 = vector.broadcast %cst_228 : f32 to vector<1x128xf32>
    %512 = arith.mulf %507, %511 : vector<1x128xf32>
    %cst_229 = arith.constant 1.250000e-01 : f32
    %513 = vector.broadcast %cst_229 : f32 to vector<1x128xf32>
    %514 = arith.mulf %510, %513 : vector<1x128xf32>
    %515 = arith.mulf %512, %512 : vector<1x128xf32>
    %516 = arith.subf %514, %515 : vector<1x128xf32>
    %cst_230 = arith.constant 0.000000e+00 : f32
    %517 = vector.broadcast %cst_230 : f32 to vector<1x128xf32>
    %518 = arith.maximumf %516, %517 : vector<1x128xf32>
    %519 = vector.broadcast %512 : vector<1x128xf32> to vector<8x128xf32>
    %520 = arith.subf %505, %519 : vector<8x128xf32>
    %cst_231 = arith.constant 9.99999974E-6 : f32
    %521 = vector.broadcast %cst_231 : f32 to vector<1x128xf32>
    %522 = arith.addf %518, %521 : vector<1x128xf32>
    %523 = math.rsqrt %522 : vector<1x128xf32>
    %524 = vector.broadcast %523 : vector<1x128xf32> to vector<8x128xf32>
    %525 = arith.mulf %520, %524 : vector<8x128xf32>
    %c0_232 = arith.constant 0 : index
    %c9728 = arith.constant 9728 : index
    %526 = vector.load %arg2[%c0_232, %c9728] : memref<1x10752xf32, #tpu.memory_space<vmem>>, vector<1x128xf32>
    %527 = vector.broadcast %526 : vector<1x128xf32> to vector<8x128xf32>
    %528 = arith.mulf %525, %527 : vector<8x128xf32>
    %c0_233 = arith.constant 0 : index
    %c9856 = arith.constant 9856 : index
    %529 = vector.load %arg2[%c0_233, %c9856] : memref<1x10752xf32, #tpu.memory_space<vmem>>, vector<1x128xf32>
    %530 = vector.broadcast %529 : vector<1x128xf32> to vector<8x128xf32>
    %531 = arith.addf %528, %530 : vector<8x128xf32>
    %532 = arith.addf %531, %469 : vector<8x128xf32>
    %cst_234 = arith.constant 0.000000e+00 : f32
    %533 = vector.broadcast %cst_234 : f32 to vector<8x128xf32>
    %534 = arith.maximumf %532, %533 : vector<8x128xf32>
    %c3_235 = arith.constant 3 : index
    %c0_236 = arith.constant 0 : index
    %c0_237 = arith.constant 0 : index
    %535 = vector.load %arg5[%c3_235, %c0_236, %c0_237] : memref<5x128x128xbf16, #tpu.memory_space<vmem>>, vector<1x128x128xbf16>
    %536 = vector.shape_cast %535 : vector<1x128x128xbf16> to vector<128x128xbf16>
    %537 = arith.truncf %534 : vector<8x128xf32> to vector<8x128xbf16>
    %cst_238 = arith.constant dense<0.000000e+00> : vector<8x128xf32>
    %538 = tpu.matmul %537, %536, %cst_238 {dimension_numbers = #tpu.dot_dimension_numbers<[1], [0], [0], [1], [0, 0, 1, 1], [], []>} : vector<8x128xbf16>, vector<128x128xbf16>, vector<8x128xf32> -> vector<8x128xf32>
    %cst_239 = arith.constant dense<0.000000e+00> : vector<128xf32>
    %539 = vector.multi_reduction <add>, %538, %cst_239 [0] : vector<8x128xf32> to vector<128xf32>
    %540 = vector.shape_cast %539 : vector<128xf32> to vector<1x128xf32>
    %541 = arith.mulf %538, %538 : vector<8x128xf32>
    %cst_240 = arith.constant dense<0.000000e+00> : vector<128xf32>
    %542 = vector.multi_reduction <add>, %541, %cst_240 [0] : vector<8x128xf32> to vector<128xf32>
    %543 = vector.shape_cast %542 : vector<128xf32> to vector<1x128xf32>
    %cst_241 = arith.constant 1.250000e-01 : f32
    %544 = vector.broadcast %cst_241 : f32 to vector<1x128xf32>
    %545 = arith.mulf %540, %544 : vector<1x128xf32>
    %cst_242 = arith.constant 1.250000e-01 : f32
    %546 = vector.broadcast %cst_242 : f32 to vector<1x128xf32>
    %547 = arith.mulf %543, %546 : vector<1x128xf32>
    %548 = arith.mulf %545, %545 : vector<1x128xf32>
    %549 = arith.subf %547, %548 : vector<1x128xf32>
    %cst_243 = arith.constant 0.000000e+00 : f32
    %550 = vector.broadcast %cst_243 : f32 to vector<1x128xf32>
    %551 = arith.maximumf %549, %550 : vector<1x128xf32>
    %552 = vector.broadcast %545 : vector<1x128xf32> to vector<8x128xf32>
    %553 = arith.subf %538, %552 : vector<8x128xf32>
    %cst_244 = arith.constant 9.99999974E-6 : f32
    %554 = vector.broadcast %cst_244 : f32 to vector<1x128xf32>
    %555 = arith.addf %551, %554 : vector<1x128xf32>
    %556 = math.rsqrt %555 : vector<1x128xf32>
    %557 = vector.broadcast %556 : vector<1x128xf32> to vector<8x128xf32>
    %558 = arith.mulf %553, %557 : vector<8x128xf32>
    %c0_245 = arith.constant 0 : index
    %c9984 = arith.constant 9984 : index
    %559 = vector.load %arg2[%c0_245, %c9984] : memref<1x10752xf32, #tpu.memory_space<vmem>>, vector<1x128xf32>
    %560 = vector.broadcast %559 : vector<1x128xf32> to vector<8x128xf32>
    %561 = arith.mulf %558, %560 : vector<8x128xf32>
    %c0_246 = arith.constant 0 : index
    %c10112 = arith.constant 10112 : index
    %562 = vector.load %arg2[%c0_246, %c10112] : memref<1x10752xf32, #tpu.memory_space<vmem>>, vector<1x128xf32>
    %563 = vector.broadcast %562 : vector<1x128xf32> to vector<8x128xf32>
    %564 = arith.addf %561, %563 : vector<8x128xf32>
    %cst_247 = arith.constant 0.000000e+00 : f32
    %565 = vector.broadcast %cst_247 : f32 to vector<8x128xf32>
    %566 = arith.maximumf %564, %565 : vector<8x128xf32>
    %c4_248 = arith.constant 4 : index
    %c0_249 = arith.constant 0 : index
    %c0_250 = arith.constant 0 : index
    %567 = vector.load %arg5[%c4_248, %c0_249, %c0_250] : memref<5x128x128xbf16, #tpu.memory_space<vmem>>, vector<1x128x128xbf16>
    %568 = vector.shape_cast %567 : vector<1x128x128xbf16> to vector<128x128xbf16>
    %569 = arith.truncf %566 : vector<8x128xf32> to vector<8x128xbf16>
    %cst_251 = arith.constant dense<0.000000e+00> : vector<8x128xf32>
    %570 = tpu.matmul %569, %568, %cst_251 {dimension_numbers = #tpu.dot_dimension_numbers<[1], [0], [0], [1], [0, 0, 1, 1], [], []>} : vector<8x128xbf16>, vector<128x128xbf16>, vector<8x128xf32> -> vector<8x128xf32>
    %cst_252 = arith.constant dense<0.000000e+00> : vector<128xf32>
    %571 = vector.multi_reduction <add>, %570, %cst_252 [0] : vector<8x128xf32> to vector<128xf32>
    %572 = vector.shape_cast %571 : vector<128xf32> to vector<1x128xf32>
    %573 = arith.mulf %570, %570 : vector<8x128xf32>
    %cst_253 = arith.constant dense<0.000000e+00> : vector<128xf32>
    %574 = vector.multi_reduction <add>, %573, %cst_253 [0] : vector<8x128xf32> to vector<128xf32>
    %575 = vector.shape_cast %574 : vector<128xf32> to vector<1x128xf32>
    %cst_254 = arith.constant 1.250000e-01 : f32
    %576 = vector.broadcast %cst_254 : f32 to vector<1x128xf32>
    %577 = arith.mulf %572, %576 : vector<1x128xf32>
    %cst_255 = arith.constant 1.250000e-01 : f32
    %578 = vector.broadcast %cst_255 : f32 to vector<1x128xf32>
    %579 = arith.mulf %575, %578 : vector<1x128xf32>
    %580 = arith.mulf %577, %577 : vector<1x128xf32>
    %581 = arith.subf %579, %580 : vector<1x128xf32>
    %cst_256 = arith.constant 0.000000e+00 : f32
    %582 = vector.broadcast %cst_256 : f32 to vector<1x128xf32>
    %583 = arith.maximumf %581, %582 : vector<1x128xf32>
    %584 = vector.broadcast %577 : vector<1x128xf32> to vector<8x128xf32>
    %585 = arith.subf %570, %584 : vector<8x128xf32>
    %cst_257 = arith.constant 9.99999974E-6 : f32
    %586 = vector.broadcast %cst_257 : f32 to vector<1x128xf32>
    %587 = arith.addf %583, %586 : vector<1x128xf32>
    %588 = math.rsqrt %587 : vector<1x128xf32>
    %589 = vector.broadcast %588 : vector<1x128xf32> to vector<8x128xf32>
    %590 = arith.mulf %585, %589 : vector<8x128xf32>
    %c0_258 = arith.constant 0 : index
    %c10240 = arith.constant 10240 : index
    %591 = vector.load %arg2[%c0_258, %c10240] : memref<1x10752xf32, #tpu.memory_space<vmem>>, vector<1x128xf32>
    %592 = vector.broadcast %591 : vector<1x128xf32> to vector<8x128xf32>
    %593 = arith.mulf %590, %592 : vector<8x128xf32>
    %c0_259 = arith.constant 0 : index
    %c10368 = arith.constant 10368 : index
    %594 = vector.load %arg2[%c0_259, %c10368] : memref<1x10752xf32, #tpu.memory_space<vmem>>, vector<1x128xf32>
    %595 = vector.broadcast %594 : vector<1x128xf32> to vector<8x128xf32>
    %596 = arith.addf %593, %595 : vector<8x128xf32>
    %597 = arith.addf %596, %534 : vector<8x128xf32>
    %cst_260 = arith.constant 0.000000e+00 : f32
    %598 = vector.broadcast %cst_260 : f32 to vector<8x128xf32>
    %599 = arith.maximumf %597, %598 : vector<8x128xf32>
    %c0_261 = arith.constant 0 : index
    %c10496 = arith.constant 10496 : index
    %600 = vector.load %arg2[%c0_261, %c10496] : memref<1x10752xf32, #tpu.memory_space<vmem>>, vector<1x128xf32>
    %601 = vector.broadcast %600 : vector<1x128xf32> to vector<8x128xf32>
    %602 = arith.mulf %599, %601 : vector<8x128xf32>
    %cst_262 = arith.constant dense<0.000000e+00> : vector<8xf32>
    %603 = vector.multi_reduction <add>, %602, %cst_262 [1] : vector<8x128xf32> to vector<8xf32>
    %604 = vector.shape_cast %603 : vector<8xf32> to vector<8x1xf32>
    %c0_263 = arith.constant 0 : index
    %c10624 = arith.constant 10624 : index
    %605 = vector.load %arg2[%c0_263, %c10624] : memref<1x10752xf32, #tpu.memory_space<vmem>>, vector<1x1xf32>
    %606 = vector.broadcast %605 : vector<1x1xf32> to vector<8x1xf32>
    %607 = arith.addf %604, %606 : vector<8x1xf32>
    %c0_264 = arith.constant 0 : index
    %c0_265 = arith.constant 0 : index
    %608 = vector.load %arg11[%c0_264, %c0_265] : memref<8x1xf32, #tpu.memory_space<vmem>>, vector<8x1xf32>
    tpu.vector_store %arg11[%c0_264, %c0_265], %607 {strides = array<i32>} : memref<8x1xf32, #tpu.memory_space<vmem>>, vector<8x1xf32>,
    return
  }
}

</mosaic_0001>

<llo_original>
// kernel: d_forward.1
$region0: #{d_forward.1}
  #allocation0 [shape = 'u32[]', space=smem, size = 0x4, offset = 0x4, fixed_abs, tag = 'smem constant byte address 0x4 - core index']
  #allocation1 [shape = 'u32[144,128]{1,0:T(1,128)}', space=vmem, size = 0x12000, scoped, tag = 'internal scratch']
  %s0 = inlined_call_operand.vmem [shape: bf16[8,3712], index: 0, kind: input, shape index: {}]
  %s1 = inlined_call_operand.vmem [shape: bf16[8,3712], index: 1, kind: input, shape index: {}]
  %s2 = inlined_call_operand.vmem [shape: f32[1,10752], index: 2, kind: input, shape index: {}]
  %s3 = inlined_call_operand.vmem [shape: bf16[2,3712,64], index: 3, kind: input, shape index: {}]
  %s4 = inlined_call_operand.vmem [shape: bf16[4,64,128], index: 4, kind: input, shape index: {}]
  %s5 = inlined_call_operand.vmem [shape: bf16[5,128,128], index: 5, kind: input, shape index: {}]
  %s6 = inlined_call_operand.vmem [shape: bf16[4,128,256], index: 6, kind: input, shape index: {}]
  %s7 = inlined_call_operand.vmem [shape: bf16[9,256,256], index: 7, kind: input, shape index: {}]
  %s8 = inlined_call_operand.vmem [shape: bf16[2,512,512], index: 8, kind: input, shape index: {}]
  %s9 = inlined_call_operand.vmem [shape: bf16[2,512,256], index: 9, kind: input, shape index: {}]
  %s10 = inlined_call_operand.vmem [shape: bf16[2,256,128], index: 10, kind: input, shape index: {}]
  %s11 = inlined_call_operand.vmem [shape: f32[8,1], index: 11, kind: output, shape index: {}]
  %s12 = sld [smem:[#allocation0]]
  $region54: #{d_forward.1} parent=0
    _
  %s14 = ssub.s32 1, %s12
  %s15 = scalar_select 0, %s14, %s12
  // Predicated region
  $region2: #{d_forward.1} parent=0 // pred_check
    _
  $region3: #{d_forward.1} parent=0 // pred_check_branch
    %17 = sbr.rel (0) target = $region5
  $region4: #{d_forward.1} parent=0 // pred_region
    _
  $region5: #{d_forward.1} parent=0 // pred_fallthru
    _
  // Predicated region
  $region6: #{d_forward.1} parent=0 // pred_check
    _
  $region7: #{d_forward.1} parent=0 // pred_check_branch
    %19 = sbr.rel (0) target = $region9
  $region8: #{d_forward.1} parent=0 // pred_region
    _
  $region9: #{d_forward.1} parent=0 // pred_fallthru
    _
  // Predicated region
  $region10: #{d_forward.1} parent=0 // pred_check
    _
  $region11: #{d_forward.1} parent=0 // pred_check_branch
    %21 = sbr.rel (0) target = $region13
  $region12: #{d_forward.1} parent=0 // pred_region
    _
  $region13: #{d_forward.1} parent=0 // pred_fallthru
    _
  // Predicated region
  $region14: #{d_forward.1} parent=0 // pred_check
    _
  $region15: #{d_forward.1} parent=0 // pred_check_branch
    %23 = sbr.rel (0) target = $region17
  $region16: #{d_forward.1} parent=0 // pred_region
    _
  $region17: #{d_forward.1} parent=0 // pred_fallthru
    _
  // Predicated region
  $region18: #{d_forward.1} parent=0 // pred_check
    _
  $region19: #{d_forward.1} parent=0 // pred_check_branch
    %25 = sbr.rel (0) target = $region21
  $region20: #{d_forward.1} parent=0 // pred_region
    _
  $region21: #{d_forward.1} parent=0 // pred_fallthru
    _
  // Predicated region
  $region22: #{d_forward.1} parent=0 // pred_check
    _
  $region23: #{d_forward.1} parent=0 // pred_check_branch
    %27 = sbr.rel (0) target = $region25
  $region24: #{d_forward.1} parent=0 // pred_region
    _
  $region25: #{d_forward.1} parent=0 // pred_fallthru
    _
  // Predicated region
  $region26: #{d_forward.1} parent=0 // pred_check
    _
  $region27: #{d_forward.1} parent=0 // pred_check_branch
    %29 = sbr.rel (0) target = $region29
  $region28: #{d_forward.1} parent=0 // pred_region
    _
  $region29: #{d_forward.1} parent=0 // pred_fallthru
    _
  // Predicated region
  $region30: #{d_forward.1} parent=0 // pred_check
    _
  $region31: #{d_forward.1} parent=0 // pred_check_branch
    %31 = sbr.rel (0) target = $region33
  $region32: #{d_forward.1} parent=0 // pred_region
    _
  $region33: #{d_forward.1} parent=0 // pred_fallthru
    _
  // Predicated region
  $region34: #{d_forward.1} parent=0 // pred_check
    _
  $region35: #{d_forward.1} parent=0 // pred_check_branch
    %33 = sbr.rel (0) target = $region37
  $region36: #{d_forward.1} parent=0 // pred_region
    _
  $region37: #{d_forward.1} parent=0 // pred_fallthru
    _
  // Predicated region
  $region38: #{d_forward.1} parent=0 // pred_check
    _
  $region39: #{d_forward.1} parent=0 // pred_check_branch
    %35 = sbr.rel (0) target = $region41
  $region40: #{d_forward.1} parent=0 // pred_region
    _
  $region41: #{d_forward.1} parent=0 // pred_fallthru
    _
  // Predicated region
  $region42: #{d_forward.1} parent=0 // pred_check
    _
  $region43: #{d_forward.1} parent=0 // pred_check_branch
    %37 = sbr.rel (0) target = $region45
  $region44: #{d_forward.1} parent=0 // pred_region
    _
  $region45: #{d_forward.1} parent=0 // pred_fallthru
    _
  %v39 = vld [vmem:[%s0] sm:$0xff]
  %v40 = vld [vmem:[%s0 + $0x8] sm:$0xff]
  %v41 = vld [vmem:[%s0 + $0x10] sm:$0xff]
  %v42 = vld [vmem:[%s0 + $0x18] sm:$0xff]
  %v43 = vld [vmem:[%s0 + $0x20] sm:$0xff]
  %v44 = vld [vmem:[%s0 + $0x28] sm:$0xff]
  %v45 = vld [vmem:[%s0 + $0x30] sm:$0xff]
  %v46 = vld [vmem:[%s0 + $0x38] sm:$0xff]
  %v47 = vld [vmem:[%s0 + $0x40] sm:$0xff]
  %v48 = vld [vmem:[%s0 + $0x48] sm:$0xff]
  %v49 = vld [vmem:[%s0 + $0x50] sm:$0xff]
  %v50 = vld [vmem:[%s0 + $0x58] sm:$0xff]
  %v51 = vld [vmem:[%s0 + $0x60] sm:$0xff]
  %v52 = vld [vmem:[%s0 + $0x68] sm:$0xff]
  %v53 = vld [vmem:[%s0 + $0x70] sm:$0xf]
  %v54 = vld [vmem:[%s3] sm:$0xf]
  %v55 = vld [vmem:[%s3 + $0x4] sm:$0xf]
  %v56 = vld [vmem:[%s3 + $0x8] sm:$0xf]
  %v57 = vld [vmem:[%s3 + $0xc] sm:$0xf]
  %v58 = vld [vmem:[%s3 + $0x10] sm:$0xf]
  %v59 = vld [vmem:[%s3 + $0x14] sm:$0xf]
  %v60 = vld [vmem:[%s3 + $0x18] sm:$0xf]
  %v61 = vld [vmem:[%s3 + $0x1c] sm:$0xf]
  %v62 = vld [vmem:[%s3 + $0x20] sm:$0xf]
  %v63 = vld [vmem:[%s3 + $0x24] sm:$0xf]
  %v64 = vld [vmem:[%s3 + $0x28] sm:$0xf]
  %v65 = vld [vmem:[%s3 + $0x2c] sm:$0xf]
  %v66 = vld [vmem:[%s3 + $0x30] sm:$0xf]
  %v67 = vld [vmem:[%s3 + $0x34] sm:$0xf]
  %v68 = vld [vmem:[%s3 + $0x38] sm:$0xf]
  %v69 = vld [vmem:[%s3 + $0x3c] sm:$0xf]
  %v70 = vld [vmem:[%s3 + $0x40] sm:$0xf]
  %v71 = vld [vmem:[%s3 + $0x44] sm:$0xf]
  %v72 = vld [vmem:[%s3 + $0x48] sm:$0xf]
  %v73 = vld [vmem:[%s3 + $0x4c] sm:$0xf]
  %v74 = vld [vmem:[%s3 + $0x50] sm:$0xf]
  %v75 = vld [vmem:[%s3 + $0x54] sm:$0xf]
  %v76 = vld [vmem:[%s3 + $0x58] sm:$0xf]
  %v77 = vld [vmem:[%s3 + $0x5c] sm:$0xf]
  %v78 = vld [vmem:[%s3 + $0x60] sm:$0xf]
  %v79 = vld [vmem:[%s3 + $0x64] sm:$0xf]
  %v80 = vld [vmem:[%s3 + $0x68] sm:$0xf]
  %v81 = vld [vmem:[%s3 + $0x6c] sm:$0xf]
  %v82 = vld [vmem:[%s3 + $0x70] sm:$0xf]
  %v83 = vld [vmem:[%s3 + $0x74] sm:$0xf]
  %v84 = vld [vmem:[%s3 + $0x78] sm:$0xf]
  %v85 = vld [vmem:[%s3 + $0x7c] sm:$0xf]
  %v86 = vld [vmem:[%s3 + $0x80] sm:$0xf]
  %v87 = vld [vmem:[%s3 + $0x84] sm:$0xf]
  %v88 = vld [vmem:[%s3 + $0x88] sm:$0xf]
  %v89 = vld [vmem:[%s3 + $0x8c] sm:$0xf]
  %v90 = vld [vmem:[%s3 + $0x90] sm:$0xf]
  %v91 = vld [vmem:[%s3 + $0x94] sm:$0xf]
  %v92 = vld [vmem:[%s3 + $0x98] sm:$0xf]
  %v93 = vld [vmem:[%s3 + $0x9c] sm:$0xf]
  %v94 = vld [vmem:[%s3 + $0xa0] sm:$0xf]
  %v95 = vld [vmem:[%s3 + $0xa4] sm:$0xf]
  %v96 = vld [vmem:[%s3 + $0xa8] sm:$0xf]
  %v97 = vld [vmem:[%s3 + $0xac] sm:$0xf]
  %v98 = vld [vmem:[%s3 + $0xb0] sm:$0xf]
  %v99 = vld [vmem:[%s3 + $0xb4] sm:$0xf]
  %v100 = vld [vmem:[%s3 + $0xb8] sm:$0xf]
  %v101 = vld [vmem:[%s3 + $0xbc] sm:$0xf]
  %v102 = vld [vmem:[%s3 + $0xc0] sm:$0xf]
  %v103 = vld [vmem:[%s3 + $0xc4] sm:$0xf]
  %v104 = vld [vmem:[%s3 + $0xc8] sm:$0xf]
  %v105 = vld [vmem:[%s3 + $0xcc] sm:$0xf]
  %v106 = vld [vmem:[%s3 + $0xd0] sm:$0xf]
  %v107 = vld [vmem:[%s3 + $0xd4] sm:$0xf]
  %v108 = vld [vmem:[%s3 + $0xd8] sm:$0xf]
  %v109 = vld [vmem:[%s3 + $0xdc] sm:$0xf]
  %v110 = vld [vmem:[%s3 + $0xe0] sm:$0xf]
  %v111 = vld [vmem:[%s3 + $0xe4] sm:$0xf]
  %v112 = vld [vmem:[%s3 + $0xe8] sm:$0xf]
  %v113 = vld [vmem:[%s3 + $0xec] sm:$0xf]
  %v114 = vld [vmem:[%s3 + $0xf0] sm:$0xf]
  %v115 = vld [vmem:[%s3 + $0xf4] sm:$0xf]
  %v116 = vld [vmem:[%s3 + $0xf8] sm:$0xf]
  %v117 = vld [vmem:[%s3 + $0xfc] sm:$0xf]
  %v118 = vld [vmem:[%s3 + $0x100] sm:$0xf]
  %v119 = vld [vmem:[%s3 + $0x104] sm:$0xf]
  %v120 = vld [vmem:[%s3 + $0x108] sm:$0xf]
  %v121 = vld [vmem:[%s3 + $0x10c] sm:$0xf]
  %v122 = vld [vmem:[%s3 + $0x110] sm:$0xf]
  %v123 = vld [vmem:[%s3 + $0x114] sm:$0xf]
  %v124 = vld [vmem:[%s3 + $0x118] sm:$0xf]
  %v125 = vld [vmem:[%s3 + $0x11c] sm:$0xf]
  %v126 = vld [vmem:[%s3 + $0x120] sm:$0xf]
  %v127 = vld [vmem:[%s3 + $0x124] sm:$0xf]
  %v128 = vld [vmem:[%s3 + $0x128] sm:$0xf]
  %v129 = vld [vmem:[%s3 + $0x12c] sm:$0xf]
  %v130 = vld [vmem:[%s3 + $0x130] sm:$0xf]
  %v131 = vld [vmem:[%s3 + $0x134] sm:$0xf]
  %v132 = vld [vmem:[%s3 + $0x138] sm:$0xf]
  %v133 = vld [vmem:[%s3 + $0x13c] sm:$0xf]
  %v134 = vld [vmem:[%s3 + $0x140] sm:$0xf]
  %v135 = vld [vmem:[%s3 + $0x144] sm:$0xf]
  %v136 = vld [vmem:[%s3 + $0x148] sm:$0xf]
  %v137 = vld [vmem:[%s3 + $0x14c] sm:$0xf]
  %v138 = vld [vmem:[%s3 + $0x150] sm:$0xf]
  %v139 = vld [vmem:[%s3 + $0x154] sm:$0xf]
  %v140 = vld [vmem:[%s3 + $0x158] sm:$0xf]
  %v141 = vld [vmem:[%s3 + $0x15c] sm:$0xf]
  %v142 = vld [vmem:[%s3 + $0x160] sm:$0xf]
  %v143 = vld [vmem:[%s3 + $0x164] sm:$0xf]
  %v144 = vld [vmem:[%s3 + $0x168] sm:$0xf]
  %v145 = vld [vmem:[%s3 + $0x16c] sm:$0xf]
  %v146 = vld [vmem:[%s3 + $0x170] sm:$0xf]
  %v147 = vld [vmem:[%s3 + $0x174] sm:$0xf]
  %v148 = vld [vmem:[%s3 + $0x178] sm:$0xf]
  %v149 = vld [vmem:[%s3 + $0x17c] sm:$0xf]
  %v150 = vld [vmem:[%s3 + $0x180] sm:$0xf]
  %v151 = vld [vmem:[%s3 + $0x184] sm:$0xf]
  %v152 = vld [vmem:[%s3 + $0x188] sm:$0xf]
  %v153 = vld [vmem:[%s3 + $0x18c] sm:$0xf]
  %v154 = vld [vmem:[%s3 + $0x190] sm:$0xf]
  %v155 = vld [vmem:[%s3 + $0x194] sm:$0xf]
  %v156 = vld [vmem:[%s3 + $0x198] sm:$0xf]
  %v157 = vld [vmem:[%s3 + $0x19c] sm:$0xf]
  %v158 = vld [vmem:[%s3 + $0x1a0] sm:$0xf]
  %v159 = vld [vmem:[%s3 + $0x1a4] sm:$0xf]
  %v160 = vld [vmem:[%s3 + $0x1a8] sm:$0xf]
  %v161 = vld [vmem:[%s3 + $0x1ac] sm:$0xf]
  %v162 = vld [vmem:[%s3 + $0x1b0] sm:$0xf]
  %v163 = vld [vmem:[%s3 + $0x1b4] sm:$0xf]
  %v164 = vld [vmem:[%s3 + $0x1b8] sm:$0xf]
  %v165 = vld [vmem:[%s3 + $0x1bc] sm:$0xf]
  %v166 = vld [vmem:[%s3 + $0x1c0] sm:$0xf]
  %v167 = vld [vmem:[%s3 + $0x1c4] sm:$0xf]
  %v168 = vld [vmem:[%s3 + $0x1c8] sm:$0xf]
  %v169 = vld [vmem:[%s3 + $0x1cc] sm:$0xf]
  %v170 = vld [vmem:[%s3 + $0x1d0] sm:$0xf]
  %v171 = vld [vmem:[%s3 + $0x1d4] sm:$0xf]
  %v172 = vld [vmem:[%s3 + $0x1d8] sm:$0xf]
  %v173 = vld [vmem:[%s3 + $0x1dc] sm:$0xf]
  %v174 = vld [vmem:[%s3 + $0x1e0] sm:$0xf]
  %v175 = vld [vmem:[%s3 + $0x1e4] sm:$0xf]
  %v176 = vld [vmem:[%s3 + $0x1e8] sm:$0xf]
  %v177 = vld [vmem:[%s3 + $0x1ec] sm:$0xf]
  %v178 = vld [vmem:[%s3 + $0x1f0] sm:$0xf]
  %v179 = vld [vmem:[%s3 + $0x1f4] sm:$0xf]
  %v180 = vld [vmem:[%s3 + $0x1f8] sm:$0xf]
  %v181 = vld [vmem:[%s3 + $0x1fc] sm:$0xf]
  %v182 = vld [vmem:[%s3 + $0x200] sm:$0xf]
  %v183 = vld [vmem:[%s3 + $0x204] sm:$0xf]
  %v184 = vld [vmem:[%s3 + $0x208] sm:$0xf]
  %v185 = vld [vmem:[%s3 + $0x20c] sm:$0xf]
  %v186 = vld [vmem:[%s3 + $0x210] sm:$0xf]
  %v187 = vld [vmem:[%s3 + $0x214] sm:$0xf]
  %v188 = vld [vmem:[%s3 + $0x218] sm:$0xf]
  %v189 = vld [vmem:[%s3 + $0x21c] sm:$0xf]
  %v190 = vld [vmem:[%s3 + $0x220] sm:$0xf]
  %v191 = vld [vmem:[%s3 + $0x224] sm:$0xf]
  %v192 = vld [vmem:[%s3 + $0x228] sm:$0xf]
  %v193 = vld [vmem:[%s3 + $0x22c] sm:$0xf]
  %v194 = vld [vmem:[%s3 + $0x230] sm:$0xf]
  %v195 = vld [vmem:[%s3 + $0x234] sm:$0xf]
  %v196 = vld [vmem:[%s3 + $0x238] sm:$0xf]
  %v197 = vld [vmem:[%s3 + $0x23c] sm:$0xf]
  %v198 = vld [vmem:[%s3 + $0x240] sm:$0xf]
  %v199 = vld [vmem:[%s3 + $0x244] sm:$0xf]
  %v200 = vld [vmem:[%s3 + $0x248] sm:$0xf]
  %v201 = vld [vmem:[%s3 + $0x24c] sm:$0xf]
  %v202 = vld [vmem:[%s3 + $0x250] sm:$0xf]
  %v203 = vld [vmem:[%s3 + $0x254] sm:$0xf]
  %v204 = vld [vmem:[%s3 + $0x258] sm:$0xf]
  %v205 = vld [vmem:[%s3 + $0x25c] sm:$0xf]
  %v206 = vld [vmem:[%s3 + $0x260] sm:$0xf]
  %v207 = vld [vmem:[%s3 + $0x264] sm:$0xf]
  %v208 = vld [vmem:[%s3 + $0x268] sm:$0xf]
  %v209 = vld [vmem:[%s3 + $0x26c] sm:$0xf]
  %v210 = vld [vmem:[%s3 + $0x270] sm:$0xf]
  %v211 = vld [vmem:[%s3 + $0x274] sm:$0xf]
  %v212 = vld [vmem:[%s3 + $0x278] sm:$0xf]
  %v213 = vld [vmem:[%s3 + $0x27c] sm:$0xf]
  %v214 = vld [vmem:[%s3 + $0x280] sm:$0xf]
  %v215 = vld [vmem:[%s3 + $0x284] sm:$0xf]
  %v216 = vld [vmem:[%s3 + $0x288] sm:$0xf]
  %v217 = vld [vmem:[%s3 + $0x28c] sm:$0xf]
  %v218 = vld [vmem:[%s3 + $0x290] sm:$0xf]
  %v219 = vld [vmem:[%s3 + $0x294] sm:$0xf]
  %v220 = vld [vmem:[%s3 + $0x298] sm:$0xf]
  %v221 = vld [vmem:[%s3 + $0x29c] sm:$0xf]
  %v222 = vld [vmem:[%s3 + $0x2a0] sm:$0xf]
  %v223 = vld [vmem:[%s3 + $0x2a4] sm:$0xf]
  %v224 = vld [vmem:[%s3 + $0x2a8] sm:$0xf]
  %v225 = vld [vmem:[%s3 + $0x2ac] sm:$0xf]
  %v226 = vld [vmem:[%s3 + $0x2b0] sm:$0xf]
  %v227 = vld [vmem:[%s3 + $0x2b4] sm:$0xf]
  %v228 = vld [vmem:[%s3 + $0x2b8] sm:$0xf]
  %v229 = vld [vmem:[%s3 + $0x2bc] sm:$0xf]
  %v230 = vld [vmem:[%s3 + $0x2c0] sm:$0xf]
  %v231 = vld [vmem:[%s3 + $0x2c4] sm:$0xf]
  %v232 = vld [vmem:[%s3 + $0x2c8] sm:$0xf]
  %v233 = vld [vmem:[%s3 + $0x2cc] sm:$0xf]
  %v234 = vld [vmem:[%s3 + $0x2d0] sm:$0xf]
  %v235 = vld [vmem:[%s3 + $0x2d4] sm:$0xf]
  %v236 = vld [vmem:[%s3 + $0x2d8] sm:$0xf]
  %v237 = vld [vmem:[%s3 + $0x2dc] sm:$0xf]
  %v238 = vld [vmem:[%s3 + $0x2e0] sm:$0xf]
  %v239 = vld [vmem:[%s3 + $0x2e4] sm:$0xf]
  %v240 = vld [vmem:[%s3 + $0x2e8] sm:$0xf]
  %v241 = vld [vmem:[%s3 + $0x2ec] sm:$0xf]
  %v242 = vld [vmem:[%s3 + $0x2f0] sm:$0xf]
  %v243 = vld [vmem:[%s3 + $0x2f4] sm:$0xf]
  %v244 = vld [vmem:[%s3 + $0x2f8] sm:$0xf]
  %v245 = vld [vmem:[%s3 + $0x2fc] sm:$0xf]
  %v246 = vld [vmem:[%s3 + $0x300] sm:$0xf]
  %v247 = vld [vmem:[%s3 + $0x304] sm:$0xf]
  %v248 = vld [vmem:[%s3 + $0x308] sm:$0xf]
  %v249 = vld [vmem:[%s3 + $0x30c] sm:$0xf]
  %v250 = vld [vmem:[%s3 + $0x310] sm:$0xf]
  %v251 = vld [vmem:[%s3 + $0x314] sm:$0xf]
  %v252 = vld [vmem:[%s3 + $0x318] sm:$0xf]
  %v253 = vld [vmem:[%s3 + $0x31c] sm:$0xf]
  %v254 = vld [vmem:[%s3 + $0x320] sm:$0xf]
  %v255 = vld [vmem:[%s3 + $0x324] sm:$0xf]
  %v256 = vld [vmem:[%s3 + $0x328] sm:$0xf]
  %v257 = vld [vmem:[%s3 + $0x32c] sm:$0xf]
  %v258 = vld [vmem:[%s3 + $0x330] sm:$0xf]
  %v259 = vld [vmem:[%s3 + $0x334] sm:$0xf]
  %v260 = vld [vmem:[%s3 + $0x338] sm:$0xf]
  %v261 = vld [vmem:[%s3 + $0x33c] sm:$0xf]
  %v262 = vld [vmem:[%s3 + $0x340] sm:$0xf]
  %v263 = vld [vmem:[%s3 + $0x344] sm:$0xf]
  %v264 = vld [vmem:[%s3 + $0x348] sm:$0xf]
  %v265 = vld [vmem:[%s3 + $0x34c] sm:$0xf]
  %v266 = vld [vmem:[%s3 + $0x350] sm:$0xf]
  %v267 = vld [vmem:[%s3 + $0x354] sm:$0xf]
  %v268 = vld [vmem:[%s3 + $0x358] sm:$0xf]
  %v269 = vld [vmem:[%s3 + $0x35c] sm:$0xf]
  %v270 = vld [vmem:[%s3 + $0x360] sm:$0xf]
  %v271 = vld [vmem:[%s3 + $0x364] sm:$0xf]
  %v272 = vld [vmem:[%s3 + $0x368] sm:$0xf]
  %v273 = vld [vmem:[%s3 + $0x36c] sm:$0xf]
  %v274 = vld [vmem:[%s3 + $0x370] sm:$0xf]
  %v275 = vld [vmem:[%s3 + $0x374] sm:$0xf]
  %v276 = vld [vmem:[%s3 + $0x378] sm:$0xf]
  %v277 = vld [vmem:[%s3 + $0x37c] sm:$0xf]
  %v278 = vld [vmem:[%s3 + $0x380] sm:$0xf]
  %v279 = vld [vmem:[%s3 + $0x384] sm:$0xf]
  %v280 = vld [vmem:[%s3 + $0x388] sm:$0xf]
  %v281 = vld [vmem:[%s3 + $0x38c] sm:$0xf]
  %v282 = vld [vmem:[%s3 + $0x390] sm:$0xf]
  %v283 = vld [vmem:[%s3 + $0x394] sm:$0xf]
  %v284 = vld [vmem:[%s3 + $0x398] sm:$0xf]
  %v285 = vld [vmem:[%s3 + $0x39c] sm:$0xf]
  %v286 = vld [vmem:[%s3 + $0x3a0] sm:$0xf]
  %v287 = vld [vmem:[%s3 + $0x3a4] sm:$0xf]
  %v288 = vld [vmem:[%s3 + $0x3a8] sm:$0xf]
  %v289 = vld [vmem:[%s3 + $0x3ac] sm:$0xf]
  %v290 = vld [vmem:[%s3 + $0x3b0] sm:$0xf]
  %v291 = vld [vmem:[%s3 + $0x3b4] sm:$0xf]
  %v292 = vld [vmem:[%s3 + $0x3b8] sm:$0xf]
  %v293 = vld [vmem:[%s3 + $0x3bc] sm:$0xf]
  %v294 = vld [vmem:[%s3 + $0x3c0] sm:$0xf]
  %v295 = vld [vmem:[%s3 + $0x3c4] sm:$0xf]
  %v296 = vld [vmem:[%s3 + $0x3c8] sm:$0xf]
  %v297 = vld [vmem:[%s3 + $0x3cc] sm:$0xf]
  %v298 = vld [vmem:[%s3 + $0x3d0] sm:$0xf]
  %v299 = vld [vmem:[%s3 + $0x3d4] sm:$0xf]
  %v300 = vld [vmem:[%s3 + $0x3d8] sm:$0xf]
  %v301 = vld [vmem:[%s3 + $0x3dc] sm:$0xf]
  %v302 = vld [vmem:[%s3 + $0x3e0] sm:$0xf]
  %v303 = vld [vmem:[%s3 + $0x3e4] sm:$0xf]
  %v304 = vld [vmem:[%s3 + $0x3e8] sm:$0xf]
  %v305 = vld [vmem:[%s3 + $0x3ec] sm:$0xf]
  %v306 = vld [vmem:[%s3 + $0x3f0] sm:$0xf]
  %v307 = vld [vmem:[%s3 + $0x3f4] sm:$0xf]
  %v308 = vld [vmem:[%s3 + $0x3f8] sm:$0xf]
  %v309 = vld [vmem:[%s3 + $0x3fc] sm:$0xf]
  %v310 = vld [vmem:[%s3 + $0x400] sm:$0xf]
  %v311 = vld [vmem:[%s3 + $0x404] sm:$0xf]
  %v312 = vld [vmem:[%s3 + $0x408] sm:$0xf]
  %v313 = vld [vmem:[%s3 + $0x40c] sm:$0xf]
  %v314 = vld [vmem:[%s3 + $0x410] sm:$0xf]
  %v315 = vld [vmem:[%s3 + $0x414] sm:$0xf]
  %v316 = vld [vmem:[%s3 + $0x418] sm:$0xf]
  %v317 = vld [vmem:[%s3 + $0x41c] sm:$0xf]
  %v318 = vld [vmem:[%s3 + $0x420] sm:$0xf]
  %v319 = vld [vmem:[%s3 + $0x424] sm:$0xf]
  %v320 = vld [vmem:[%s3 + $0x428] sm:$0xf]
  %v321 = vld [vmem:[%s3 + $0x42c] sm:$0xf]
  %v322 = vld [vmem:[%s3 + $0x430] sm:$0xf]
  %v323 = vld [vmem:[%s3 + $0x434] sm:$0xf]
  %v324 = vld [vmem:[%s3 + $0x438] sm:$0xf]
  %v325 = vld [vmem:[%s3 + $0x43c] sm:$0xf]
  %v326 = vld [vmem:[%s3 + $0x440] sm:$0xf]
  %v327 = vld [vmem:[%s3 + $0x444] sm:$0xf]
  %v328 = vld [vmem:[%s3 + $0x448] sm:$0xf]
  %v329 = vld [vmem:[%s3 + $0x44c] sm:$0xf]
  %v330 = vld [vmem:[%s3 + $0x450] sm:$0xf]
  %v331 = vld [vmem:[%s3 + $0x454] sm:$0xf]
  %v332 = vld [vmem:[%s3 + $0x458] sm:$0xf]
  %v333 = vld [vmem:[%s3 + $0x45c] sm:$0xf]
  %v334 = vld [vmem:[%s3 + $0x460] sm:$0xf]
  %v335 = vld [vmem:[%s3 + $0x464] sm:$0xf]
  %v336 = vld [vmem:[%s3 + $0x468] sm:$0xf]
  %v337 = vld [vmem:[%s3 + $0x46c] sm:$0xf]
  %v338 = vld [vmem:[%s3 + $0x470] sm:$0xf]
  %v339 = vld [vmem:[%s3 + $0x474] sm:$0xf]
  %v340 = vld [vmem:[%s3 + $0x478] sm:$0xf]
  %v341 = vld [vmem:[%s3 + $0x47c] sm:$0xf]
  %v342 = vld [vmem:[%s3 + $0x480] sm:$0xf]
  %v343 = vld [vmem:[%s3 + $0x484] sm:$0xf]
  %v344 = vld [vmem:[%s3 + $0x488] sm:$0xf]
  %v345 = vld [vmem:[%s3 + $0x48c] sm:$0xf]
  %v346 = vld [vmem:[%s3 + $0x490] sm:$0xf]
  %v347 = vld [vmem:[%s3 + $0x494] sm:$0xf]
  %v348 = vld [vmem:[%s3 + $0x498] sm:$0xf]
  %v349 = vld [vmem:[%s3 + $0x49c] sm:$0xf]
  %v350 = vld [vmem:[%s3 + $0x4a0] sm:$0xf]
  %v351 = vld [vmem:[%s3 + $0x4a4] sm:$0xf]
  %v352 = vld [vmem:[%s3 + $0x4a8] sm:$0xf]
  %v353 = vld [vmem:[%s3 + $0x4ac] sm:$0xf]
  %v354 = vld [vmem:[%s3 + $0x4b0] sm:$0xf]
  %v355 = vld [vmem:[%s3 + $0x4b4] sm:$0xf]
  %v356 = vld [vmem:[%s3 + $0x4b8] sm:$0xf]
  %v357 = vld [vmem:[%s3 + $0x4bc] sm:$0xf]
  %v358 = vld [vmem:[%s3 + $0x4c0] sm:$0xf]
  %v359 = vld [vmem:[%s3 + $0x4c4] sm:$0xf]
  %v360 = vld [vmem:[%s3 + $0x4c8] sm:$0xf]
  %v361 = vld [vmem:[%s3 + $0x4cc] sm:$0xf]
  %v362 = vld [vmem:[%s3 + $0x4d0] sm:$0xf]
  %v363 = vld [vmem:[%s3 + $0x4d4] sm:$0xf]
  %v364 = vld [vmem:[%s3 + $0x4d8] sm:$0xf]
  %v365 = vld [vmem:[%s3 + $0x4dc] sm:$0xf]
  %v366 = vld [vmem:[%s3 + $0x4e0] sm:$0xf]
  %v367 = vld [vmem:[%s3 + $0x4e4] sm:$0xf]
  %v368 = vld [vmem:[%s3 + $0x4e8] sm:$0xf]
  %v369 = vld [vmem:[%s3 + $0x4ec] sm:$0xf]
  %v370 = vld [vmem:[%s3 + $0x4f0] sm:$0xf]
  %v371 = vld [vmem:[%s3 + $0x4f4] sm:$0xf]
  %v372 = vld [vmem:[%s3 + $0x4f8] sm:$0xf]
  %v373 = vld [vmem:[%s3 + $0x4fc] sm:$0xf]
  %v374 = vld [vmem:[%s3 + $0x500] sm:$0xf]
  %v375 = vld [vmem:[%s3 + $0x504] sm:$0xf]
  %v376 = vld [vmem:[%s3 + $0x508] sm:$0xf]
  %v377 = vld [vmem:[%s3 + $0x50c] sm:$0xf]
  %v378 = vld [vmem:[%s3 + $0x510] sm:$0xf]
  %v379 = vld [vmem:[%s3 + $0x514] sm:$0xf]
  %v380 = vld [vmem:[%s3 + $0x518] sm:$0xf]
  %v381 = vld [vmem:[%s3 + $0x51c] sm:$0xf]
  %v382 = vld [vmem:[%s3 + $0x520] sm:$0xf]
  %v383 = vld [vmem:[%s3 + $0x524] sm:$0xf]
  %v384 = vld [vmem:[%s3 + $0x528] sm:$0xf]
  %v385 = vld [vmem:[%s3 + $0x52c] sm:$0xf]
  %v386 = vld [vmem:[%s3 + $0x530] sm:$0xf]
  %v387 = vld [vmem:[%s3 + $0x534] sm:$0xf]
  %v388 = vld [vmem:[%s3 + $0x538] sm:$0xf]
  %v389 = vld [vmem:[%s3 + $0x53c] sm:$0xf]
  %v390 = vld [vmem:[%s3 + $0x540] sm:$0xf]
  %v391 = vld [vmem:[%s3 + $0x544] sm:$0xf]
  %v392 = vld [vmem:[%s3 + $0x548] sm:$0xf]
  %v393 = vld [vmem:[%s3 + $0x54c] sm:$0xf]
  %v394 = vld [vmem:[%s3 + $0x550] sm:$0xf]
  %v395 = vld [vmem:[%s3 + $0x554] sm:$0xf]
  %v396 = vld [vmem:[%s3 + $0x558] sm:$0xf]
  %v397 = vld [vmem:[%s3 + $0x55c] sm:$0xf]
  %v398 = vld [vmem:[%s3 + $0x560] sm:$0xf]
  %v399 = vld [vmem:[%s3 + $0x564] sm:$0xf]
  %v400 = vld [vmem:[%s3 + $0x568] sm:$0xf]
  %v401 = vld [vmem:[%s3 + $0x56c] sm:$0xf]
  %v402 = vld [vmem:[%s3 + $0x570] sm:$0xf]
  %v403 = vld [vmem:[%s3 + $0x574] sm:$0xf]
  %v404 = vld [vmem:[%s3 + $0x578] sm:$0xf]
  %v405 = vld [vmem:[%s3 + $0x57c] sm:$0xf]
  %v406 = vld [vmem:[%s3 + $0x580] sm:$0xf]
  %v407 = vld [vmem:[%s3 + $0x584] sm:$0xf]
  %v408 = vld [vmem:[%s3 + $0x588] sm:$0xf]
  %v409 = vld [vmem:[%s3 + $0x58c] sm:$0xf]
  %v410 = vld [vmem:[%s3 + $0x590] sm:$0xf]
  %v411 = vld [vmem:[%s3 + $0x594] sm:$0xf]
  %v412 = vld [vmem:[%s3 + $0x598] sm:$0xf]
  %v413 = vld [vmem:[%s3 + $0x59c] sm:$0xf]
  %v414 = vld [vmem:[%s3 + $0x5a0] sm:$0xf]
  %v415 = vld [vmem:[%s3 + $0x5a4] sm:$0xf]
  %v416 = vld [vmem:[%s3 + $0x5a8] sm:$0xf]
  %v417 = vld [vmem:[%s3 + $0x5ac] sm:$0xf]
  %v418 = vld [vmem:[%s3 + $0x5b0] sm:$0xf]
  %v419 = vld [vmem:[%s3 + $0x5b4] sm:$0xf]
  %v420 = vld [vmem:[%s3 + $0x5b8] sm:$0xf]
  %v421 = vld [vmem:[%s3 + $0x5bc] sm:$0xf]
  %v422 = vld [vmem:[%s3 + $0x5c0] sm:$0xf]
  %v423 = vld [vmem:[%s3 + $0x5c4] sm:$0xf]
  %v424 = vld [vmem:[%s3 + $0x5c8] sm:$0xf]
  %v425 = vld [vmem:[%s3 + $0x5cc] sm:$0xf]
  %v426 = vld [vmem:[%s3 + $0x5d0] sm:$0xf]
  %v427 = vld [vmem:[%s3 + $0x5d4] sm:$0xf]
  %v428 = vld [vmem:[%s3 + $0x5d8] sm:$0xf]
  %v429 = vld [vmem:[%s3 + $0x5dc] sm:$0xf]
  %v430 = vld [vmem:[%s3 + $0x5e0] sm:$0xf]
  %v431 = vld [vmem:[%s3 + $0x5e4] sm:$0xf]
  %v432 = vld [vmem:[%s3 + $0x5e8] sm:$0xf]
  %v433 = vld [vmem:[%s3 + $0x5ec] sm:$0xf]
  %v434 = vld [vmem:[%s3 + $0x5f0] sm:$0xf]
  %v435 = vld [vmem:[%s3 + $0x5f4] sm:$0xf]
  %v436 = vld [vmem:[%s3 + $0x5f8] sm:$0xf]
  %v437 = vld [vmem:[%s3 + $0x5fc] sm:$0xf]
  %v438 = vld [vmem:[%s3 + $0x600] sm:$0xf]
  %v439 = vld [vmem:[%s3 + $0x604] sm:$0xf]
  %v440 = vld [vmem:[%s3 + $0x608] sm:$0xf]
  %v441 = vld [vmem:[%s3 + $0x60c] sm:$0xf]
  %v442 = vld [vmem:[%s3 + $0x610] sm:$0xf]
  %v443 = vld [vmem:[%s3 + $0x614] sm:$0xf]
  %v444 = vld [vmem:[%s3 + $0x618] sm:$0xf]
  %v445 = vld [vmem:[%s3 + $0x61c] sm:$0xf]
  %v446 = vld [vmem:[%s3 + $0x620] sm:$0xf]
  %v447 = vld [vmem:[%s3 + $0x624] sm:$0xf]
  %v448 = vld [vmem:[%s3 + $0x628] sm:$0xf]
  %v449 = vld [vmem:[%s3 + $0x62c] sm:$0xf]
  %v450 = vld [vmem:[%s3 + $0x630] sm:$0xf]
  %v451 = vld [vmem:[%s3 + $0x634] sm:$0xf]
  %v452 = vld [vmem:[%s3 + $0x638] sm:$0xf]
  %v453 = vld [vmem:[%s3 + $0x63c] sm:$0xf]
  %v454 = vld [vmem:[%s3 + $0x640] sm:$0xf]
  %v455 = vld [vmem:[%s3 + $0x644] sm:$0xf]
  %v456 = vld [vmem:[%s3 + $0x648] sm:$0xf]
  %v457 = vld [vmem:[%s3 + $0x64c] sm:$0xf]
  %v458 = vld [vmem:[%s3 + $0x650] sm:$0xf]
  %v459 = vld [vmem:[%s3 + $0x654] sm:$0xf]
  %v460 = vld [vmem:[%s3 + $0x658] sm:$0xf]
  %v461 = vld [vmem:[%s3 + $0x65c] sm:$0xf]
  %v462 = vld [vmem:[%s3 + $0x660] sm:$0xf]
  %v463 = vld [vmem:[%s3 + $0x664] sm:$0xf]
  %v464 = vld [vmem:[%s3 + $0x668] sm:$0xf]
  %v465 = vld [vmem:[%s3 + $0x66c] sm:$0xf]
  %v466 = vld [vmem:[%s3 + $0x670] sm:$0xf]
  %v467 = vld [vmem:[%s3 + $0x674] sm:$0xf]
  %v468 = vld [vmem:[%s3 + $0x678] sm:$0xf]
  %v469 = vld [vmem:[%s3 + $0x67c] sm:$0xf]
  %v470 = vld [vmem:[%s3 + $0x680] sm:$0xf]
  %v471 = vld [vmem:[%s3 + $0x684] sm:$0xf]
  %v472 = vld [vmem:[%s3 + $0x688] sm:$0xf]
  %v473 = vld [vmem:[%s3 + $0x68c] sm:$0xf]
  %v474 = vld [vmem:[%s3 + $0x690] sm:$0xf]
  %v475 = vld [vmem:[%s3 + $0x694] sm:$0xf]
  %v476 = vld [vmem:[%s3 + $0x698] sm:$0xf]
  %v477 = vld [vmem:[%s3 + $0x69c] sm:$0xf]
  %v478 = vld [vmem:[%s3 + $0x6a0] sm:$0xf]
  %v479 = vld [vmem:[%s3 + $0x6a4] sm:$0xf]
  %v480 = vld [vmem:[%s3 + $0x6a8] sm:$0xf]
  %v481 = vld [vmem:[%s3 + $0x6ac] sm:$0xf]
  %v482 = vld [vmem:[%s3 + $0x6b0] sm:$0xf]
  %v483 = vld [vmem:[%s3 + $0x6b4] sm:$0xf]
  %v484 = vld [vmem:[%s3 + $0x6b8] sm:$0xf]
  %v485 = vld [vmem:[%s3 + $0x6bc] sm:$0xf]
  %v486 = vld [vmem:[%s3 + $0x6c0] sm:$0xf]
  %v487 = vld [vmem:[%s3 + $0x6c4] sm:$0xf]
  %v488 = vld [vmem:[%s3 + $0x6c8] sm:$0xf]
  %v489 = vld [vmem:[%s3 + $0x6cc] sm:$0xf]
  %v490 = vld [vmem:[%s3 + $0x6d0] sm:$0xf]
  %v491 = vld [vmem:[%s3 + $0x6d4] sm:$0xf]
  %v492 = vld [vmem:[%s3 + $0x6d8] sm:$0xf]
  %v493 = vld [vmem:[%s3 + $0x6dc] sm:$0xf]
  %v494 = vld [vmem:[%s3 + $0x6e0] sm:$0xf]
  %v495 = vld [vmem:[%s3 + $0x6e4] sm:$0xf]
  %v496 = vld [vmem:[%s3 + $0x6e8] sm:$0xf]
  %v497 = vld [vmem:[%s3 + $0x6ec] sm:$0xf]
  %v498 = vld [vmem:[%s3 + $0x6f0] sm:$0xf]
  %v499 = vld [vmem:[%s3 + $0x6f4] sm:$0xf]
  %v500 = vld [vmem:[%s3 + $0x6f8] sm:$0xf]
  %v501 = vld [vmem:[%s3 + $0x6fc] sm:$0xf]
  %v502 = vld [vmem:[%s3 + $0x700] sm:$0xf]
  %v503 = vld [vmem:[%s3 + $0x704] sm:$0xf]
  %v504 = vld [vmem:[%s3 + $0x708] sm:$0xf]
  %v505 = vld [vmem:[%s3 + $0x70c] sm:$0xf]
  %v506 = vld [vmem:[%s3 + $0x710] sm:$0xf]
  %v507 = vld [vmem:[%s3 + $0x714] sm:$0xf]
  %v508 = vld [vmem:[%s3 + $0x718] sm:$0xf]
  %v509 = vld [vmem:[%s3 + $0x71c] sm:$0xf]
  %v510 = vld [vmem:[%s3 + $0x720] sm:$0xf]
  %v511 = vld [vmem:[%s3 + $0x724] sm:$0xf]
  %v512 = vld [vmem:[%s3 + $0x728] sm:$0xf]
  %v513 = vld [vmem:[%s3 + $0x72c] sm:$0xf]
  %v514 = vld [vmem:[%s3 + $0x730] sm:$0xf]
  %v515 = vld [vmem:[%s3 + $0x734] sm:$0xf]
  %v516 = vld [vmem:[%s3 + $0x738] sm:$0xf]
  %v517 = vld [vmem:[%s3 + $0x73c] sm:$0xf]
  %v518 = vld [vmem:[%s2] sm:$0x1]
  %v520 = vlaneseq
  %v521 = vshrl.u32 %v520, 7
  %v522 = vsub.s32 0, %v521
  %v523 = vrot.slane %v518, %v522
  %v540 = vunpack.c.l.b16 %v39
  %v541 = vunpack.c.h.b16 %v39
  %v542 = vunpack.c.l.b16 %v40
  %v543 = vunpack.c.h.b16 %v40
  %v544 = vunpack.c.l.b16 %v41
  %v545 = vunpack.c.h.b16 %v41
  %v546 = vunpack.c.l.b16 %v42
  %v547 = vunpack.c.h.b16 %v42
  %v548 = vunpack.c.l.b16 %v43
  %v549 = vunpack.c.h.b16 %v43
  %v550 = vunpack.c.l.b16 %v44
  %v551 = vunpack.c.h.b16 %v44
  %v552 = vunpack.c.l.b16 %v45
  %v553 = vunpack.c.h.b16 %v45
  %v554 = vunpack.c.l.b16 %v46
  %v555 = vunpack.c.h.b16 %v46
  %v556 = vunpack.c.l.b16 %v47
  %v557 = vunpack.c.h.b16 %v47
  %v558 = vunpack.c.l.b16 %v48
  %v559 = vunpack.c.h.b16 %v48
  %v560 = vunpack.c.l.b16 %v49
  %v561 = vunpack.c.h.b16 %v49
  %v562 = vunpack.c.l.b16 %v50
  %v563 = vunpack.c.h.b16 %v50
  %v564 = vunpack.c.l.b16 %v51
  %v565 = vunpack.c.h.b16 %v51
  %v566 = vunpack.c.l.b16 %v52
  %v567 = vunpack.c.h.b16 %v52
  %v568 = vunpack.c.l.b16 %v53
  %v569 = vpack.c.b16 %v540, %v540
  %v570 = vpack.c.b16 %v541, %v541
  %v571 = vpack.c.b16 %v542, %v542
  %v572 = vpack.c.b16 %v543, %v543
  %v573 = vpack.c.b16 %v544, %v544
  %v574 = vpack.c.b16 %v545, %v545
  %v575 = vpack.c.b16 %v546, %v546
  %v576 = vpack.c.b16 %v547, %v547
  %v577 = vpack.c.b16 %v548, %v548
  %v578 = vpack.c.b16 %v549, %v549
  %v579 = vpack.c.b16 %v550, %v550
  %v580 = vpack.c.b16 %v551, %v551
  %v581 = vpack.c.b16 %v552, %v552
  %v582 = vpack.c.b16 %v553, %v553
  %v583 = vpack.c.b16 %v554, %v554
  %v584 = vpack.c.b16 %v555, %v555
  %v585 = vpack.c.b16 %v556, %v556
  %v586 = vpack.c.b16 %v557, %v557
  %v587 = vpack.c.b16 %v558, %v558
  %v588 = vpack.c.b16 %v559, %v559
  %v589 = vpack.c.b16 %v560, %v560
  %v590 = vpack.c.b16 %v561, %v561
  %v591 = vpack.c.b16 %v562, %v562
  %v592 = vpack.c.b16 %v563, %v563
  %v593 = vpack.c.b16 %v564, %v564
  %v594 = vpack.c.b16 %v565, %v565
  %v595 = vpack.c.b16 %v566, %v566
  %v596 = vpack.c.b16 %v567, %v567
  %v597 = vpack.c.b16 %v568, %v568
  %v1091 = vunpack.c.l.b16 %v54
  %v1092 = vunpack.c.l.b16 %v55
  %v1093 = vunpack.c.l.b16 %v56
  %v1094 = vunpack.c.l.b16 %v57
  %v1095 = vunpack.c.l.b16 %v58
  %v1096 = vunpack.c.l.b16 %v59
  %v1097 = vunpack.c.l.b16 %v60
  %v1098 = vunpack.c.l.b16 %v61
  %v1099 = vunpack.c.l.b16 %v62
  %v1100 = vunpack.c.l.b16 %v63
  %v1101 = vunpack.c.l.b16 %v64
  %v1102 = vunpack.c.l.b16 %v65
  %v1103 = vunpack.c.l.b16 %v66
  %v1104 = vunpack.c.l.b16 %v67
  %v1105 = vunpack.c.l.b16 %v68
  %v1106 = vunpack.c.l.b16 %v69
  %v1107 = vunpack.c.l.b16 %v70
  %v1108 = vunpack.c.l.b16 %v71
  %v1109 = vunpack.c.l.b16 %v72
  %v1110 = vunpack.c.l.b16 %v73
  %v1111 = vunpack.c.l.b16 %v74
  %v1112 = vunpack.c.l.b16 %v75
  %v1113 = vunpack.c.l.b16 %v76
  %v1114 = vunpack.c.l.b16 %v77
  %v1115 = vunpack.c.l.b16 %v78
  %v1116 = vunpack.c.l.b16 %v79
  %v1117 = vunpack.c.l.b16 %v80
  %v1118 = vunpack.c.l.b16 %v81
  %v1119 = vunpack.c.l.b16 %v82
  %v1120 = vunpack.c.l.b16 %v83
  %v1121 = vunpack.c.l.b16 %v84
  %v1122 = vunpack.c.l.b16 %v85
  %v1123 = vunpack.c.l.b16 %v86
  %v1124 = vunpack.c.l.b16 %v87
  %v1125 = vunpack.c.l.b16 %v88
  %v1126 = vunpack.c.l.b16 %v89
  %v1127 = vunpack.c.l.b16 %v90
  %v1128 = vunpack.c.l.b16 %v91
  %v1129 = vunpack.c.l.b16 %v92
  %v1130 = vunpack.c.l.b16 %v93
  %v1131 = vunpack.c.l.b16 %v94
  %v1132 = vunpack.c.l.b16 %v95
  %v1133 = vunpack.c.l.b16 %v96
  %v1134 = vunpack.c.l.b16 %v97
  %v1135 = vunpack.c.l.b16 %v98
  %v1136 = vunpack.c.l.b16 %v99
  %v1137 = vunpack.c.l.b16 %v100
  %v1138 = vunpack.c.l.b16 %v101
  %v1139 = vunpack.c.l.b16 %v102
  %v1140 = vunpack.c.l.b16 %v103
  %v1141 = vunpack.c.l.b16 %v104
  %v1142 = vunpack.c.l.b16 %v105
  %v1143 = vunpack.c.l.b16 %v106
  %v1144 = vunpack.c.l.b16 %v107
  %v1145 = vunpack.c.l.b16 %v108
  %v1146 = vunpack.c.l.b16 %v109
  %v1147 = vunpack.c.l.b16 %v110
  %v1148 = vunpack.c.l.b16 %v111
  %v1149 = vunpack.c.l.b16 %v112
  %v1150 = vunpack.c.l.b16 %v113
  %v1151 = vunpack.c.l.b16 %v114
  %v1152 = vunpack.c.l.b16 %v115
  %v1153 = vunpack.c.l.b16 %v116
  %v1154 = vunpack.c.l.b16 %v117
  %v1155 = vunpack.c.l.b16 %v118
  %v1156 = vunpack.c.l.b16 %v119
  %v1157 = vunpack.c.l.b16 %v120
  %v1158 = vunpack.c.l.b16 %v121
  %v1159 = vunpack.c.l.b16 %v122
  %v1160 = vunpack.c.l.b16 %v123
  %v1161 = vunpack.c.l.b16 %v124
  %v1162 = vunpack.c.l.b16 %v125
  %v1163 = vunpack.c.l.b16 %v126
  %v1164 = vunpack.c.l.b16 %v127
  %v1165 = vunpack.c.l.b16 %v128
  %v1166 = vunpack.c.l.b16 %v129
  %v1167 = vunpack.c.l.b16 %v130
  %v1168 = vunpack.c.l.b16 %v131
  %v1169 = vunpack.c.l.b16 %v132
  %v1170 = vunpack.c.l.b16 %v133
  %v1171 = vunpack.c.l.b16 %v134
  %v1172 = vunpack.c.l.b16 %v135
  %v1173 = vunpack.c.l.b16 %v136
  %v1174 = vunpack.c.l.b16 %v137
  %v1175 = vunpack.c.l.b16 %v138
  %v1176 = vunpack.c.l.b16 %v139
  %v1177 = vunpack.c.l.b16 %v140
  %v1178 = vunpack.c.l.b16 %v141
  %v1179 = vunpack.c.l.b16 %v142
  %v1180 = vunpack.c.l.b16 %v143
  %v1181 = vunpack.c.l.b16 %v144
  %v1182 = vunpack.c.l.b16 %v145
  %v1183 = vunpack.c.l.b16 %v146
  %v1184 = vunpack.c.l.b16 %v147
  %v1185 = vunpack.c.l.b16 %v148
  %v1186 = vunpack.c.l.b16 %v149
  %v1187 = vunpack.c.l.b16 %v150
  %v1188 = vunpack.c.l.b16 %v151
  %v1189 = vunpack.c.l.b16 %v152
  %v1190 = vunpack.c.l.b16 %v153
  %v1191 = vunpack.c.l.b16 %v154
  %v1192 = vunpack.c.l.b16 %v155
  %v1193 = vunpack.c.l.b16 %v156
  %v1194 = vunpack.c.l.b16 %v157
  %v1195 = vunpack.c.l.b16 %v158
  %v1196 = vunpack.c.l.b16 %v159
  %v1197 = vunpack.c.l.b16 %v160
  %v1198 = vunpack.c.l.b16 %v161
  %v1199 = vunpack.c.l.b16 %v162
  %v1200 = vunpack.c.l.b16 %v163
  %v1201 = vunpack.c.l.b16 %v164
  %v1202 = vunpack.c.l.b16 %v165
  %v1203 = vunpack.c.l.b16 %v166
  %v1204 = vunpack.c.l.b16 %v167
  %v1205 = vunpack.c.l.b16 %v168
  %v1206 = vunpack.c.l.b16 %v169
  %v1207 = vunpack.c.l.b16 %v170
  %v1208 = vunpack.c.l.b16 %v171
  %v1209 = vunpack.c.l.b16 %v172
  %v1210 = vunpack.c.l.b16 %v173
  %v1211 = vunpack.c.l.b16 %v174
  %v1212 = vunpack.c.l.b16 %v175
  %v1213 = vunpack.c.l.b16 %v176
  %v1214 = vunpack.c.l.b16 %v177
  %v1215 = vunpack.c.l.b16 %v178
  %v1216 = vunpack.c.l.b16 %v179
  %v1217 = vunpack.c.l.b16 %v180
  %v1218 = vunpack.c.l.b16 %v181
  %v1219 = vunpack.c.l.b16 %v182
  %v1220 = vunpack.c.l.b16 %v183
  %v1221 = vunpack.c.l.b16 %v184
  %v1222 = vunpack.c.l.b16 %v185
  %v1223 = vunpack.c.l.b16 %v186
  %v1224 = vunpack.c.l.b16 %v187
  %v1225 = vunpack.c.l.b16 %v188
  %v1226 = vunpack.c.l.b16 %v189
  %v1227 = vunpack.c.l.b16 %v190
  %v1228 = vunpack.c.l.b16 %v191
  %v1229 = vunpack.c.l.b16 %v192
  %v1230 = vunpack.c.l.b16 %v193
  %v1231 = vunpack.c.l.b16 %v194
  %v1232 = vunpack.c.l.b16 %v195
  %v1233 = vunpack.c.l.b16 %v196
  %v1234 = vunpack.c.l.b16 %v197
  %v1235 = vunpack.c.l.b16 %v198
  %v1236 = vunpack.c.l.b16 %v199
  %v1237 = vunpack.c.l.b16 %v200
  %v1238 = vunpack.c.l.b16 %v201
  %v1239 = vunpack.c.l.b16 %v202
  %v1240 = vunpack.c.l.b16 %v203
  %v1241 = vunpack.c.l.b16 %v204
  %v1242 = vunpack.c.l.b16 %v205
  %v1243 = vunpack.c.l.b16 %v206
  %v1244 = vunpack.c.l.b16 %v207
  %v1245 = vunpack.c.l.b16 %v208
  %v1246 = vunpack.c.l.b16 %v209
  %v1247 = vunpack.c.l.b16 %v210
  %v1248 = vunpack.c.l.b16 %v211
  %v1249 = vunpack.c.l.b16 %v212
  %v1250 = vunpack.c.l.b16 %v213
  %v1251 = vunpack.c.l.b16 %v214
  %v1252 = vunpack.c.l.b16 %v215
  %v1253 = vunpack.c.l.b16 %v216
  %v1254 = vunpack.c.l.b16 %v217
  %v1255 = vunpack.c.l.b16 %v218
  %v1256 = vunpack.c.l.b16 %v219
  %v1257 = vunpack.c.l.b16 %v220
  %v1258 = vunpack.c.l.b16 %v221
  %v1259 = vunpack.c.l.b16 %v222
  %v1260 = vunpack.c.l.b16 %v223
  %v1261 = vunpack.c.l.b16 %v224
  %v1262 = vunpack.c.l.b16 %v225
  %v1263 = vunpack.c.l.b16 %v226
  %v1264 = vunpack.c.l.b16 %v227
  %v1265 = vunpack.c.l.b16 %v228
  %v1266 = vunpack.c.l.b16 %v229
  %v1267 = vunpack.c.l.b16 %v230
  %v1268 = vunpack.c.l.b16 %v231
  %v1269 = vunpack.c.l.b16 %v232
  %v1270 = vunpack.c.l.b16 %v233
  %v1271 = vunpack.c.l.b16 %v234
  %v1272 = vunpack.c.l.b16 %v235
  %v1273 = vunpack.c.l.b16 %v236
  %v1274 = vunpack.c.l.b16 %v237
  %v1275 = vunpack.c.l.b16 %v238
  %v1276 = vunpack.c.l.b16 %v239
  %v1277 = vunpack.c.l.b16 %v240
  %v1278 = vunpack.c.l.b16 %v241
  %v1279 = vunpack.c.l.b16 %v242
  %v1280 = vunpack.c.l.b16 %v243
  %v1281 = vunpack.c.l.b16 %v244
  %v1282 = vunpack.c.l.b16 %v245
  %v1283 = vunpack.c.l.b16 %v246
  %v1284 = vunpack.c.l.b16 %v247
  %v1285 = vunpack.c.l.b16 %v248
  %v1286 = vunpack.c.l.b16 %v249
  %v1287 = vunpack.c.l.b16 %v250
  %v1288 = vunpack.c.l.b16 %v251
  %v1289 = vunpack.c.l.b16 %v252
  %v1290 = vunpack.c.l.b16 %v253
  %v1291 = vunpack.c.l.b16 %v254
  %v1292 = vunpack.c.l.b16 %v255
  %v1293 = vunpack.c.l.b16 %v256
  %v1294 = vunpack.c.l.b16 %v257
  %v1295 = vunpack.c.l.b16 %v258
  %v1296 = vunpack.c.l.b16 %v259
  %v1297 = vunpack.c.l.b16 %v260
  %v1298 = vunpack.c.l.b16 %v261
  %v1299 = vunpack.c.l.b16 %v262
  %v1300 = vunpack.c.l.b16 %v263
  %v1301 = vunpack.c.l.b16 %v264
  %v1302 = vunpack.c.l.b16 %v265
  %v1303 = vunpack.c.l.b16 %v266
  %v1304 = vunpack.c.l.b16 %v267
  %v1305 = vunpack.c.l.b16 %v268
  %v1306 = vunpack.c.l.b16 %v269
  %v1307 = vunpack.c.l.b16 %v270
  %v1308 = vunpack.c.l.b16 %v271
  %v1309 = vunpack.c.l.b16 %v272
  %v1310 = vunpack.c.l.b16 %v273
  %v1311 = vunpack.c.l.b16 %v274
  %v1312 = vunpack.c.l.b16 %v275
  %v1313 = vunpack.c.l.b16 %v276
  %v1314 = vunpack.c.l.b16 %v277
  %v1315 = vunpack.c.l.b16 %v278
  %v1316 = vunpack.c.l.b16 %v279
  %v1317 = vunpack.c.l.b16 %v280
  %v1318 = vunpack.c.l.b16 %v281
  %v1319 = vunpack.c.l.b16 %v282
  %v1320 = vunpack.c.l.b16 %v283
  %v1321 = vunpack.c.l.b16 %v284
  %v1322 = vunpack.c.l.b16 %v285
  %v1323 = vunpack.c.l.b16 %v286
  %v1324 = vunpack.c.l.b16 %v287
  %v1325 = vunpack.c.l.b16 %v288
  %v1326 = vunpack.c.l.b16 %v289
  %v1327 = vunpack.c.l.b16 %v290
  %v1328 = vunpack.c.l.b16 %v291
  %v1329 = vunpack.c.l.b16 %v292
  %v1330 = vunpack.c.l.b16 %v293
  %v1331 = vunpack.c.l.b16 %v294
  %v1332 = vunpack.c.l.b16 %v295
  %v1333 = vunpack.c.l.b16 %v296
  %v1334 = vunpack.c.l.b16 %v297
  %v1335 = vunpack.c.l.b16 %v298
  %v1336 = vunpack.c.l.b16 %v299
  %v1337 = vunpack.c.l.b16 %v300
  %v1338 = vunpack.c.l.b16 %v301
  %v1339 = vunpack.c.l.b16 %v302
  %v1340 = vunpack.c.l.b16 %v303
  %v1341 = vunpack.c.l.b16 %v304
  %v1342 = vunpack.c.l.b16 %v305
  %v1343 = vunpack.c.l.b16 %v306
  %v1344 = vunpack.c.l.b16 %v307
  %v1345 = vunpack.c.l.b16 %v308
  %v1346 = vunpack.c.l.b16 %v309
  %v1347 = vunpack.c.l.b16 %v310
  %v1348 = vunpack.c.l.b16 %v311
  %v1349 = vunpack.c.l.b16 %v312
  %v1350 = vunpack.c.l.b16 %v313
  %v1351 = vunpack.c.l.b16 %v314
  %v1352 = vunpack.c.l.b16 %v315
  %v1353 = vunpack.c.l.b16 %v316
  %v1354 = vunpack.c.l.b16 %v317
  %v1355 = vunpack.c.l.b16 %v318
  %v1356 = vunpack.c.l.b16 %v319
  %v1357 = vunpack.c.l.b16 %v320
  %v1358 = vunpack.c.l.b16 %v321
  %v1359 = vunpack.c.l.b16 %v322
  %v1360 = vunpack.c.l.b16 %v323
  %v1361 = vunpack.c.l.b16 %v324
  %v1362 = vunpack.c.l.b16 %v325
  %v1363 = vunpack.c.l.b16 %v326
  %v1364 = vunpack.c.l.b16 %v327
  %v1365 = vunpack.c.l.b16 %v328
  %v1366 = vunpack.c.l.b16 %v329
  %v1367 = vunpack.c.l.b16 %v330
  %v1368 = vunpack.c.l.b16 %v331
  %v1369 = vunpack.c.l.b16 %v332
  %v1370 = vunpack.c.l.b16 %v333
  %v1371 = vunpack.c.l.b16 %v334
  %v1372 = vunpack.c.l.b16 %v335
  %v1373 = vunpack.c.l.b16 %v336
  %v1374 = vunpack.c.l.b16 %v337
  %v1375 = vunpack.c.l.b16 %v338
  %v1376 = vunpack.c.l.b16 %v339
  %v1377 = vunpack.c.l.b16 %v340
  %v1378 = vunpack.c.l.b16 %v341
  %v1379 = vunpack.c.l.b16 %v342
  %v1380 = vunpack.c.l.b16 %v343
  %v1381 = vunpack.c.l.b16 %v344
  %v1382 = vunpack.c.l.b16 %v345
  %v1383 = vunpack.c.l.b16 %v346
  %v1384 = vunpack.c.l.b16 %v347
  %v1385 = vunpack.c.l.b16 %v348
  %v1386 = vunpack.c.l.b16 %v349
  %v1387 = vunpack.c.l.b16 %v350
  %v1388 = vunpack.c.l.b16 %v351
  %v1389 = vunpack.c.l.b16 %v352
  %v1390 = vunpack.c.l.b16 %v353
  %v1391 = vunpack.c.l.b16 %v354
  %v1392 = vunpack.c.l.b16 %v355
  %v1393 = vunpack.c.l.b16 %v356
  %v1394 = vunpack.c.l.b16 %v357
  %v1395 = vunpack.c.l.b16 %v358
  %v1396 = vunpack.c.l.b16 %v359
  %v1397 = vunpack.c.l.b16 %v360
  %v1398 = vunpack.c.l.b16 %v361
  %v1399 = vunpack.c.l.b16 %v362
  %v1400 = vunpack.c.l.b16 %v363
  %v1401 = vunpack.c.l.b16 %v364
  %v1402 = vunpack.c.l.b16 %v365
  %v1403 = vunpack.c.l.b16 %v366
  %v1404 = vunpack.c.l.b16 %v367
  %v1405 = vunpack.c.l.b16 %v368
  %v1406 = vunpack.c.l.b16 %v369
  %v1407 = vunpack.c.l.b16 %v370
  %v1408 = vunpack.c.l.b16 %v371
  %v1409 = vunpack.c.l.b16 %v372
  %v1410 = vunpack.c.l.b16 %v373
  %v1411 = vunpack.c.l.b16 %v374
  %v1412 = vunpack.c.l.b16 %v375
  %v1413 = vunpack.c.l.b16 %v376
  %v1414 = vunpack.c.l.b16 %v377
  %v1415 = vunpack.c.l.b16 %v378
  %v1416 = vunpack.c.l.b16 %v379
  %v1417 = vunpack.c.l.b16 %v380
  %v1418 = vunpack.c.l.b16 %v381
  %v1419 = vunpack.c.l.b16 %v382
  %v1420 = vunpack.c.l.b16 %v383
  %v1421 = vunpack.c.l.b16 %v384
  %v1422 = vunpack.c.l.b16 %v385
  %v1423 = vunpack.c.l.b16 %v386
  %v1424 = vunpack.c.l.b16 %v387
  %v1425 = vunpack.c.l.b16 %v388
  %v1426 = vunpack.c.l.b16 %v389
  %v1427 = vunpack.c.l.b16 %v390
  %v1428 = vunpack.c.l.b16 %v391
  %v1429 = vunpack.c.l.b16 %v392
  %v1430 = vunpack.c.l.b16 %v393
  %v1431 = vunpack.c.l.b16 %v394
  %v1432 = vunpack.c.l.b16 %v395
  %v1433 = vunpack.c.l.b16 %v396
  %v1434 = vunpack.c.l.b16 %v397
  %v1435 = vunpack.c.l.b16 %v398
  %v1436 = vunpack.c.l.b16 %v399
  %v1437 = vunpack.c.l.b16 %v400
  %v1438 = vunpack.c.l.b16 %v401
  %v1439 = vunpack.c.l.b16 %v402
  %v1440 = vunpack.c.l.b16 %v403
  %v1441 = vunpack.c.l.b16 %v404
  %v1442 = vunpack.c.l.b16 %v405
  %v1443 = vunpack.c.l.b16 %v406
  %v1444 = vunpack.c.l.b16 %v407
  %v1445 = vunpack.c.l.b16 %v408
  %v1446 = vunpack.c.l.b16 %v409
  %v1447 = vunpack.c.l.b16 %v410
  %v1448 = vunpack.c.l.b16 %v411
  %v1449 = vunpack.c.l.b16 %v412
  %v1450 = vunpack.c.l.b16 %v413
  %v1451 = vunpack.c.l.b16 %v414
  %v1452 = vunpack.c.l.b16 %v415
  %v1453 = vunpack.c.l.b16 %v416
  %v1454 = vunpack.c.l.b16 %v417
  %v1455 = vunpack.c.l.b16 %v418
  %v1456 = vunpack.c.l.b16 %v419
  %v1457 = vunpack.c.l.b16 %v420
  %v1458 = vunpack.c.l.b16 %v421
  %v1459 = vunpack.c.l.b16 %v422
  %v1460 = vunpack.c.l.b16 %v423
  %v1461 = vunpack.c.l.b16 %v424
  %v1462 = vunpack.c.l.b16 %v425
  %v1463 = vunpack.c.l.b16 %v426
  %v1464 = vunpack.c.l.b16 %v427
  %v1465 = vunpack.c.l.b16 %v428
  %v1466 = vunpack.c.l.b16 %v429
  %v1467 = vunpack.c.l.b16 %v430
  %v1468 = vunpack.c.l.b16 %v431
  %v1469 = vunpack.c.l.b16 %v432
  %v1470 = vunpack.c.l.b16 %v433
  %v1471 = vunpack.c.l.b16 %v434
  %v1472 = vunpack.c.l.b16 %v435
  %v1473 = vunpack.c.l.b16 %v436
  %v1474 = vunpack.c.l.b16 %v437
  %v1475 = vunpack.c.l.b16 %v438
  %v1476 = vunpack.c.l.b16 %v439
  %v1477 = vunpack.c.l.b16 %v440
  %v1478 = vunpack.c.l.b16 %v441
  %v1479 = vunpack.c.l.b16 %v442
  %v1480 = vunpack.c.l.b16 %v443
  %v1481 = vunpack.c.l.b16 %v444
  %v1482 = vunpack.c.l.b16 %v445
  %v1483 = vunpack.c.l.b16 %v446
  %v1484 = vunpack.c.l.b16 %v447
  %v1485 = vunpack.c.l.b16 %v448
  %v1486 = vunpack.c.l.b16 %v449
  %v1487 = vunpack.c.l.b16 %v450
  %v1488 = vunpack.c.l.b16 %v451
  %v1489 = vunpack.c.l.b16 %v452
  %v1490 = vunpack.c.l.b16 %v453
  %v1491 = vunpack.c.l.b16 %v454
  %v1492 = vunpack.c.l.b16 %v455
  %v1493 = vunpack.c.l.b16 %v456
  %v1494 = vunpack.c.l.b16 %v457
  %v1495 = vunpack.c.l.b16 %v458
  %v1496 = vunpack.c.l.b16 %v459
  %v1497 = vunpack.c.l.b16 %v460
  %v1498 = vunpack.c.l.b16 %v461
  %v1499 = vunpack.c.l.b16 %v462
  %v1500 = vunpack.c.l.b16 %v463
  %v1501 = vunpack.c.l.b16 %v464
  %v1502 = vunpack.c.l.b16 %v465
  %v1503 = vunpack.c.l.b16 %v466
  %v1504 = vunpack.c.l.b16 %v467
  %v1505 = vunpack.c.l.b16 %v468
  %v1506 = vunpack.c.l.b16 %v469
  %v1507 = vunpack.c.l.b16 %v470
  %v1508 = vunpack.c.l.b16 %v471
  %v1509 = vunpack.c.l.b16 %v472
  %v1510 = vunpack.c.l.b16 %v473
  %v1511 = vunpack.c.l.b16 %v474
  %v1512 = vunpack.c.l.b16 %v475
  %v1513 = vunpack.c.l.b16 %v476
  %v1514 = vunpack.c.l.b16 %v477
  %v1515 = vunpack.c.l.b16 %v478
  %v1516 = vunpack.c.l.b16 %v479
  %v1517 = vunpack.c.l.b16 %v480
  %v1518 = vunpack.c.l.b16 %v481
  %v1519 = vunpack.c.l.b16 %v482
  %v1520 = vunpack.c.l.b16 %v483
  %v1521 = vunpack.c.l.b16 %v484
  %v1522 = vunpack.c.l.b16 %v485
  %v1523 = vunpack.c.l.b16 %v486
  %v1524 = vunpack.c.l.b16 %v487
  %v1525 = vunpack.c.l.b16 %v488
  %v1526 = vunpack.c.l.b16 %v489
  %v1527 = vunpack.c.l.b16 %v490
  %v1528 = vunpack.c.l.b16 %v491
  %v1529 = vunpack.c.l.b16 %v492
  %v1530 = vunpack.c.l.b16 %v493
  %v1531 = vunpack.c.l.b16 %v494
  %v1532 = vunpack.c.l.b16 %v495
  %v1533 = vunpack.c.l.b16 %v496
  %v1534 = vunpack.c.l.b16 %v497
  %v1535 = vunpack.c.l.b16 %v498
  %v1536 = vunpack.c.l.b16 %v499
  %v1537 = vunpack.c.l.b16 %v500
  %v1538 = vunpack.c.l.b16 %v501
  %v1539 = vunpack.c.l.b16 %v502
  %v1540 = vunpack.c.l.b16 %v503
  %v1541 = vunpack.c.l.b16 %v504
  %v1542 = vunpack.c.l.b16 %v505
  %v1543 = vunpack.c.l.b16 %v506
  %v1544 = vunpack.c.l.b16 %v507
  %v1545 = vunpack.c.l.b16 %v508
  %v1546 = vunpack.c.l.b16 %v509
  %v1547 = vunpack.c.l.b16 %v510
  %v1548 = vunpack.c.l.b16 %v511
  %v1549 = vunpack.c.l.b16 %v512
  %v1550 = vunpack.c.l.b16 %v513
  %v1551 = vunpack.c.l.b16 %v514
  %v1552 = vunpack.c.l.b16 %v515
  %v1553 = vunpack.c.l.b16 %v516
  %v1554 = vunpack.c.l.b16 %v517
  %v1555 = vpack.c.b16 %v1092, %v1091
  %v1556 = vpack.c.b16 %v1094, %v1093
  %v1557 = vpack.c.b16 %v1096, %v1095
  %v1558 = vpack.c.b16 %v1098, %v1097
  %v1559 = vpack.c.b16 %v1100, %v1099
  %v1560 = vpack.c.b16 %v1102, %v1101
  %v1561 = vpack.c.b16 %v1104, %v1103
  %v1562 = vpack.c.b16 %v1106, %v1105
  %v1563 = vpack.c.b16 %v1108, %v1107
  %v1564 = vpack.c.b16 %v1110, %v1109
  %v1565 = vpack.c.b16 %v1112, %v1111
  %v1566 = vpack.c.b16 %v1114, %v1113
  %v1567 = vpack.c.b16 %v1116, %v1115
  %v1568 = vpack.c.b16 %v1118, %v1117
  %v1569 = vpack.c.b16 %v1120, %v1119
  %v1570 = vpack.c.b16 %v1122, %v1121
  %v1571 = vpack.c.b16 %v1124, %v1123
  %v1572 = vpack.c.b16 %v1126, %v1125
  %v1573 = vpack.c.b16 %v1128, %v1127
  %v1574 = vpack.c.b16 %v1130, %v1129
  %v1575 = vpack.c.b16 %v1132, %v1131
  %v1576 = vpack.c.b16 %v1134, %v1133
  %v1577 = vpack.c.b16 %v1136, %v1135
  %v1578 = vpack.c.b16 %v1138, %v1137
  %v1579 = vpack.c.b16 %v1140, %v1139
  %v1580 = vpack.c.b16 %v1142, %v1141
  %v1581 = vpack.c.b16 %v1144, %v1143
  %v1582 = vpack.c.b16 %v1146, %v1145
  %v1583 = vpack.c.b16 %v1148, %v1147
  %v1584 = vpack.c.b16 %v1150, %v1149
  %v1585 = vpack.c.b16 %v1152, %v1151
  %v1586 = vpack.c.b16 %v1154, %v1153
  %v1587 = vpack.c.b16 %v1156, %v1155
  %v1588 = vpack.c.b16 %v1158, %v1157
  %v1589 = vpack.c.b16 %v1160, %v1159
  %v1590 = vpack.c.b16 %v1162, %v1161
  %v1591 = vpack.c.b16 %v1164, %v1163
  %v1592 = vpack.c.b16 %v1166, %v1165
  %v1593 = vpack.c.b16 %v1168, %v1167
  %v1594 = vpack.c.b16 %v1170, %v1169
  %v1595 = vpack.c.b16 %v1172, %v1171
  %v1596 = vpack.c.b16 %v1174, %v1173
  %v1597 = vpack.c.b16 %v1176, %v1175
  %v1598 = vpack.c.b16 %v1178, %v1177
  %v1599 = vpack.c.b16 %v1180, %v1179
  %v1600 = vpack.c.b16 %v1182, %v1181
  %v1601 = vpack.c.b16 %v1184, %v1183
  %v1602 = vpack.c.b16 %v1186, %v1185
  %v1603 = vpack.c.b16 %v1188, %v1187
  %v1604 = vpack.c.b16 %v1190, %v1189
  %v1605 = vpack.c.b16 %v1192, %v1191
  %v1606 = vpack.c.b16 %v1194, %v1193
  %v1607 = vpack.c.b16 %v1196, %v1195
  %v1608 = vpack.c.b16 %v1198, %v1197
  %v1609 = vpack.c.b16 %v1200, %v1199
  %v1610 = vpack.c.b16 %v1202, %v1201
  %v1611 = vpack.c.b16 %v1204, %v1203
  %v1612 = vpack.c.b16 %v1206, %v1205
  %v1613 = vpack.c.b16 %v1208, %v1207
  %v1614 = vpack.c.b16 %v1210, %v1209
  %v1615 = vpack.c.b16 %v1212, %v1211
  %v1616 = vpack.c.b16 %v1214, %v1213
  %v1617 = vpack.c.b16 %v1216, %v1215
  %v1618 = vpack.c.b16 %v1218, %v1217
  %v1619 = vpack.c.b16 %v1220, %v1219
  %v1620 = vpack.c.b16 %v1222, %v1221
  %v1621 = vpack.c.b16 %v1224, %v1223
  %v1622 = vpack.c.b16 %v1226, %v1225
  %v1623 = vpack.c.b16 %v1228, %v1227
  %v1624 = vpack.c.b16 %v1230, %v1229
  %v1625 = vpack.c.b16 %v1232, %v1231
  %v1626 = vpack.c.b16 %v1234, %v1233
  %v1627 = vpack.c.b16 %v1236, %v1235
  %v1628 = vpack.c.b16 %v1238, %v1237
  %v1629 = vpack.c.b16 %v1240, %v1239
  %v1630 = vpack.c.b16 %v1242, %v1241
  %v1631 = vpack.c.b16 %v1244, %v1243
  %v1632 = vpack.c.b16 %v1246, %v1245
  %v1633 = vpack.c.b16 %v1248, %v1247
  %v1634 = vpack.c.b16 %v1250, %v1249
  %v1635 = vpack.c.b16 %v1252, %v1251
  %v1636 = vpack.c.b16 %v1254, %v1253
  %v1637 = vpack.c.b16 %v1256, %v1255
  %v1638 = vpack.c.b16 %v1258, %v1257
  %v1639 = vpack.c.b16 %v1260, %v1259
  %v1640 = vpack.c.b16 %v1262, %v1261
  %v1641 = vpack.c.b16 %v1264, %v1263
  %v1642 = vpack.c.b16 %v1266, %v1265
  %v1643 = vpack.c.b16 %v1268, %v1267
  %v1644 = vpack.c.b16 %v1270, %v1269
  %v1645 = vpack.c.b16 %v1272, %v1271
  %v1646 = vpack.c.b16 %v1274, %v1273
  %v1647 = vpack.c.b16 %v1276, %v1275
  %v1648 = vpack.c.b16 %v1278, %v1277
  %v1649 = vpack.c.b16 %v1280, %v1279
  %v1650 = vpack.c.b16 %v1282, %v1281
  %v1651 = vpack.c.b16 %v1284, %v1283
  %v1652 = vpack.c.b16 %v1286, %v1285
  %v1653 = vpack.c.b16 %v1288, %v1287
  %v1654 = vpack.c.b16 %v1290, %v1289
  %v1655 = vpack.c.b16 %v1292, %v1291
  %v1656 = vpack.c.b16 %v1294, %v1293
  %v1657 = vpack.c.b16 %v1296, %v1295
  %v1658 = vpack.c.b16 %v1298, %v1297
  %v1659 = vpack.c.b16 %v1300, %v1299
  %v1660 = vpack.c.b16 %v1302, %v1301
  %v1661 = vpack.c.b16 %v1304, %v1303
  %v1662 = vpack.c.b16 %v1306, %v1305
  %v1663 = vpack.c.b16 %v1308, %v1307
  %v1664 = vpack.c.b16 %v1310, %v1309
  %v1665 = vpack.c.b16 %v1312, %v1311
  %v1666 = vpack.c.b16 %v1314, %v1313
  %v1667 = vpack.c.b16 %v1316, %v1315
  %v1668 = vpack.c.b16 %v1318, %v1317
  %v1669 = vpack.c.b16 %v1320, %v1319
  %v1670 = vpack.c.b16 %v1322, %v1321
  %v1671 = vpack.c.b16 %v1324, %v1323
  %v1672 = vpack.c.b16 %v1326, %v1325
  %v1673 = vpack.c.b16 %v1328, %v1327
  %v1674 = vpack.c.b16 %v1330, %v1329
  %v1675 = vpack.c.b16 %v1332, %v1331
  %v1676 = vpack.c.b16 %v1334, %v1333
  %v1677 = vpack.c.b16 %v1336, %v1335
  %v1678 = vpack.c.b16 %v1338, %v1337
  %v1679 = vpack.c.b16 %v1340, %v1339
  %v1680 = vpack.c.b16 %v1342, %v1341
  %v1681 = vpack.c.b16 %v1344, %v1343
  %v1682 = vpack.c.b16 %v1346, %v1345
  %v1683 = vpack.c.b16 %v1348, %v1347
  %v1684 = vpack.c.b16 %v1350, %v1349
  %v1685 = vpack.c.b16 %v1352, %v1351
  %v1686 = vpack.c.b16 %v1354, %v1353
  %v1687 = vpack.c.b16 %v1356, %v1355
  %v1688 = vpack.c.b16 %v1358, %v1357
  %v1689 = vpack.c.b16 %v1360, %v1359
  %v1690 = vpack.c.b16 %v1362, %v1361
  %v1691 = vpack.c.b16 %v1364, %v1363
  %v1692 = vpack.c.b16 %v1366, %v1365
  %v1693 = vpack.c.b16 %v1368, %v1367
  %v1694 = vpack.c.b16 %v1370, %v1369
  %v1695 = vpack.c.b16 %v1372, %v1371
  %v1696 = vpack.c.b16 %v1374, %v1373
  %v1697 = vpack.c.b16 %v1376, %v1375
  %v1698 = vpack.c.b16 %v1378, %v1377
  %v1699 = vpack.c.b16 %v1380, %v1379
  %v1700 = vpack.c.b16 %v1382, %v1381
  %v1701 = vpack.c.b16 %v1384, %v1383
  %v1702 = vpack.c.b16 %v1386, %v1385
  %v1703 = vpack.c.b16 %v1388, %v1387
  %v1704 = vpack.c.b16 %v1390, %v1389
  %v1705 = vpack.c.b16 %v1392, %v1391
  %v1706 = vpack.c.b16 %v1394, %v1393
  %v1707 = vpack.c.b16 %v1396, %v1395
  %v1708 = vpack.c.b16 %v1398, %v1397
  %v1709 = vpack.c.b16 %v1400, %v1399
  %v1710 = vpack.c.b16 %v1402, %v1401
  %v1711 = vpack.c.b16 %v1404, %v1403
  %v1712 = vpack.c.b16 %v1406, %v1405
  %v1713 = vpack.c.b16 %v1408, %v1407
  %v1714 = vpack.c.b16 %v1410, %v1409
  %v1715 = vpack.c.b16 %v1412, %v1411
  %v1716 = vpack.c.b16 %v1414, %v1413
  %v1717 = vpack.c.b16 %v1416, %v1415
  %v1718 = vpack.c.b16 %v1418, %v1417
  %v1719 = vpack.c.b16 %v1420, %v1419
  %v1720 = vpack.c.b16 %v1422, %v1421
  %v1721 = vpack.c.b16 %v1424, %v1423
  %v1722 = vpack.c.b16 %v1426, %v1425
  %v1723 = vpack.c.b16 %v1428, %v1427
  %v1724 = vpack.c.b16 %v1430, %v1429
  %v1725 = vpack.c.b16 %v1432, %v1431
  %v1726 = vpack.c.b16 %v1434, %v1433
  %v1727 = vpack.c.b16 %v1436, %v1435
  %v1728 = vpack.c.b16 %v1438, %v1437
  %v1729 = vpack.c.b16 %v1440, %v1439
  %v1730 = vpack.c.b16 %v1442, %v1441
  %v1731 = vpack.c.b16 %v1444, %v1443
  %v1732 = vpack.c.b16 %v1446, %v1445
  %v1733 = vpack.c.b16 %v1448, %v1447
  %v1734 = vpack.c.b16 %v1450, %v1449
  %v1735 = vpack.c.b16 %v1452, %v1451
  %v1736 = vpack.c.b16 %v1454, %v1453
  %v1737 = vpack.c.b16 %v1456, %v1455
  %v1738 = vpack.c.b16 %v1458, %v1457
  %v1739 = vpack.c.b16 %v1460, %v1459
  %v1740 = vpack.c.b16 %v1462, %v1461
  %v1741 = vpack.c.b16 %v1464, %v1463
  %v1742 = vpack.c.b16 %v1466, %v1465
  %v1743 = vpack.c.b16 %v1468, %v1467
  %v1744 = vpack.c.b16 %v1470, %v1469
  %v1745 = vpack.c.b16 %v1472, %v1471
  %v1746 = vpack.c.b16 %v1474, %v1473
  %v1747 = vpack.c.b16 %v1476, %v1475
  %v1748 = vpack.c.b16 %v1478, %v1477
  %v1749 = vpack.c.b16 %v1480, %v1479
  %v1750 = vpack.c.b16 %v1482, %v1481
  %v1751 = vpack.c.b16 %v1484, %v1483
  %v1752 = vpack.c.b16 %v1486, %v1485
  %v1753 = vpack.c.b16 %v1488, %v1487
  %v1754 = vpack.c.b16 %v1490, %v1489
  %v1755 = vpack.c.b16 %v1492, %v1491
  %v1756 = vpack.c.b16 %v1494, %v1493
  %v1757 = vpack.c.b16 %v1496, %v1495
  %v1758 = vpack.c.b16 %v1498, %v1497
  %v1759 = vpack.c.b16 %v1500, %v1499
  %v1760 = vpack.c.b16 %v1502, %v1501
  %v1761 = vpack.c.b16 %v1504, %v1503
  %v1762 = vpack.c.b16 %v1506, %v1505
  %v1763 = vpack.c.b16 %v1508, %v1507
  %v1764 = vpack.c.b16 %v1510, %v1509
  %v1765 = vpack.c.b16 %v1512, %v1511
  %v1766 = vpack.c.b16 %v1514, %v1513
  %v1767 = vpack.c.b16 %v1516, %v1515
  %v1768 = vpack.c.b16 %v1518, %v1517
  %v1769 = vpack.c.b16 %v1520, %v1519
  %v1770 = vpack.c.b16 %v1522, %v1521
  %v1771 = vpack.c.b16 %v1524, %v1523
  %v1772 = vpack.c.b16 %v1526, %v1525
  %v1773 = vpack.c.b16 %v1528, %v1527
  %v1774 = vpack.c.b16 %v1530, %v1529
  %v1775 = vpack.c.b16 %v1532, %v1531
  %v1776 = vpack.c.b16 %v1534, %v1533
  %v1777 = vpack.c.b16 %v1536, %v1535
  %v1778 = vpack.c.b16 %v1538, %v1537
  %v1779 = vpack.c.b16 %v1540, %v1539
  %v1780 = vpack.c.b16 %v1542, %v1541
  %v1781 = vpack.c.b16 %v1544, %v1543
  %v1782 = vpack.c.b16 %v1546, %v1545
  %v1783 = vpack.c.b16 %v1548, %v1547
  %v1784 = vpack.c.b16 %v1550, %v1549
  %v1785 = vpack.c.b16 %v1552, %v1551
  %v1786 = vpack.c.b16 %v1554, %v1553
  %2019 = vmatprep.subr.bf16.mxu0 0
  %2020 = vmatpush1.bf16.msra.mxu0 %v1555
  %2021 = vmatprep.subr.bf16.mxu0 0
  %2022 = vmatpush1.bf16.msra.mxu0 %v1556
  %2023 = vmatprep.subr.bf16.mxu0 0
  %2024 = vmatpush1.bf16.msra.mxu0 %v1557
  %2025 = vmatprep.subr.bf16.mxu0 0
  %2026 = vmatpush1.bf16.msra.mxu0 %v1558
  %2027 = vmatprep.subr.bf16.mxu0 0
  %2028 = vmatpush1.bf16.msra.mxu0 %v1559
  %2029 = vmatprep.subr.bf16.mxu0 0
  %2030 = vmatpush1.bf16.msra.mxu0 %v1560
  %2031 = vmatprep.subr.bf16.mxu0 0
  %2032 = vmatpush1.bf16.msra.mxu0 %v1561
  %2033 = vmatprep.subr.bf16.mxu0 0
  %2034 = vmatpush1.bf16.msra.mxu0 %v1562
  %2035 = vmatprep.subr.bf16.mxu0 0
  %2036 = vmatpush1.bf16.msra.mxu0 %v1563
  %2037 = vmatprep.subr.bf16.mxu0 0
  %2038 = vmatpush1.bf16.msra.mxu0 %v1564
  %2039 = vmatprep.subr.bf16.mxu0 0
  %2040 = vmatpush1.bf16.msra.mxu0 %v1565
  %2041 = vmatprep.subr.bf16.mxu0 0
  %2042 = vmatpush1.bf16.msra.mxu0 %v1566
  %2043 = vmatprep.subr.bf16.mxu0 0
  %2044 = vmatpush1.bf16.msra.mxu0 %v1567
  %2045 = vmatprep.subr.bf16.mxu0 0
  %2046 = vmatpush1.bf16.msra.mxu0 %v1568
  %2047 = vmatprep.subr.bf16.mxu0 0
  %2048 = vmatpush1.bf16.msra.mxu0 %v1569
  %2049 = vmatprep.subr.bf16.mxu0 0
  %2050 = vmatpush1.bf16.msra.mxu0 %v1570
  %2051 = vmatprep.mubr.bf16.mxu0 %v570
  %2052 = vmatmul.mubr.bf16.gmra.mrb[0].mxu0 %v569
  %v2053 = vpop.f32.mrb[0].mxu0
  %v2054 = vadd.f32 %v523, %v2053
  %v2055 = vpop.f32.mrb[0].mxu0
  %v2056 = vpop.f32.mrb[0].mxu0
  %v2057 = vpop.f32.mrb[0].mxu0
  %2058 = vdwg.mxu0
  %2059 = vmatprep.subr.bf16.mxu0 0
  %2060 = vmatpush1.bf16.msra.mxu0 %v1571
  %2061 = vmatprep.subr.bf16.mxu0 0
  %2062 = vmatpush1.bf16.msra.mxu0 %v1572
  %2063 = vmatprep.subr.bf16.mxu0 0
  %2064 = vmatpush1.bf16.msra.mxu0 %v1573
  %2065 = vmatprep.subr.bf16.mxu0 0
  %2066 = vmatpush1.bf16.msra.mxu0 %v1574
  %2067 = vmatprep.subr.bf16.mxu0 0
  %2068 = vmatpush1.bf16.msra.mxu0 %v1575
  %2069 = vmatprep.subr.bf16.mxu0 0
  %2070 = vmatpush1.bf16.msra.mxu0 %v1576
  %2071 = vmatprep.subr.bf16.mxu0 0
  %2072 = vmatpush1.bf16.msra.mxu0 %v1577
  %2073 = vmatprep.subr.bf16.mxu0 0
  %2074 = vmatpush1.bf16.msra.mxu0 %v1578
  %2075 = vmatprep.subr.bf16.mxu0 0
  %2076 = vmatpush1.bf16.msra.mxu0 %v1579
  %2077 = vmatprep.subr.bf16.mxu0 0
  %2078 = vmatpush1.bf16.msra.mxu0 %v1580
  %2079 = vmatprep.subr.bf16.mxu0 0
  %2080 = vmatpush1.bf16.msra.mxu0 %v1581
  %2081 = vmatprep.subr.bf16.mxu0 0
  %2082 = vmatpush1.bf16.msra.mxu0 %v1582
  %2083 = vmatprep.subr.bf16.mxu0 0
  %2084 = vmatpush1.bf16.msra.mxu0 %v1583
  %2085 = vmatprep.subr.bf16.mxu0 0
  %2086 = vmatpush1.bf16.msra.mxu0 %v1584
  %2087 = vmatprep.subr.bf16.mxu0 0
  %2088 = vmatpush1.bf16.msra.mxu0 %v1585
  %2089 = vmatprep.subr.bf16.mxu0 0
  %2090 = vmatpush1.bf16.msra.mxu0 %v1586
  %2091 = vmatprep.mubr.bf16.mxu0 %v572
  %2092 = vmatmul.mubr.bf16.gmra.mrb[0].mxu0 %v571
  %v2093 = vpop.f32.mrb[0].mxu0
  %v2094 = vadd.f32 %v2054, %v2093
  %v2095 = vpop.f32.mrb[0].mxu0
  %v2096 = vpop.f32.mrb[0].mxu0
  %v2097 = vpop.f32.mrb[0].mxu0
  %2098 = vdwg.mxu0
  %2099 = vmatprep.subr.bf16.mxu0 0
  %2100 = vmatpush1.bf16.msra.mxu0 %v1587
  %2101 = vmatprep.subr.bf16.mxu0 0
  %2102 = vmatpush1.bf16.msra.mxu0 %v1588
  %2103 = vmatprep.subr.bf16.mxu0 0
  %2104 = vmatpush1.bf16.msra.mxu0 %v1589
  %2105 = vmatprep.subr.bf16.mxu0 0
  %2106 = vmatpush1.bf16.msra.mxu0 %v1590
  %2107 = vmatprep.subr.bf16.mxu0 0
  %2108 = vmatpush1.bf16.msra.mxu0 %v1591
  %2109 = vmatprep.subr.bf16.mxu0 0
  %2110 = vmatpush1.bf16.msra.mxu0 %v1592
  %2111 = vmatprep.subr.bf16.mxu0 0
  %2112 = vmatpush1.bf16.msra.mxu0 %v1593
  %2113 = vmatprep.subr.bf16.mxu0 0
  %2114 = vmatpush1.bf16.msra.mxu0 %v1594
  %2115 = vmatprep.subr.bf16.mxu0 0
  %2116 = vmatpush1.bf16.msra.mxu0 %v1595
  %2117 = vmatprep.subr.bf16.mxu0 0
  %2118 = vmatpush1.bf16.msra.mxu0 %v1596
  %2119 = vmatprep.subr.bf16.mxu0 0
  %2120 = vmatpush1.bf16.msra.mxu0 %v1597
  %2121 = vmatprep.subr.bf16.mxu0 0
  %2122 = vmatpush1.bf16.msra.mxu0 %v1598
  %2123 = vmatprep.subr.bf16.mxu0 0
  %2124 = vmatpush1.bf16.msra.mxu0 %v1599
  %2125 = vmatprep.subr.bf16.mxu0 0
  %2126 = vmatpush1.bf16.msra.mxu0 %v1600
  %2127 = vmatprep.subr.bf16.mxu0 0
  %2128 = vmatpush1.bf16.msra.mxu0 %v1601
  %2129 = vmatprep.subr.bf16.mxu0 0
  %2130 = vmatpush1.bf16.msra.mxu0 %v1602
  %2131 = vmatprep.mubr.bf16.mxu0 %v574
  %2132 = vmatmul.mubr.bf16.gmra.mrb[0].mxu0 %v573
  %v2133 = vpop.f32.mrb[0].mxu0
  %v2134 = vadd.f32 %v2094, %v2133
  %v2135 = vpop.f32.mrb[0].mxu0
  %v2136 = vpop.f32.mrb[0].mxu0
  %v2137 = vpop.f32.mrb[0].mxu0
  %2138 = vdwg.mxu0
  %2139 = vmatprep.subr.bf16.mxu0 0
  %2140 = vmatpush1.bf16.msra.mxu0 %v1603
  %2141 = vmatprep.subr.bf16.mxu0 0
  %2142 = vmatpush1.bf16.msra.mxu0 %v1604
  %2143 = vmatprep.subr.bf16.mxu0 0
  %2144 = vmatpush1.bf16.msra.mxu0 %v1605
  %2145 = vmatprep.subr.bf16.mxu0 0
  %2146 = vmatpush1.bf16.msra.mxu0 %v1606
  %2147 = vmatprep.subr.bf16.mxu0 0
  %2148 = vmatpush1.bf16.msra.mxu0 %v1607
  %2149 = vmatprep.subr.bf16.mxu0 0
  %2150 = vmatpush1.bf16.msra.mxu0 %v1608
  %2151 = vmatprep.subr.bf16.mxu0 0
  %2152 = vmatpush1.bf16.msra.mxu0 %v1609
  %2153 = vmatprep.subr.bf16.mxu0 0
  %2154 = vmatpush1.bf16.msra.mxu0 %v1610
  %2155 = vmatprep.subr.bf16.mxu0 0
  %2156 = vmatpush1.bf16.msra.mxu0 %v1611
  %2157 = vmatprep.subr.bf16.mxu0 0
  %2158 = vmatpush1.bf16.msra.mxu0 %v1612
  %2159 = vmatprep.subr.bf16.mxu0 0
  %2160 = vmatpush1.bf16.msra.mxu0 %v1613
  %2161 = vmatprep.subr.bf16.mxu0 0
  %2162 = vmatpush1.bf16.msra.mxu0 %v1614
  %2163 = vmatprep.subr.bf16.mxu0 0
  %2164 = vmatpush1.bf16.msra.mxu0 %v1615
  %2165 = vmatprep.subr.bf16.mxu0 0
  %2166 = vmatpush1.bf16.msra.mxu0 %v1616
  %2167 = vmatprep.subr.bf16.mxu0 0
  %2168 = vmatpush1.bf16.msra.mxu0 %v1617
  %2169 = vmatprep.subr.bf16.mxu0 0
  %2170 = vmatpush1.bf16.msra.mxu0 %v1618
  %2171 = vmatprep.mubr.bf16.mxu0 %v576
  %2172 = vmatmul.mubr.bf16.gmra.mrb[0].mxu0 %v575
  %v2173 = vpop.f32.mrb[0].mxu0
  %v2174 = vadd.f32 %v2134, %v2173
  %v2175 = vpop.f32.mrb[0].mxu0
  %v2176 = vpop.f32.mrb[0].mxu0
  %v2177 = vpop.f32.mrb[0].mxu0
  %2178 = vdwg.mxu0
  %2179 = vmatprep.subr.bf16.mxu0 0
  %2180 = vmatpush1.bf16.msra.mxu0 %v1619
  %2181 = vmatprep.subr.bf16.mxu0 0
  %2182 = vmatpush1.bf16.msra.mxu0 %v1620
  %2183 = vmatprep.subr.bf16.mxu0 0
  %2184 = vmatpush1.bf16.msra.mxu0 %v1621
  %2185 = vmatprep.subr.bf16.mxu0 0
  %2186 = vmatpush1.bf16.msra.mxu0 %v1622
  %2187 = vmatprep.subr.bf16.mxu0 0
  %2188 = vmatpush1.bf16.msra.mxu0 %v1623
  %2189 = vmatprep.subr.bf16.mxu0 0
  %2190 = vmatpush1.bf16.msra.mxu0 %v1624
  %2191 = vmatprep.subr.bf16.mxu0 0
  %2192 = vmatpush1.bf16.msra.mxu0 %v1625
  %2193 = vmatprep.subr.bf16.mxu0 0
  %2194 = vmatpush1.bf16.msra.mxu0 %v1626
  %2195 = vmatprep.subr.bf16.mxu0 0
  %2196 = vmatpush1.bf16.msra.mxu0 %v1627
  %2197 = vmatprep.subr.bf16.mxu0 0
  %2198 = vmatpush1.bf16.msra.mxu0 %v1628
  %2199 = vmatprep.subr.bf16.mxu0 0
  %2200 = vmatpush1.bf16.msra.mxu0 %v1629
  %2201 = vmatprep.subr.bf16.mxu0 0
  %2202 = vmatpush1.bf16.msra.mxu0 %v1630
  %2203 = vmatprep.subr.bf16.mxu0 0
  %2204 = vmatpush1.bf16.msra.mxu0 %v1631
  %2205 = vmatprep.subr.bf16.mxu0 0
  %2206 = vmatpush1.bf16.msra.mxu0 %v1632
  %2207 = vmatprep.subr.bf16.mxu0 0
  %2208 = vmatpush1.bf16.msra.mxu0 %v1633
  %2209 = vmatprep.subr.bf16.mxu0 0
  %2210 = vmatpush1.bf16.msra.mxu0 %v1634
  %2211 = vmatprep.mubr.bf16.mxu0 %v578
  %2212 = vmatmul.mubr.bf16.gmra.mrb[0].mxu0 %v577
  %v2213 = vpop.f32.mrb[0].mxu0
  %v2214 = vadd.f32 %v2174, %v2213
  %v2215 = vpop.f32.mrb[0].mxu0
  %v2216 = vpop.f32.mrb[0].mxu0
  %v2217 = vpop.f32.mrb[0].mxu0
  %2218 = vdwg.mxu0
  %2219 = vmatprep.subr.bf16.mxu0 0
  %2220 = vmatpush1.bf16.msra.mxu0 %v1635
  %2221 = vmatprep.subr.bf16.mxu0 0
  %2222 = vmatpush1.bf16.msra.mxu0 %v1636
  %2223 = vmatprep.subr.bf16.mxu0 0
  %2224 = vmatpush1.bf16.msra.mxu0 %v1637
  %2225 = vmatprep.subr.bf16.mxu0 0
  %2226 = vmatpush1.bf16.msra.mxu0 %v1638
  %2227 = vmatprep.subr.bf16.mxu0 0
  %2228 = vmatpush1.bf16.msra.mxu0 %v1639
  %2229 = vmatprep.subr.bf16.mxu0 0
  %2230 = vmatpush1.bf16.msra.mxu0 %v1640
  %2231 = vmatprep.subr.bf16.mxu0 0
  %2232 = vmatpush1.bf16.msra.mxu0 %v1641
  %2233 = vmatprep.subr.bf16.mxu0 0
  %2234 = vmatpush1.bf16.msra.mxu0 %v1642
  %2235 = vmatprep.subr.bf16.mxu0 0
  %2236 = vmatpush1.bf16.msra.mxu0 %v1643
  %2237 = vmatprep.subr.bf16.mxu0 0
  %2238 = vmatpush1.bf16.msra.mxu0 %v1644
  %2239 = vmatprep.subr.bf16.mxu0 0
  %2240 = vmatpush1.bf16.msra.mxu0 %v1645
  %2241 = vmatprep.subr.bf16.mxu0 0
  %2242 = vmatpush1.bf16.msra.mxu0 %v1646
  %2243 = vmatprep.subr.bf16.mxu0 0
  %2244 = vmatpush1.bf16.msra.mxu0 %v1647
  %2245 = vmatprep.subr.bf16.mxu0 0
  %2246 = vmatpush1.bf16.msra.mxu0 %v1648
  %2247 = vmatprep.subr.bf16.mxu0 0
  %2248 = vmatpush1.bf16.msra.mxu0 %v1649
  %2249 = vmatprep.subr.bf16.mxu0 0
  %2250 = vmatpush1.bf16.msra.mxu0 %v1650
  %2251 = vmatprep.mubr.bf16.mxu0 %v580
  %2252 = vmatmul.mubr.bf16.gmra.mrb[0].mxu0 %v579
  %v2253 = vpop.f32.mrb[0].mxu0
  %v2254 = vadd.f32 %v2214, %v2253
  %v2255 = vpop.f32.mrb[0].mxu0
  %v2256 = vpop.f32.mrb[0].mxu0
  %v2257 = vpop.f32.mrb[0].mxu0
  %2258 = vdwg.mxu0
  %2259 = vmatprep.subr.bf16.mxu0 0
  %2260 = vmatpush1.bf16.msra.mxu0 %v1651
  %2261 = vmatprep.subr.bf16.mxu0 0
  %2262 = vmatpush1.bf16.msra.mxu0 %v1652
  %2263 = vmatprep.subr.bf16.mxu0 0
  %2264 = vmatpush1.bf16.msra.mxu0 %v1653
  %2265 = vmatprep.subr.bf16.mxu0 0
  %2266 = vmatpush1.bf16.msra.mxu0 %v1654
  %2267 = vmatprep.subr.bf16.mxu0 0
  %2268 = vmatpush1.bf16.msra.mxu0 %v1655
  %2269 = vmatprep.subr.bf16.mxu0 0
  %2270 = vmatpush1.bf16.msra.mxu0 %v1656
  %2271 = vmatprep.subr.bf16.mxu0 0
  %2272 = vmatpush1.bf16.msra.mxu0 %v1657
  %2273 = vmatprep.subr.bf16.mxu0 0
  %2274 = vmatpush1.bf16.msra.mxu0 %v1658
  %2275 = vmatprep.subr.bf16.mxu0 0
  %2276 = vmatpush1.bf16.msra.mxu0 %v1659
  %2277 = vmatprep.subr.bf16.mxu0 0
  %2278 = vmatpush1.bf16.msra.mxu0 %v1660
  %2279 = vmatprep.subr.bf16.mxu0 0
  %2280 = vmatpush1.bf16.msra.mxu0 %v1661
  %2281 = vmatprep.subr.bf16.mxu0 0
  %2282 = vmatpush1.bf16.msra.mxu0 %v1662
  %2283 = vmatprep.subr.bf16.mxu0 0
  %2284 = vmatpush1.bf16.msra.mxu0 %v1663
  %2285 = vmatprep.subr.bf16.mxu0 0
  %2286 = vmatpush1.bf16.msra.mxu0 %v1664
  %2287 = vmatprep.subr.bf16.mxu0 0
  %2288 = vmatpush1.bf16.msra.mxu0 %v1665
  %2289 = vmatprep.subr.bf16.mxu0 0
  %2290 = vmatpush1.bf16.msra.mxu0 %v1666
  %2291 = vmatprep.mubr.bf16.mxu0 %v582
  %2292 = vmatmul.mubr.bf16.gmra.mrb[0].mxu0 %v581
  %v2293 = vpop.f32.mrb[0].mxu0
  %v2294 = vadd.f32 %v2254, %v2293
  %v2295 = vpop.f32.mrb[0].mxu0
  %v2296 = vpop.f32.mrb[0].mxu0
  %v2297 = vpop.f32.mrb[0].mxu0
  %2298 = vdwg.mxu0
  %2299 = vmatprep.subr.bf16.mxu0 0
  %2300 = vmatpush1.bf16.msra.mxu0 %v1667
  %2301 = vmatprep.subr.bf16.mxu0 0
  %2302 = vmatpush1.bf16.msra.mxu0 %v1668
  %2303 = vmatprep.subr.bf16.mxu0 0
  %2304 = vmatpush1.bf16.msra.mxu0 %v1669
  %2305 = vmatprep.subr.bf16.mxu0 0
  %2306 = vmatpush1.bf16.msra.mxu0 %v1670
  %2307 = vmatprep.subr.bf16.mxu0 0
  %2308 = vmatpush1.bf16.msra.mxu0 %v1671
  %2309 = vmatprep.subr.bf16.mxu0 0
  %2310 = vmatpush1.bf16.msra.mxu0 %v1672
  %2311 = vmatprep.subr.bf16.mxu0 0
  %2312 = vmatpush1.bf16.msra.mxu0 %v1673
  %2313 = vmatprep.subr.bf16.mxu0 0
  %2314 = vmatpush1.bf16.msra.mxu0 %v1674
  %2315 = vmatprep.subr.bf16.mxu0 0
  %2316 = vmatpush1.bf16.msra.mxu0 %v1675
  %2317 = vmatprep.subr.bf16.mxu0 0
  %2318 = vmatpush1.bf16.msra.mxu0 %v1676
  %2319 = vmatprep.subr.bf16.mxu0 0
  %2320 = vmatpush1.bf16.msra.mxu0 %v1677
  %2321 = vmatprep.subr.bf16.mxu0 0
  %2322 = vmatpush1.bf16.msra.mxu0 %v1678
  %2323 = vmatprep.subr.bf16.mxu0 0
  %2324 = vmatpush1.bf16.msra.mxu0 %v1679
  %2325 = vmatprep.subr.bf16.mxu0 0
  %2326 = vmatpush1.bf16.msra.mxu0 %v1680
  %2327 = vmatprep.subr.bf16.mxu0 0
  %2328 = vmatpush1.bf16.msra.mxu0 %v1681
  %2329 = vmatprep.subr.bf16.mxu0 0
  %2330 = vmatpush1.bf16.msra.mxu0 %v1682
  %2331 = vmatprep.mubr.bf16.mxu0 %v584
  %2332 = vmatmul.mubr.bf16.gmra.mrb[0].mxu0 %v583
  %v2333 = vpop.f32.mrb[0].mxu0
  %v2334 = vadd.f32 %v2294, %v2333
  %v2335 = vpop.f32.mrb[0].mxu0
  %v2336 = vpop.f32.mrb[0].mxu0
  %v2337 = vpop.f32.mrb[0].mxu0
  %2338 = vdwg.mxu0
  %2339 = vmatprep.subr.bf16.mxu0 0
  %2340 = vmatpush1.bf16.msra.mxu0 %v1683
  %2341 = vmatprep.subr.bf16.mxu0 0
  %2342 = vmatpush1.bf16.msra.mxu0 %v1684
  %2343 = vmatprep.subr.bf16.mxu0 0
  %2344 = vmatpush1.bf16.msra.mxu0 %v1685
  %2345 = vmatprep.subr.bf16.mxu0 0
  %2346 = vmatpush1.bf16.msra.mxu0 %v1686
  %2347 = vmatprep.subr.bf16.mxu0 0
  %2348 = vmatpush1.bf16.msra.mxu0 %v1687
  %2349 = vmatprep.subr.bf16.mxu0 0
  %2350 = vmatpush1.bf16.msra.mxu0 %v1688
  %2351 = vmatprep.subr.bf16.mxu0 0
  %2352 = vmatpush1.bf16.msra.mxu0 %v1689
  %2353 = vmatprep.subr.bf16.mxu0 0
  %2354 = vmatpush1.bf16.msra.mxu0 %v1690
  %2355 = vmatprep.subr.bf16.mxu0 0
  %2356 = vmatpush1.bf16.msra.mxu0 %v1691
  %2357 = vmatprep.subr.bf16.mxu0 0
  %2358 = vmatpush1.bf16.msra.mxu0 %v1692
  %2359 = vmatprep.subr.bf16.mxu0 0
  %2360 = vmatpush1.bf16.msra.mxu0 %v1693
  %2361 = vmatprep.subr.bf16.mxu0 0
  %2362 = vmatpush1.bf16.msra.mxu0 %v1694
  %2363 = vmatprep.subr.bf16.mxu0 0
  %2364 = vmatpush1.bf16.msra.mxu0 %v1695
  %2365 = vmatprep.subr.bf16.mxu0 0
  %2366 = vmatpush1.bf16.msra.mxu0 %v1696
  %2367 = vmatprep.subr.bf16.mxu0 0
  %2368 = vmatpush1.bf16.msra.mxu0 %v1697
  %2369 = vmatprep.subr.bf16.mxu0 0
  %2370 = vmatpush1.bf16.msra.mxu0 %v1698
  %2371 = vmatprep.mubr.bf16.mxu0 %v586
  %2372 = vmatmul.mubr.bf16.gmra.mrb[0].mxu0 %v585
  %v2373 = vpop.f32.mrb[0].mxu0
  %v2374 = vadd.f32 %v2334, %v2373
  %v2375 = vpop.f32.mrb[0].mxu0
  %v2376 = vpop.f32.mrb[0].mxu0
  %v2377 = vpop.f32.mrb[0].mxu0
  %2378 = vdwg.mxu0
  %2379 = vmatprep.subr.bf16.mxu0 0
  %2380 = vmatpush1.bf16.msra.mxu0 %v1699
  %2381 = vmatprep.subr.bf16.mxu0 0
  %2382 = vmatpush1.bf16.msra.mxu0 %v1700
  %2383 = vmatprep.subr.bf16.mxu0 0
  %2384 = vmatpush1.bf16.msra.mxu0 %v1701
  %2385 = vmatprep.subr.bf16.mxu0 0
  %2386 = vmatpush1.bf16.msra.mxu0 %v1702
  %2387 = vmatprep.subr.bf16.mxu0 0
  %2388 = vmatpush1.bf16.msra.mxu0 %v1703
  %2389 = vmatprep.subr.bf16.mxu0 0
  %2390 = vmatpush1.bf16.msra.mxu0 %v1704
  %2391 = vmatprep.subr.bf16.mxu0 0
  %2392 = vmatpush1.bf16.msra.mxu0 %v1705
  %2393 = vmatprep.subr.bf16.mxu0 0
  %2394 = vmatpush1.bf16.msra.mxu0 %v1706
  %2395 = vmatprep.subr.bf16.mxu0 0
  %2396 = vmatpush1.bf16.msra.mxu0 %v1707
  %2397 = vmatprep.subr.bf16.mxu0 0
  %2398 = vmatpush1.bf16.msra.mxu0 %v1708
  %2399 = vmatprep.subr.bf16.mxu0 0
  %2400 = vmatpush1.bf16.msra.mxu0 %v1709
  %2401 = vmatprep.subr.bf16.mxu0 0
  %2402 = vmatpush1.bf16.msra.mxu0 %v1710
  %2403 = vmatprep.subr.bf16.mxu0 0
  %2404 = vmatpush1.bf16.msra.mxu0 %v1711
  %2405 = vmatprep.subr.bf16.mxu0 0
  %2406 = vmatpush1.bf16.msra.mxu0 %v1712
  %2407 = vmatprep.subr.bf16.mxu0 0
  %2408 = vmatpush1.bf16.msra.mxu0 %v1713
  %2409 = vmatprep.subr.bf16.mxu0 0
  %2410 = vmatpush1.bf16.msra.mxu0 %v1714
  %2411 = vmatprep.mubr.bf16.mxu0 %v588
  %2412 = vmatmul.mubr.bf16.gmra.mrb[0].mxu0 %v587
  %v2413 = vpop.f32.mrb[0].mxu0
  %v2414 = vadd.f32 %v2374, %v2413
  %v2415 = vpop.f32.mrb[0].mxu0
  %v2416 = vpop.f32.mrb[0].mxu0
  %v2417 = vpop.f32.mrb[0].mxu0
  %2418 = vdwg.mxu0
  %2419 = vmatprep.subr.bf16.mxu0 0
  %2420 = vmatpush1.bf16.msra.mxu0 %v1715
  %2421 = vmatprep.subr.bf16.mxu0 0
  %2422 = vmatpush1.bf16.msra.mxu0 %v1716
  %2423 = vmatprep.subr.bf16.mxu0 0
  %2424 = vmatpush1.bf16.msra.mxu0 %v1717
  %2425 = vmatprep.subr.bf16.mxu0 0
  %2426 = vmatpush1.bf16.msra.mxu0 %v1718
  %2427 = vmatprep.subr.bf16.mxu0 0
  %2428 = vmatpush1.bf16.msra.mxu0 %v1719
  %2429 = vmatprep.subr.bf16.mxu0 0
  %2430 = vmatpush1.bf16.msra.mxu0 %v1720
  %2431 = vmatprep.subr.bf16.mxu0 0
  %2432 = vmatpush1.bf16.msra.mxu0 %v1721
  %2433 = vmatprep.subr.bf16.mxu0 0
  %2434 = vmatpush1.bf16.msra.mxu0 %v1722
  %2435 = vmatprep.subr.bf16.mxu0 0
  %2436 = vmatpush1.bf16.msra.mxu0 %v1723
  %2437 = vmatprep.subr.bf16.mxu0 0
  %2438 = vmatpush1.bf16.msra.mxu0 %v1724
  %2439 = vmatprep.subr.bf16.mxu0 0
  %2440 = vmatpush1.bf16.msra.mxu0 %v1725
  %2441 = vmatprep.subr.bf16.mxu0 0
  %2442 = vmatpush1.bf16.msra.mxu0 %v1726
  %2443 = vmatprep.subr.bf16.mxu0 0
  %2444 = vmatpush1.bf16.msra.mxu0 %v1727
  %2445 = vmatprep.subr.bf16.mxu0 0
  %2446 = vmatpush1.bf16.msra.mxu0 %v1728
  %2447 = vmatprep.subr.bf16.mxu0 0
  %2448 = vmatpush1.bf16.msra.mxu0 %v1729
  %2449 = vmatprep.subr.bf16.mxu0 0
  %2450 = vmatpush1.bf16.msra.mxu0 %v1730
  %2451 = vmatprep.mubr.bf16.mxu0 %v590
  %2452 = vmatmul.mubr.bf16.gmra.mrb[0].mxu0 %v589
  %v2453 = vpop.f32.mrb[0].mxu0
  %v2454 = vadd.f32 %v2414, %v2453
  %v2455 = vpop.f32.mrb[0].mxu0
  %v2456 = vpop.f32.mrb[0].mxu0
  %v2457 = vpop.f32.mrb[0].mxu0
  %2458 = vdwg.mxu0
  %2459 = vmatprep.subr.bf16.mxu0 0
  %2460 = vmatpush1.bf16.msra.mxu0 %v1731
  %2461 = vmatprep.subr.bf16.mxu0 0
  %2462 = vmatpush1.bf16.msra.mxu0 %v1732
  %2463 = vmatprep.subr.bf16.mxu0 0
  %2464 = vmatpush1.bf16.msra.mxu0 %v1733
  %2465 = vmatprep.subr.bf16.mxu0 0
  %2466 = vmatpush1.bf16.msra.mxu0 %v1734
  %2467 = vmatprep.subr.bf16.mxu0 0
  %2468 = vmatpush1.bf16.msra.mxu0 %v1735
  %2469 = vmatprep.subr.bf16.mxu0 0
  %2470 = vmatpush1.bf16.msra.mxu0 %v1736
  %2471 = vmatprep.subr.bf16.mxu0 0
  %2472 = vmatpush1.bf16.msra.mxu0 %v1737
  %2473 = vmatprep.subr.bf16.mxu0 0
  %2474 = vmatpush1.bf16.msra.mxu0 %v1738
  %2475 = vmatprep.subr.bf16.mxu0 0
  %2476 = vmatpush1.bf16.msra.mxu0 %v1739
  %2477 = vmatprep.subr.bf16.mxu0 0
  %2478 = vmatpush1.bf16.msra.mxu0 %v1740
  %2479 = vmatprep.subr.bf16.mxu0 0
  %2480 = vmatpush1.bf16.msra.mxu0 %v1741
  %2481 = vmatprep.subr.bf16.mxu0 0
  %2482 = vmatpush1.bf16.msra.mxu0 %v1742
  %2483 = vmatprep.subr.bf16.mxu0 0
  %2484 = vmatpush1.bf16.msra.mxu0 %v1743
  %2485 = vmatprep.subr.bf16.mxu0 0
  %2486 = vmatpush1.bf16.msra.mxu0 %v1744
  %2487 = vmatprep.subr.bf16.mxu0 0
  %2488 = vmatpush1.bf16.msra.mxu0 %v1745
  %2489 = vmatprep.subr.bf16.mxu0 0
  %2490 = vmatpush1.bf16.msra.mxu0 %v1746
  %2491 = vmatprep.mubr.bf16.mxu0 %v592
  %2492 = vmatmul.mubr.bf16.gmra.mrb[0].mxu0 %v591
  %v2493 = vpop.f32.mrb[0].mxu0
  %v2494 = vadd.f32 %v2454, %v2493
  %v2495 = vpop.f32.mrb[0].mxu0
  %v2496 = vpop.f32.mrb[0].mxu0
  %v2497 = vpop.f32.mrb[0].mxu0
  %2498 = vdwg.mxu0
  %2499 = vmatprep.subr.bf16.mxu0 0
  %2500 = vmatpush1.bf16.msra.mxu0 %v1747
  %2501 = vmatprep.subr.bf16.mxu0 0
  %2502 = vmatpush1.bf16.msra.mxu0 %v1748
  %2503 = vmatprep.subr.bf16.mxu0 0
  %2504 = vmatpush1.bf16.msra.mxu0 %v1749
  %2505 = vmatprep.subr.bf16.mxu0 0
  %2506 = vmatpush1.bf16.msra.mxu0 %v1750
  %2507 = vmatprep.subr.bf16.mxu0 0
  %2508 = vmatpush1.bf16.msra.mxu0 %v1751
  %2509 = vmatprep.subr.bf16.mxu0 0
  %2510 = vmatpush1.bf16.msra.mxu0 %v1752
  %2511 = vmatprep.subr.bf16.mxu0 0
  %2512 = vmatpush1.bf16.msra.mxu0 %v1753
  %2513 = vmatprep.subr.bf16.mxu0 0
  %2514 = vmatpush1.bf16.msra.mxu0 %v1754
  %2515 = vmatprep.subr.bf16.mxu0 0
  %2516 = vmatpush1.bf16.msra.mxu0 %v1755
  %2517 = vmatprep.subr.bf16.mxu0 0
  %2518 = vmatpush1.bf16.msra.mxu0 %v1756
  %2519 = vmatprep.subr.bf16.mxu0 0
  %2520 = vmatpush1.bf16.msra.mxu0 %v1757
  %2521 = vmatprep.subr.bf16.mxu0 0
  %2522 = vmatpush1.bf16.msra.mxu0 %v1758
  %2523 = vmatprep.subr.bf16.mxu0 0
  %2524 = vmatpush1.bf16.msra.mxu0 %v1759
  %2525 = vmatprep.subr.bf16.mxu0 0
  %2526 = vmatpush1.bf16.msra.mxu0 %v1760
  %2527 = vmatprep.subr.bf16.mxu0 0
  %2528 = vmatpush1.bf16.msra.mxu0 %v1761
  %2529 = vmatprep.subr.bf16.mxu0 0
  %2530 = vmatpush1.bf16.msra.mxu0 %v1762
  %2531 = vmatprep.mubr.bf16.mxu0 %v594
  %2532 = vmatmul.mubr.bf16.gmra.mrb[0].mxu0 %v593
  %v2533 = vpop.f32.mrb[0].mxu0
  %v2534 = vadd.f32 %v2494, %v2533
  %v2535 = vpop.f32.mrb[0].mxu0
  %v2536 = vpop.f32.mrb[0].mxu0
  %v2537 = vpop.f32.mrb[0].mxu0
  %2538 = vdwg.mxu0
  %2539 = vmatprep.subr.bf16.mxu0 0
  %2540 = vmatpush1.bf16.msra.mxu0 %v1763
  %2541 = vmatprep.subr.bf16.mxu0 0
  %2542 = vmatpush1.bf16.msra.mxu0 %v1764
  %2543 = vmatprep.subr.bf16.mxu0 0
  %2544 = vmatpush1.bf16.msra.mxu0 %v1765
  %2545 = vmatprep.subr.bf16.mxu0 0
  %2546 = vmatpush1.bf16.msra.mxu0 %v1766
  %2547 = vmatprep.subr.bf16.mxu0 0
  %2548 = vmatpush1.bf16.msra.mxu0 %v1767
  %2549 = vmatprep.subr.bf16.mxu0 0
  %2550 = vmatpush1.bf16.msra.mxu0 %v1768
  %2551 = vmatprep.subr.bf16.mxu0 0
  %2552 = vmatpush1.bf16.msra.mxu0 %v1769
  %2553 = vmatprep.subr.bf16.mxu0 0
  %2554 = vmatpush1.bf16.msra.mxu0 %v1770
  %2555 = vmatprep.subr.bf16.mxu0 0
  %2556 = vmatpush1.bf16.msra.mxu0 %v1771
  %2557 = vmatprep.subr.bf16.mxu0 0
  %2558 = vmatpush1.bf16.msra.mxu0 %v1772
  %2559 = vmatprep.subr.bf16.mxu0 0
  %2560 = vmatpush1.bf16.msra.mxu0 %v1773
  %2561 = vmatprep.subr.bf16.mxu0 0
  %2562 = vmatpush1.bf16.msra.mxu0 %v1774
  %2563 = vmatprep.subr.bf16.mxu0 0
  %2564 = vmatpush1.bf16.msra.mxu0 %v1775
  %2565 = vmatprep.subr.bf16.mxu0 0
  %2566 = vmatpush1.bf16.msra.mxu0 %v1776
  %2567 = vmatprep.subr.bf16.mxu0 0
  %2568 = vmatpush1.bf16.msra.mxu0 %v1777
  %2569 = vmatprep.subr.bf16.mxu0 0
  %2570 = vmatpush1.bf16.msra.mxu0 %v1778
  %2571 = vmatprep.mubr.bf16.mxu0 %v596
  %2572 = vmatmul.mubr.bf16.gmra.mrb[0].mxu0 %v595
  %v2573 = vpop.f32.mrb[0].mxu0
  %v2574 = vadd.f32 %v2534, %v2573
  %v2575 = vpop.f32.mrb[0].mxu0
  %v2576 = vpop.f32.mrb[0].mxu0
  %v2577 = vpop.f32.mrb[0].mxu0
  %2578 = vdwg.mxu0
  %2579 = vmatprep.subr.bf16.mxu0 0
  %2580 = vmatpush1.bf16.msra.mxu0 %v1779
  %2581 = vmatprep.subr.bf16.mxu0 0
  %2582 = vmatpush1.bf16.msra.mxu0 %v1780
  %2583 = vmatprep.subr.bf16.mxu0 0
  %2584 = vmatpush1.bf16.msra.mxu0 %v1781
  %2585 = vmatprep.subr.bf16.mxu0 0
  %2586 = vmatpush1.bf16.msra.mxu0 %v1782
  %2587 = vmatprep.subr.bf16.mxu0 0
  %2588 = vmatpush1.bf16.msra.mxu0 %v1783
  %2589 = vmatprep.subr.bf16.mxu0 0
  %2590 = vmatpush1.bf16.msra.mxu0 %v1784
  %2591 = vmatprep.subr.bf16.mxu0 0
  %2592 = vmatpush1.bf16.msra.mxu0 %v1785
  %2593 = vmatprep.subr.bf16.mxu0 0
  %2594 = vmatpush1.bf16.msra.mxu0 %v1786
  %2595 = vmatprep.subr.bf16.mxu0 0
  %2596 = vmatpush1.bf16.msra.mxu0 0
  %2597 = vmatprep.subr.bf16.mxu0 0
  %2598 = vmatpush1.bf16.msra.mxu0 0
  %2599 = vmatprep.subr.bf16.mxu0 0
  %2600 = vmatpush1.bf16.msra.mxu0 0
  %2601 = vmatprep.subr.bf16.mxu0 0
  %2602 = vmatpush1.bf16.msra.mxu0 0
  %2603 = vmatprep.subr.bf16.mxu0 0
  %2604 = vmatpush1.bf16.msra.mxu0 0
  %2605 = vmatprep.subr.bf16.mxu0 0
  %2606 = vmatpush1.bf16.msra.mxu0 0
  %2607 = vmatprep.subr.bf16.mxu0 0
  %2608 = vmatpush1.bf16.msra.mxu0 0
  %2609 = vmatprep.subr.bf16.mxu0 0
  %2610 = vmatpush1.bf16.msra.mxu0 0
  %2611 = vmatprep.mubr.bf16.mxu0 0
  %2612 = vmatmul.mubr.bf16.gmra.mrb[0].mxu0 %v597
  %v2613 = vpop.f32.mrb[0].mxu0
  %v2614 = vadd.f32 %v2574, %v2613
  %v2615 = vpop.f32.mrb[0].mxu0
  %v2616 = vpop.f32.mrb[0].mxu0
  %v2617 = vpop.f32.mrb[0].mxu0
  %2618 = vdwg.mxu0
  %v2619 = vld [vmem:[%s1] sm:$0xff]
  %v2620 = vld [vmem:[%s1 + $0x8] sm:$0xff]
  %v2621 = vld [vmem:[%s1 + $0x10] sm:$0xff]
  %v2622 = vld [vmem:[%s1 + $0x18] sm:$0xff]
  %v2623 = vld [vmem:[%s1 + $0x20] sm:$0xff]
  %v2624 = vld [vmem:[%s1 + $0x28] sm:$0xff]
  %v2625 = vld [vmem:[%s1 + $0x30] sm:$0xff]
  %v2626 = vld [vmem:[%s1 + $0x38] sm:$0xff]
  %v2627 = vld [vmem:[%s1 + $0x40] sm:$0xff]
  %v2628 = vld [vmem:[%s1 + $0x48] sm:$0xff]
  %v2629 = vld [vmem:[%s1 + $0x50] sm:$0xff]
  %v2630 = vld [vmem:[%s1 + $0x58] sm:$0xff]
  %v2631 = vld [vmem:[%s1 + $0x60] sm:$0xff]
  %v2632 = vld [vmem:[%s1 + $0x68] sm:$0xff]
  %v2633 = vld [vmem:[%s1 + $0x70] sm:$0xf]
  %s2634 = scalar_lea.vmem %s3, 1856
  %v2635 = vld [vmem:[%s2634] sm:$0xf]
  %v2636 = vld [vmem:[%s2634 + $0x4] sm:$0xf]
  %v2637 = vld [vmem:[%s2634 + $0x8] sm:$0xf]
  %v2638 = vld [vmem:[%s2634 + $0xc] sm:$0xf]
  %v2639 = vld [vmem:[%s2634 + $0x10] sm:$0xf]
  %v2640 = vld [vmem:[%s2634 + $0x14] sm:$0xf]
  %v2641 = vld [vmem:[%s2634 + $0x18] sm:$0xf]
  %v2642 = vld [vmem:[%s2634 + $0x1c] sm:$0xf]
  %v2643 = vld [vmem:[%s2634 + $0x20] sm:$0xf]
  %v2644 = vld [vmem:[%s2634 + $0x24] sm:$0xf]
  %v2645 = vld [vmem:[%s2634 + $0x28] sm:$0xf]
  %v2646 = vld [vmem:[%s2634 + $0x2c] sm:$0xf]
  %v2647 = vld [vmem:[%s2634 + $0x30] sm:$0xf]
  %v2648 = vld [vmem:[%s2634 + $0x34] sm:$0xf]
  %v2649 = vld [vmem:[%s2634 + $0x38] sm:$0xf]
  %v2650 = vld [vmem:[%s2634 + $0x3c] sm:$0xf]
  %v2651 = vld [vmem:[%s2634 + $0x40] sm:$0xf]
  %v2652 = vld [vmem:[%s2634 + $0x44] sm:$0xf]
  %v2653 = vld [vmem:[%s2634 + $0x48] sm:$0xf]
  %v2654 = vld [vmem:[%s2634 + $0x4c] sm:$0xf]
  %v2655 = vld [vmem:[%s2634 + $0x50] sm:$0xf]
  %v2656 = vld [vmem:[%s2634 + $0x54] sm:$0xf]
  %v2657 = vld [vmem:[%s2634 + $0x58] sm:$0xf]
  %v2658 = vld [vmem:[%s2634 + $0x5c] sm:$0xf]
  %v2659 = vld [vmem:[%s2634 + $0x60] sm:$0xf]
  %v2660 = vld [vmem:[%s2634 + $0x64] sm:$0xf]
  %v2661 = vld [vmem:[%s2634 + $0x68] sm:$0xf]
  %v2662 = vld [vmem:[%s2634 + $0x6c] sm:$0xf]
  %v2663 = vld [vmem:[%s2634 + $0x70] sm:$0xf]
  %v2664 = vld [vmem:[%s2634 + $0x74] sm:$0xf]
  %v2665 = vld [vmem:[%s2634 + $0x78] sm:$0xf]
  %v2666 = vld [vmem:[%s2634 + $0x7c] sm:$0xf]
  %v2667 = vld [vmem:[%s2634 + $0x80] sm:$0xf]
  %v2668 = vld [vmem:[%s2634 + $0x84] sm:$0xf]
  %v2669 = vld [vmem:[%s2634 + $0x88] sm:$0xf]
  %v2670 = vld [vmem:[%s2634 + $0x8c] sm:$0xf]
  %v2671 = vld [vmem:[%s2634 + $0x90] sm:$0xf]
  %v2672 = vld [vmem:[%s2634 + $0x94] sm:$0xf]
  %v2673 = vld [vmem:[%s2634 + $0x98] sm:$0xf]
  %v2674 = vld [vmem:[%s2634 + $0x9c] sm:$0xf]
  %v2675 = vld [vmem:[%s2634 + $0xa0] sm:$0xf]
  %v2676 = vld [vmem:[%s2634 + $0xa4] sm:$0xf]
  %v2677 = vld [vmem:[%s2634 + $0xa8] sm:$0xf]
  %v2678 = vld [vmem:[%s2634 + $0xac] sm:$0xf]
  %v2679 = vld [vmem:[%s2634 + $0xb0] sm:$0xf]
  %v2680 = vld [vmem:[%s2634 + $0xb4] sm:$0xf]
  %v2681 = vld [vmem:[%s2634 + $0xb8] sm:$0xf]
  %v2682 = vld [vmem:[%s2634 + $0xbc] sm:$0xf]
  %v2683 = vld [vmem:[%s2634 + $0xc0] sm:$0xf]
  %v2684 = vld [vmem:[%s2634 + $0xc4] sm:$0xf]
  %v2685 = vld [vmem:[%s2634 + $0xc8] sm:$0xf]
  %v2686 = vld [vmem:[%s2634 + $0xcc] sm:$0xf]
  %v2687 = vld [vmem:[%s2634 + $0xd0] sm:$0xf]
  %v2688 = vld [vmem:[%s2634 + $0xd4] sm:$0xf]
  %v2689 = vld [vmem:[%s2634 + $0xd8] sm:$0xf]
  %v2690 = vld [vmem:[%s2634 + $0xdc] sm:$0xf]
  %v2691 = vld [vmem:[%s2634 + $0xe0] sm:$0xf]
  %v2692 = vld [vmem:[%s2634 + $0xe4] sm:$0xf]
  %v2693 = vld [vmem:[%s2634 + $0xe8] sm:$0xf]
  %v2694 = vld [vmem:[%s2634 + $0xec] sm:$0xf]
  %v2695 = vld [vmem:[%s2634 + $0xf0] sm:$0xf]
  %v2696 = vld [vmem:[%s2634 + $0xf4] sm:$0xf]
  %v2697 = vld [vmem:[%s2634 + $0xf8] sm:$0xf]
  %v2698 = vld [vmem:[%s2634 + $0xfc] sm:$0xf]
  %v2699 = vld [vmem:[%s2634 + $0x100] sm:$0xf]
  %v2700 = vld [vmem:[%s2634 + $0x104] sm:$0xf]
  %v2701 = vld [vmem:[%s2634 + $0x108] sm:$0xf]
  %v2702 = vld [vmem:[%s2634 + $0x10c] sm:$0xf]
  %v2703 = vld [vmem:[%s2634 + $0x110] sm:$0xf]
  %v2704 = vld [vmem:[%s2634 + $0x114] sm:$0xf]
  %v2705 = vld [vmem:[%s2634 + $0x118] sm:$0xf]
  %v2706 = vld [vmem:[%s2634 + $0x11c] sm:$0xf]
  %v2707 = vld [vmem:[%s2634 + $0x120] sm:$0xf]
  %v2708 = vld [vmem:[%s2634 + $0x124] sm:$0xf]
  %v2709 = vld [vmem:[%s2634 + $0x128] sm:$0xf]
  %v2710 = vld [vmem:[%s2634 + $0x12c] sm:$0xf]
  %v2711 = vld [vmem:[%s2634 + $0x130] sm:$0xf]
  %v2712 = vld [vmem:[%s2634 + $0x134] sm:$0xf]
  %v2713 = vld [vmem:[%s2634 + $0x138] sm:$0xf]
  %v2714 = vld [vmem:[%s2634 + $0x13c] sm:$0xf]
  %v2715 = vld [vmem:[%s2634 + $0x140] sm:$0xf]
  %v2716 = vld [vmem:[%s2634 + $0x144] sm:$0xf]
  %v2717 = vld [vmem:[%s2634 + $0x148] sm:$0xf]
  %v2718 = vld [vmem:[%s2634 + $0x14c] sm:$0xf]
  %v2719 = vld [vmem:[%s2634 + $0x150] sm:$0xf]
  %v2720 = vld [vmem:[%s2634 + $0x154] sm:$0xf]
  %v2721 = vld [vmem:[%s2634 + $0x158] sm:$0xf]
  %v2722 = vld [vmem:[%s2634 + $0x15c] sm:$0xf]
  %v2723 = vld [vmem:[%s2634 + $0x160] sm:$0xf]
  %v2724 = vld [vmem:[%s2634 + $0x164] sm:$0xf]
  %v2725 = vld [vmem:[%s2634 + $0x168] sm:$0xf]
  %v2726 = vld [vmem:[%s2634 + $0x16c] sm:$0xf]
  %v2727 = vld [vmem:[%s2634 + $0x170] sm:$0xf]
  %v2728 = vld [vmem:[%s2634 + $0x174] sm:$0xf]
  %v2729 = vld [vmem:[%s2634 + $0x178] sm:$0xf]
  %v2730 = vld [vmem:[%s2634 + $0x17c] sm:$0xf]
  %v2731 = vld [vmem:[%s2634 + $0x180] sm:$0xf]
  %v2732 = vld [vmem:[%s2634 + $0x184] sm:$0xf]
  %v2733 = vld [vmem:[%s2634 + $0x188] sm:$0xf]
  %v2734 = vld [vmem:[%s2634 + $0x18c] sm:$0xf]
  %v2735 = vld [vmem:[%s2634 + $0x190] sm:$0xf]
  %v2736 = vld [vmem:[%s2634 + $0x194] sm:$0xf]
  %v2737 = vld [vmem:[%s2634 + $0x198] sm:$0xf]
  %v2738 = vld [vmem:[%s2634 + $0x19c] sm:$0xf]
  %v2739 = vld [vmem:[%s2634 + $0x1a0] sm:$0xf]
  %v2740 = vld [vmem:[%s2634 + $0x1a4] sm:$0xf]
  %v2741 = vld [vmem:[%s2634 + $0x1a8] sm:$0xf]
  %v2742 = vld [vmem:[%s2634 + $0x1ac] sm:$0xf]
  %v2743 = vld [vmem:[%s2634 + $0x1b0] sm:$0xf]
  %v2744 = vld [vmem:[%s2634 + $0x1b4] sm:$0xf]
  %v2745 = vld [vmem:[%s2634 + $0x1b8] sm:$0xf]
  %v2746 = vld [vmem:[%s2634 + $0x1bc] sm:$0xf]
  %v2747 = vld [vmem:[%s2634 + $0x1c0] sm:$0xf]
  %v2748 = vld [vmem:[%s2634 + $0x1c4] sm:$0xf]
  %v2749 = vld [vmem:[%s2634 + $0x1c8] sm:$0xf]
  %v2750 = vld [vmem:[%s2634 + $0x1cc] sm:$0xf]
  %v2751 = vld [vmem:[%s2634 + $0x1d0] sm:$0xf]
  %v2752 = vld [vmem:[%s2634 + $0x1d4] sm:$0xf]
  %v2753 = vld [vmem:[%s2634 + $0x1d8] sm:$0xf]
  %v2754 = vld [vmem:[%s2634 + $0x1dc] sm:$0xf]
  %v2755 = vld [vmem:[%s2634 + $0x1e0] sm:$0xf]
  %v2756 = vld [vmem:[%s2634 + $0x1e4] sm:$0xf]
  %v2757 = vld [vmem:[%s2634 + $0x1e8] sm:$0xf]
  %v2758 = vld [vmem:[%s2634 + $0x1ec] sm:$0xf]
  %v2759 = vld [vmem:[%s2634 + $0x1f0] sm:$0xf]
  %v2760 = vld [vmem:[%s2634 + $0x1f4] sm:$0xf]
  %v2761 = vld [vmem:[%s2634 + $0x1f8] sm:$0xf]
  %v2762 = vld [vmem:[%s2634 + $0x1fc] sm:$0xf]
  %v2763 = vld [vmem:[%s2634 + $0x200] sm:$0xf]
  %v2764 = vld [vmem:[%s2634 + $0x204] sm:$0xf]
  %v2765 = vld [vmem:[%s2634 + $0x208] sm:$0xf]
  %v2766 = vld [vmem:[%s2634 + $0x20c] sm:$0xf]
  %v2767 = vld [vmem:[%s2634 + $0x210] sm:$0xf]
  %v2768 = vld [vmem:[%s2634 + $0x214] sm:$0xf]
  %v2769 = vld [vmem:[%s2634 + $0x218] sm:$0xf]
  %v2770 = vld [vmem:[%s2634 + $0x21c] sm:$0xf]
  %v2771 = vld [vmem:[%s2634 + $0x220] sm:$0xf]
  %v2772 = vld [vmem:[%s2634 + $0x224] sm:$0xf]
  %v2773 = vld [vmem:[%s2634 + $0x228] sm:$0xf]
  %v2774 = vld [vmem:[%s2634 + $0x22c] sm:$0xf]
  %v2775 = vld [vmem:[%s2634 + $0x230] sm:$0xf]
  %v2776 = vld [vmem:[%s2634 + $0x234] sm:$0xf]
  %v2777 = vld [vmem:[%s2634 + $0x238] sm:$0xf]
  %v2778 = vld [vmem:[%s2634 + $0x23c] sm:$0xf]
  %v2779 = vld [vmem:[%s2634 + $0x240] sm:$0xf]
  %v2780 = vld [vmem:[%s2634 + $0x244] sm:$0xf]
  %v2781 = vld [vmem:[%s2634 + $0x248] sm:$0xf]
  %v2782 = vld [vmem:[%s2634 + $0x24c] sm:$0xf]
  %v2783 = vld [vmem:[%s2634 + $0x250] sm:$0xf]
  %v2784 = vld [vmem:[%s2634 + $0x254] sm:$0xf]
  %v2785 = vld [vmem:[%s2634 + $0x258] sm:$0xf]
  %v2786 = vld [vmem:[%s2634 + $0x25c] sm:$0xf]
  %v2787 = vld [vmem:[%s2634 + $0x260] sm:$0xf]
  %v2788 = vld [vmem:[%s2634 + $0x264] sm:$0xf]
  %v2789 = vld [vmem:[%s2634 + $0x268] sm:$0xf]
  %v2790 = vld [vmem:[%s2634 + $0x26c] sm:$0xf]
  %v2791 = vld [vmem:[%s2634 + $0x270] sm:$0xf]
  %v2792 = vld [vmem:[%s2634 + $0x274] sm:$0xf]
  %v2793 = vld [vmem:[%s2634 + $0x278] sm:$0xf]
  %v2794 = vld [vmem:[%s2634 + $0x27c] sm:$0xf]
  %v2795 = vld [vmem:[%s2634 + $0x280] sm:$0xf]
  %v2796 = vld [vmem:[%s2634 + $0x284] sm:$0xf]
  %v2797 = vld [vmem:[%s2634 + $0x288] sm:$0xf]
  %v2798 = vld [vmem:[%s2634 + $0x28c] sm:$0xf]
  %v2799 = vld [vmem:[%s2634 + $0x290] sm:$0xf]
  %v2800 = vld [vmem:[%s2634 + $0x294] sm:$0xf]
  %v2801 = vld [vmem:[%s2634 + $0x298] sm:$0xf]
  %v2802 = vld [vmem:[%s2634 + $0x29c] sm:$0xf]
  %v2803 = vld [vmem:[%s2634 + $0x2a0] sm:$0xf]
  %v2804 = vld [vmem:[%s2634 + $0x2a4] sm:$0xf]
  %v2805 = vld [vmem:[%s2634 + $0x2a8] sm:$0xf]
  %v2806 = vld [vmem:[%s2634 + $0x2ac] sm:$0xf]
  %v2807 = vld [vmem:[%s2634 + $0x2b0] sm:$0xf]
  %v2808 = vld [vmem:[%s2634 + $0x2b4] sm:$0xf]
  %v2809 = vld [vmem:[%s2634 + $0x2b8] sm:$0xf]
  %v2810 = vld [vmem:[%s2634 + $0x2bc] sm:$0xf]
  %v2811 = vld [vmem:[%s2634 + $0x2c0] sm:$0xf]
  %v2812 = vld [vmem:[%s2634 + $0x2c4] sm:$0xf]
  %v2813 = vld [vmem:[%s2634 + $0x2c8] sm:$0xf]
  %v2814 = vld [vmem:[%s2634 + $0x2cc] sm:$0xf]
  %v2815 = vld [vmem:[%s2634 + $0x2d0] sm:$0xf]
  %v2816 = vld [vmem:[%s2634 + $0x2d4] sm:$0xf]
  %v2817 = vld [vmem:[%s2634 + $0x2d8] sm:$0xf]
  %v2818 = vld [vmem:[%s2634 + $0x2dc] sm:$0xf]
  %v2819 = vld [vmem:[%s2634 + $0x2e0] sm:$0xf]
  %v2820 = vld [vmem:[%s2634 + $0x2e4] sm:$0xf]
  %v2821 = vld [vmem:[%s2634 + $0x2e8] sm:$0xf]
  %v2822 = vld [vmem:[%s2634 + $0x2ec] sm:$0xf]
  %v2823 = vld [vmem:[%s2634 + $0x2f0] sm:$0xf]
  %v2824 = vld [vmem:[%s2634 + $0x2f4] sm:$0xf]
  %v2825 = vld [vmem:[%s2634 + $0x2f8] sm:$0xf]
  %v2826 = vld [vmem:[%s2634 + $0x2fc] sm:$0xf]
  %v2827 = vld [vmem:[%s2634 + $0x300] sm:$0xf]
  %v2828 = vld [vmem:[%s2634 + $0x304] sm:$0xf]
  %v2829 = vld [vmem:[%s2634 + $0x308] sm:$0xf]
  %v2830 = vld [vmem:[%s2634 + $0x30c] sm:$0xf]
  %v2831 = vld [vmem:[%s2634 + $0x310] sm:$0xf]
  %v2832 = vld [vmem:[%s2634 + $0x314] sm:$0xf]
  %v2833 = vld [vmem:[%s2634 + $0x318] sm:$0xf]
  %v2834 = vld [vmem:[%s2634 + $0x31c] sm:$0xf]
  %v2835 = vld [vmem:[%s2634 + $0x320] sm:$0xf]
  %v2836 = vld [vmem:[%s2634 + $0x324] sm:$0xf]
  %v2837 = vld [vmem:[%s2634 + $0x328] sm:$0xf]
  %v2838 = vld [vmem:[%s2634 + $0x32c] sm:$0xf]
  %v2839 = vld [vmem:[%s2634 + $0x330] sm:$0xf]
  %v2840 = vld [vmem:[%s2634 + $0x334] sm:$0xf]
  %v2841 = vld [vmem:[%s2634 + $0x338] sm:$0xf]
  %v2842 = vld [vmem:[%s2634 + $0x33c] sm:$0xf]
  %v2843 = vld [vmem:[%s2634 + $0x340] sm:$0xf]
  %v2844 = vld [vmem:[%s2634 + $0x344] sm:$0xf]
  %v2845 = vld [vmem:[%s2634 + $0x348] sm:$0xf]
  %v2846 = vld [vmem:[%s2634 + $0x34c] sm:$0xf]
  %v2847 = vld [vmem:[%s2634 + $0x350] sm:$0xf]
  %v2848 = vld [vmem:[%s2634 + $0x354] sm:$0xf]
  %v2849 = vld [vmem:[%s2634 + $0x358] sm:$0xf]
  %v2850 = vld [vmem:[%s2634 + $0x35c] sm:$0xf]
  %v2851 = vld [vmem:[%s2634 + $0x360] sm:$0xf]
  %v2852 = vld [vmem:[%s2634 + $0x364] sm:$0xf]
  %v2853 = vld [vmem:[%s2634 + $0x368] sm:$0xf]
  %v2854 = vld [vmem:[%s2634 + $0x36c] sm:$0xf]
  %v2855 = vld [vmem:[%s2634 + $0x370] sm:$0xf]
  %v2856 = vld [vmem:[%s2634 + $0x374] sm:$0xf]
  %v2857 = vld [vmem:[%s2634 + $0x378] sm:$0xf]
  %v2858 = vld [vmem:[%s2634 + $0x37c] sm:$0xf]
  %v2859 = vld [vmem:[%s2634 + $0x380] sm:$0xf]
  %v2860 = vld [vmem:[%s2634 + $0x384] sm:$0xf]
  %v2861 = vld [vmem:[%s2634 + $0x388] sm:$0xf]
  %v2862 = vld [vmem:[%s2634 + $0x38c] sm:$0xf]
  %v2863 = vld [vmem:[%s2634 + $0x390] sm:$0xf]
  %v2864 = vld [vmem:[%s2634 + $0x394] sm:$0xf]
  %v2865 = vld [vmem:[%s2634 + $0x398] sm:$0xf]
  %v2866 = vld [vmem:[%s2634 + $0x39c] sm:$0xf]
  %v2867 = vld [vmem:[%s2634 + $0x3a0] sm:$0xf]
  %v2868 = vld [vmem:[%s2634 + $0x3a4] sm:$0xf]
  %v2869 = vld [vmem:[%s2634 + $0x3a8] sm:$0xf]
  %v2870 = vld [vmem:[%s2634 + $0x3ac] sm:$0xf]
  %v2871 = vld [vmem:[%s2634 + $0x3b0] sm:$0xf]
  %v2872 = vld [vmem:[%s2634 + $0x3b4] sm:$0xf]
  %v2873 = vld [vmem:[%s2634 + $0x3b8] sm:$0xf]
  %v2874 = vld [vmem:[%s2634 + $0x3bc] sm:$0xf]
  %v2875 = vld [vmem:[%s2634 + $0x3c0] sm:$0xf]
  %v2876 = vld [vmem:[%s2634 + $0x3c4] sm:$0xf]
  %v2877 = vld [vmem:[%s2634 + $0x3c8] sm:$0xf]
  %v2878 = vld [vmem:[%s2634 + $0x3cc] sm:$0xf]
  %v2879 = vld [vmem:[%s2634 + $0x3d0] sm:$0xf]
  %v2880 = vld [vmem:[%s2634 + $0x3d4] sm:$0xf]
  %v2881 = vld [vmem:[%s2634 + $0x3d8] sm:$0xf]
  %v2882 = vld [vmem:[%s2634 + $0x3dc] sm:$0xf]
  %v2883 = vld [vmem:[%s2634 + $0x3e0] sm:$0xf]
  %v2884 = vld [vmem:[%s2634 + $0x3e4] sm:$0xf]
  %v2885 = vld [vmem:[%s2634 + $0x3e8] sm:$0xf]
  %v2886 = vld [vmem:[%s2634 + $0x3ec] sm:$0xf]
  %v2887 = vld [vmem:[%s2634 + $0x3f0] sm:$0xf]
  %v2888 = vld [vmem:[%s2634 + $0x3f4] sm:$0xf]
  %v2889 = vld [vmem:[%s2634 + $0x3f8] sm:$0xf]
  %v2890 = vld [vmem:[%s2634 + $0x3fc] sm:$0xf]
  %v2891 = vld [vmem:[%s2634 + $0x400] sm:$0xf]
  %v2892 = vld [vmem:[%s2634 + $0x404] sm:$0xf]
  %v2893 = vld [vmem:[%s2634 + $0x408] sm:$0xf]
  %v2894 = vld [vmem:[%s2634 + $0x40c] sm:$0xf]
  %v2895 = vld [vmem:[%s2634 + $0x410] sm:$0xf]
  %v2896 = vld [vmem:[%s2634 + $0x414] sm:$0xf]
  %v2897 = vld [vmem:[%s2634 + $0x418] sm:$0xf]
  %v2898 = vld [vmem:[%s2634 + $0x41c] sm:$0xf]
  %v2899 = vld [vmem:[%s2634 + $0x420] sm:$0xf]
  %v2900 = vld [vmem:[%s2634 + $0x424] sm:$0xf]
  %v2901 = vld [vmem:[%s2634 + $0x428] sm:$0xf]
  %v2902 = vld [vmem:[%s2634 + $0x42c] sm:$0xf]
  %v2903 = vld [vmem:[%s2634 + $0x430] sm:$0xf]
  %v2904 = vld [vmem:[%s2634 + $0x434] sm:$0xf]
  %v2905 = vld [vmem:[%s2634 + $0x438] sm:$0xf]
  %v2906 = vld [vmem:[%s2634 + $0x43c] sm:$0xf]
  %v2907 = vld [vmem:[%s2634 + $0x440] sm:$0xf]
  %v2908 = vld [vmem:[%s2634 + $0x444] sm:$0xf]
  %v2909 = vld [vmem:[%s2634 + $0x448] sm:$0xf]
  %v2910 = vld [vmem:[%s2634 + $0x44c] sm:$0xf]
  %v2911 = vld [vmem:[%s2634 + $0x450] sm:$0xf]
  %v2912 = vld [vmem:[%s2634 + $0x454] sm:$0xf]
  %v2913 = vld [vmem:[%s2634 + $0x458] sm:$0xf]
  %v2914 = vld [vmem:[%s2634 + $0x45c] sm:$0xf]
  %v2915 = vld [vmem:[%s2634 + $0x460] sm:$0xf]
  %v2916 = vld [vmem:[%s2634 + $0x464] sm:$0xf]
  %v2917 = vld [vmem:[%s2634 + $0x468] sm:$0xf]
  %v2918 = vld [vmem:[%s2634 + $0x46c] sm:$0xf]
  %v2919 = vld [vmem:[%s2634 + $0x470] sm:$0xf]
  %v2920 = vld [vmem:[%s2634 + $0x474] sm:$0xf]
  %v2921 = vld [vmem:[%s2634 + $0x478] sm:$0xf]
  %v2922 = vld [vmem:[%s2634 + $0x47c] sm:$0xf]
  %v2923 = vld [vmem:[%s2634 + $0x480] sm:$0xf]
  %v2924 = vld [vmem:[%s2634 + $0x484] sm:$0xf]
  %v2925 = vld [vmem:[%s2634 + $0x488] sm:$0xf]
  %v2926 = vld [vmem:[%s2634 + $0x48c] sm:$0xf]
  %v2927 = vld [vmem:[%s2634 + $0x490] sm:$0xf]
  %v2928 = vld [vmem:[%s2634 + $0x494] sm:$0xf]
  %v2929 = vld [vmem:[%s2634 + $0x498] sm:$0xf]
  %v2930 = vld [vmem:[%s2634 + $0x49c] sm:$0xf]
  %v2931 = vld [vmem:[%s2634 + $0x4a0] sm:$0xf]
  %v2932 = vld [vmem:[%s2634 + $0x4a4] sm:$0xf]
  %v2933 = vld [vmem:[%s2634 + $0x4a8] sm:$0xf]
  %v2934 = vld [vmem:[%s2634 + $0x4ac] sm:$0xf]
  %v2935 = vld [vmem:[%s2634 + $0x4b0] sm:$0xf]
  %v2936 = vld [vmem:[%s2634 + $0x4b4] sm:$0xf]
  %v2937 = vld [vmem:[%s2634 + $0x4b8] sm:$0xf]
  %v2938 = vld [vmem:[%s2634 + $0x4bc] sm:$0xf]
  %v2939 = vld [vmem:[%s2634 + $0x4c0] sm:$0xf]
  %v2940 = vld [vmem:[%s2634 + $0x4c4] sm:$0xf]
  %v2941 = vld [vmem:[%s2634 + $0x4c8] sm:$0xf]
  %v2942 = vld [vmem:[%s2634 + $0x4cc] sm:$0xf]
  %v2943 = vld [vmem:[%s2634 + $0x4d0] sm:$0xf]
  %v2944 = vld [vmem:[%s2634 + $0x4d4] sm:$0xf]
  %v2945 = vld [vmem:[%s2634 + $0x4d8] sm:$0xf]
  %v2946 = vld [vmem:[%s2634 + $0x4dc] sm:$0xf]
  %v2947 = vld [vmem:[%s2634 + $0x4e0] sm:$0xf]
  %v2948 = vld [vmem:[%s2634 + $0x4e4] sm:$0xf]
  %v2949 = vld [vmem:[%s2634 + $0x4e8] sm:$0xf]
  %v2950 = vld [vmem:[%s2634 + $0x4ec] sm:$0xf]
  %v2951 = vld [vmem:[%s2634 + $0x4f0] sm:$0xf]
  %v2952 = vld [vmem:[%s2634 + $0x4f4] sm:$0xf]
  %v2953 = vld [vmem:[%s2634 + $0x4f8] sm:$0xf]
  %v2954 = vld [vmem:[%s2634 + $0x4fc] sm:$0xf]
  %v2955 = vld [vmem:[%s2634 + $0x500] sm:$0xf]
  %v2956 = vld [vmem:[%s2634 + $0x504] sm:$0xf]
  %v2957 = vld [vmem:[%s2634 + $0x508] sm:$0xf]
  %v2958 = vld [vmem:[%s2634 + $0x50c] sm:$0xf]
  %v2959 = vld [vmem:[%s2634 + $0x510] sm:$0xf]
  %v2960 = vld [vmem:[%s2634 + $0x514] sm:$0xf]
  %v2961 = vld [vmem:[%s2634 + $0x518] sm:$0xf]
  %v2962 = vld [vmem:[%s2634 + $0x51c] sm:$0xf]
  %v2963 = vld [vmem:[%s2634 + $0x520] sm:$0xf]
  %v2964 = vld [vmem:[%s2634 + $0x524] sm:$0xf]
  %v2965 = vld [vmem:[%s2634 + $0x528] sm:$0xf]
  %v2966 = vld [vmem:[%s2634 + $0x52c] sm:$0xf]
  %v2967 = vld [vmem:[%s2634 + $0x530] sm:$0xf]
  %v2968 = vld [vmem:[%s2634 + $0x534] sm:$0xf]
  %v2969 = vld [vmem:[%s2634 + $0x538] sm:$0xf]
  %v2970 = vld [vmem:[%s2634 + $0x53c] sm:$0xf]
  %v2971 = vld [vmem:[%s2634 + $0x540] sm:$0xf]
  %v2972 = vld [vmem:[%s2634 + $0x544] sm:$0xf]
  %v2973 = vld [vmem:[%s2634 + $0x548] sm:$0xf]
  %v2974 = vld [vmem:[%s2634 + $0x54c] sm:$0xf]
  %v2975 = vld [vmem:[%s2634 + $0x550] sm:$0xf]
  %v2976 = vld [vmem:[%s2634 + $0x554] sm:$0xf]
  %v2977 = vld [vmem:[%s2634 + $0x558] sm:$0xf]
  %v2978 = vld [vmem:[%s2634 + $0x55c] sm:$0xf]
  %v2979 = vld [vmem:[%s2634 + $0x560] sm:$0xf]
  %v2980 = vld [vmem:[%s2634 + $0x564] sm:$0xf]
  %v2981 = vld [vmem:[%s2634 + $0x568] sm:$0xf]
  %v2982 = vld [vmem:[%s2634 + $0x56c] sm:$0xf]
  %v2983 = vld [vmem:[%s2634 + $0x570] sm:$0xf]
  %v2984 = vld [vmem:[%s2634 + $0x574] sm:$0xf]
  %v2985 = vld [vmem:[%s2634 + $0x578] sm:$0xf]
  %v2986 = vld [vmem:[%s2634 + $0x57c] sm:$0xf]
  %v2987 = vld [vmem:[%s2634 + $0x580] sm:$0xf]
  %v2988 = vld [vmem:[%s2634 + $0x584] sm:$0xf]
  %v2989 = vld [vmem:[%s2634 + $0x588] sm:$0xf]
  %v2990 = vld [vmem:[%s2634 + $0x58c] sm:$0xf]
  %v2991 = vld [vmem:[%s2634 + $0x590] sm:$0xf]
  %v2992 = vld [vmem:[%s2634 + $0x594] sm:$0xf]
  %v2993 = vld [vmem:[%s2634 + $0x598] sm:$0xf]
  %v2994 = vld [vmem:[%s2634 + $0x59c] sm:$0xf]
  %v2995 = vld [vmem:[%s2634 + $0x5a0] sm:$0xf]
  %v2996 = vld [vmem:[%s2634 + $0x5a4] sm:$0xf]
  %v2997 = vld [vmem:[%s2634 + $0x5a8] sm:$0xf]
  %v2998 = vld [vmem:[%s2634 + $0x5ac] sm:$0xf]
  %v2999 = vld [vmem:[%s2634 + $0x5b0] sm:$0xf]
  %v3000 = vld [vmem:[%s2634 + $0x5b4] sm:$0xf]
  %v3001 = vld [vmem:[%s2634 + $0x5b8] sm:$0xf]
  %v3002 = vld [vmem:[%s2634 + $0x5bc] sm:$0xf]
  %v3003 = vld [vmem:[%s2634 + $0x5c0] sm:$0xf]
  %v3004 = vld [vmem:[%s2634 + $0x5c4] sm:$0xf]
  %v3005 = vld [vmem:[%s2634 + $0x5c8] sm:$0xf]
  %v3006 = vld [vmem:[%s2634 + $0x5cc] sm:$0xf]
  %v3007 = vld [vmem:[%s2634 + $0x5d0] sm:$0xf]
  %v3008 = vld [vmem:[%s2634 + $0x5d4] sm:$0xf]
  %v3009 = vld [vmem:[%s2634 + $0x5d8] sm:$0xf]
  %v3010 = vld [vmem:[%s2634 + $0x5dc] sm:$0xf]
  %v3011 = vld [vmem:[%s2634 + $0x5e0] sm:$0xf]
  %v3012 = vld [vmem:[%s2634 + $0x5e4] sm:$0xf]
  %v3013 = vld [vmem:[%s2634 + $0x5e8] sm:$0xf]
  %v3014 = vld [vmem:[%s2634 + $0x5ec] sm:$0xf]
  %v3015 = vld [vmem:[%s2634 + $0x5f0] sm:$0xf]
  %v3016 = vld [vmem:[%s2634 + $0x5f4] sm:$0xf]
  %v3017 = vld [vmem:[%s2634 + $0x5f8] sm:$0xf]
  %v3018 = vld [vmem:[%s2634 + $0x5fc] sm:$0xf]
  %v3019 = vld [vmem:[%s2634 + $0x600] sm:$0xf]
  %v3020 = vld [vmem:[%s2634 + $0x604] sm:$0xf]
  %v3021 = vld [vmem:[%s2634 + $0x608] sm:$0xf]
  %v3022 = vld [vmem:[%s2634 + $0x60c] sm:$0xf]
  %v3023 = vld [vmem:[%s2634 + $0x610] sm:$0xf]
  %v3024 = vld [vmem:[%s2634 + $0x614] sm:$0xf]
  %v3025 = vld [vmem:[%s2634 + $0x618] sm:$0xf]
  %v3026 = vld [vmem:[%s2634 + $0x61c] sm:$0xf]
  %v3027 = vld [vmem:[%s2634 + $0x620] sm:$0xf]
  %v3028 = vld [vmem:[%s2634 + $0x624] sm:$0xf]
  %v3029 = vld [vmem:[%s2634 + $0x628] sm:$0xf]
  %v3030 = vld [vmem:[%s2634 + $0x62c] sm:$0xf]
  %v3031 = vld [vmem:[%s2634 + $0x630] sm:$0xf]
  %v3032 = vld [vmem:[%s2634 + $0x634] sm:$0xf]
  %v3033 = vld [vmem:[%s2634 + $0x638] sm:$0xf]
  %v3034 = vld [vmem:[%s2634 + $0x63c] sm:$0xf]
  %v3035 = vld [vmem:[%s2634 + $0x640] sm:$0xf]
  %v3036 = vld [vmem:[%s2634 + $0x644] sm:$0xf]
  %v3037 = vld [vmem:[%s2634 + $0x648] sm:$0xf]
  %v3038 = vld [vmem:[%s2634 + $0x64c] sm:$0xf]
  %v3039 = vld [vmem:[%s2634 + $0x650] sm:$0xf]
  %v3040 = vld [vmem:[%s2634 + $0x654] sm:$0xf]
  %v3041 = vld [vmem:[%s2634 + $0x658] sm:$0xf]
  %v3042 = vld [vmem:[%s2634 + $0x65c] sm:$0xf]
  %v3043 = vld [vmem:[%s2634 + $0x660] sm:$0xf]
  %v3044 = vld [vmem:[%s2634 + $0x664] sm:$0xf]
  %v3045 = vld [vmem:[%s2634 + $0x668] sm:$0xf]
  %v3046 = vld [vmem:[%s2634 + $0x66c] sm:$0xf]
  %v3047 = vld [vmem:[%s2634 + $0x670] sm:$0xf]
  %v3048 = vld [vmem:[%s2634 + $0x674] sm:$0xf]
  %v3049 = vld [vmem:[%s2634 + $0x678] sm:$0xf]
  %v3050 = vld [vmem:[%s2634 + $0x67c] sm:$0xf]
  %v3051 = vld [vmem:[%s2634 + $0x680] sm:$0xf]
  %v3052 = vld [vmem:[%s2634 + $0x684] sm:$0xf]
  %v3053 = vld [vmem:[%s2634 + $0x688] sm:$0xf]
  %v3054 = vld [vmem:[%s2634 + $0x68c] sm:$0xf]
  %v3055 = vld [vmem:[%s2634 + $0x690] sm:$0xf]
  %v3056 = vld [vmem:[%s2634 + $0x694] sm:$0xf]
  %v3057 = vld [vmem:[%s2634 + $0x698] sm:$0xf]
  %v3058 = vld [vmem:[%s2634 + $0x69c] sm:$0xf]
  %v3059 = vld [vmem:[%s2634 + $0x6a0] sm:$0xf]
  %v3060 = vld [vmem:[%s2634 + $0x6a4] sm:$0xf]
  %v3061 = vld [vmem:[%s2634 + $0x6a8] sm:$0xf]
  %v3062 = vld [vmem:[%s2634 + $0x6ac] sm:$0xf]
  %v3063 = vld [vmem:[%s2634 + $0x6b0] sm:$0xf]
  %v3064 = vld [vmem:[%s2634 + $0x6b4] sm:$0xf]
  %v3065 = vld [vmem:[%s2634 + $0x6b8] sm:$0xf]
  %v3066 = vld [vmem:[%s2634 + $0x6bc] sm:$0xf]
  %v3067 = vld [vmem:[%s2634 + $0x6c0] sm:$0xf]
  %v3068 = vld [vmem:[%s2634 + $0x6c4] sm:$0xf]
  %v3069 = vld [vmem:[%s2634 + $0x6c8] sm:$0xf]
  %v3070 = vld [vmem:[%s2634 + $0x6cc] sm:$0xf]
  %v3071 = vld [vmem:[%s2634 + $0x6d0] sm:$0xf]
  %v3072 = vld [vmem:[%s2634 + $0x6d4] sm:$0xf]
  %v3073 = vld [vmem:[%s2634 + $0x6d8] sm:$0xf]
  %v3074 = vld [vmem:[%s2634 + $0x6dc] sm:$0xf]
  %v3075 = vld [vmem:[%s2634 + $0x6e0] sm:$0xf]
  %v3076 = vld [vmem:[%s2634 + $0x6e4] sm:$0xf]
  %v3077 = vld [vmem:[%s2634 + $0x6e8] sm:$0xf]
  %v3078 = vld [vmem:[%s2634 + $0x6ec] sm:$0xf]
  %v3079 = vld [vmem:[%s2634 + $0x6f0] sm:$0xf]
  %v3080 = vld [vmem:[%s2634 + $0x6f4] sm:$0xf]
  %v3081 = vld [vmem:[%s2634 + $0x6f8] sm:$0xf]
  %v3082 = vld [vmem:[%s2634 + $0x6fc] sm:$0xf]
  %v3083 = vld [vmem:[%s2634 + $0x700] sm:$0xf]
  %v3084 = vld [vmem:[%s2634 + $0x704] sm:$0xf]
  %v3085 = vld [vmem:[%s2634 + $0x708] sm:$0xf]
  %v3086 = vld [vmem:[%s2634 + $0x70c] sm:$0xf]
  %v3087 = vld [vmem:[%s2634 + $0x710] sm:$0xf]
  %v3088 = vld [vmem:[%s2634 + $0x714] sm:$0xf]
  %v3089 = vld [vmem:[%s2634 + $0x718] sm:$0xf]
  %v3090 = vld [vmem:[%s2634 + $0x71c] sm:$0xf]
  %v3091 = vld [vmem:[%s2634 + $0x720] sm:$0xf]
  %v3092 = vld [vmem:[%s2634 + $0x724] sm:$0xf]
  %v3093 = vld [vmem:[%s2634 + $0x728] sm:$0xf]
  %v3094 = vld [vmem:[%s2634 + $0x72c] sm:$0xf]
  %v3095 = vld [vmem:[%s2634 + $0x730] sm:$0xf]
  %v3096 = vld [vmem:[%s2634 + $0x734] sm:$0xf]
  %v3097 = vld [vmem:[%s2634 + $0x738] sm:$0xf]
  %v3098 = vld [vmem:[%s2634 + $0x73c] sm:$0xf]
  %v3099 = vld [vmem:[%s2 + $0x1] sm:$0x1]
  %v3101 = vlaneseq
  %v3102 = vshrl.u32 %v3101, 7
  %v3103 = vsub.s32 0, %v3102
  %v3104 = vrot.slane %v3099, %v3103
  %v3121 = vunpack.c.l.b16 %v2619
  %v3122 = vunpack.c.h.b16 %v2619
  %v3123 = vunpack.c.l.b16 %v2620
  %v3124 = vunpack.c.h.b16 %v2620
  %v3125 = vunpack.c.l.b16 %v2621
  %v3126 = vunpack.c.h.b16 %v2621
  %v3127 = vunpack.c.l.b16 %v2622
  %v3128 = vunpack.c.h.b16 %v2622
  %v3129 = vunpack.c.l.b16 %v2623
  %v3130 = vunpack.c.h.b16 %v2623
  %v3131 = vunpack.c.l.b16 %v2624
  %v3132 = vunpack.c.h.b16 %v2624
  %v3133 = vunpack.c.l.b16 %v2625
  %v3134 = vunpack.c.h.b16 %v2625
  %v3135 = vunpack.c.l.b16 %v2626
  %v3136 = vunpack.c.h.b16 %v2626
  %v3137 = vunpack.c.l.b16 %v2627
  %v3138 = vunpack.c.h.b16 %v2627
  %v3139 = vunpack.c.l.b16 %v2628
  %v3140 = vunpack.c.h.b16 %v2628
  %v3141 = vunpack.c.l.b16 %v2629
  %v3142 = vunpack.c.h.b16 %v2629
  %v3143 = vunpack.c.l.b16 %v2630
  %v3144 = vunpack.c.h.b16 %v2630
  %v3145 = vunpack.c.l.b16 %v2631
  %v3146 = vunpack.c.h.b16 %v2631
  %v3147 = vunpack.c.l.b16 %v2632
  %v3148 = vunpack.c.h.b16 %v2632
  %v3149 = vunpack.c.l.b16 %v2633
  %v3150 = vpack.c.b16 %v3121, %v3121
  %v3151 = vpack.c.b16 %v3122, %v3122
  %v3152 = vpack.c.b16 %v3123, %v3123
  %v3153 = vpack.c.b16 %v3124, %v3124
  %v3154 = vpack.c.b16 %v3125, %v3125
  %v3155 = vpack.c.b16 %v3126, %v3126
  %v3156 = vpack.c.b16 %v3127, %v3127
  %v3157 = vpack.c.b16 %v3128, %v3128
  %v3158 = vpack.c.b16 %v3129, %v3129
  %v3159 = vpack.c.b16 %v3130, %v3130
  %v3160 = vpack.c.b16 %v3131, %v3131
  %v3161 = vpack.c.b16 %v3132, %v3132
  %v3162 = vpack.c.b16 %v3133, %v3133
  %v3163 = vpack.c.b16 %v3134, %v3134
  %v3164 = vpack.c.b16 %v3135, %v3135
  %v3165 = vpack.c.b16 %v3136, %v3136
  %v3166 = vpack.c.b16 %v3137, %v3137
  %v3167 = vpack.c.b16 %v3138, %v3138
  %v3168 = vpack.c.b16 %v3139, %v3139
  %v3169 = vpack.c.b16 %v3140, %v3140
  %v3170 = vpack.c.b16 %v3141, %v3141
  %v3171 = vpack.c.b16 %v3142, %v3142
  %v3172 = vpack.c.b16 %v3143, %v3143
  %v3173 = vpack.c.b16 %v3144, %v3144
  %v3174 = vpack.c.b16 %v3145, %v3145
  %v3175 = vpack.c.b16 %v3146, %v3146
  %v3176 = vpack.c.b16 %v3147, %v3147
  %v3177 = vpack.c.b16 %v3148, %v3148
  %v3178 = vpack.c.b16 %v3149, %v3149
  %v3672 = vunpack.c.l.b16 %v2635
  %v3673 = vunpack.c.l.b16 %v2636
  %v3674 = vunpack.c.l.b16 %v2637
  %v3675 = vunpack.c.l.b16 %v2638
  %v3676 = vunpack.c.l.b16 %v2639
  %v3677 = vunpack.c.l.b16 %v2640
  %v3678 = vunpack.c.l.b16 %v2641
  %v3679 = vunpack.c.l.b16 %v2642
  %v3680 = vunpack.c.l.b16 %v2643
  %v3681 = vunpack.c.l.b16 %v2644
  %v3682 = vunpack.c.l.b16 %v2645
  %v3683 = vunpack.c.l.b16 %v2646
  %v3684 = vunpack.c.l.b16 %v2647
  %v3685 = vunpack.c.l.b16 %v2648
  %v3686 = vunpack.c.l.b16 %v2649
  %v3687 = vunpack.c.l.b16 %v2650
  %v3688 = vunpack.c.l.b16 %v2651
  %v3689 = vunpack.c.l.b16 %v2652
  %v3690 = vunpack.c.l.b16 %v2653
  %v3691 = vunpack.c.l.b16 %v2654
  %v3692 = vunpack.c.l.b16 %v2655
  %v3693 = vunpack.c.l.b16 %v2656
  %v3694 = vunpack.c.l.b16 %v2657
  %v3695 = vunpack.c.l.b16 %v2658
  %v3696 = vunpack.c.l.b16 %v2659
  %v3697 = vunpack.c.l.b16 %v2660
  %v3698 = vunpack.c.l.b16 %v2661
  %v3699 = vunpack.c.l.b16 %v2662
  %v3700 = vunpack.c.l.b16 %v2663
  %v3701 = vunpack.c.l.b16 %v2664
  %v3702 = vunpack.c.l.b16 %v2665
  %v3703 = vunpack.c.l.b16 %v2666
  %v3704 = vunpack.c.l.b16 %v2667
  %v3705 = vunpack.c.l.b16 %v2668
  %v3706 = vunpack.c.l.b16 %v2669
  %v3707 = vunpack.c.l.b16 %v2670
  %v3708 = vunpack.c.l.b16 %v2671
  %v3709 = vunpack.c.l.b16 %v2672
  %v3710 = vunpack.c.l.b16 %v2673
  %v3711 = vunpack.c.l.b16 %v2674
  %v3712 = vunpack.c.l.b16 %v2675
  %v3713 = vunpack.c.l.b16 %v2676
  %v3714 = vunpack.c.l.b16 %v2677
  %v3715 = vunpack.c.l.b16 %v2678
  %v3716 = vunpack.c.l.b16 %v2679
  %v3717 = vunpack.c.l.b16 %v2680
  %v3718 = vunpack.c.l.b16 %v2681
  %v3719 = vunpack.c.l.b16 %v2682
  %v3720 = vunpack.c.l.b16 %v2683
  %v3721 = vunpack.c.l.b16 %v2684
  %v3722 = vunpack.c.l.b16 %v2685
  %v3723 = vunpack.c.l.b16 %v2686
  %v3724 = vunpack.c.l.b16 %v2687
  %v3725 = vunpack.c.l.b16 %v2688
  %v3726 = vunpack.c.l.b16 %v2689
  %v3727 = vunpack.c.l.b16 %v2690
  %v3728 = vunpack.c.l.b16 %v2691
  %v3729 = vunpack.c.l.b16 %v2692
  %v3730 = vunpack.c.l.b16 %v2693
  %v3731 = vunpack.c.l.b16 %v2694
  %v3732 = vunpack.c.l.b16 %v2695
  %v3733 = vunpack.c.l.b16 %v2696
  %v3734 = vunpack.c.l.b16 %v2697
  %v3735 = vunpack.c.l.b16 %v2698
  %v3736 = vunpack.c.l.b16 %v2699
  %v3737 = vunpack.c.l.b16 %v2700
  %v3738 = vunpack.c.l.b16 %v2701
  %v3739 = vunpack.c.l.b16 %v2702
  %v3740 = vunpack.c.l.b16 %v2703
  %v3741 = vunpack.c.l.b16 %v2704
  %v3742 = vunpack.c.l.b16 %v2705
  %v3743 = vunpack.c.l.b16 %v2706
  %v3744 = vunpack.c.l.b16 %v2707
  %v3745 = vunpack.c.l.b16 %v2708
  %v3746 = vunpack.c.l.b16 %v2709
  %v3747 = vunpack.c.l.b16 %v2710
  %v3748 = vunpack.c.l.b16 %v2711
  %v3749 = vunpack.c.l.b16 %v2712
  %v3750 = vunpack.c.l.b16 %v2713
  %v3751 = vunpack.c.l.b16 %v2714
  %v3752 = vunpack.c.l.b16 %v2715
  %v3753 = vunpack.c.l.b16 %v2716
  %v3754 = vunpack.c.l.b16 %v2717
  %v3755 = vunpack.c.l.b16 %v2718
  %v3756 = vunpack.c.l.b16 %v2719
  %v3757 = vunpack.c.l.b16 %v2720
  %v3758 = vunpack.c.l.b16 %v2721
  %v3759 = vunpack.c.l.b16 %v2722
  %v3760 = vunpack.c.l.b16 %v2723
  %v3761 = vunpack.c.l.b16 %v2724
  %v3762 = vunpack.c.l.b16 %v2725
  %v3763 = vunpack.c.l.b16 %v2726
  %v3764 = vunpack.c.l.b16 %v2727
  %v3765 = vunpack.c.l.b16 %v2728
  %v3766 = vunpack.c.l.b16 %v2729
  %v3767 = vunpack.c.l.b16 %v2730
  %v3768 = vunpack.c.l.b16 %v2731
  %v3769 = vunpack.c.l.b16 %v2732
  %v3770 = vunpack.c.l.b16 %v2733
  %v3771 = vunpack.c.l.b16 %v2734
  %v3772 = vunpack.c.l.b16 %v2735
  %v3773 = vunpack.c.l.b16 %v2736
  %v3774 = vunpack.c.l.b16 %v2737
  %v3775 = vunpack.c.l.b16 %v2738
  %v3776 = vunpack.c.l.b16 %v2739
  %v3777 = vunpack.c.l.b16 %v2740
  %v3778 = vunpack.c.l.b16 %v2741
  %v3779 = vunpack.c.l.b16 %v2742
  %v3780 = vunpack.c.l.b16 %v2743
  %v3781 = vunpack.c.l.b16 %v2744
  %v3782 = vunpack.c.l.b16 %v2745
  %v3783 = vunpack.c.l.b16 %v2746
  %v3784 = vunpack.c.l.b16 %v2747
  %v3785 = vunpack.c.l.b16 %v2748
  %v3786 = vunpack.c.l.b16 %v2749
  %v3787 = vunpack.c.l.b16 %v2750
  %v3788 = vunpack.c.l.b16 %v2751
  %v3789 = vunpack.c.l.b16 %v2752
  %v3790 = vunpack.c.l.b16 %v2753
  %v3791 = vunpack.c.l.b16 %v2754
  %v3792 = vunpack.c.l.b16 %v2755
  %v3793 = vunpack.c.l.b16 %v2756
  %v3794 = vunpack.c.l.b16 %v2757
  %v3795 = vunpack.c.l.b16 %v2758
  %v3796 = vunpack.c.l.b16 %v2759
  %v3797 = vunpack.c.l.b16 %v2760
  %v3798 = vunpack.c.l.b16 %v2761
  %v3799 = vunpack.c.l.b16 %v2762
  %v3800 = vunpack.c.l.b16 %v2763
  %v3801 = vunpack.c.l.b16 %v2764
  %v3802 = vunpack.c.l.b16 %v2765
  %v3803 = vunpack.c.l.b16 %v2766
  %v3804 = vunpack.c.l.b16 %v2767
  %v3805 = vunpack.c.l.b16 %v2768
  %v3806 = vunpack.c.l.b16 %v2769
  %v3807 = vunpack.c.l.b16 %v2770
  %v3808 = vunpack.c.l.b16 %v2771
  %v3809 = vunpack.c.l.b16 %v2772
  %v3810 = vunpack.c.l.b16 %v2773
  %v3811 = vunpack.c.l.b16 %v2774
  %v3812 = vunpack.c.l.b16 %v2775
  %v3813 = vunpack.c.l.b16 %v2776
  %v3814 = vunpack.c.l.b16 %v2777
  %v3815 = vunpack.c.l.b16 %v2778
  %v3816 = vunpack.c.l.b16 %v2779
  %v3817 = vunpack.c.l.b16 %v2780
  %v3818 = vunpack.c.l.b16 %v2781
  %v3819 = vunpack.c.l.b16 %v2782
  %v3820 = vunpack.c.l.b16 %v2783
  %v3821 = vunpack.c.l.b16 %v2784
  %v3822 = vunpack.c.l.b16 %v2785
  %v3823 = vunpack.c.l.b16 %v2786
  %v3824 = vunpack.c.l.b16 %v2787
  %v3825 = vunpack.c.l.b16 %v2788
  %v3826 = vunpack.c.l.b16 %v2789
  %v3827 = vunpack.c.l.b16 %v2790
  %v3828 = vunpack.c.l.b16 %v2791
  %v3829 = vunpack.c.l.b16 %v2792
  %v3830 = vunpack.c.l.b16 %v2793
  %v3831 = vunpack.c.l.b16 %v2794
  %v3832 = vunpack.c.l.b16 %v2795
  %v3833 = vunpack.c.l.b16 %v2796
  %v3834 = vunpack.c.l.b16 %v2797
  %v3835 = vunpack.c.l.b16 %v2798
  %v3836 = vunpack.c.l.b16 %v2799
  %v3837 = vunpack.c.l.b16 %v2800
  %v3838 = vunpack.c.l.b16 %v2801
  %v3839 = vunpack.c.l.b16 %v2802
  %v3840 = vunpack.c.l.b16 %v2803
  %v3841 = vunpack.c.l.b16 %v2804
  %v3842 = vunpack.c.l.b16 %v2805
  %v3843 = vunpack.c.l.b16 %v2806
  %v3844 = vunpack.c.l.b16 %v2807
  %v3845 = vunpack.c.l.b16 %v2808
  %v3846 = vunpack.c.l.b16 %v2809
  %v3847 = vunpack.c.l.b16 %v2810
  %v3848 = vunpack.c.l.b16 %v2811
  %v3849 = vunpack.c.l.b16 %v2812
  %v3850 = vunpack.c.l.b16 %v2813
  %v3851 = vunpack.c.l.b16 %v2814
  %v3852 = vunpack.c.l.b16 %v2815
  %v3853 = vunpack.c.l.b16 %v2816
  %v3854 = vunpack.c.l.b16 %v2817
  %v3855 = vunpack.c.l.b16 %v2818
  %v3856 = vunpack.c.l.b16 %v2819
  %v3857 = vunpack.c.l.b16 %v2820
  %v3858 = vunpack.c.l.b16 %v2821
  %v3859 = vunpack.c.l.b16 %v2822
  %v3860 = vunpack.c.l.b16 %v2823
  %v3861 = vunpack.c.l.b16 %v2824
  %v3862 = vunpack.c.l.b16 %v2825
  %v3863 = vunpack.c.l.b16 %v2826
  %v3864 = vunpack.c.l.b16 %v2827
  %v3865 = vunpack.c.l.b16 %v2828
  %v3866 = vunpack.c.l.b16 %v2829
  %v3867 = vunpack.c.l.b16 %v2830
  %v3868 = vunpack.c.l.b16 %v2831
  %v3869 = vunpack.c.l.b16 %v2832
  %v3870 = vunpack.c.l.b16 %v2833
  %v3871 = vunpack.c.l.b16 %v2834
  %v3872 = vunpack.c.l.b16 %v2835
  %v3873 = vunpack.c.l.b16 %v2836
  %v3874 = vunpack.c.l.b16 %v2837
  %v3875 = vunpack.c.l.b16 %v2838
  %v3876 = vunpack.c.l.b16 %v2839
  %v3877 = vunpack.c.l.b16 %v2840
  %v3878 = vunpack.c.l.b16 %v2841
  %v3879 = vunpack.c.l.b16 %v2842
  %v3880 = vunpack.c.l.b16 %v2843
  %v3881 = vunpack.c.l.b16 %v2844
  %v3882 = vunpack.c.l.b16 %v2845
  %v3883 = vunpack.c.l.b16 %v2846
  %v3884 = vunpack.c.l.b16 %v2847
  %v3885 = vunpack.c.l.b16 %v2848
  %v3886 = vunpack.c.l.b16 %v2849
  %v3887 = vunpack.c.l.b16 %v2850
  %v3888 = vunpack.c.l.b16 %v2851
  %v3889 = vunpack.c.l.b16 %v2852
  %v3890 = vunpack.c.l.b16 %v2853
  %v3891 = vunpack.c.l.b16 %v2854
  %v3892 = vunpack.c.l.b16 %v2855
  %v3893 = vunpack.c.l.b16 %v2856
  %v3894 = vunpack.c.l.b16 %v2857
  %v3895 = vunpack.c.l.b16 %v2858
  %v3896 = vunpack.c.l.b16 %v2859
  %v3897 = vunpack.c.l.b16 %v2860
  %v3898 = vunpack.c.l.b16 %v2861
  %v3899 = vunpack.c.l.b16 %v2862
  %v3900 = vunpack.c.l.b16 %v2863
  %v3901 = vunpack.c.l.b16 %v2864
  %v3902 = vunpack.c.l.b16 %v2865
  %v3903 = vunpack.c.l.b16 %v2866
  %v3904 = vunpack.c.l.b16 %v2867
  %v3905 = vunpack.c.l.b16 %v2868
  %v3906 = vunpack.c.l.b16 %v2869
  %v3907 = vunpack.c.l.b16 %v2870
  %v3908 = vunpack.c.l.b16 %v2871
  %v3909 = vunpack.c.l.b16 %v2872
  %v3910 = vunpack.c.l.b16 %v2873
  %v3911 = vunpack.c.l.b16 %v2874
  %v3912 = vunpack.c.l.b16 %v2875
  %v3913 = vunpack.c.l.b16 %v2876
  %v3914 = vunpack.c.l.b16 %v2877
  %v3915 = vunpack.c.l.b16 %v2878
  %v3916 = vunpack.c.l.b16 %v2879
  %v3917 = vunpack.c.l.b16 %v2880
  %v3918 = vunpack.c.l.b16 %v2881
  %v3919 = vunpack.c.l.b16 %v2882
  %v3920 = vunpack.c.l.b16 %v2883
  %v3921 = vunpack.c.l.b16 %v2884
  %v3922 = vunpack.c.l.b16 %v2885
  %v3923 = vunpack.c.l.b16 %v2886
  %v3924 = vunpack.c.l.b16 %v2887
  %v3925 = vunpack.c.l.b16 %v2888
  %v3926 = vunpack.c.l.b16 %v2889
  %v3927 = vunpack.c.l.b16 %v2890
  %v3928 = vunpack.c.l.b16 %v2891
  %v3929 = vunpack.c.l.b16 %v2892
  %v3930 = vunpack.c.l.b16 %v2893
  %v3931 = vunpack.c.l.b16 %v2894
  %v3932 = vunpack.c.l.b16 %v2895
  %v3933 = vunpack.c.l.b16 %v2896
  %v3934 = vunpack.c.l.b16 %v2897
  %v3935 = vunpack.c.l.b16 %v2898
  %v3936 = vunpack.c.l.b16 %v2899
  %v3937 = vunpack.c.l.b16 %v2900
  %v3938 = vunpack.c.l.b16 %v2901
  %v3939 = vunpack.c.l.b16 %v2902
  %v3940 = vunpack.c.l.b16 %v2903
  %v3941 = vunpack.c.l.b16 %v2904
  %v3942 = vunpack.c.l.b16 %v2905
  %v3943 = vunpack.c.l.b16 %v2906
  %v3944 = vunpack.c.l.b16 %v2907
  %v3945 = vunpack.c.l.b16 %v2908
  %v3946 = vunpack.c.l.b16 %v2909
  %v3947 = vunpack.c.l.b16 %v2910
  %v3948 = vunpack.c.l.b16 %v2911
  %v3949 = vunpack.c.l.b16 %v2912
  %v3950 = vunpack.c.l.b16 %v2913
  %v3951 = vunpack.c.l.b16 %v2914
  %v3952 = vunpack.c.l.b16 %v2915
  %v3953 = vunpack.c.l.b16 %v2916
  %v3954 = vunpack.c.l.b16 %v2917
  %v3955 = vunpack.c.l.b16 %v2918
  %v3956 = vunpack.c.l.b16 %v2919
  %v3957 = vunpack.c.l.b16 %v2920
  %v3958 = vunpack.c.l.b16 %v2921
  %v3959 = vunpack.c.l.b16 %v2922
  %v3960 = vunpack.c.l.b16 %v2923
  %v3961 = vunpack.c.l.b16 %v2924
  %v3962 = vunpack.c.l.b16 %v2925
  %v3963 = vunpack.c.l.b16 %v2926
  %v3964 = vunpack.c.l.b16 %v2927
  %v3965 = vunpack.c.l.b16 %v2928
  %v3966 = vunpack.c.l.b16 %v2929
  %v3967 = vunpack.c.l.b16 %v2930
  %v3968 = vunpack.c.l.b16 %v2931
  %v3969 = vunpack.c.l.b16 %v2932
  %v3970 = vunpack.c.l.b16 %v2933
  %v3971 = vunpack.c.l.b16 %v2934
  %v3972 = vunpack.c.l.b16 %v2935
  %v3973 = vunpack.c.l.b16 %v2936
  %v3974 = vunpack.c.l.b16 %v2937
  %v3975 = vunpack.c.l.b16 %v2938
  %v3976 = vunpack.c.l.b16 %v2939
  %v3977 = vunpack.c.l.b16 %v2940
  %v3978 = vunpack.c.l.b16 %v2941
  %v3979 = vunpack.c.l.b16 %v2942
  %v3980 = vunpack.c.l.b16 %v2943
  %v3981 = vunpack.c.l.b16 %v2944
  %v3982 = vunpack.c.l.b16 %v2945
  %v3983 = vunpack.c.l.b16 %v2946
  %v3984 = vunpack.c.l.b16 %v2947
  %v3985 = vunpack.c.l.b16 %v2948
  %v3986 = vunpack.c.l.b16 %v2949
  %v3987 = vunpack.c.l.b16 %v2950
  %v3988 = vunpack.c.l.b16 %v2951
  %v3989 = vunpack.c.l.b16 %v2952
  %v3990 = vunpack.c.l.b16 %v2953
  %v3991 = vunpack.c.l.b16 %v2954
  %v3992 = vunpack.c.l.b16 %v2955
  %v3993 = vunpack.c.l.b16 %v2956
  %v3994 = vunpack.c.l.b16 %v2957
  %v3995 = vunpack.c.l.b16 %v2958
  %v3996 = vunpack.c.l.b16 %v2959
  %v3997 = vunpack.c.l.b16 %v2960
  %v3998 = vunpack.c.l.b16 %v2961
  %v3999 = vunpack.c.l.b16 %v2962
  %v4000 = vunpack.c.l.b16 %v2963
  %v4001 = vunpack.c.l.b16 %v2964
  %v4002 = vunpack.c.l.b16 %v2965
  %v4003 = vunpack.c.l.b16 %v2966
  %v4004 = vunpack.c.l.b16 %v2967
  %v4005 = vunpack.c.l.b16 %v2968
  %v4006 = vunpack.c.l.b16 %v2969
  %v4007 = vunpack.c.l.b16 %v2970
  %v4008 = vunpack.c.l.b16 %v2971
  %v4009 = vunpack.c.l.b16 %v2972
  %v4010 = vunpack.c.l.b16 %v2973
  %v4011 = vunpack.c.l.b16 %v2974
  %v4012 = vunpack.c.l.b16 %v2975
  %v4013 = vunpack.c.l.b16 %v2976
  %v4014 = vunpack.c.l.b16 %v2977
  %v4015 = vunpack.c.l.b16 %v2978
  %v4016 = vunpack.c.l.b16 %v2979
  %v4017 = vunpack.c.l.b16 %v2980
  %v4018 = vunpack.c.l.b16 %v2981
  %v4019 = vunpack.c.l.b16 %v2982
  %v4020 = vunpack.c.l.b16 %v2983
  %v4021 = vunpack.c.l.b16 %v2984
  %v4022 = vunpack.c.l.b16 %v2985
  %v4023 = vunpack.c.l.b16 %v2986
  %v4024 = vunpack.c.l.b16 %v2987
  %v4025 = vunpack.c.l.b16 %v2988
  %v4026 = vunpack.c.l.b16 %v2989
  %v4027 = vunpack.c.l.b16 %v2990
  %v4028 = vunpack.c.l.b16 %v2991
  %v4029 = vunpack.c.l.b16 %v2992
  %v4030 = vunpack.c.l.b16 %v2993
  %v4031 = vunpack.c.l.b16 %v2994
  %v4032 = vunpack.c.l.b16 %v2995
  %v4033 = vunpack.c.l.b16 %v2996
  %v4034 = vunpack.c.l.b16 %v2997
  %v4035 = vunpack.c.l.b16 %v2998
  %v4036 = vunpack.c.l.b16 %v2999
  %v4037 = vunpack.c.l.b16 %v3000
  %v4038 = vunpack.c.l.b16 %v3001
  %v4039 = vunpack.c.l.b16 %v3002
  %v4040 = vunpack.c.l.b16 %v3003
  %v4041 = vunpack.c.l.b16 %v3004
  %v4042 = vunpack.c.l.b16 %v3005
  %v4043 = vunpack.c.l.b16 %v3006
  %v4044 = vunpack.c.l.b16 %v3007
  %v4045 = vunpack.c.l.b16 %v3008
  %v4046 = vunpack.c.l.b16 %v3009
  %v4047 = vunpack.c.l.b16 %v3010
  %v4048 = vunpack.c.l.b16 %v3011
  %v4049 = vunpack.c.l.b16 %v3012
  %v4050 = vunpack.c.l.b16 %v3013
  %v4051 = vunpack.c.l.b16 %v3014
  %v4052 = vunpack.c.l.b16 %v3015
  %v4053 = vunpack.c.l.b16 %v3016
  %v4054 = vunpack.c.l.b16 %v3017
  %v4055 = vunpack.c.l.b16 %v3018
  %v4056 = vunpack.c.l.b16 %v3019
  %v4057 = vunpack.c.l.b16 %v3020
  %v4058 = vunpack.c.l.b16 %v3021
  %v4059 = vunpack.c.l.b16 %v3022
  %v4060 = vunpack.c.l.b16 %v3023
  %v4061 = vunpack.c.l.b16 %v3024
  %v4062 = vunpack.c.l.b16 %v3025
  %v4063 = vunpack.c.l.b16 %v3026
  %v4064 = vunpack.c.l.b16 %v3027
  %v4065 = vunpack.c.l.b16 %v3028
  %v4066 = vunpack.c.l.b16 %v3029
  %v4067 = vunpack.c.l.b16 %v3030
  %v4068 = vunpack.c.l.b16 %v3031
  %v4069 = vunpack.c.l.b16 %v3032
  %v4070 = vunpack.c.l.b16 %v3033
  %v4071 = vunpack.c.l.b16 %v3034
  %v4072 = vunpack.c.l.b16 %v3035
  %v4073 = vunpack.c.l.b16 %v3036
  %v4074 = vunpack.c.l.b16 %v3037
  %v4075 = vunpack.c.l.b16 %v3038
  %v4076 = vunpack.c.l.b16 %v3039
  %v4077 = vunpack.c.l.b16 %v3040
  %v4078 = vunpack.c.l.b16 %v3041
  %v4079 = vunpack.c.l.b16 %v3042
  %v4080 = vunpack.c.l.b16 %v3043
  %v4081 = vunpack.c.l.b16 %v3044
  %v4082 = vunpack.c.l.b16 %v3045
  %v4083 = vunpack.c.l.b16 %v3046
  %v4084 = vunpack.c.l.b16 %v3047
  %v4085 = vunpack.c.l.b16 %v3048
  %v4086 = vunpack.c.l.b16 %v3049
  %v4087 = vunpack.c.l.b16 %v3050
  %v4088 = vunpack.c.l.b16 %v3051
  %v4089 = vunpack.c.l.b16 %v3052
  %v4090 = vunpack.c.l.b16 %v3053
  %v4091 = vunpack.c.l.b16 %v3054
  %v4092 = vunpack.c.l.b16 %v3055
  %v4093 = vunpack.c.l.b16 %v3056
  %v4094 = vunpack.c.l.b16 %v3057
  %v4095 = vunpack.c.l.b16 %v3058
  %v4096 = vunpack.c.l.b16 %v3059
  %v4097 = vunpack.c.l.b16 %v3060
  %v4098 = vunpack.c.l.b16 %v3061
  %v4099 = vunpack.c.l.b16 %v3062
  %v4100 = vunpack.c.l.b16 %v3063
  %v4101 = vunpack.c.l.b16 %v3064
  %v4102 = vunpack.c.l.b16 %v3065
  %v4103 = vunpack.c.l.b16 %v3066
  %v4104 = vunpack.c.l.b16 %v3067
  %v4105 = vunpack.c.l.b16 %v3068
  %v4106 = vunpack.c.l.b16 %v3069
  %v4107 = vunpack.c.l.b16 %v3070
  %v4108 = vunpack.c.l.b16 %v3071
  %v4109 = vunpack.c.l.b16 %v3072
  %v4110 = vunpack.c.l.b16 %v3073
  %v4111 = vunpack.c.l.b16 %v3074
  %v4112 = vunpack.c.l.b16 %v3075
  %v4113 = vunpack.c.l.b16 %v3076
  %v4114 = vunpack.c.l.b16 %v3077
  %v4115 = vunpack.c.l.b16 %v3078
  %v4116 = vunpack.c.l.b16 %v3079
  %v4117 = vunpack.c.l.b16 %v3080
  %v4118 = vunpack.c.l.b16 %v3081
  %v4119 = vunpack.c.l.b16 %v3082
  %v4120 = vunpack.c.l.b16 %v3083
  %v4121 = vunpack.c.l.b16 %v3084
  %v4122 = vunpack.c.l.b16 %v3085
  %v4123 = vunpack.c.l.b16 %v3086
  %v4124 = vunpack.c.l.b16 %v3087
  %v4125 = vunpack.c.l.b16 %v3088
  %v4126 = vunpack.c.l.b16 %v3089
  %v4127 = vunpack.c.l.b16 %v3090
  %v4128 = vunpack.c.l.b16 %v3091
  %v4129 = vunpack.c.l.b16 %v3092
  %v4130 = vunpack.c.l.b16 %v3093
  %v4131 = vunpack.c.l.b16 %v3094
  %v4132 = vunpack.c.l.b16 %v3095
  %v4133 = vunpack.c.l.b16 %v3096
  %v4134 = vunpack.c.l.b16 %v3097
  %v4135 = vunpack.c.l.b16 %v3098
  %v4136 = vpack.c.b16 %v3673, %v3672
  %v4137 = vpack.c.b16 %v3675, %v3674
  %v4138 = vpack.c.b16 %v3677, %v3676
  %v4139 = vpack.c.b16 %v3679, %v3678
  %v4140 = vpack.c.b16 %v3681, %v3680
  %v4141 = vpack.c.b16 %v3683, %v3682
  %v4142 = vpack.c.b16 %v3685, %v3684
  %v4143 = vpack.c.b16 %v3687, %v3686
  %v4144 = vpack.c.b16 %v3689, %v3688
  %v4145 = vpack.c.b16 %v3691, %v3690
  %v4146 = vpack.c.b16 %v3693, %v3692
  %v4147 = vpack.c.b16 %v3695, %v3694
  %v4148 = vpack.c.b16 %v3697, %v3696
  %v4149 = vpack.c.b16 %v3699, %v3698
  %v4150 = vpack.c.b16 %v3701, %v3700
  %v4151 = vpack.c.b16 %v3703, %v3702
  %v4152 = vpack.c.b16 %v3705, %v3704
  %v4153 = vpack.c.b16 %v3707, %v3706
  %v4154 = vpack.c.b16 %v3709, %v3708
  %v4155 = vpack.c.b16 %v3711, %v3710
  %v4156 = vpack.c.b16 %v3713, %v3712
  %v4157 = vpack.c.b16 %v3715, %v3714
  %v4158 = vpack.c.b16 %v3717, %v3716
  %v4159 = vpack.c.b16 %v3719, %v3718
  %v4160 = vpack.c.b16 %v3721, %v3720
  %v4161 = vpack.c.b16 %v3723, %v3722
  %v4162 = vpack.c.b16 %v3725, %v3724
  %v4163 = vpack.c.b16 %v3727, %v3726
  %v4164 = vpack.c.b16 %v3729, %v3728
  %v4165 = vpack.c.b16 %v3731, %v3730
  %v4166 = vpack.c.b16 %v3733, %v3732
  %v4167 = vpack.c.b16 %v3735, %v3734
  %v4168 = vpack.c.b16 %v3737, %v3736
  %v4169 = vpack.c.b16 %v3739, %v3738
  %v4170 = vpack.c.b16 %v3741, %v3740
  %v4171 = vpack.c.b16 %v3743, %v3742
  %v4172 = vpack.c.b16 %v3745, %v3744
  %v4173 = vpack.c.b16 %v3747, %v3746
  %v4174 = vpack.c.b16 %v3749, %v3748
  %v4175 = vpack.c.b16 %v3751, %v3750
  %v4176 = vpack.c.b16 %v3753, %v3752
  %v4177 = vpack.c.b16 %v3755, %v3754
  %v4178 = vpack.c.b16 %v3757, %v3756
  %v4179 = vpack.c.b16 %v3759, %v3758
  %v4180 = vpack.c.b16 %v3761, %v3760
  %v4181 = vpack.c.b16 %v3763, %v3762
  %v4182 = vpack.c.b16 %v3765, %v3764
  %v4183 = vpack.c.b16 %v3767, %v3766
  %v4184 = vpack.c.b16 %v3769, %v3768
  %v4185 = vpack.c.b16 %v3771, %v3770
  %v4186 = vpack.c.b16 %v3773, %v3772
  %v4187 = vpack.c.b16 %v3775, %v3774
  %v4188 = vpack.c.b16 %v3777, %v3776
  %v4189 = vpack.c.b16 %v3779, %v3778
  %v4190 = vpack.c.b16 %v3781, %v3780
  %v4191 = vpack.c.b16 %v3783, %v3782
  %v4192 = vpack.c.b16 %v3785, %v3784
  %v4193 = vpack.c.b16 %v3787, %v3786
  %v4194 = vpack.c.b16 %v3789, %v3788
  %v4195 = vpack.c.b16 %v3791, %v3790
  %v4196 = vpack.c.b16 %v3793, %v3792
  %v4197 = vpack.c.b16 %v3795, %v3794
  %v4198 = vpack.c.b16 %v3797, %v3796
  %v4199 = vpack.c.b16 %v3799, %v3798
  %v4200 = vpack.c.b16 %v3801, %v3800
  %v4201 = vpack.c.b16 %v3803, %v3802
  %v4202 = vpack.c.b16 %v3805, %v3804
  %v4203 = vpack.c.b16 %v3807, %v3806
  %v4204 = vpack.c.b16 %v3809, %v3808
  %v4205 = vpack.c.b16 %v3811, %v3810
  %v4206 = vpack.c.b16 %v3813, %v3812
  %v4207 = vpack.c.b16 %v3815, %v3814
  %v4208 = vpack.c.b16 %v3817, %v3816
  %v4209 = vpack.c.b16 %v3819, %v3818
  %v4210 = vpack.c.b16 %v3821, %v3820
  %v4211 = vpack.c.b16 %v3823, %v3822
  %v4212 = vpack.c.b16 %v3825, %v3824
  %v4213 = vpack.c.b16 %v3827, %v3826
  %v4214 = vpack.c.b16 %v3829, %v3828
  %v4215 = vpack.c.b16 %v3831, %v3830
  %v4216 = vpack.c.b16 %v3833, %v3832
  %v4217 = vpack.c.b16 %v3835, %v3834
  %v4218 = vpack.c.b16 %v3837, %v3836
  %v4219 = vpack.c.b16 %v3839, %v3838
  %v4220 = vpack.c.b16 %v3841, %v3840
  %v4221 = vpack.c.b16 %v3843, %v3842
  %v4222 = vpack.c.b16 %v3845, %v3844
  %v4223 = vpack.c.b16 %v3847, %v3846
  %v4224 = vpack.c.b16 %v3849, %v3848
  %v4225 = vpack.c.b16 %v3851, %v3850
  %v4226 = vpack.c.b16 %v3853, %v3852
  %v4227 = vpack.c.b16 %v3855, %v3854
  %v4228 = vpack.c.b16 %v3857, %v3856
  %v4229 = vpack.c.b16 %v3859, %v3858
  %v4230 = vpack.c.b16 %v3861, %v3860
  %v4231 = vpack.c.b16 %v3863, %v3862
  %v4232 = vpack.c.b16 %v3865, %v3864
  %v4233 = vpack.c.b16 %v3867, %v3866
  %v4234 = vpack.c.b16 %v3869, %v3868
  %v4235 = vpack.c.b16 %v3871, %v3870
  %v4236 = vpack.c.b16 %v3873, %v3872
  %v4237 = vpack.c.b16 %v3875, %v3874
  %v4238 = vpack.c.b16 %v3877, %v3876
  %v4239 = vpack.c.b16 %v3879, %v3878
  %v4240 = vpack.c.b16 %v3881, %v3880
  %v4241 = vpack.c.b16 %v3883, %v3882
  %v4242 = vpack.c.b16 %v3885, %v3884
  %v4243 = vpack.c.b16 %v3887, %v3886
  %v4244 = vpack.c.b16 %v3889, %v3888
  %v4245 = vpack.c.b16 %v3891, %v3890
  %v4246 = vpack.c.b16 %v3893, %v3892
  %v4247 = vpack.c.b16 %v3895, %v3894
  %v4248 = vpack.c.b16 %v3897, %v3896
  %v4249 = vpack.c.b16 %v3899, %v3898
  %v4250 = vpack.c.b16 %v3901, %v3900
  %v4251 = vpack.c.b16 %v3903, %v3902
  %v4252 = vpack.c.b16 %v3905, %v3904
  %v4253 = vpack.c.b16 %v3907, %v3906
  %v4254 = vpack.c.b16 %v3909, %v3908
  %v4255 = vpack.c.b16 %v3911, %v3910
  %v4256 = vpack.c.b16 %v3913, %v3912
  %v4257 = vpack.c.b16 %v3915, %v3914
  %v4258 = vpack.c.b16 %v3917, %v3916
  %v4259 = vpack.c.b16 %v3919, %v3918
  %v4260 = vpack.c.b16 %v3921, %v3920
  %v4261 = vpack.c.b16 %v3923, %v3922
  %v4262 = vpack.c.b16 %v3925, %v3924
  %v4263 = vpack.c.b16 %v3927, %v3926
  %v4264 = vpack.c.b16 %v3929, %v3928
  %v4265 = vpack.c.b16 %v3931, %v3930
  %v4266 = vpack.c.b16 %v3933, %v3932
  %v4267 = vpack.c.b16 %v3935, %v3934
  %v4268 = vpack.c.b16 %v3937, %v3936
  %v4269 = vpack.c.b16 %v3939, %v3938
  %v4270 = vpack.c.b16 %v3941, %v3940
  %v4271 = vpack.c.b16 %v3943, %v3942
  %v4272 = vpack.c.b16 %v3945, %v3944
  %v4273 = vpack.c.b16 %v3947, %v3946
  %v4274 = vpack.c.b16 %v3949, %v3948
  %v4275 = vpack.c.b16 %v3951, %v3950
  %v4276 = vpack.c.b16 %v3953, %v3952
  %v4277 = vpack.c.b16 %v3955, %v3954
  %v4278 = vpack.c.b16 %v3957, %v3956
  %v4279 = vpack.c.b16 %v3959, %v3958
  %v4280 = vpack.c.b16 %v3961, %v3960
  %v4281 = vpack.c.b16 %v3963, %v3962
  %v4282 = vpack.c.b16 %v3965, %v3964
  %v4283 = vpack.c.b16 %v3967, %v3966
  %v4284 = vpack.c.b16 %v3969, %v3968
  %v4285 = vpack.c.b16 %v3971, %v3970
  %v4286 = vpack.c.b16 %v3973, %v3972
  %v4287 = vpack.c.b16 %v3975, %v3974
  %v4288 = vpack.c.b16 %v3977, %v3976
  %v4289 = vpack.c.b16 %v3979, %v3978
  %v4290 = vpack.c.b16 %v3981, %v3980
  %v4291 = vpack.c.b16 %v3983, %v3982
  %v4292 = vpack.c.b16 %v3985, %v3984
  %v4293 = vpack.c.b16 %v3987, %v3986
  %v4294 = vpack.c.b16 %v3989, %v3988
  %v4295 = vpack.c.b16 %v3991, %v3990
  %v4296 = vpack.c.b16 %v3993, %v3992
  %v4297 = vpack.c.b16 %v3995, %v3994
  %v4298 = vpack.c.b16 %v3997, %v3996
  %v4299 = vpack.c.b16 %v3999, %v3998
  %v4300 = vpack.c.b16 %v4001, %v4000
  %v4301 = vpack.c.b16 %v4003, %v4002
  %v4302 = vpack.c.b16 %v4005, %v4004
  %v4303 = vpack.c.b16 %v4007, %v4006
  %v4304 = vpack.c.b16 %v4009, %v4008
  %v4305 = vpack.c.b16 %v4011, %v4010
  %v4306 = vpack.c.b16 %v4013, %v4012
  %v4307 = vpack.c.b16 %v4015, %v4014
  %v4308 = vpack.c.b16 %v4017, %v4016
  %v4309 = vpack.c.b16 %v4019, %v4018
  %v4310 = vpack.c.b16 %v4021, %v4020
  %v4311 = vpack.c.b16 %v4023, %v4022
  %v4312 = vpack.c.b16 %v4025, %v4024
  %v4313 = vpack.c.b16 %v4027, %v4026
  %v4314 = vpack.c.b16 %v4029, %v4028
  %v4315 = vpack.c.b16 %v4031, %v4030
  %v4316 = vpack.c.b16 %v4033, %v4032
  %v4317 = vpack.c.b16 %v4035, %v4034
  %v4318 = vpack.c.b16 %v4037, %v4036
  %v4319 = vpack.c.b16 %v4039, %v4038
  %v4320 = vpack.c.b16 %v4041, %v4040
  %v4321 = vpack.c.b16 %v4043, %v4042
  %v4322 = vpack.c.b16 %v4045, %v4044
  %v4323 = vpack.c.b16 %v4047, %v4046
  %v4324 = vpack.c.b16 %v4049, %v4048
  %v4325 = vpack.c.b16 %v4051, %v4050
  %v4326 = vpack.c.b16 %v4053, %v4052
  %v4327 = vpack.c.b16 %v4055, %v4054
  %v4328 = vpack.c.b16 %v4057, %v4056
  %v4329 = vpack.c.b16 %v4059, %v4058
  %v4330 = vpack.c.b16 %v4061, %v4060
  %v4331 = vpack.c.b16 %v4063, %v4062
  %v4332 = vpack.c.b16 %v4065, %v4064
  %v4333 = vpack.c.b16 %v4067, %v4066
  %v4334 = vpack.c.b16 %v4069, %v4068
  %v4335 = vpack.c.b16 %v4071, %v4070
  %v4336 = vpack.c.b16 %v4073, %v4072
  %v4337 = vpack.c.b16 %v4075, %v4074
  %v4338 = vpack.c.b16 %v4077, %v4076
  %v4339 = vpack.c.b16 %v4079, %v4078
  %v4340 = vpack.c.b16 %v4081, %v4080
  %v4341 = vpack.c.b16 %v4083, %v4082
  %v4342 = vpack.c.b16 %v4085, %v4084
  %v4343 = vpack.c.b16 %v4087, %v4086
  %v4344 = vpack.c.b16 %v4089, %v4088
  %v4345 = vpack.c.b16 %v4091, %v4090
  %v4346 = vpack.c.b16 %v4093, %v4092
  %v4347 = vpack.c.b16 %v4095, %v4094
  %v4348 = vpack.c.b16 %v4097, %v4096
  %v4349 = vpack.c.b16 %v4099, %v4098
  %v4350 = vpack.c.b16 %v4101, %v4100
  %v4351 = vpack.c.b16 %v4103, %v4102
  %v4352 = vpack.c.b16 %v4105, %v4104
  %v4353 = vpack.c.b16 %v4107, %v4106
  %v4354 = vpack.c.b16 %v4109, %v4108
  %v4355 = vpack.c.b16 %v4111, %v4110
  %v4356 = vpack.c.b16 %v4113, %v4112
  %v4357 = vpack.c.b16 %v4115, %v4114
  %v4358 = vpack.c.b16 %v4117, %v4116
  %v4359 = vpack.c.b16 %v4119, %v4118
  %v4360 = vpack.c.b16 %v4121, %v4120
  %v4361 = vpack.c.b16 %v4123, %v4122
  %v4362 = vpack.c.b16 %v4125, %v4124
  %v4363 = vpack.c.b16 %v4127, %v4126
  %v4364 = vpack.c.b16 %v4129, %v4128
  %v4365 = vpack.c.b16 %v4131, %v4130
  %v4366 = vpack.c.b16 %v4133, %v4132
  %v4367 = vpack.c.b16 %v4135, %v4134
  %4600 = vmatprep.subr.bf16.mxu0 0
  %4601 = vmatpush1.bf16.msra.mxu0 %v4136
  %4602 = vmatprep.subr.bf16.mxu0 0
  %4603 = vmatpush1.bf16.msra.mxu0 %v4137
  %4604 = vmatprep.subr.bf16.mxu0 0
  %4605 = vmatpush1.bf16.msra.mxu0 %v4138
  %4606 = vmatprep.subr.bf16.mxu0 0
  %4607 = vmatpush1.bf16.msra.mxu0 %v4139
  %4608 = vmatprep.subr.bf16.mxu0 0
  %4609 = vmatpush1.bf16.msra.mxu0 %v4140
  %4610 = vmatprep.subr.bf16.mxu0 0
  %4611 = vmatpush1.bf16.msra.mxu0 %v4141
  %4612 = vmatprep.subr.bf16.mxu0 0
  %4613 = vmatpush1.bf16.msra.mxu0 %v4142
  %4614 = vmatprep.subr.bf16.mxu0 0
  %4615 = vmatpush1.bf16.msra.mxu0 %v4143
  %4616 = vmatprep.subr.bf16.mxu0 0
  %4617 = vmatpush1.bf16.msra.mxu0 %v4144
  %4618 = vmatprep.subr.bf16.mxu0 0
  %4619 = vmatpush1.bf16.msra.mxu0 %v4145
  %4620 = vmatprep.subr.bf16.mxu0 0
  %4621 = vmatpush1.bf16.msra.mxu0 %v4146
  %4622 = vmatprep.subr.bf16.mxu0 0
  %4623 = vmatpush1.bf16.msra.mxu0 %v4147
  %4624 = vmatprep.subr.bf16.mxu0 0
  %4625 = vmatpush1.bf16.msra.mxu0 %v4148
  %4626 = vmatprep.subr.bf16.mxu0 0
  %4627 = vmatpush1.bf16.msra.mxu0 %v4149
  %4628 = vmatprep.subr.bf16.mxu0 0
  %4629 = vmatpush1.bf16.msra.mxu0 %v4150
  %4630 = vmatprep.subr.bf16.mxu0 0
  %4631 = vmatpush1.bf16.msra.mxu0 %v4151
  %4632 = vmatprep.mubr.bf16.mxu0 %v3151
  %4633 = vmatmul.mubr.bf16.gmra.mrb[0].mxu0 %v3150
  %v4634 = vpop.f32.mrb[0].mxu0
  %v4635 = vadd.f32 %v3104, %v4634
  %v4636 = vpop.f32.mrb[0].mxu0
  %v4637 = vpop.f32.mrb[0].mxu0
  %v4638 = vpop.f32.mrb[0].mxu0
  %4639 = vdwg.mxu0
  %4640 = vmatprep.subr.bf16.mxu0 0
  %4641 = vmatpush1.bf16.msra.mxu0 %v4152
  %4642 = vmatprep.subr.bf16.mxu0 0
  %4643 = vmatpush1.bf16.msra.mxu0 %v4153
  %4644 = vmatprep.subr.bf16.mxu0 0
  %4645 = vmatpush1.bf16.msra.mxu0 %v4154
  %4646 = vmatprep.subr.bf16.mxu0 0
  %4647 = vmatpush1.bf16.msra.mxu0 %v4155
  %4648 = vmatprep.subr.bf16.mxu0 0
  %4649 = vmatpush1.bf16.msra.mxu0 %v4156
  %4650 = vmatprep.subr.bf16.mxu0 0
  %4651 = vmatpush1.bf16.msra.mxu0 %v4157
  %4652 = vmatprep.subr.bf16.mxu0 0
  %4653 = vmatpush1.bf16.msra.mxu0 %v4158
  %4654 = vmatprep.subr.bf16.mxu0 0
  %4655 = vmatpush1.bf16.msra.mxu0 %v4159
  %4656 = vmatprep.subr.bf16.mxu0 0
  %4657 = vmatpush1.bf16.msra.mxu0 %v4160
  %4658 = vmatprep.subr.bf16.mxu0 0
  %4659 = vmatpush1.bf16.msra.mxu0 %v4161
  %4660 = vmatprep.subr.bf16.mxu0 0
  %4661 = vmatpush1.bf16.msra.mxu0 %v4162
  %4662 = vmatprep.subr.bf16.mxu0 0
  %4663 = vmatpush1.bf16.msra.mxu0 %v4163
  %4664 = vmatprep.subr.bf16.mxu0 0
  %4665 = vmatpush1.bf16.msra.mxu0 %v4164
  %4666 = vmatprep.subr.bf16.mxu0 0
  %4667 = vmatpush1.bf16.msra.mxu0 %v4165
  %4668 = vmatprep.subr.bf16.mxu0 0
  %4669 = vmatpush1.bf16.msra.mxu0 %v4166
  %4670 = vmatprep.subr.bf16.mxu0 0
  %4671 = vmatpush1.bf16.msra.mxu0 %v4167
  %4672 = vmatprep.mubr.bf16.mxu0 %v3153
  %4673 = vmatmul.mubr.bf16.gmra.mrb[0].mxu0 %v3152
  %v4674 = vpop.f32.mrb[0].mxu0
  %v4675 = vadd.f32 %v4635, %v4674
  %v4676 = vpop.f32.mrb[0].mxu0
  %v4677 = vpop.f32.mrb[0].mxu0
  %v4678 = vpop.f32.mrb[0].mxu0
  %4679 = vdwg.mxu0
  %4680 = vmatprep.subr.bf16.mxu0 0
  %4681 = vmatpush1.bf16.msra.mxu0 %v4168
  %4682 = vmatprep.subr.bf16.mxu0 0
  %4683 = vmatpush1.bf16.msra.mxu0 %v4169
  %4684 = vmatprep.subr.bf16.mxu0 0
  %4685 = vmatpush1.bf16.msra.mxu0 %v4170
  %4686 = vmatprep.subr.bf16.mxu0 0
  %4687 = vmatpush1.bf16.msra.mxu0 %v4171
  %4688 = vmatprep.subr.bf16.mxu0 0
  %4689 = vmatpush1.bf16.msra.mxu0 %v4172
  %4690 = vmatprep.subr.bf16.mxu0 0
  %4691 = vmatpush1.bf16.msra.mxu0 %v4173
  %4692 = vmatprep.subr.bf16.mxu0 0
  %4693 = vmatpush1.bf16.msra.mxu0 %v4174
  %4694 = vmatprep.subr.bf16.mxu0 0
  %4695 = vmatpush1.bf16.msra.mxu0 %v4175
  %4696 = vmatprep.subr.bf16.mxu0 0
  %4697 = vmatpush1.bf16.msra.mxu0 %v4176
  %4698 = vmatprep.subr.bf16.mxu0 0
  %4699 = vmatpush1.bf16.msra.mxu0 %v4177
  %4700 = vmatprep.subr.bf16.mxu0 0
  %4701 = vmatpush1.bf16.msra.mxu0 %v4178
  %4702 = vmatprep.subr.bf16.mxu0 0
  %4703 = vmatpush1.bf16.msra.mxu0 %v4179
  %4704 = vmatprep.subr.bf16.mxu0 0
  %4705 = vmatpush1.bf16.msra.mxu0 %v4180
  %4706 = vmatprep.subr.bf16.mxu0 0
  %4707 = vmatpush1.bf16.msra.mxu0 %v4181
  %4708 = vmatprep.subr.bf16.mxu0 0
  %4709 = vmatpush1.bf16.msra.mxu0 %v4182
  %4710 = vmatprep.subr.bf16.mxu0 0
  %4711 = vmatpush1.bf16.msra.mxu0 %v4183
  %4712 = vmatprep.mubr.bf16.mxu0 %v3155
  %4713 = vmatmul.mubr.bf16.gmra.mrb[0].mxu0 %v3154
  %v4714 = vpop.f32.mrb[0].mxu0
  %v4715 = vadd.f32 %v4675, %v4714
  %v4716 = vpop.f32.mrb[0].mxu0
  %v4717 = vpop.f32.mrb[0].mxu0
  %v4718 = vpop.f32.mrb[0].mxu0
  %4719 = vdwg.mxu0
  %4720 = vmatprep.subr.bf16.mxu0 0
  %4721 = vmatpush1.bf16.msra.mxu0 %v4184
  %4722 = vmatprep.subr.bf16.mxu0 0
  %4723 = vmatpush1.bf16.msra.mxu0 %v4185
  %4724 = vmatprep.subr.bf16.mxu0 0
  %4725 = vmatpush1.bf16.msra.mxu0 %v4186
  %4726 = vmatprep.subr.bf16.mxu0 0
  %4727 = vmatpush1.bf16.msra.mxu0 %v4187
  %4728 = vmatprep.subr.bf16.mxu0 0
  %4729 = vmatpush1.bf16.msra.mxu0 %v4188
  %4730 = vmatprep.subr.bf16.mxu0 0
  %4731 = vmatpush1.bf16.msra.mxu0 %v4189
  %4732 = vmatprep.subr.bf16.mxu0 0
  %4733 = vmatpush1.bf16.msra.mxu0 %v4190
  %4734 = vmatprep.subr.bf16.mxu0 0
  %4735 = vmatpush1.bf16.msra.mxu0 %v4191
  %4736 = vmatprep.subr.bf16.mxu0 0
  %4737 = vmatpush1.bf16.msra.mxu0 %v4192
  %4738 = vmatprep.subr.bf16.mxu0 0
  %4739 = vmatpush1.bf16.msra.mxu0 %v4193
  %4740 = vmatprep.subr.bf16.mxu0 0
  %4741 = vmatpush1.bf16.msra.mxu0 %v4194
  %4742 = vmatprep.subr.bf16.mxu0 0
  %4743 = vmatpush1.bf16.msra.mxu0 %v4195
  %4744 = vmatprep.subr.bf16.mxu0 0
  %4745 = vmatpush1.bf16.msra.mxu0 %v4196
  %4746 = vmatprep.subr.bf16.mxu0 0
  %4747 = vmatpush1.bf16.msra.mxu0 %v4197
  %4748 = vmatprep.subr.bf16.mxu0 0
  %4749 = vmatpush1.bf16.msra.mxu0 %v4198
  %4750 = vmatprep.subr.bf16.mxu0 0
  %4751 = vmatpush1.bf16.msra.mxu0 %v4199
  %4752 = vmatprep.mubr.bf16.mxu0 %v3157
  %4753 = vmatmul.mubr.bf16.gmra.mrb[0].mxu0 %v3156
  %v4754 = vpop.f32.mrb[0].mxu0
  %v4755 = vadd.f32 %v4715, %v4754
  %v4756 = vpop.f32.mrb[0].mxu0
  %v4757 = vpop.f32.mrb[0].mxu0
  %v4758 = vpop.f32.mrb[0].mxu0
  %4759 = vdwg.mxu0
  %4760 = vmatprep.subr.bf16.mxu0 0
  %4761 = vmatpush1.bf16.msra.mxu0 %v4200
  %4762 = vmatprep.subr.bf16.mxu0 0
  %4763 = vmatpush1.bf16.msra.mxu0 %v4201
  %4764 = vmatprep.subr.bf16.mxu0 0
  %4765 = vmatpush1.bf16.msra.mxu0 %v4202
  %4766 = vmatprep.subr.bf16.mxu0 0
  %4767 = vmatpush1.bf16.msra.mxu0 %v4203
  %4768 = vmatprep.subr.bf16.mxu0 0
  %4769 = vmatpush1.bf16.msra.mxu0 %v4204
  %4770 = vmatprep.subr.bf16.mxu0 0
  %4771 = vmatpush1.bf16.msra.mxu0 %v4205
  %4772 = vmatprep.subr.bf16.mxu0 0
  %4773 = vmatpush1.bf16.msra.mxu0 %v4206
  %4774 = vmatprep.subr.bf16.mxu0 0
  %4775 = vmatpush1.bf16.msra.mxu0 %v4207
  %4776 = vmatprep.subr.bf16.mxu0 0
  %4777 = vmatpush1.bf16.msra.mxu0 %v4208
  %4778 = vmatprep.subr.bf16.mxu0 0
  %4779 = vmatpush1.bf16.msra.mxu0 %v4209
  %4780 = vmatprep.subr.bf16.mxu0 0
  %4781 = vmatpush1.bf16.msra.mxu0 %v4210
  %4782 = vmatprep.subr.bf16.mxu0 0
  %4783 = vmatpush1.bf16.msra.mxu0 %v4211
  %4784 = vmatprep.subr.bf16.mxu0 0
  %4785 = vmatpush1.bf16.msra.mxu0 %v4212
  %4786 = vmatprep.subr.bf16.mxu0 0
  %4787 = vmatpush1.bf16.msra.mxu0 %v4213
  %4788 = vmatprep.subr.bf16.mxu0 0
  %4789 = vmatpush1.bf16.msra.mxu0 %v4214
  %4790 = vmatprep.subr.bf16.mxu0 0
  %4791 = vmatpush1.bf16.msra.mxu0 %v4215
  %4792 = vmatprep.mubr.bf16.mxu0 %v3159
  %4793 = vmatmul.mubr.bf16.gmra.mrb[0].mxu0 %v3158
  %v4794 = vpop.f32.mrb[0].mxu0
  %v4795 = vadd.f32 %v4755, %v4794
  %v4796 = vpop.f32.mrb[0].mxu0
  %v4797 = vpop.f32.mrb[0].mxu0
  %v4798 = vpop.f32.mrb[0].mxu0
  %4799 = vdwg.mxu0
  %4800 = vmatprep.subr.bf16.mxu0 0
  %4801 = vmatpush1.bf16.msra.mxu0 %v4216
  %4802 = vmatprep.subr.bf16.mxu0 0
  %4803 = vmatpush1.bf16.msra.mxu0 %v4217
  %4804 = vmatprep.subr.bf16.mxu0 0
  %4805 = vmatpush1.bf16.msra.mxu0 %v4218
  %4806 = vmatprep.subr.bf16.mxu0 0
  %4807 = vmatpush1.bf16.msra.mxu0 %v4219
  %4808 = vmatprep.subr.bf16.mxu0 0
  %4809 = vmatpush1.bf16.msra.mxu0 %v4220
  %4810 = vmatprep.subr.bf16.mxu0 0
  %4811 = vmatpush1.bf16.msra.mxu0 %v4221
  %4812 = vmatprep.subr.bf16.mxu0 0
  %4813 = vmatpush1.bf16.msra.mxu0 %v4222
  %4814 = vmatprep.subr.bf16.mxu0 0
  %4815 = vmatpush1.bf16.msra.mxu0 %v4223
  %4816 = vmatprep.subr.bf16.mxu0 0
  %4817 = vmatpush1.bf16.msra.mxu0 %v4224
  %4818 = vmatprep.subr.bf16.mxu0 0
  %4819 = vmatpush1.bf16.msra.mxu0 %v4225
  %4820 = vmatprep.subr.bf16.mxu0 0
  %4821 = vmatpush1.bf16.msra.mxu0 %v4226
  %4822 = vmatprep.subr.bf16.mxu0 0
  %4823 = vmatpush1.bf16.msra.mxu0 %v4227
  %4824 = vmatprep.subr.bf16.mxu0 0
  %4825 = vmatpush1.bf16.msra.mxu0 %v4228
  %4826 = vmatprep.subr.bf16.mxu0 0
  %4827 = vmatpush1.bf16.msra.mxu0 %v4229
  %4828 = vmatprep.subr.bf16.mxu0 0
  %4829 = vmatpush1.bf16.msra.mxu0 %v4230
  %4830 = vmatprep.subr.bf16.mxu0 0
  %4831 = vmatpush1.bf16.msra.mxu0 %v4231
  %4832 = vmatprep.mubr.bf16.mxu0 %v3161
  %4833 = vmatmul.mubr.bf16.gmra.mrb[0].mxu0 %v3160
  %v4834 = vpop.f32.mrb[0].mxu0
  %v4835 = vadd.f32 %v4795, %v4834
  %v4836 = vpop.f32.mrb[0].mxu0
  %v4837 = vpop.f32.mrb[0].mxu0
  %v4838 = vpop.f32.mrb[0].mxu0
  %4839 = vdwg.mxu0
  %4840 = vmatprep.subr.bf16.mxu0 0
  %4841 = vmatpush1.bf16.msra.mxu0 %v4232
  %4842 = vmatprep.subr.bf16.mxu0 0
  %4843 = vmatpush1.bf16.msra.mxu0 %v4233
  %4844 = vmatprep.subr.bf16.mxu0 0
  %4845 = vmatpush1.bf16.msra.mxu0 %v4234
  %4846 = vmatprep.subr.bf16.mxu0 0
  %4847 = vmatpush1.bf16.msra.mxu0 %v4235
  %4848 = vmatprep.subr.bf16.mxu0 0
  %4849 = vmatpush1.bf16.msra.mxu0 %v4236
  %4850 = vmatprep.subr.bf16.mxu0 0
  %4851 = vmatpush1.bf16.msra.mxu0 %v4237
  %4852 = vmatprep.subr.bf16.mxu0 0
  %4853 = vmatpush1.bf16.msra.mxu0 %v4238
  %4854 = vmatprep.subr.bf16.mxu0 0
  %4855 = vmatpush1.bf16.msra.mxu0 %v4239
  %4856 = vmatprep.subr.bf16.mxu0 0
  %4857 = vmatpush1.bf16.msra.mxu0 %v4240
  %4858 = vmatprep.subr.bf16.mxu0 0
  %4859 = vmatpush1.bf16.msra.mxu0 %v4241
  %4860 = vmatprep.subr.bf16.mxu0 0
  %4861 = vmatpush1.bf16.msra.mxu0 %v4242
  %4862 = vmatprep.subr.bf16.mxu0 0
  %4863 = vmatpush1.bf16.msra.mxu0 %v4243
  %4864 = vmatprep.subr.bf16.mxu0 0
  %4865 = vmatpush1.bf16.msra.mxu0 %v4244
  %4866 = vmatprep.subr.bf16.mxu0 0
  %4867 = vmatpush1.bf16.msra.mxu0 %v4245
  %4868 = vmatprep.subr.bf16.mxu0 0
  %4869 = vmatpush1.bf16.msra.mxu0 %v4246
  %4870 = vmatprep.subr.bf16.mxu0 0
  %4871 = vmatpush1.bf16.msra.mxu0 %v4247
  %4872 = vmatprep.mubr.bf16.mxu0 %v3163
  %4873 = vmatmul.mubr.bf16.gmra.mrb[0].mxu0 %v3162
  %v4874 = vpop.f32.mrb[0].mxu0
  %v4875 = vadd.f32 %v4835, %v4874
  %v4876 = vpop.f32.mrb[0].mxu0
  %v4877 = vpop.f32.mrb[0].mxu0
  %v4878 = vpop.f32.mrb[0].mxu0
  %4879 = vdwg.mxu0
  %4880 = vmatprep.subr.bf16.mxu0 0
  %4881 = vmatpush1.bf16.msra.mxu0 %v4248
  %4882 = vmatprep.subr.bf16.mxu0 0
  %4883 = vmatpush1.bf16.msra.mxu0 %v4249
  %4884 = vmatprep.subr.bf16.mxu0 0
  %4885 = vmatpush1.bf16.msra.mxu0 %v4250
  %4886 = vmatprep.subr.bf16.mxu0 0
  %4887 = vmatpush1.bf16.msra.mxu0 %v4251
  %4888 = vmatprep.subr.bf16.mxu0 0
  %4889 = vmatpush1.bf16.msra.mxu0 %v4252
  %4890 = vmatprep.subr.bf16.mxu0 0
  %4891 = vmatpush1.bf16.msra.mxu0 %v4253
  %4892 = vmatprep.subr.bf16.mxu0 0
  %4893 = vmatpush1.bf16.msra.mxu0 %v4254
  %4894 = vmatprep.subr.bf16.mxu0 0
  %4895 = vmatpush1.bf16.msra.mxu0 %v4255
  %4896 = vmatprep.subr.bf16.mxu0 0
  %4897 = vmatpush1.bf16.msra.mxu0 %v4256
  %4898 = vmatprep.subr.bf16.mxu0 0
  %4899 = vmatpush1.bf16.msra.mxu0 %v4257
  %4900 = vmatprep.subr.bf16.mxu0 0
  %4901 = vmatpush1.bf16.msra.mxu0 %v4258
  %4902 = vmatprep.subr.bf16.mxu0 0
  %4903 = vmatpush1.bf16.msra.mxu0 %v4259
  %4904 = vmatprep.subr.bf16.mxu0 0
  %4905 = vmatpush1.bf16.msra.mxu0 %v4260
  %4906 = vmatprep.subr.bf16.mxu0 0
  %4907 = vmatpush1.bf16.msra.mxu0 %v4261
  %4908 = vmatprep.subr.bf16.mxu0 0
  %4909 = vmatpush1.bf16.msra.mxu0 %v4262
  %4910 = vmatprep.subr.bf16.mxu0 0
  %4911 = vmatpush1.bf16.msra.mxu0 %v4263
  %4912 = vmatprep.mubr.bf16.mxu0 %v3165
  %4913 = vmatmul.mubr.bf16.gmra.mrb[0].mxu0 %v3164
  %v4914 = vpop.f32.mrb[0].mxu0
  %v4915 = vadd.f32 %v4875, %v4914
  %v4916 = vpop.f32.mrb[0].mxu0
  %v4917 = vpop.f32.mrb[0].mxu0
  %v4918 = vpop.f32.mrb[0].mxu0
  %4919 = vdwg.mxu0
  %4920 = vmatprep.subr.bf16.mxu0 0
  %4921 = vmatpush1.bf16.msra.mxu0 %v4264
  %4922 = vmatprep.subr.bf16.mxu0 0
  %4923 = vmatpush1.bf16.msra.mxu0 %v4265
  %4924 = vmatprep.subr.bf16.mxu0 0
  %4925 = vmatpush1.bf16.msra.mxu0 %v4266
  %4926 = vmatprep.subr.bf16.mxu0 0
  %4927 = vmatpush1.bf16.msra.mxu0 %v4267
  %4928 = vmatprep.subr.bf16.mxu0 0
  %4929 = vmatpush1.bf16.msra.mxu0 %v4268
  %4930 = vmatprep.subr.bf16.mxu0 0
  %4931 = vmatpush1.bf16.msra.mxu0 %v4269
  %4932 = vmatprep.subr.bf16.mxu0 0
  %4933 = vmatpush1.bf16.msra.mxu0 %v4270
  %4934 = vmatprep.subr.bf16.mxu0 0
  %4935 = vmatpush1.bf16.msra.mxu0 %v4271
  %4936 = vmatprep.subr.bf16.mxu0 0
  %4937 = vmatpush1.bf16.msra.mxu0 %v4272
  %4938 = vmatprep.subr.bf16.mxu0 0
  %4939 = vmatpush1.bf16.msra.mxu0 %v4273
  %4940 = vmatprep.subr.bf16.mxu0 0
  %4941 = vmatpush1.bf16.msra.mxu0 %v4274
  %4942 = vmatprep.subr.bf16.mxu0 0
  %4943 = vmatpush1.bf16.msra.mxu0 %v4275
  %4944 = vmatprep.subr.bf16.mxu0 0
  %4945 = vmatpush1.bf16.msra.mxu0 %v4276
  %4946 = vmatprep.subr.bf16.mxu0 0
  %4947 = vmatpush1.bf16.msra.mxu0 %v4277
  %4948 = vmatprep.subr.bf16.mxu0 0
  %4949 = vmatpush1.bf16.msra.mxu0 %v4278
  %4950 = vmatprep.subr.bf16.mxu0 0
  %4951 = vmatpush1.bf16.msra.mxu0 %v4279
  %4952 = vmatprep.mubr.bf16.mxu0 %v3167
  %4953 = vmatmul.mubr.bf16.gmra.mrb[0].mxu0 %v3166
  %v4954 = vpop.f32.mrb[0].mxu0
  %v4955 = vadd.f32 %v4915, %v4954
  %v4956 = vpop.f32.mrb[0].mxu0
  %v4957 = vpop.f32.mrb[0].mxu0
  %v4958 = vpop.f32.mrb[0].mxu0
  %4959 = vdwg.mxu0
  %4960 = vmatprep.subr.bf16.mxu0 0
  %4961 = vmatpush1.bf16.msra.mxu0 %v4280
  %4962 = vmatprep.subr.bf16.mxu0 0
  %4963 = vmatpush1.bf16.msra.mxu0 %v4281
  %4964 = vmatprep.subr.bf16.mxu0 0
  %4965 = vmatpush1.bf16.msra.mxu0 %v4282
  %4966 = vmatprep.subr.bf16.mxu0 0
  %4967 = vmatpush1.bf16.msra.mxu0 %v4283
  %4968 = vmatprep.subr.bf16.mxu0 0
  %4969 = vmatpush1.bf16.msra.mxu0 %v4284
  %4970 = vmatprep.subr.bf16.mxu0 0
  %4971 = vmatpush1.bf16.msra.mxu0 %v4285
  %4972 = vmatprep.subr.bf16.mxu0 0
  %4973 = vmatpush1.bf16.msra.mxu0 %v4286
  %4974 = vmatprep.subr.bf16.mxu0 0
  %4975 = vmatpush1.bf16.msra.mxu0 %v4287
  %4976 = vmatprep.subr.bf16.mxu0 0
  %4977 = vmatpush1.bf16.msra.mxu0 %v4288
  %4978 = vmatprep.subr.bf16.mxu0 0
  %4979 = vmatpush1.bf16.msra.mxu0 %v4289
  %4980 = vmatprep.subr.bf16.mxu0 0
  %4981 = vmatpush1.bf16.msra.mxu0 %v4290
  %4982 = vmatprep.subr.bf16.mxu0 0
  %4983 = vmatpush1.bf16.msra.mxu0 %v4291
  %4984 = vmatprep.subr.bf16.mxu0 0
  %4985 = vmatpush1.bf16.msra.mxu0 %v4292
  %4986 = vmatprep.subr.bf16.mxu0 0
  %4987 = vmatpush1.bf16.msra.mxu0 %v4293
  %4988 = vmatprep.subr.bf16.mxu0 0
  %4989 = vmatpush1.bf16.msra.mxu0 %v4294
  %4990 = vmatprep.subr.bf16.mxu0 0
  %4991 = vmatpush1.bf16.msra.mxu0 %v4295
  %4992 = vmatprep.mubr.bf16.mxu0 %v3169
  %4993 = vmatmul.mubr.bf16.gmra.mrb[0].mxu0 %v3168
  %v4994 = vpop.f32.mrb[0].mxu0
  %v4995 = vadd.f32 %v4955, %v4994
  %v4996 = vpop.f32.mrb[0].mxu0
  %v4997 = vpop.f32.mrb[0].mxu0
  %v4998 = vpop.f32.mrb[0].mxu0
  %4999 = vdwg.mxu0
  %5000 = vmatprep.subr.bf16.mxu0 0
  %5001 = vmatpush1.bf16.msra.mxu0 %v4296
  %5002 = vmatprep.subr.bf16.mxu0 0
  %5003 = vmatpush1.bf16.msra.mxu0 %v4297
  %5004 = vmatprep.subr.bf16.mxu0 0
  %5005 = vmatpush1.bf16.msra.mxu0 %v4298
  %5006 = vmatprep.subr.bf16.mxu0 0
  %5007 = vmatpush1.bf16.msra.mxu0 %v4299
  %5008 = vmatprep.subr.bf16.mxu0 0
  %5009 = vmatpush1.bf16.msra.mxu0 %v4300
  %5010 = vmatprep.subr.bf16.mxu0 0
  %5011 = vmatpush1.bf16.msra.mxu0 %v4301
  %5012 = vmatprep.subr.bf16.mxu0 0
  %5013 = vmatpush1.bf16.msra.mxu0 %v4302
  %5014 = vmatprep.subr.bf16.mxu0 0
  %5015 = vmatpush1.bf16.msra.mxu0 %v4303
  %5016 = vmatprep.subr.bf16.mxu0 0
  %5017 = vmatpush1.bf16.msra.mxu0 %v4304
  %5018 = vmatprep.subr.bf16.mxu0 0
  %5019 = vmatpush1.bf16.msra.mxu0 %v4305
  %5020 = vmatprep.subr.bf16.mxu0 0
  %5021 = vmatpush1.bf16.msra.mxu0 %v4306
  %5022 = vmatprep.subr.bf16.mxu0 0
  %5023 = vmatpush1.bf16.msra.mxu0 %v4307
  %5024 = vmatprep.subr.bf16.mxu0 0
  %5025 = vmatpush1.bf16.msra.mxu0 %v4308
  %5026 = vmatprep.subr.bf16.mxu0 0
  %5027 = vmatpush1.bf16.msra.mxu0 %v4309
  %5028 = vmatprep.subr.bf16.mxu0 0
  %5029 = vmatpush1.bf16.msra.mxu0 %v4310
  %5030 = vmatprep.subr.bf16.mxu0 0
  %5031 = vmatpush1.bf16.msra.mxu0 %v4311
  %5032 = vmatprep.mubr.bf16.mxu0 %v3171
  %5033 = vmatmul.mubr.bf16.gmra.mrb[0].mxu0 %v3170
  %v5034 = vpop.f32.mrb[0].mxu0
  %v5035 = vadd.f32 %v4995, %v5034
  %v5036 = vpop.f32.mrb[0].mxu0
  %v5037 = vpop.f32.mrb[0].mxu0
  %v5038 = vpop.f32.mrb[0].mxu0
  %5039 = vdwg.mxu0
  %5040 = vmatprep.subr.bf16.mxu0 0
  %5041 = vmatpush1.bf16.msra.mxu0 %v4312
  %5042 = vmatprep.subr.bf16.mxu0 0
  %5043 = vmatpush1.bf16.msra.mxu0 %v4313
  %5044 = vmatprep.subr.bf16.mxu0 0
  %5045 = vmatpush1.bf16.msra.mxu0 %v4314
  %5046 = vmatprep.subr.bf16.mxu0 0
  %5047 = vmatpush1.bf16.msra.mxu0 %v4315
  %5048 = vmatprep.subr.bf16.mxu0 0
  %5049 = vmatpush1.bf16.msra.mxu0 %v4316
  %5050 = vmatprep.subr.bf16.mxu0 0
  %5051 = vmatpush1.bf16.msra.mxu0 %v4317
  %5052 = vmatprep.subr.bf16.mxu0 0
  %5053 = vmatpush1.bf16.msra.mxu0 %v4318
  %5054 = vmatprep.subr.bf16.mxu0 0
  %5055 = vmatpush1.bf16.msra.mxu0 %v4319
  %5056 = vmatprep.subr.bf16.mxu0 0
  %5057 = vmatpush1.bf16.msra.mxu0 %v4320
  %5058 = vmatprep.subr.bf16.mxu0 0
  %5059 = vmatpush1.bf16.msra.mxu0 %v4321
  %5060 = vmatprep.subr.bf16.mxu0 0
  %5061 = vmatpush1.bf16.msra.mxu0 %v4322
  %5062 = vmatprep.subr.bf16.mxu0 0
  %5063 = vmatpush1.bf16.msra.mxu0 %v4323
  %5064 = vmatprep.subr.bf16.mxu0 0
  %5065 = vmatpush1.bf16.msra.mxu0 %v4324
  %5066 = vmatprep.subr.bf16.mxu0 0
  %5067 = vmatpush1.bf16.msra.mxu0 %v4325
  %5068 = vmatprep.subr.bf16.mxu0 0
  %5069 = vmatpush1.bf16.msra.mxu0 %v4326
  %5070 = vmatprep.subr.bf16.mxu0 0
  %5071 = vmatpush1.bf16.msra.mxu0 %v4327
  %5072 = vmatprep.mubr.bf16.mxu0 %v3173
  %5073 = vmatmul.mubr.bf16.gmra.mrb[0].mxu0 %v3172
  %v5074 = vpop.f32.mrb[0].mxu0
  %v5075 = vadd.f32 %v5035, %v5074
  %v5076 = vpop.f32.mrb[0].mxu0
  %v5077 = vpop.f32.mrb[0].mxu0
  %v5078 = vpop.f32.mrb[0].mxu0
  %5079 = vdwg.mxu0
  %5080 = vmatprep.subr.bf16.mxu0 0
  %5081 = vmatpush1.bf16.msra.mxu0 %v4328
  %5082 = vmatprep.subr.bf16.mxu0 0
  %5083 = vmatpush1.bf16.msra.mxu0 %v4329
  %5084 = vmatprep.subr.bf16.mxu0 0
  %5085 = vmatpush1.bf16.msra.mxu0 %v4330
  %5086 = vmatprep.subr.bf16.mxu0 0
  %5087 = vmatpush1.bf16.msra.mxu0 %v4331
  %5088 = vmatprep.subr.bf16.mxu0 0
  %5089 = vmatpush1.bf16.msra.mxu0 %v4332
  %5090 = vmatprep.subr.bf16.mxu0 0
  %5091 = vmatpush1.bf16.msra.mxu0 %v4333
  %5092 = vmatprep.subr.bf16.mxu0 0
  %5093 = vmatpush1.bf16.msra.mxu0 %v4334
  %5094 = vmatprep.subr.bf16.mxu0 0
  %5095 = vmatpush1.bf16.msra.mxu0 %v4335
  %5096 = vmatprep.subr.bf16.mxu0 0
  %5097 = vmatpush1.bf16.msra.mxu0 %v4336
  %5098 = vmatprep.subr.bf16.mxu0 0
  %5099 = vmatpush1.bf16.msra.mxu0 %v4337
  %5100 = vmatprep.subr.bf16.mxu0 0
  %5101 = vmatpush1.bf16.msra.mxu0 %v4338
  %5102 = vmatprep.subr.bf16.mxu0 0
  %5103 = vmatpush1.bf16.msra.mxu0 %v4339
  %5104 = vmatprep.subr.bf16.mxu0 0
  %5105 = vmatpush1.bf16.msra.mxu0 %v4340
  %5106 = vmatprep.subr.bf16.mxu0 0
  %5107 = vmatpush1.bf16.msra.mxu0 %v4341
  %5108 = vmatprep.subr.bf16.mxu0 0
  %5109 = vmatpush1.bf16.msra.mxu0 %v4342
  %5110 = vmatprep.subr.bf16.mxu0 0
  %5111 = vmatpush1.bf16.msra.mxu0 %v4343
  %5112 = vmatprep.mubr.bf16.mxu0 %v3175
  %5113 = vmatmul.mubr.bf16.gmra.mrb[0].mxu0 %v3174
  %v5114 = vpop.f32.mrb[0].mxu0
  %v5115 = vadd.f32 %v5075, %v5114
  %v5116 = vpop.f32.mrb[0].mxu0
  %v5117 = vpop.f32.mrb[0].mxu0
  %v5118 = vpop.f32.mrb[0].mxu0
  %5119 = vdwg.mxu0
  %5120 = vmatprep.subr.bf16.mxu0 0
  %5121 = vmatpush1.bf16.msra.mxu0 %v4344
  %5122 = vmatprep.subr.bf16.mxu0 0
  %5123 = vmatpush1.bf16.msra.mxu0 %v4345
  %5124 = vmatprep.subr.bf16.mxu0 0
  %5125 = vmatpush1.bf16.msra.mxu0 %v4346
  %5126 = vmatprep.subr.bf16.mxu0 0
  %5127 = vmatpush1.bf16.msra.mxu0 %v4347
  %5128 = vmatprep.subr.bf16.mxu0 0
  %5129 = vmatpush1.bf16.msra.mxu0 %v4348
  %5130 = vmatprep.subr.bf16.mxu0 0
  %5131 = vmatpush1.bf16.msra.mxu0 %v4349
  %5132 = vmatprep.subr.bf16.mxu0 0
  %5133 = vmatpush1.bf16.msra.mxu0 %v4350
  %5134 = vmatprep.subr.bf16.mxu0 0
  %5135 = vmatpush1.bf16.msra.mxu0 %v4351
  %5136 = vmatprep.subr.bf16.mxu0 0
  %5137 = vmatpush1.bf16.msra.mxu0 %v4352
  %5138 = vmatprep.subr.bf16.mxu0 0
  %5139 = vmatpush1.bf16.msra.mxu0 %v4353
  %5140 = vmatprep.subr.bf16.mxu0 0
  %5141 = vmatpush1.bf16.msra.mxu0 %v4354
  %5142 = vmatprep.subr.bf16.mxu0 0
  %5143 = vmatpush1.bf16.msra.mxu0 %v4355
  %5144 = vmatprep.subr.bf16.mxu0 0
  %5145 = vmatpush1.bf16.msra.mxu0 %v4356
  %5146 = vmatprep.subr.bf16.mxu0 0
  %5147 = vmatpush1.bf16.msra.mxu0 %v4357
  %5148 = vmatprep.subr.bf16.mxu0 0
  %5149 = vmatpush1.bf16.msra.mxu0 %v4358
  %5150 = vmatprep.subr.bf16.mxu0 0
  %5151 = vmatpush1.bf16.msra.mxu0 %v4359
  %5152 = vmatprep.mubr.bf16.mxu0 %v3177
  %5153 = vmatmul.mubr.bf16.gmra.mrb[0].mxu0 %v3176
  %v5154 = vpop.f32.mrb[0].mxu0
  %v5155 = vadd.f32 %v5115, %v5154
  %v5156 = vpop.f32.mrb[0].mxu0
  %v5157 = vpop.f32.mrb[0].mxu0
  %v5158 = vpop.f32.mrb[0].mxu0
  %5159 = vdwg.mxu0
  %5160 = vmatprep.subr.bf16.mxu0 0
  %5161 = vmatpush1.bf16.msra.mxu0 %v4360
  %5162 = vmatprep.subr.bf16.mxu0 0
  %5163 = vmatpush1.bf16.msra.mxu0 %v4361
  %5164 = vmatprep.subr.bf16.mxu0 0
  %5165 = vmatpush1.bf16.msra.mxu0 %v4362
  %5166 = vmatprep.subr.bf16.mxu0 0
  %5167 = vmatpush1.bf16.msra.mxu0 %v4363
  %5168 = vmatprep.subr.bf16.mxu0 0
  %5169 = vmatpush1.bf16.msra.mxu0 %v4364
  %5170 = vmatprep.subr.bf16.mxu0 0
  %5171 = vmatpush1.bf16.msra.mxu0 %v4365
  %5172 = vmatprep.subr.bf16.mxu0 0
  %5173 = vmatpush1.bf16.msra.mxu0 %v4366
  %5174 = vmatprep.subr.bf16.mxu0 0
  %5175 = vmatpush1.bf16.msra.mxu0 %v4367
  %5176 = vmatprep.subr.bf16.mxu0 0
  %5177 = vmatpush1.bf16.msra.mxu0 0
  %5178 = vmatprep.subr.bf16.mxu0 0
  %5179 = vmatpush1.bf16.msra.mxu0 0
  %5180 = vmatprep.subr.bf16.mxu0 0
  %5181 = vmatpush1.bf16.msra.mxu0 0
  %5182 = vmatprep.subr.bf16.mxu0 0
  %5183 = vmatpush1.bf16.msra.mxu0 0
  %5184 = vmatprep.subr.bf16.mxu0 0
  %5185 = vmatpush1.bf16.msra.mxu0 0
  %5186 = vmatprep.subr.bf16.mxu0 0
  %5187 = vmatpush1.bf16.msra.mxu0 0
  %5188 = vmatprep.subr.bf16.mxu0 0
  %5189 = vmatpush1.bf16.msra.mxu0 0
  %5190 = vmatprep.subr.bf16.mxu0 0
  %5191 = vmatpush1.bf16.msra.mxu0 0
  %5192 = vmatprep.mubr.bf16.mxu0 0
  %5193 = vmatmul.mubr.bf16.gmra.mrb[0].mxu0 %v3178
  %v5194 = vpop.f32.mrb[0].mxu0
  %v5195 = vadd.f32 %v5155, %v5194
  %v5196 = vpop.f32.mrb[0].mxu0
  %v5197 = vpop.f32.mrb[0].mxu0
  %v5198 = vpop.f32.mrb[0].mxu0
  %5199 = vdwg.mxu0
  %s5200 = scalar_lea.vmem %s4, 64
  %v5201 = vld [vmem:[%s5200] sm:$0xf]
  %v5202 = vld [vmem:[%s5200 + $0x4] sm:$0xf]
  %v5203 = vld [vmem:[%s5200 + $0x8] sm:$0xf]
  %v5204 = vld [vmem:[%s5200 + $0xc] sm:$0xf]
  %v5205 = vld [vmem:[%s5200 + $0x10] sm:$0xf]
  %v5206 = vld [vmem:[%s5200 + $0x14] sm:$0xf]
  %v5207 = vld [vmem:[%s5200 + $0x18] sm:$0xf]
  %v5208 = vld [vmem:[%s5200 + $0x1c] sm:$0xf]
  %v5209 = vpack.c.bf16 %v2614, %v2614
  %v5218 = vunpack.c.l.b16 %v5201
  %v5219 = vunpack.c.l.b16 %v5202
  %v5220 = vunpack.c.l.b16 %v5203
  %v5221 = vunpack.c.l.b16 %v5204
  %v5222 = vunpack.c.l.b16 %v5205
  %v5223 = vunpack.c.l.b16 %v5206
  %v5224 = vunpack.c.l.b16 %v5207
  %v5225 = vunpack.c.l.b16 %v5208
  %v5226 = vpack.c.b16 %v5219, %v5218
  %v5227 = vpack.c.b16 %v5221, %v5220
  %v5228 = vpack.c.b16 %v5223, %v5222
  %v5229 = vpack.c.b16 %v5225, %v5224
  %vm5234 = vcmask 523264
  %v5236 = vsel %vm5234, %v5209, 0
  %5238 = vmatprep.subr.bf16.mxu0 0
  %5239 = vmatpush1.bf16.msra.mxu0 %v5226
  %5240 = vmatprep.subr.bf16.mxu0 0
  %5241 = vmatpush1.bf16.msra.mxu0 %v5227
  %5242 = vmatprep.subr.bf16.mxu0 0
  %5243 = vmatpush1.bf16.msra.mxu0 %v5228
  %5244 = vmatprep.subr.bf16.mxu0 0
  %5245 = vmatpush1.bf16.msra.mxu0 %v5229
  %5246 = vmatprep.subr.bf16.mxu0 0
  %5247 = vmatpush1.bf16.msra.mxu0 0
  %5248 = vmatprep.subr.bf16.mxu0 0
  %5249 = vmatpush1.bf16.msra.mxu0 0
  %5250 = vmatprep.subr.bf16.mxu0 0
  %5251 = vmatpush1.bf16.msra.mxu0 0
  %5252 = vmatprep.subr.bf16.mxu0 0
  %5253 = vmatpush1.bf16.msra.mxu0 0
  %5254 = vmatprep.subr.bf16.mxu0 0
  %5255 = vmatpush1.bf16.msra.mxu0 0
  %5256 = vmatprep.subr.bf16.mxu0 0
  %5257 = vmatpush1.bf16.msra.mxu0 0
  %5258 = vmatprep.subr.bf16.mxu0 0
  %5259 = vmatpush1.bf16.msra.mxu0 0
  %5260 = vmatprep.subr.bf16.mxu0 0
  %5261 = vmatpush1.bf16.msra.mxu0 0
  %5262 = vmatprep.subr.bf16.mxu0 0
  %5263 = vmatpush1.bf16.msra.mxu0 0
  %5264 = vmatprep.subr.bf16.mxu0 0
  %5265 = vmatpush1.bf16.msra.mxu0 0
  %5266 = vmatprep.subr.bf16.mxu0 0
  %5267 = vmatpush1.bf16.msra.mxu0 0
  %5268 = vmatprep.subr.bf16.mxu0 0
  %5269 = vmatpush1.bf16.msra.mxu0 0
  %5270 = vmatprep.mubr.bf16.mxu0 0
  %5271 = vmatmul.mubr.bf16.gmra.mrb[0].mxu0 %v5236
  %v5272 = vpop.f32.mrb[0].mxu0
  %v5273 = vadd.f32 0.0, %v5272
  %v5274 = vpop.f32.mrb[0].mxu0
  %v5275 = vpop.f32.mrb[0].mxu0
  %v5276 = vpop.f32.mrb[0].mxu0
  %5277 = vdwg.mxu0
  %s5278 = scalar_lea.vmem %s4, 96
  %v5279 = vld [vmem:[%s5278] sm:$0xf]
  %v5280 = vld [vmem:[%s5278 + $0x4] sm:$0xf]
  %v5281 = vld [vmem:[%s5278 + $0x8] sm:$0xf]
  %v5282 = vld [vmem:[%s5278 + $0xc] sm:$0xf]
  %v5283 = vld [vmem:[%s5278 + $0x10] sm:$0xf]
  %v5284 = vld [vmem:[%s5278 + $0x14] sm:$0xf]
  %v5285 = vld [vmem:[%s5278 + $0x18] sm:$0xf]
  %v5286 = vld [vmem:[%s5278 + $0x1c] sm:$0xf]
  %v5287 = vpack.c.bf16 %v5195, %v5195
  %v5296 = vunpack.c.l.b16 %v5279
  %v5297 = vunpack.c.l.b16 %v5280
  %v5298 = vunpack.c.l.b16 %v5281
  %v5299 = vunpack.c.l.b16 %v5282
  %v5300 = vunpack.c.l.b16 %v5283
  %v5301 = vunpack.c.l.b16 %v5284
  %v5302 = vunpack.c.l.b16 %v5285
  %v5303 = vunpack.c.l.b16 %v5286
  %v5304 = vpack.c.b16 %v5297, %v5296
  %v5305 = vpack.c.b16 %v5299, %v5298
  %v5306 = vpack.c.b16 %v5301, %v5300
  %v5307 = vpack.c.b16 %v5303, %v5302
  %v5313 = vsel %vm5234, %v5287, 0
  %5315 = vmatprep.subr.bf16.mxu0 0
  %5316 = vmatpush1.bf16.msra.mxu0 %v5304
  %5317 = vmatprep.subr.bf16.mxu0 0
  %5318 = vmatpush1.bf16.msra.mxu0 %v5305
  %5319 = vmatprep.subr.bf16.mxu0 0
  %5320 = vmatpush1.bf16.msra.mxu0 %v5306
  %5321 = vmatprep.subr.bf16.mxu0 0
  %5322 = vmatpush1.bf16.msra.mxu0 %v5307
  %5323 = vmatprep.subr.bf16.mxu0 0
  %5324 = vmatpush1.bf16.msra.mxu0 0
  %5325 = vmatprep.subr.bf16.mxu0 0
  %5326 = vmatpush1.bf16.msra.mxu0 0
  %5327 = vmatprep.subr.bf16.mxu0 0
  %5328 = vmatpush1.bf16.msra.mxu0 0
  %5329 = vmatprep.subr.bf16.mxu0 0
  %5330 = vmatpush1.bf16.msra.mxu0 0
  %5331 = vmatprep.subr.bf16.mxu0 0
  %5332 = vmatpush1.bf16.msra.mxu0 0
  %5333 = vmatprep.subr.bf16.mxu0 0
  %5334 = vmatpush1.bf16.msra.mxu0 0
  %5335 = vmatprep.subr.bf16.mxu0 0
  %5336 = vmatpush1.bf16.msra.mxu0 0
  %5337 = vmatprep.subr.bf16.mxu0 0
  %5338 = vmatpush1.bf16.msra.mxu0 0
  %5339 = vmatprep.subr.bf16.mxu0 0
  %5340 = vmatpush1.bf16.msra.mxu0 0
  %5341 = vmatprep.subr.bf16.mxu0 0
  %5342 = vmatpush1.bf16.msra.mxu0 0
  %5343 = vmatprep.subr.bf16.mxu0 0
  %5344 = vmatpush1.bf16.msra.mxu0 0
  %5345 = vmatprep.subr.bf16.mxu0 0
  %5346 = vmatpush1.bf16.msra.mxu0 0
  %5347 = vmatprep.mubr.bf16.mxu0 0
  %5348 = vmatmul.mubr.bf16.gmra.mrb[0].mxu0 %v5313
  %v5349 = vpop.f32.mrb[0].mxu0
  %v5350 = vadd.f32 0.0, %v5349
  %v5351 = vpop.f32.mrb[0].mxu0
  %v5352 = vpop.f32.mrb[0].mxu0
  %v5353 = vpop.f32.mrb[0].mxu0
  %5354 = vdwg.mxu0
  %v5355 = vld [vmem:[%s4] sm:$0xf]
  %v5356 = vld [vmem:[%s4 + $0x4] sm:$0xf]
  %v5357 = vld [vmem:[%s4 + $0x8] sm:$0xf]
  %v5358 = vld [vmem:[%s4 + $0xc] sm:$0xf]
  %v5359 = vld [vmem:[%s4 + $0x10] sm:$0xf]
  %v5360 = vld [vmem:[%s4 + $0x14] sm:$0xf]
  %v5361 = vld [vmem:[%s4 + $0x18] sm:$0xf]
  %v5362 = vld [vmem:[%s4 + $0x1c] sm:$0xf]
  %v5371 = vunpack.c.l.b16 %v5355
  %v5372 = vunpack.c.l.b16 %v5356
  %v5373 = vunpack.c.l.b16 %v5357
  %v5374 = vunpack.c.l.b16 %v5358
  %v5375 = vunpack.c.l.b16 %v5359
  %v5376 = vunpack.c.l.b16 %v5360
  %v5377 = vunpack.c.l.b16 %v5361
  %v5378 = vunpack.c.l.b16 %v5362
  %v5379 = vpack.c.b16 %v5372, %v5371
  %v5380 = vpack.c.b16 %v5374, %v5373
  %v5381 = vpack.c.b16 %v5376, %v5375
  %v5382 = vpack.c.b16 %v5378, %v5377
  %5387 = vmatprep.subr.bf16.mxu0 0
  %5388 = vmatpush1.bf16.msra.mxu0 %v5379
  %5389 = vmatprep.subr.bf16.mxu0 0
  %5390 = vmatpush1.bf16.msra.mxu0 %v5380
  %5391 = vmatprep.subr.bf16.mxu0 0
  %5392 = vmatpush1.bf16.msra.mxu0 %v5381
  %5393 = vmatprep.subr.bf16.mxu0 0
  %5394 = vmatpush1.bf16.msra.mxu0 %v5382
  %5395 = vmatprep.subr.bf16.mxu0 0
  %5396 = vmatpush1.bf16.msra.mxu0 0
  %5397 = vmatprep.subr.bf16.mxu0 0
  %5398 = vmatpush1.bf16.msra.mxu0 0
  %5399 = vmatprep.subr.bf16.mxu0 0
  %5400 = vmatpush1.bf16.msra.mxu0 0
  %5401 = vmatprep.subr.bf16.mxu0 0
  %5402 = vmatpush1.bf16.msra.mxu0 0
  %5403 = vmatprep.subr.bf16.mxu0 0
  %5404 = vmatpush1.bf16.msra.mxu0 0
  %5405 = vmatprep.subr.bf16.mxu0 0
  %5406 = vmatpush1.bf16.msra.mxu0 0
  %5407 = vmatprep.subr.bf16.mxu0 0
  %5408 = vmatpush1.bf16.msra.mxu0 0
  %5409 = vmatprep.subr.bf16.mxu0 0
  %5410 = vmatpush1.bf16.msra.mxu0 0
  %5411 = vmatprep.subr.bf16.mxu0 0
  %5412 = vmatpush1.bf16.msra.mxu0 0
  %5413 = vmatprep.subr.bf16.mxu0 0
  %5414 = vmatpush1.bf16.msra.mxu0 0
  %5415 = vmatprep.subr.bf16.mxu0 0
  %5416 = vmatpush1.bf16.msra.mxu0 0
  %5417 = vmatprep.subr.bf16.mxu0 0
  %5418 = vmatpush1.bf16.msra.mxu0 0
  %5419 = vmatprep.mubr.bf16.mxu0 0
  %5420 = vmatmul.mubr.bf16.gmra.mrb[0].mxu0 %v5236
  %v5421 = vpop.f32.mrb[0].mxu0
  %v5422 = vadd.f32 0.0, %v5421
  %v5423 = vpop.f32.mrb[0].mxu0
  %v5424 = vpop.f32.mrb[0].mxu0
  %v5425 = vpop.f32.mrb[0].mxu0
  %5426 = vdwg.mxu0
  %s5427 = scalar_lea.vmem %s4, 32
  %v5428 = vld [vmem:[%s5427] sm:$0xf]
  %v5429 = vld [vmem:[%s5427 + $0x4] sm:$0xf]
  %v5430 = vld [vmem:[%s5427 + $0x8] sm:$0xf]
  %v5431 = vld [vmem:[%s5427 + $0xc] sm:$0xf]
  %v5432 = vld [vmem:[%s5427 + $0x10] sm:$0xf]
  %v5433 = vld [vmem:[%s5427 + $0x14] sm:$0xf]
  %v5434 = vld [vmem:[%s5427 + $0x18] sm:$0xf]
  %v5435 = vld [vmem:[%s5427 + $0x1c] sm:$0xf]
  %v5444 = vunpack.c.l.b16 %v5428
  %v5445 = vunpack.c.l.b16 %v5429
  %v5446 = vunpack.c.l.b16 %v5430
  %v5447 = vunpack.c.l.b16 %v5431
  %v5448 = vunpack.c.l.b16 %v5432
  %v5449 = vunpack.c.l.b16 %v5433
  %v5450 = vunpack.c.l.b16 %v5434
  %v5451 = vunpack.c.l.b16 %v5435
  %v5452 = vpack.c.b16 %v5445, %v5444
  %v5453 = vpack.c.b16 %v5447, %v5446
  %v5454 = vpack.c.b16 %v5449, %v5448
  %v5455 = vpack.c.b16 %v5451, %v5450
  %5460 = vmatprep.subr.bf16.mxu0 0
  %5461 = vmatpush1.bf16.msra.mxu0 %v5452
  %5462 = vmatprep.subr.bf16.mxu0 0
  %5463 = vmatpush1.bf16.msra.mxu0 %v5453
  %5464 = vmatprep.subr.bf16.mxu0 0
  %5465 = vmatpush1.bf16.msra.mxu0 %v5454
  %5466 = vmatprep.subr.bf16.mxu0 0
  %5467 = vmatpush1.bf16.msra.mxu0 %v5455
  %5468 = vmatprep.subr.bf16.mxu0 0
  %5469 = vmatpush1.bf16.msra.mxu0 0
  %5470 = vmatprep.subr.bf16.mxu0 0
  %5471 = vmatpush1.bf16.msra.mxu0 0
  %5472 = vmatprep.subr.bf16.mxu0 0
  %5473 = vmatpush1.bf16.msra.mxu0 0
  %5474 = vmatprep.subr.bf16.mxu0 0
  %5475 = vmatpush1.bf16.msra.mxu0 0
  %5476 = vmatprep.subr.bf16.mxu0 0
  %5477 = vmatpush1.bf16.msra.mxu0 0
  %5478 = vmatprep.subr.bf16.mxu0 0
  %5479 = vmatpush1.bf16.msra.mxu0 0
  %5480 = vmatprep.subr.bf16.mxu0 0
  %5481 = vmatpush1.bf16.msra.mxu0 0
  %5482 = vmatprep.subr.bf16.mxu0 0
  %5483 = vmatpush1.bf16.msra.mxu0 0
  %5484 = vmatprep.subr.bf16.mxu0 0
  %5485 = vmatpush1.bf16.msra.mxu0 0
  %5486 = vmatprep.subr.bf16.mxu0 0
  %5487 = vmatpush1.bf16.msra.mxu0 0
  %5488 = vmatprep.subr.bf16.mxu0 0
  %5489 = vmatpush1.bf16.msra.mxu0 0
  %5490 = vmatprep.subr.bf16.mxu0 0
  %5491 = vmatpush1.bf16.msra.mxu0 0
  %5492 = vmatprep.mubr.bf16.mxu0 0
  %5493 = vmatmul.mubr.bf16.gmra.mrb[0].mxu0 %v5313
  %v5494 = vpop.f32.mrb[0].mxu0
  %v5495 = vadd.f32 0.0, %v5494
  %v5496 = vpop.f32.mrb[0].mxu0
  %v5497 = vpop.f32.mrb[0].mxu0
  %v5498 = vpop.f32.mrb[0].mxu0
  %5499 = vdwg.mxu0
  %v5500 = vrot.slane %v5422, 4
  %v5501 = vadd.f32 %v5422, %v5500
  %v5502 = vrot.slane %v5501, 2
  %v5503 = vadd.f32 %v5501, %v5502
  %v5504 = vrot.slane %v5503, 1
  %v5505 = vadd.f32 %v5503, %v5504
  %v5506 = vrot.slane %v5495, 4
  %v5507 = vadd.f32 %v5495, %v5506
  %v5508 = vrot.slane %v5507, 2
  %v5509 = vadd.f32 %v5507, %v5508
  %v5510 = vrot.slane %v5509, 1
  %v5511 = vadd.f32 %v5509, %v5510
  %v5512 = vmul.f32 %v5422, %v5422
  %v5513 = vmul.f32 %v5495, %v5495
  %v5514 = vrot.slane %v5512, 4
  %v5515 = vadd.f32 %v5512, %v5514
  %v5516 = vrot.slane %v5515, 2
  %v5517 = vadd.f32 %v5515, %v5516
  %v5518 = vrot.slane %v5517, 1
  %v5519 = vadd.f32 %v5517, %v5518
  %v5520 = vrot.slane %v5513, 4
  %v5521 = vadd.f32 %v5513, %v5520
  %v5522 = vrot.slane %v5521, 2
  %v5523 = vadd.f32 %v5521, %v5522
  %v5524 = vrot.slane %v5523, 1
  %v5525 = vadd.f32 %v5523, %v5524
  %v5526 = vmul.f32 %v5505, 0.125
  %v5527 = vmul.f32 %v5511, 0.125
  %v5528 = vmul.f32 %v5519, 0.125
  %v5529 = vmul.f32 %v5525, 0.125
  %v5530 = vmul.f32 %v5526, %v5526
  %v5531 = vmul.f32 %v5527, %v5527
  %v5532 = vsub.f32 %v5528, %v5530
  %v5533 = vsub.f32 %v5529, %v5531
  %v5534 = vmax.f32 %v5532, 0.0
  %v5535 = vmax.f32 %v5533, 0.0
  %v5536 = vsub.f32 %v5422, %v5526
  %v5537 = vsub.f32 %v5495, %v5527
  %v5538 = vadd.f32 %v5534, 1e-05
  %v5539 = vadd.f32 %v5535, 1e-05
  %v5540 = vrsqrt.pop %v5538
  %v5541 = vrsqrt.pop %v5539
  %v5542 = vmul.f32 %v5536, %v5540
  %v5543 = vmul.f32 %v5537, %v5541
  %v5544 = vld [vmem:[%s2 + $0x2] sm:$0x3]
  %v5546 = vlaneseq
  %v5547 = vshrl.u32 %v5546, 7
  %v5548 = vsub.s32 0, %v5547
  %v5549 = vrot.slane %v5544, %v5548
  %v5550 = vlaneseq
  %v5551 = vshrl.u32 %v5550, 7
  %v5552 = vsub.s32 1, %v5551
  %v5553 = vrot.slane %v5544, %v5552
  %v5556 = vmul.f32 %v5542, %v5549
  %v5557 = vmul.f32 %v5543, %v5553
  %v5558 = vld [vmem:[%s2 + $0x4] sm:$0x3]
  %v5560 = vlaneseq
  %v5561 = vshrl.u32 %v5560, 7
  %v5562 = vsub.s32 0, %v5561
  %v5563 = vrot.slane %v5558, %v5562
  %v5564 = vlaneseq
  %v5565 = vshrl.u32 %v5564, 7
  %v5566 = vsub.s32 1, %v5565
  %v5567 = vrot.slane %v5558, %v5566
  %v5570 = vadd.f32 %v5556, %v5563
  %v5571 = vadd.f32 %v5557, %v5567
  %v5572 = vmax.f32 %v5570, 0.0
  %v5573 = vmax.f32 %v5571, 0.0
  %v5574 = vld [vmem:[%s5] sm:$0xf]
  %v5575 = vld [vmem:[%s5 + $0x4] sm:$0xf]
  %v5576 = vld [vmem:[%s5 + $0x8] sm:$0xf]
  %v5577 = vld [vmem:[%s5 + $0xc] sm:$0xf]
  %v5578 = vld [vmem:[%s5 + $0x10] sm:$0xf]
  %v5579 = vld [vmem:[%s5 + $0x14] sm:$0xf]
  %v5580 = vld [vmem:[%s5 + $0x18] sm:$0xf]
  %v5581 = vld [vmem:[%s5 + $0x1c] sm:$0xf]
  %v5582 = vld [vmem:[%s5 + $0x20] sm:$0xf]
  %v5583 = vld [vmem:[%s5 + $0x24] sm:$0xf]
  %v5584 = vld [vmem:[%s5 + $0x28] sm:$0xf]
  %v5585 = vld [vmem:[%s5 + $0x2c] sm:$0xf]
  %v5586 = vld [vmem:[%s5 + $0x30] sm:$0xf]
  %v5587 = vld [vmem:[%s5 + $0x34] sm:$0xf]
  %v5588 = vld [vmem:[%s5 + $0x38] sm:$0xf]
  %v5589 = vld [vmem:[%s5 + $0x3c] sm:$0xf]
  %v5590 = vpack.c.bf16 %v5572, %v5572
  %v5607 = vunpack.c.l.b16 %v5574
  %v5608 = vunpack.c.l.b16 %v5575
  %v5609 = vunpack.c.l.b16 %v5576
  %v5610 = vunpack.c.l.b16 %v5577
  %v5611 = vunpack.c.l.b16 %v5578
  %v5612 = vunpack.c.l.b16 %v5579
  %v5613 = vunpack.c.l.b16 %v5580
  %v5614 = vunpack.c.l.b16 %v5581
  %v5615 = vunpack.c.l.b16 %v5582
  %v5616 = vunpack.c.l.b16 %v5583
  %v5617 = vunpack.c.l.b16 %v5584
  %v5618 = vunpack.c.l.b16 %v5585
  %v5619 = vunpack.c.l.b16 %v5586
  %v5620 = vunpack.c.l.b16 %v5587
  %v5621 = vunpack.c.l.b16 %v5588
  %v5622 = vunpack.c.l.b16 %v5589
  %v5623 = vpack.c.b16 %v5608, %v5607
  %v5624 = vpack.c.b16 %v5610, %v5609
  %v5625 = vpack.c.b16 %v5612, %v5611
  %v5626 = vpack.c.b16 %v5614, %v5613
  %v5627 = vpack.c.b16 %v5616, %v5615
  %v5628 = vpack.c.b16 %v5618, %v5617
  %v5629 = vpack.c.b16 %v5620, %v5619
  %v5630 = vpack.c.b16 %v5622, %v5621
  %5639 = vmatprep.subr.bf16.mxu0 0
  %5640 = vmatpush1.bf16.msra.mxu0 %v5623
  %5641 = vmatprep.subr.bf16.mxu0 0
  %5642 = vmatpush1.bf16.msra.mxu0 %v5624
  %5643 = vmatprep.subr.bf16.mxu0 0
  %5644 = vmatpush1.bf16.msra.mxu0 %v5625
  %5645 = vmatprep.subr.bf16.mxu0 0
  %5646 = vmatpush1.bf16.msra.mxu0 %v5626
  %5647 = vmatprep.subr.bf16.mxu0 0
  %5648 = vmatpush1.bf16.msra.mxu0 %v5627
  %5649 = vmatprep.subr.bf16.mxu0 0
  %5650 = vmatpush1.bf16.msra.mxu0 %v5628
  %5651 = vmatprep.subr.bf16.mxu0 0
  %5652 = vmatpush1.bf16.msra.mxu0 %v5629
  %5653 = vmatprep.subr.bf16.mxu0 0
  %5654 = vmatpush1.bf16.msra.mxu0 %v5630
  %5655 = vmatprep.subr.bf16.mxu0 0
  %5656 = vmatpush1.bf16.msra.mxu0 0
  %5657 = vmatprep.subr.bf16.mxu0 0
  %5658 = vmatpush1.bf16.msra.mxu0 0
  %5659 = vmatprep.subr.bf16.mxu0 0
  %5660 = vmatpush1.bf16.msra.mxu0 0
  %5661 = vmatprep.subr.bf16.mxu0 0
  %5662 = vmatpush1.bf16.msra.mxu0 0
  %5663 = vmatprep.subr.bf16.mxu0 0
  %5664 = vmatpush1.bf16.msra.mxu0 0
  %5665 = vmatprep.subr.bf16.mxu0 0
  %5666 = vmatpush1.bf16.msra.mxu0 0
  %5667 = vmatprep.subr.bf16.mxu0 0
  %5668 = vmatpush1.bf16.msra.mxu0 0
  %5669 = vmatprep.subr.bf16.mxu0 0
  %5670 = vmatpush1.bf16.msra.mxu0 0
  %5671 = vmatprep.mubr.bf16.mxu0 0
  %5672 = vmatmul.mubr.bf16.gmra.mrb[0].mxu0 %v5590
  %v5673 = vpop.f32.mrb[0].mxu0
  %v5674 = vadd.f32 0.0, %v5673
  %v5675 = vpop.f32.mrb[0].mxu0
  %v5676 = vpop.f32.mrb[0].mxu0
  %v5677 = vpop.f32.mrb[0].mxu0
  %5678 = vdwg.mxu0
  %s5679 = scalar_lea.vmem %s5, 64
  %v5680 = vld [vmem:[%s5679] sm:$0xf]
  %v5681 = vld [vmem:[%s5679 + $0x4] sm:$0xf]
  %v5682 = vld [vmem:[%s5679 + $0x8] sm:$0xf]
  %v5683 = vld [vmem:[%s5679 + $0xc] sm:$0xf]
  %v5684 = vld [vmem:[%s5679 + $0x10] sm:$0xf]
  %v5685 = vld [vmem:[%s5679 + $0x14] sm:$0xf]
  %v5686 = vld [vmem:[%s5679 + $0x18] sm:$0xf]
  %v5687 = vld [vmem:[%s5679 + $0x1c] sm:$0xf]
  %v5688 = vld [vmem:[%s5679 + $0x20] sm:$0xf]
  %v5689 = vld [vmem:[%s5679 + $0x24] sm:$0xf]
  %v5690 = vld [vmem:[%s5679 + $0x28] sm:$0xf]
  %v5691 = vld [vmem:[%s5679 + $0x2c] sm:$0xf]
  %v5692 = vld [vmem:[%s5679 + $0x30] sm:$0xf]
  %v5693 = vld [vmem:[%s5679 + $0x34] sm:$0xf]
  %v5694 = vld [vmem:[%s5679 + $0x38] sm:$0xf]
  %v5695 = vld [vmem:[%s5679 + $0x3c] sm:$0xf]
  %v5696 = vpack.c.bf16 %v5573, %v5573
  %v5713 = vunpack.c.l.b16 %v5680
  %v5714 = vunpack.c.l.b16 %v5681
  %v5715 = vunpack.c.l.b16 %v5682
  %v5716 = vunpack.c.l.b16 %v5683
  %v5717 = vunpack.c.l.b16 %v5684
  %v5718 = vunpack.c.l.b16 %v5685
  %v5719 = vunpack.c.l.b16 %v5686
  %v5720 = vunpack.c.l.b16 %v5687
  %v5721 = vunpack.c.l.b16 %v5688
  %v5722 = vunpack.c.l.b16 %v5689
  %v5723 = vunpack.c.l.b16 %v5690
  %v5724 = vunpack.c.l.b16 %v5691
  %v5725 = vunpack.c.l.b16 %v5692
  %v5726 = vunpack.c.l.b16 %v5693
  %v5727 = vunpack.c.l.b16 %v5694
  %v5728 = vunpack.c.l.b16 %v5695
  %v5729 = vpack.c.b16 %v5714, %v5713
  %v5730 = vpack.c.b16 %v5716, %v5715
  %v5731 = vpack.c.b16 %v5718, %v5717
  %v5732 = vpack.c.b16 %v5720, %v5719
  %v5733 = vpack.c.b16 %v5722, %v5721
  %v5734 = vpack.c.b16 %v5724, %v5723
  %v5735 = vpack.c.b16 %v5726, %v5725
  %v5736 = vpack.c.b16 %v5728, %v5727
  %5745 = vmatprep.subr.bf16.mxu0 0
  %5746 = vmatpush1.bf16.msra.mxu0 %v5729
  %5747 = vmatprep.subr.bf16.mxu0 0
  %5748 = vmatpush1.bf16.msra.mxu0 %v5730
  %5749 = vmatprep.subr.bf16.mxu0 0
  %5750 = vmatpush1.bf16.msra.mxu0 %v5731
  %5751 = vmatprep.subr.bf16.mxu0 0
  %5752 = vmatpush1.bf16.msra.mxu0 %v5732
  %5753 = vmatprep.subr.bf16.mxu0 0
  %5754 = vmatpush1.bf16.msra.mxu0 %v5733
  %5755 = vmatprep.subr.bf16.mxu0 0
  %5756 = vmatpush1.bf16.msra.mxu0 %v5734
  %5757 = vmatprep.subr.bf16.mxu0 0
  %5758 = vmatpush1.bf16.msra.mxu0 %v5735
  %5759 = vmatprep.subr.bf16.mxu0 0
  %5760 = vmatpush1.bf16.msra.mxu0 %v5736
  %5761 = vmatprep.subr.bf16.mxu0 0
  %5762 = vmatpush1.bf16.msra.mxu0 0
  %5763 = vmatprep.subr.bf16.mxu0 0
  %5764 = vmatpush1.bf16.msra.mxu0 0
  %5765 = vmatprep.subr.bf16.mxu0 0
  %5766 = vmatpush1.bf16.msra.mxu0 0
  %5767 = vmatprep.subr.bf16.mxu0 0
  %5768 = vmatpush1.bf16.msra.mxu0 0
  %5769 = vmatprep.subr.bf16.mxu0 0
  %5770 = vmatpush1.bf16.msra.mxu0 0
  %5771 = vmatprep.subr.bf16.mxu0 0
  %5772 = vmatpush1.bf16.msra.mxu0 0
  %5773 = vmatprep.subr.bf16.mxu0 0
  %5774 = vmatpush1.bf16.msra.mxu0 0
  %5775 = vmatprep.subr.bf16.mxu0 0
  %5776 = vmatpush1.bf16.msra.mxu0 0
  %5777 = vmatprep.mubr.bf16.mxu0 0
  %5778 = vmatmul.mubr.bf16.gmra.mrb[0].mxu0 %v5696
  %v5779 = vpop.f32.mrb[0].mxu0
  %v5780 = vadd.f32 0.0, %v5779
  %v5781 = vpop.f32.mrb[0].mxu0
  %v5782 = vpop.f32.mrb[0].mxu0
  %v5783 = vpop.f32.mrb[0].mxu0
  %5784 = vdwg.mxu0
  %v5785 = vrot.slane %v5674, 4
  %v5786 = vadd.f32 %v5674, %v5785
  %v5787 = vrot.slane %v5786, 2
  %v5788 = vadd.f32 %v5786, %v5787
  %v5789 = vrot.slane %v5788, 1
  %v5790 = vadd.f32 %v5788, %v5789
  %v5791 = vrot.slane %v5780, 4
  %v5792 = vadd.f32 %v5780, %v5791
  %v5793 = vrot.slane %v5792, 2
  %v5794 = vadd.f32 %v5792, %v5793
  %v5795 = vrot.slane %v5794, 1
  %v5796 = vadd.f32 %v5794, %v5795
  %v5797 = vmul.f32 %v5674, %v5674
  %v5798 = vmul.f32 %v5780, %v5780
  %v5799 = vrot.slane %v5797, 4
  %v5800 = vadd.f32 %v5797, %v5799
  %v5801 = vrot.slane %v5800, 2
  %v5802 = vadd.f32 %v5800, %v5801
  %v5803 = vrot.slane %v5802, 1
  %v5804 = vadd.f32 %v5802, %v5803
  %v5805 = vrot.slane %v5798, 4
  %v5806 = vadd.f32 %v5798, %v5805
  %v5807 = vrot.slane %v5806, 2
  %v5808 = vadd.f32 %v5806, %v5807
  %v5809 = vrot.slane %v5808, 1
  %v5810 = vadd.f32 %v5808, %v5809
  %v5811 = vmul.f32 %v5790, 0.125
  %v5812 = vmul.f32 %v5796, 0.125
  %v5813 = vmul.f32 %v5804, 0.125
  %v5814 = vmul.f32 %v5810, 0.125
  %v5815 = vmul.f32 %v5811, %v5811
  %v5816 = vmul.f32 %v5812, %v5812
  %v5817 = vsub.f32 %v5813, %v5815
  %v5818 = vsub.f32 %v5814, %v5816
  %v5819 = vmax.f32 %v5817, 0.0
  %v5820 = vmax.f32 %v5818, 0.0
  %v5821 = vsub.f32 %v5674, %v5811
  %v5822 = vsub.f32 %v5780, %v5812
  %v5823 = vadd.f32 %v5819, 1e-05
  %v5824 = vadd.f32 %v5820, 1e-05
  %v5825 = vrsqrt.pop %v5823
  %v5826 = vrsqrt.pop %v5824
  %v5827 = vmul.f32 %v5821, %v5825
  %v5828 = vmul.f32 %v5822, %v5826
  %v5829 = vld [vmem:[%s2 + $0x6] sm:$0x3]
  %v5831 = vlaneseq
  %v5832 = vshrl.u32 %v5831, 7
  %v5833 = vsub.s32 0, %v5832
  %v5834 = vrot.slane %v5829, %v5833
  %v5835 = vlaneseq
  %v5836 = vshrl.u32 %v5835, 7
  %v5837 = vsub.s32 1, %v5836
  %v5838 = vrot.slane %v5829, %v5837
  %v5841 = vmul.f32 %v5827, %v5834
  %v5842 = vmul.f32 %v5828, %v5838
  %v5843 = vld [vmem:[%s2 + $0x8] sm:$0x3]
  %v5845 = vlaneseq
  %v5846 = vshrl.u32 %v5845, 7
  %v5847 = vsub.s32 0, %v5846
  %v5848 = vrot.slane %v5843, %v5847
  %v5849 = vlaneseq
  %v5850 = vshrl.u32 %v5849, 7
  %v5851 = vsub.s32 1, %v5850
  %v5852 = vrot.slane %v5843, %v5851
  %v5855 = vadd.f32 %v5841, %v5848
  %v5856 = vadd.f32 %v5842, %v5852
  %v5857 = vadd.f32 %v5855, %v5273
  %v5858 = vadd.f32 %v5856, %v5350
  %v5859 = vmax.f32 %v5857, 0.0
  %v5860 = vmax.f32 %v5858, 0.0
  %s5861 = scalar_lea.vmem %s6, 256
  %v5862 = vld [vmem:[%s5861] sm:$0xff]
  %v5863 = vld [vmem:[%s5861 + $0x8] sm:$0xff]
  %v5864 = vld [vmem:[%s5861 + $0x10] sm:$0xff]
  %v5865 = vld [vmem:[%s5861 + $0x18] sm:$0xff]
  %v5866 = vld [vmem:[%s5861 + $0x20] sm:$0xff]
  %v5867 = vld [vmem:[%s5861 + $0x28] sm:$0xff]
  %v5868 = vld [vmem:[%s5861 + $0x30] sm:$0xff]
  %v5869 = vld [vmem:[%s5861 + $0x38] sm:$0xff]
  %v5870 = vld [vmem:[%s5861 + $0x40] sm:$0xff]
  %v5871 = vld [vmem:[%s5861 + $0x48] sm:$0xff]
  %v5872 = vld [vmem:[%s5861 + $0x50] sm:$0xff]
  %v5873 = vld [vmem:[%s5861 + $0x58] sm:$0xff]
  %v5874 = vld [vmem:[%s5861 + $0x60] sm:$0xff]
  %v5875 = vld [vmem:[%s5861 + $0x68] sm:$0xff]
  %v5876 = vld [vmem:[%s5861 + $0x70] sm:$0xff]
  %v5877 = vld [vmem:[%s5861 + $0x78] sm:$0xff]
  %v5878 = vpack.c.bf16 %v5859, %v5859
  %v5895 = vunpack.c.l.b16 %v5862
  %v5896 = vunpack.c.h.b16 %v5862
  %v5897 = vunpack.c.l.b16 %v5863
  %v5898 = vunpack.c.h.b16 %v5863
  %v5899 = vunpack.c.l.b16 %v5864
  %v5900 = vunpack.c.h.b16 %v5864
  %v5901 = vunpack.c.l.b16 %v5865
  %v5902 = vunpack.c.h.b16 %v5865
  %v5903 = vunpack.c.l.b16 %v5866
  %v5904 = vunpack.c.h.b16 %v5866
  %v5905 = vunpack.c.l.b16 %v5867
  %v5906 = vunpack.c.h.b16 %v5867
  %v5907 = vunpack.c.l.b16 %v5868
  %v5908 = vunpack.c.h.b16 %v5868
  %v5909 = vunpack.c.l.b16 %v5869
  %v5910 = vunpack.c.h.b16 %v5869
  %v5911 = vunpack.c.l.b16 %v5870
  %v5912 = vunpack.c.h.b16 %v5870
  %v5913 = vunpack.c.l.b16 %v5871
  %v5914 = vunpack.c.h.b16 %v5871
  %v5915 = vunpack.c.l.b16 %v5872
  %v5916 = vunpack.c.h.b16 %v5872
  %v5917 = vunpack.c.l.b16 %v5873
  %v5918 = vunpack.c.h.b16 %v5873
  %v5919 = vunpack.c.l.b16 %v5874
  %v5920 = vunpack.c.h.b16 %v5874
  %v5921 = vunpack.c.l.b16 %v5875
  %v5922 = vunpack.c.h.b16 %v5875
  %v5923 = vunpack.c.l.b16 %v5876
  %v5924 = vunpack.c.h.b16 %v5876
  %v5925 = vunpack.c.l.b16 %v5877
  %v5926 = vunpack.c.h.b16 %v5877
  %v5927 = vpack.c.b16 %v5897, %v5895
  %v5928 = vpack.c.b16 %v5898, %v5896
  %v5929 = vpack.c.b16 %v5901, %v5899
  %v5930 = vpack.c.b16 %v5902, %v5900
  %v5931 = vpack.c.b16 %v5905, %v5903
  %v5932 = vpack.c.b16 %v5906, %v5904
  %v5933 = vpack.c.b16 %v5909, %v5907
  %v5934 = vpack.c.b16 %v5910, %v5908
  %v5935 = vpack.c.b16 %v5913, %v5911
  %v5936 = vpack.c.b16 %v5914, %v5912
  %v5937 = vpack.c.b16 %v5917, %v5915
  %v5938 = vpack.c.b16 %v5918, %v5916
  %v5939 = vpack.c.b16 %v5921, %v5919
  %v5940 = vpack.c.b16 %v5922, %v5920
  %v5941 = vpack.c.b16 %v5925, %v5923
  %v5942 = vpack.c.b16 %v5926, %v5924
  %5959 = vmatprep.subr.bf16.mxu0 %v5928
  %5960 = vmatpush1.bf16.msra.mxu0 %v5927
  %5961 = vmatprep.subr.bf16.mxu0 %v5930
  %5962 = vmatpush1.bf16.msra.mxu0 %v5929
  %5963 = vmatprep.subr.bf16.mxu0 %v5932
  %5964 = vmatpush1.bf16.msra.mxu0 %v5931
  %5965 = vmatprep.subr.bf16.mxu0 %v5934
  %5966 = vmatpush1.bf16.msra.mxu0 %v5933
  %5967 = vmatprep.subr.bf16.mxu0 %v5936
  %5968 = vmatpush1.bf16.msra.mxu0 %v5935
  %5969 = vmatprep.subr.bf16.mxu0 %v5938
  %5970 = vmatpush1.bf16.msra.mxu0 %v5937
  %5971 = vmatprep.subr.bf16.mxu0 %v5940
  %5972 = vmatpush1.bf16.msra.mxu0 %v5939
  %5973 = vmatprep.subr.bf16.mxu0 %v5942
  %5974 = vmatpush1.bf16.msra.mxu0 %v5941
  %5975 = vmatprep.subr.bf16.mxu0 0
  %5976 = vmatpush1.bf16.msra.mxu0 0
  %5977 = vmatprep.subr.bf16.mxu0 0
  %5978 = vmatpush1.bf16.msra.mxu0 0
  %5979 = vmatprep.subr.bf16.mxu0 0
  %5980 = vmatpush1.bf16.msra.mxu0 0
  %5981 = vmatprep.subr.bf16.mxu0 0
  %5982 = vmatpush1.bf16.msra.mxu0 0
  %5983 = vmatprep.subr.bf16.mxu0 0
  %5984 = vmatpush1.bf16.msra.mxu0 0
  %5985 = vmatprep.subr.bf16.mxu0 0
  %5986 = vmatpush1.bf16.msra.mxu0 0
  %5987 = vmatprep.subr.bf16.mxu0 0
  %5988 = vmatpush1.bf16.msra.mxu0 0
  %5989 = vmatprep.subr.bf16.mxu0 0
  %5990 = vmatpush1.bf16.msra.mxu0 0
  %5991 = vmatprep.mubr.bf16.mxu0 0
  %5992 = vmatmul.mubr.bf16.gmra.mrb[0].mxu0 %v5878
  %v5993 = vpop.f32.mrb[0].mxu0
  %v5994 = vadd.f32 0.0, %v5993
  %v5995 = vpop.f32.mrb[0].mxu0
  %v5996 = vadd.f32 0.0, %v5995
  %v5997 = vpop.f32.mrb[0].mxu0
  %v5998 = vpop.f32.mrb[0].mxu0
  %5999 = vdwg.mxu0
  %s6000 = scalar_lea.vmem %s6, 384
  %v6001 = vld [vmem:[%s6000] sm:$0xff]
  %v6002 = vld [vmem:[%s6000 + $0x8] sm:$0xff]
  %v6003 = vld [vmem:[%s6000 + $0x10] sm:$0xff]
  %v6004 = vld [vmem:[%s6000 + $0x18] sm:$0xff]
  %v6005 = vld [vmem:[%s6000 + $0x20] sm:$0xff]
  %v6006 = vld [vmem:[%s6000 + $0x28] sm:$0xff]
  %v6007 = vld [vmem:[%s6000 + $0x30] sm:$0xff]
  %v6008 = vld [vmem:[%s6000 + $0x38] sm:$0xff]
  %v6009 = vld [vmem:[%s6000 + $0x40] sm:$0xff]
  %v6010 = vld [vmem:[%s6000 + $0x48] sm:$0xff]
  %v6011 = vld [vmem:[%s6000 + $0x50] sm:$0xff]
  %v6012 = vld [vmem:[%s6000 + $0x58] sm:$0xff]
  %v6013 = vld [vmem:[%s6000 + $0x60] sm:$0xff]
  %v6014 = vld [vmem:[%s6000 + $0x68] sm:$0xff]
  %v6015 = vld [vmem:[%s6000 + $0x70] sm:$0xff]
  %v6016 = vld [vmem:[%s6000 + $0x78] sm:$0xff]
  %v6017 = vpack.c.bf16 %v5860, %v5860
  %v6034 = vunpack.c.l.b16 %v6001
  %v6035 = vunpack.c.h.b16 %v6001
  %v6036 = vunpack.c.l.b16 %v6002
  %v6037 = vunpack.c.h.b16 %v6002
  %v6038 = vunpack.c.l.b16 %v6003
  %v6039 = vunpack.c.h.b16 %v6003
  %v6040 = vunpack.c.l.b16 %v6004
  %v6041 = vunpack.c.h.b16 %v6004
  %v6042 = vunpack.c.l.b16 %v6005
  %v6043 = vunpack.c.h.b16 %v6005
  %v6044 = vunpack.c.l.b16 %v6006
  %v6045 = vunpack.c.h.b16 %v6006
  %v6046 = vunpack.c.l.b16 %v6007
  %v6047 = vunpack.c.h.b16 %v6007
  %v6048 = vunpack.c.l.b16 %v6008
  %v6049 = vunpack.c.h.b16 %v6008
  %v6050 = vunpack.c.l.b16 %v6009
  %v6051 = vunpack.c.h.b16 %v6009
  %v6052 = vunpack.c.l.b16 %v6010
  %v6053 = vunpack.c.h.b16 %v6010
  %v6054 = vunpack.c.l.b16 %v6011
  %v6055 = vunpack.c.h.b16 %v6011
  %v6056 = vunpack.c.l.b16 %v6012
  %v6057 = vunpack.c.h.b16 %v6012
  %v6058 = vunpack.c.l.b16 %v6013
  %v6059 = vunpack.c.h.b16 %v6013
  %v6060 = vunpack.c.l.b16 %v6014
  %v6061 = vunpack.c.h.b16 %v6014
  %v6062 = vunpack.c.l.b16 %v6015
  %v6063 = vunpack.c.h.b16 %v6015
  %v6064 = vunpack.c.l.b16 %v6016
  %v6065 = vunpack.c.h.b16 %v6016
  %v6066 = vpack.c.b16 %v6036, %v6034
  %v6067 = vpack.c.b16 %v6037, %v6035
  %v6068 = vpack.c.b16 %v6040, %v6038
  %v6069 = vpack.c.b16 %v6041, %v6039
  %v6070 = vpack.c.b16 %v6044, %v6042
  %v6071 = vpack.c.b16 %v6045, %v6043
  %v6072 = vpack.c.b16 %v6048, %v6046
  %v6073 = vpack.c.b16 %v6049, %v6047
  %v6074 = vpack.c.b16 %v6052, %v6050
  %v6075 = vpack.c.b16 %v6053, %v6051
  %v6076 = vpack.c.b16 %v6056, %v6054
  %v6077 = vpack.c.b16 %v6057, %v6055
  %v6078 = vpack.c.b16 %v6060, %v6058
  %v6079 = vpack.c.b16 %v6061, %v6059
  %v6080 = vpack.c.b16 %v6064, %v6062
  %v6081 = vpack.c.b16 %v6065, %v6063
  %6098 = vmatprep.subr.bf16.mxu0 %v6067
  %6099 = vmatpush1.bf16.msra.mxu0 %v6066
  %6100 = vmatprep.subr.bf16.mxu0 %v6069
  %6101 = vmatpush1.bf16.msra.mxu0 %v6068
  %6102 = vmatprep.subr.bf16.mxu0 %v6071
  %6103 = vmatpush1.bf16.msra.mxu0 %v6070
  %6104 = vmatprep.subr.bf16.mxu0 %v6073
  %6105 = vmatpush1.bf16.msra.mxu0 %v6072
  %6106 = vmatprep.subr.bf16.mxu0 %v6075
  %6107 = vmatpush1.bf16.msra.mxu0 %v6074
  %6108 = vmatprep.subr.bf16.mxu0 %v6077
  %6109 = vmatpush1.bf16.msra.mxu0 %v6076
  %6110 = vmatprep.subr.bf16.mxu0 %v6079
  %6111 = vmatpush1.bf16.msra.mxu0 %v6078
  %6112 = vmatprep.subr.bf16.mxu0 %v6081
  %6113 = vmatpush1.bf16.msra.mxu0 %v6080
  %6114 = vmatprep.subr.bf16.mxu0 0
  %6115 = vmatpush1.bf16.msra.mxu0 0
  %6116 = vmatprep.subr.bf16.mxu0 0
  %6117 = vmatpush1.bf16.msra.mxu0 0
  %6118 = vmatprep.subr.bf16.mxu0 0
  %6119 = vmatpush1.bf16.msra.mxu0 0
  %6120 = vmatprep.subr.bf16.mxu0 0
  %6121 = vmatpush1.bf16.msra.mxu0 0
  %6122 = vmatprep.subr.bf16.mxu0 0
  %6123 = vmatpush1.bf16.msra.mxu0 0
  %6124 = vmatprep.subr.bf16.mxu0 0
  %6125 = vmatpush1.bf16.msra.mxu0 0
  %6126 = vmatprep.subr.bf16.mxu0 0
  %6127 = vmatpush1.bf16.msra.mxu0 0
  %6128 = vmatprep.subr.bf16.mxu0 0
  %6129 = vmatpush1.bf16.msra.mxu0 0
  %6130 = vmatprep.mubr.bf16.mxu0 0
  %6131 = vmatmul.mubr.bf16.gmra.mrb[0].mxu0 %v6017
  %v6132 = vpop.f32.mrb[0].mxu0
  %v6133 = vadd.f32 0.0, %v6132
  %v6134 = vpop.f32.mrb[0].mxu0
  %v6135 = vadd.f32 0.0, %v6134
  %v6136 = vpop.f32.mrb[0].mxu0
  %v6137 = vpop.f32.mrb[0].mxu0
  %6138 = vdwg.mxu0
  %v6139 = vld [vmem:[%s6] sm:$0xff]
  %v6140 = vld [vmem:[%s6 + $0x8] sm:$0xff]
  %v6141 = vld [vmem:[%s6 + $0x10] sm:$0xff]
  %v6142 = vld [vmem:[%s6 + $0x18] sm:$0xff]
  %v6143 = vld [vmem:[%s6 + $0x20] sm:$0xff]
  %v6144 = vld [vmem:[%s6 + $0x28] sm:$0xff]
  %v6145 = vld [vmem:[%s6 + $0x30] sm:$0xff]
  %v6146 = vld [vmem:[%s6 + $0x38] sm:$0xff]
  %v6147 = vld [vmem:[%s6 + $0x40] sm:$0xff]
  %v6148 = vld [vmem:[%s6 + $0x48] sm:$0xff]
  %v6149 = vld [vmem:[%s6 + $0x50] sm:$0xff]
  %v6150 = vld [vmem:[%s6 + $0x58] sm:$0xff]
  %v6151 = vld [vmem:[%s6 + $0x60] sm:$0xff]
  %v6152 = vld [vmem:[%s6 + $0x68] sm:$0xff]
  %v6153 = vld [vmem:[%s6 + $0x70] sm:$0xff]
  %v6154 = vld [vmem:[%s6 + $0x78] sm:$0xff]
  %v6171 = vunpack.c.l.b16 %v6139
  %v6172 = vunpack.c.h.b16 %v6139
  %v6173 = vunpack.c.l.b16 %v6140
  %v6174 = vunpack.c.h.b16 %v6140
  %v6175 = vunpack.c.l.b16 %v6141
  %v6176 = vunpack.c.h.b16 %v6141
  %v6177 = vunpack.c.l.b16 %v6142
  %v6178 = vunpack.c.h.b16 %v6142
  %v6179 = vunpack.c.l.b16 %v6143
  %v6180 = vunpack.c.h.b16 %v6143
  %v6181 = vunpack.c.l.b16 %v6144
  %v6182 = vunpack.c.h.b16 %v6144
  %v6183 = vunpack.c.l.b16 %v6145
  %v6184 = vunpack.c.h.b16 %v6145
  %v6185 = vunpack.c.l.b16 %v6146
  %v6186 = vunpack.c.h.b16 %v6146
  %v6187 = vunpack.c.l.b16 %v6147
  %v6188 = vunpack.c.h.b16 %v6147
  %v6189 = vunpack.c.l.b16 %v6148
  %v6190 = vunpack.c.h.b16 %v6148
  %v6191 = vunpack.c.l.b16 %v6149
  %v6192 = vunpack.c.h.b16 %v6149
  %v6193 = vunpack.c.l.b16 %v6150
  %v6194 = vunpack.c.h.b16 %v6150
  %v6195 = vunpack.c.l.b16 %v6151
  %v6196 = vunpack.c.h.b16 %v6151
  %v6197 = vunpack.c.l.b16 %v6152
  %v6198 = vunpack.c.h.b16 %v6152
  %v6199 = vunpack.c.l.b16 %v6153
  %v6200 = vunpack.c.h.b16 %v6153
  %v6201 = vunpack.c.l.b16 %v6154
  %v6202 = vunpack.c.h.b16 %v6154
  %v6203 = vpack.c.b16 %v6173, %v6171
  %v6204 = vpack.c.b16 %v6174, %v6172
  %v6205 = vpack.c.b16 %v6177, %v6175
  %v6206 = vpack.c.b16 %v6178, %v6176
  %v6207 = vpack.c.b16 %v6181, %v6179
  %v6208 = vpack.c.b16 %v6182, %v6180
  %v6209 = vpack.c.b16 %v6185, %v6183
  %v6210 = vpack.c.b16 %v6186, %v6184
  %v6211 = vpack.c.b16 %v6189, %v6187
  %v6212 = vpack.c.b16 %v6190, %v6188
  %v6213 = vpack.c.b16 %v6193, %v6191
  %v6214 = vpack.c.b16 %v6194, %v6192
  %v6215 = vpack.c.b16 %v6197, %v6195
  %v6216 = vpack.c.b16 %v6198, %v6196
  %v6217 = vpack.c.b16 %v6201, %v6199
  %v6218 = vpack.c.b16 %v6202, %v6200
  %6235 = vmatprep.subr.bf16.mxu0 %v6204
  %6236 = vmatpush1.bf16.msra.mxu0 %v6203
  %6237 = vmatprep.subr.bf16.mxu0 %v6206
  %6238 = vmatpush1.bf16.msra.mxu0 %v6205
  %6239 = vmatprep.subr.bf16.mxu0 %v6208
  %6240 = vmatpush1.bf16.msra.mxu0 %v6207
  %6241 = vmatprep.subr.bf16.mxu0 %v6210
  %6242 = vmatpush1.bf16.msra.mxu0 %v6209
  %6243 = vmatprep.subr.bf16.mxu0 %v6212
  %6244 = vmatpush1.bf16.msra.mxu0 %v6211
  %6245 = vmatprep.subr.bf16.mxu0 %v6214
  %6246 = vmatpush1.bf16.msra.mxu0 %v6213
  %6247 = vmatprep.subr.bf16.mxu0 %v6216
  %6248 = vmatpush1.bf16.msra.mxu0 %v6215
  %6249 = vmatprep.subr.bf16.mxu0 %v6218
  %6250 = vmatpush1.bf16.msra.mxu0 %v6217
  %6251 = vmatprep.subr.bf16.mxu0 0
  %6252 = vmatpush1.bf16.msra.mxu0 0
  %6253 = vmatprep.subr.bf16.mxu0 0
  %6254 = vmatpush1.bf16.msra.mxu0 0
  %6255 = vmatprep.subr.bf16.mxu0 0
  %6256 = vmatpush1.bf16.msra.mxu0 0
  %6257 = vmatprep.subr.bf16.mxu0 0
  %6258 = vmatpush1.bf16.msra.mxu0 0
  %6259 = vmatprep.subr.bf16.mxu0 0
  %6260 = vmatpush1.bf16.msra.mxu0 0
  %6261 = vmatprep.subr.bf16.mxu0 0
  %6262 = vmatpush1.bf16.msra.mxu0 0
  %6263 = vmatprep.subr.bf16.mxu0 0
  %6264 = vmatpush1.bf16.msra.mxu0 0
  %6265 = vmatprep.subr.bf16.mxu0 0
  %6266 = vmatpush1.bf16.msra.mxu0 0
  %6267 = vmatprep.mubr.bf16.mxu0 0
  %6268 = vmatmul.mubr.bf16.gmra.mrb[0].mxu0 %v5878
  %v6269 = vpop.f32.mrb[0].mxu0
  %v6270 = vadd.f32 0.0, %v6269
  %v6271 = vpop.f32.mrb[0].mxu0
  %v6272 = vadd.f32 0.0, %v6271
  %v6273 = vpop.f32.mrb[0].mxu0
  %v6274 = vpop.f32.mrb[0].mxu0
  %6275 = vdwg.mxu0
  %s6276 = scalar_lea.vmem %s6, 128
  %v6277 = vld [vmem:[%s6276] sm:$0xff]
  %v6278 = vld [vmem:[%s6276 + $0x8] sm:$0xff]
  %v6279 = vld [vmem:[%s6276 + $0x10] sm:$0xff]
  %v6280 = vld [vmem:[%s6276 + $0x18] sm:$0xff]
  %v6281 = vld [vmem:[%s6276 + $0x20] sm:$0xff]
  %v6282 = vld [vmem:[%s6276 + $0x28] sm:$0xff]
  %v6283 = vld [vmem:[%s6276 + $0x30] sm:$0xff]
  %v6284 = vld [vmem:[%s6276 + $0x38] sm:$0xff]
  %v6285 = vld [vmem:[%s6276 + $0x40] sm:$0xff]
  %v6286 = vld [vmem:[%s6276 + $0x48] sm:$0xff]
  %v6287 = vld [vmem:[%s6276 + $0x50] sm:$0xff]
  %v6288 = vld [vmem:[%s6276 + $0x58] sm:$0xff]
  %v6289 = vld [vmem:[%s6276 + $0x60] sm:$0xff]
  %v6290 = vld [vmem:[%s6276 + $0x68] sm:$0xff]
  %v6291 = vld [vmem:[%s6276 + $0x70] sm:$0xff]
  %v6292 = vld [vmem:[%s6276 + $0x78] sm:$0xff]
  %v6309 = vunpack.c.l.b16 %v6277
  %v6310 = vunpack.c.h.b16 %v6277
  %v6311 = vunpack.c.l.b16 %v6278
  %v6312 = vunpack.c.h.b16 %v6278
  %v6313 = vunpack.c.l.b16 %v6279
  %v6314 = vunpack.c.h.b16 %v6279
  %v6315 = vunpack.c.l.b16 %v6280
  %v6316 = vunpack.c.h.b16 %v6280
  %v6317 = vunpack.c.l.b16 %v6281
  %v6318 = vunpack.c.h.b16 %v6281
  %v6319 = vunpack.c.l.b16 %v6282
  %v6320 = vunpack.c.h.b16 %v6282
  %v6321 = vunpack.c.l.b16 %v6283
  %v6322 = vunpack.c.h.b16 %v6283
  %v6323 = vunpack.c.l.b16 %v6284
  %v6324 = vunpack.c.h.b16 %v6284
  %v6325 = vunpack.c.l.b16 %v6285
  %v6326 = vunpack.c.h.b16 %v6285
  %v6327 = vunpack.c.l.b16 %v6286
  %v6328 = vunpack.c.h.b16 %v6286
  %v6329 = vunpack.c.l.b16 %v6287
  %v6330 = vunpack.c.h.b16 %v6287
  %v6331 = vunpack.c.l.b16 %v6288
  %v6332 = vunpack.c.h.b16 %v6288
  %v6333 = vunpack.c.l.b16 %v6289
  %v6334 = vunpack.c.h.b16 %v6289
  %v6335 = vunpack.c.l.b16 %v6290
  %v6336 = vunpack.c.h.b16 %v6290
  %v6337 = vunpack.c.l.b16 %v6291
  %v6338 = vunpack.c.h.b16 %v6291
  %v6339 = vunpack.c.l.b16 %v6292
  %v6340 = vunpack.c.h.b16 %v6292
  %v6341 = vpack.c.b16 %v6311, %v6309
  %v6342 = vpack.c.b16 %v6312, %v6310
  %v6343 = vpack.c.b16 %v6315, %v6313
  %v6344 = vpack.c.b16 %v6316, %v6314
  %v6345 = vpack.c.b16 %v6319, %v6317
  %v6346 = vpack.c.b16 %v6320, %v6318
  %v6347 = vpack.c.b16 %v6323, %v6321
  %v6348 = vpack.c.b16 %v6324, %v6322
  %v6349 = vpack.c.b16 %v6327, %v6325
  %v6350 = vpack.c.b16 %v6328, %v6326
  %v6351 = vpack.c.b16 %v6331, %v6329
  %v6352 = vpack.c.b16 %v6332, %v6330
  %v6353 = vpack.c.b16 %v6335, %v6333
  %v6354 = vpack.c.b16 %v6336, %v6334
  %v6355 = vpack.c.b16 %v6339, %v6337
  %v6356 = vpack.c.b16 %v6340, %v6338
  %6373 = vmatprep.subr.bf16.mxu0 %v6342
  %6374 = vmatpush1.bf16.msra.mxu0 %v6341
  %6375 = vmatprep.subr.bf16.mxu0 %v6344
  %6376 = vmatpush1.bf16.msra.mxu0 %v6343
  %6377 = vmatprep.subr.bf16.mxu0 %v6346
  %6378 = vmatpush1.bf16.msra.mxu0 %v6345
  %6379 = vmatprep.subr.bf16.mxu0 %v6348
  %6380 = vmatpush1.bf16.msra.mxu0 %v6347
  %6381 = vmatprep.subr.bf16.mxu0 %v6350
  %6382 = vmatpush1.bf16.msra.mxu0 %v6349
  %6383 = vmatprep.subr.bf16.mxu0 %v6352
  %6384 = vmatpush1.bf16.msra.mxu0 %v6351
  %6385 = vmatprep.subr.bf16.mxu0 %v6354
  %6386 = vmatpush1.bf16.msra.mxu0 %v6353
  %6387 = vmatprep.subr.bf16.mxu0 %v6356
  %6388 = vmatpush1.bf16.msra.mxu0 %v6355
  %6389 = vmatprep.subr.bf16.mxu0 0
  %6390 = vmatpush1.bf16.msra.mxu0 0
  %6391 = vmatprep.subr.bf16.mxu0 0
  %6392 = vmatpush1.bf16.msra.mxu0 0
  %6393 = vmatprep.subr.bf16.mxu0 0
  %6394 = vmatpush1.bf16.msra.mxu0 0
  %6395 = vmatprep.subr.bf16.mxu0 0
  %6396 = vmatpush1.bf16.msra.mxu0 0
  %6397 = vmatprep.subr.bf16.mxu0 0
  %6398 = vmatpush1.bf16.msra.mxu0 0
  %6399 = vmatprep.subr.bf16.mxu0 0
  %6400 = vmatpush1.bf16.msra.mxu0 0
  %6401 = vmatprep.subr.bf16.mxu0 0
  %6402 = vmatpush1.bf16.msra.mxu0 0
  %6403 = vmatprep.subr.bf16.mxu0 0
  %6404 = vmatpush1.bf16.msra.mxu0 0
  %6405 = vmatprep.mubr.bf16.mxu0 0
  %6406 = vmatmul.mubr.bf16.gmra.mrb[0].mxu0 %v6017
  %v6407 = vpop.f32.mrb[0].mxu0
  %v6408 = vadd.f32 0.0, %v6407
  %v6409 = vpop.f32.mrb[0].mxu0
  %v6410 = vadd.f32 0.0, %v6409
  %v6411 = vpop.f32.mrb[0].mxu0
  %v6412 = vpop.f32.mrb[0].mxu0
  %6413 = vdwg.mxu0
  %v6414 = vrot.slane %v6270, 4
  %v6415 = vadd.f32 %v6270, %v6414
  %v6416 = vrot.slane %v6415, 2
  %v6417 = vadd.f32 %v6415, %v6416
  %v6418 = vrot.slane %v6417, 1
  %v6419 = vadd.f32 %v6417, %v6418
  %v6420 = vrot.slane %v6272, 4
  %v6421 = vadd.f32 %v6272, %v6420
  %v6422 = vrot.slane %v6421, 2
  %v6423 = vadd.f32 %v6421, %v6422
  %v6424 = vrot.slane %v6423, 1
  %v6425 = vadd.f32 %v6423, %v6424
  %v6426 = vrot.slane %v6408, 4
  %v6427 = vadd.f32 %v6408, %v6426
  %v6428 = vrot.slane %v6427, 2
  %v6429 = vadd.f32 %v6427, %v6428
  %v6430 = vrot.slane %v6429, 1
  %v6431 = vadd.f32 %v6429, %v6430
  %v6432 = vrot.slane %v6410, 4
  %v6433 = vadd.f32 %v6410, %v6432
  %v6434 = vrot.slane %v6433, 2
  %v6435 = vadd.f32 %v6433, %v6434
  %v6436 = vrot.slane %v6435, 1
  %v6437 = vadd.f32 %v6435, %v6436
  %v6438 = vmul.f32 %v6270, %v6270
  %v6439 = vmul.f32 %v6272, %v6272
  %v6440 = vmul.f32 %v6408, %v6408
  %v6441 = vmul.f32 %v6410, %v6410
  %v6442 = vrot.slane %v6438, 4
  %v6443 = vadd.f32 %v6438, %v6442
  %v6444 = vrot.slane %v6443, 2
  %v6445 = vadd.f32 %v6443, %v6444
  %v6446 = vrot.slane %v6445, 1
  %v6447 = vadd.f32 %v6445, %v6446
  %v6448 = vrot.slane %v6439, 4
  %v6449 = vadd.f32 %v6439, %v6448
  %v6450 = vrot.slane %v6449, 2
  %v6451 = vadd.f32 %v6449, %v6450
  %v6452 = vrot.slane %v6451, 1
  %v6453 = vadd.f32 %v6451, %v6452
  %v6454 = vrot.slane %v6440, 4
  %v6455 = vadd.f32 %v6440, %v6454
  %v6456 = vrot.slane %v6455, 2
  %v6457 = vadd.f32 %v6455, %v6456
  %v6458 = vrot.slane %v6457, 1
  %v6459 = vadd.f32 %v6457, %v6458
  %v6460 = vrot.slane %v6441, 4
  %v6461 = vadd.f32 %v6441, %v6460
  %v6462 = vrot.slane %v6461, 2
  %v6463 = vadd.f32 %v6461, %v6462
  %v6464 = vrot.slane %v6463, 1
  %v6465 = vadd.f32 %v6463, %v6464
  %v6466 = vmul.f32 %v6419, 0.125
  %v6467 = vmul.f32 %v6425, 0.125
  %v6468 = vmul.f32 %v6431, 0.125
  %v6469 = vmul.f32 %v6437, 0.125
  %v6470 = vmul.f32 %v6447, 0.125
  %v6471 = vmul.f32 %v6453, 0.125
  %v6472 = vmul.f32 %v6459, 0.125
  %v6473 = vmul.f32 %v6465, 0.125
  %v6474 = vmul.f32 %v6466, %v6466
  %v6475 = vmul.f32 %v6467, %v6467
  %v6476 = vmul.f32 %v6468, %v6468
  %v6477 = vmul.f32 %v6469, %v6469
  %v6478 = vsub.f32 %v6470, %v6474
  %v6479 = vsub.f32 %v6471, %v6475
  %v6480 = vsub.f32 %v6472, %v6476
  %v6481 = vsub.f32 %v6473, %v6477
  %v6482 = vmax.f32 %v6478, 0.0
  %v6483 = vmax.f32 %v6479, 0.0
  %v6484 = vmax.f32 %v6480, 0.0
  %v6485 = vmax.f32 %v6481, 0.0
  %v6486 = vsub.f32 %v6270, %v6466
  %v6487 = vsub.f32 %v6272, %v6467
  %v6488 = vsub.f32 %v6408, %v6468
  %v6489 = vsub.f32 %v6410, %v6469
  %v6490 = vadd.f32 %v6482, 1e-05
  %v6491 = vadd.f32 %v6483, 1e-05
  %v6492 = vadd.f32 %v6484, 1e-05
  %v6493 = vadd.f32 %v6485, 1e-05
  %v6494 = vrsqrt.pop %v6490
  %v6495 = vrsqrt.pop %v6491
  %v6496 = vrsqrt.pop %v6492
  %v6497 = vrsqrt.pop %v6493
  %v6498 = vmul.f32 %v6486, %v6494
  %v6499 = vmul.f32 %v6487, %v6495
  %v6500 = vmul.f32 %v6488, %v6496
  %v6501 = vmul.f32 %v6489, %v6497
  %v6502 = vld [vmem:[%s2 + $0xa] sm:$0xf]
  %v6504 = vlaneseq
  %v6505 = vshrl.u32 %v6504, 7
  %v6506 = vsub.s32 0, %v6505
  %v6507 = vrot.slane %v6502, %v6506
  %v6508 = vlaneseq
  %v6509 = vshrl.u32 %v6508, 7
  %v6510 = vsub.s32 1, %v6509
  %v6511 = vrot.slane %v6502, %v6510
  %v6512 = vlaneseq
  %v6513 = vshrl.u32 %v6512, 7
  %v6514 = vsub.s32 2, %v6513
  %v6515 = vrot.slane %v6502, %v6514
  %v6516 = vlaneseq
  %v6517 = vshrl.u32 %v6516, 7
  %v6518 = vsub.s32 3, %v6517
  %v6519 = vrot.slane %v6502, %v6518
  %v6524 = vmul.f32 %v6498, %v6507
  %v6525 = vmul.f32 %v6499, %v6511
  %v6526 = vmul.f32 %v6500, %v6515
  %v6527 = vmul.f32 %v6501, %v6519
  %v6528 = vld [vmem:[%s2 + $0xe] sm:$0xf]
  %v6530 = vlaneseq
  %v6531 = vshrl.u32 %v6530, 7
  %v6532 = vsub.s32 0, %v6531
  %v6533 = vrot.slane %v6528, %v6532
  %v6534 = vlaneseq
  %v6535 = vshrl.u32 %v6534, 7
  %v6536 = vsub.s32 1, %v6535
  %v6537 = vrot.slane %v6528, %v6536
  %v6538 = vlaneseq
  %v6539 = vshrl.u32 %v6538, 7
  %v6540 = vsub.s32 2, %v6539
  %v6541 = vrot.slane %v6528, %v6540
  %v6542 = vlaneseq
  %v6543 = vshrl.u32 %v6542, 7
  %v6544 = vsub.s32 3, %v6543
  %v6545 = vrot.slane %v6528, %v6544
  %v6550 = vadd.f32 %v6524, %v6533
  %v6551 = vadd.f32 %v6525, %v6537
  %v6552 = vadd.f32 %v6526, %v6541
  %v6553 = vadd.f32 %v6527, %v6545
  %v6554 = vmax.f32 %v6550, 0.0
  %v6555 = vmax.f32 %v6551, 0.0
  %v6556 = vmax.f32 %v6552, 0.0
  %v6557 = vmax.f32 %v6553, 0.0
  %v6558 = vld [vmem:[%s7] sm:$0xff]
  %v6559 = vld [vmem:[%s7 + $0x8] sm:$0xff]
  %v6560 = vld [vmem:[%s7 + $0x10] sm:$0xff]
  %v6561 = vld [vmem:[%s7 + $0x18] sm:$0xff]
  %v6562 = vld [vmem:[%s7 + $0x20] sm:$0xff]
  %v6563 = vld [vmem:[%s7 + $0x28] sm:$0xff]
  %v6564 = vld [vmem:[%s7 + $0x30] sm:$0xff]
  %v6565 = vld [vmem:[%s7 + $0x38] sm:$0xff]
  %v6566 = vld [vmem:[%s7 + $0x40] sm:$0xff]
  %v6567 = vld [vmem:[%s7 + $0x48] sm:$0xff]
  %v6568 = vld [vmem:[%s7 + $0x50] sm:$0xff]
  %v6569 = vld [vmem:[%s7 + $0x58] sm:$0xff]
  %v6570 = vld [vmem:[%s7 + $0x60] sm:$0xff]
  %v6571 = vld [vmem:[%s7 + $0x68] sm:$0xff]
  %v6572 = vld [vmem:[%s7 + $0x70] sm:$0xff]
  %v6573 = vld [vmem:[%s7 + $0x78] sm:$0xff]
  %v6574 = vld [vmem:[%s7 + $0x80] sm:$0xff]
  %v6575 = vld [vmem:[%s7 + $0x88] sm:$0xff]
  %v6576 = vld [vmem:[%s7 + $0x90] sm:$0xff]
  %v6577 = vld [vmem:[%s7 + $0x98] sm:$0xff]
  %v6578 = vld [vmem:[%s7 + $0xa0] sm:$0xff]
  %v6579 = vld [vmem:[%s7 + $0xa8] sm:$0xff]
  %v6580 = vld [vmem:[%s7 + $0xb0] sm:$0xff]
  %v6581 = vld [vmem:[%s7 + $0xb8] sm:$0xff]
  %v6582 = vld [vmem:[%s7 + $0xc0] sm:$0xff]
  %v6583 = vld [vmem:[%s7 + $0xc8] sm:$0xff]
  %v6584 = vld [vmem:[%s7 + $0xd0] sm:$0xff]
  %v6585 = vld [vmem:[%s7 + $0xd8] sm:$0xff]
  %v6586 = vld [vmem:[%s7 + $0xe0] sm:$0xff]
  %v6587 = vld [vmem:[%s7 + $0xe8] sm:$0xff]
  %v6588 = vld [vmem:[%s7 + $0xf0] sm:$0xff]
  %v6589 = vld [vmem:[%s7 + $0xf8] sm:$0xff]
  %v6590 = vpack.c.bf16 %v6554, %v6554
  %v6591 = vpack.c.bf16 %v6555, %v6555
  %v6624 = vunpack.c.l.b16 %v6558
  %v6625 = vunpack.c.h.b16 %v6558
  %v6626 = vunpack.c.l.b16 %v6559
  %v6627 = vunpack.c.h.b16 %v6559
  %v6628 = vunpack.c.l.b16 %v6560
  %v6629 = vunpack.c.h.b16 %v6560
  %v6630 = vunpack.c.l.b16 %v6561
  %v6631 = vunpack.c.h.b16 %v6561
  %v6632 = vunpack.c.l.b16 %v6562
  %v6633 = vunpack.c.h.b16 %v6562
  %v6634 = vunpack.c.l.b16 %v6563
  %v6635 = vunpack.c.h.b16 %v6563
  %v6636 = vunpack.c.l.b16 %v6564
  %v6637 = vunpack.c.h.b16 %v6564
  %v6638 = vunpack.c.l.b16 %v6565
  %v6639 = vunpack.c.h.b16 %v6565
  %v6640 = vunpack.c.l.b16 %v6566
  %v6641 = vunpack.c.h.b16 %v6566
  %v6642 = vunpack.c.l.b16 %v6567
  %v6643 = vunpack.c.h.b16 %v6567
  %v6644 = vunpack.c.l.b16 %v6568
  %v6645 = vunpack.c.h.b16 %v6568
  %v6646 = vunpack.c.l.b16 %v6569
  %v6647 = vunpack.c.h.b16 %v6569
  %v6648 = vunpack.c.l.b16 %v6570
  %v6649 = vunpack.c.h.b16 %v6570
  %v6650 = vunpack.c.l.b16 %v6571
  %v6651 = vunpack.c.h.b16 %v6571
  %v6652 = vunpack.c.l.b16 %v6572
  %v6653 = vunpack.c.h.b16 %v6572
  %v6654 = vunpack.c.l.b16 %v6573
  %v6655 = vunpack.c.h.b16 %v6573
  %v6656 = vunpack.c.l.b16 %v6574
  %v6657 = vunpack.c.h.b16 %v6574
  %v6658 = vunpack.c.l.b16 %v6575
  %v6659 = vunpack.c.h.b16 %v6575
  %v6660 = vunpack.c.l.b16 %v6576
  %v6661 = vunpack.c.h.b16 %v6576
  %v6662 = vunpack.c.l.b16 %v6577
  %v6663 = vunpack.c.h.b16 %v6577
  %v6664 = vunpack.c.l.b16 %v6578
  %v6665 = vunpack.c.h.b16 %v6578
  %v6666 = vunpack.c.l.b16 %v6579
  %v6667 = vunpack.c.h.b16 %v6579
  %v6668 = vunpack.c.l.b16 %v6580
  %v6669 = vunpack.c.h.b16 %v6580
  %v6670 = vunpack.c.l.b16 %v6581
  %v6671 = vunpack.c.h.b16 %v6581
  %v6672 = vunpack.c.l.b16 %v6582
  %v6673 = vunpack.c.h.b16 %v6582
  %v6674 = vunpack.c.l.b16 %v6583
  %v6675 = vunpack.c.h.b16 %v6583
  %v6676 = vunpack.c.l.b16 %v6584
  %v6677 = vunpack.c.h.b16 %v6584
  %v6678 = vunpack.c.l.b16 %v6585
  %v6679 = vunpack.c.h.b16 %v6585
  %v6680 = vunpack.c.l.b16 %v6586
  %v6681 = vunpack.c.h.b16 %v6586
  %v6682 = vunpack.c.l.b16 %v6587
  %v6683 = vunpack.c.h.b16 %v6587
  %v6684 = vunpack.c.l.b16 %v6588
  %v6685 = vunpack.c.h.b16 %v6588
  %v6686 = vunpack.c.l.b16 %v6589
  %v6687 = vunpack.c.h.b16 %v6589
  %v6688 = vpack.c.b16 %v6626, %v6624
  %v6689 = vpack.c.b16 %v6627, %v6625
  %v6690 = vpack.c.b16 %v6630, %v6628
  %v6691 = vpack.c.b16 %v6631, %v6629
  %v6692 = vpack.c.b16 %v6634, %v6632
  %v6693 = vpack.c.b16 %v6635, %v6633
  %v6694 = vpack.c.b16 %v6638, %v6636
  %v6695 = vpack.c.b16 %v6639, %v6637
  %v6696 = vpack.c.b16 %v6642, %v6640
  %v6697 = vpack.c.b16 %v6643, %v6641
  %v6698 = vpack.c.b16 %v6646, %v6644
  %v6699 = vpack.c.b16 %v6647, %v6645
  %v6700 = vpack.c.b16 %v6650, %v6648
  %v6701 = vpack.c.b16 %v6651, %v6649
  %v6702 = vpack.c.b16 %v6654, %v6652
  %v6703 = vpack.c.b16 %v6655, %v6653
  %v6704 = vpack.c.b16 %v6658, %v6656
  %v6705 = vpack.c.b16 %v6659, %v6657
  %v6706 = vpack.c.b16 %v6662, %v6660
  %v6707 = vpack.c.b16 %v6663, %v6661
  %v6708 = vpack.c.b16 %v6666, %v6664
  %v6709 = vpack.c.b16 %v6667, %v6665
  %v6710 = vpack.c.b16 %v6670, %v6668
  %v6711 = vpack.c.b16 %v6671, %v6669
  %v6712 = vpack.c.b16 %v6674, %v6672
  %v6713 = vpack.c.b16 %v6675, %v6673
  %v6714 = vpack.c.b16 %v6678, %v6676
  %v6715 = vpack.c.b16 %v6679, %v6677
  %v6716 = vpack.c.b16 %v6682, %v6680
  %v6717 = vpack.c.b16 %v6683, %v6681
  %v6718 = vpack.c.b16 %v6686, %v6684
  %v6719 = vpack.c.b16 %v6687, %v6685
  %6752 = vmatprep.subr.bf16.mxu0 %v6689
  %6753 = vmatpush1.bf16.msra.mxu0 %v6688
  %6754 = vmatprep.subr.bf16.mxu0 %v6691
  %6755 = vmatpush1.bf16.msra.mxu0 %v6690
  %6756 = vmatprep.subr.bf16.mxu0 %v6693
  %6757 = vmatpush1.bf16.msra.mxu0 %v6692
  %6758 = vmatprep.subr.bf16.mxu0 %v6695
  %6759 = vmatpush1.bf16.msra.mxu0 %v6694
  %6760 = vmatprep.subr.bf16.mxu0 %v6697
  %6761 = vmatpush1.bf16.msra.mxu0 %v6696
  %6762 = vmatprep.subr.bf16.mxu0 %v6699
  %6763 = vmatpush1.bf16.msra.mxu0 %v6698
  %6764 = vmatprep.subr.bf16.mxu0 %v6701
  %6765 = vmatpush1.bf16.msra.mxu0 %v6700
  %6766 = vmatprep.subr.bf16.mxu0 %v6703
  %6767 = vmatpush1.bf16.msra.mxu0 %v6702
  %6768 = vmatprep.subr.bf16.mxu0 %v6705
  %6769 = vmatpush1.bf16.msra.mxu0 %v6704
  %6770 = vmatprep.subr.bf16.mxu0 %v6707
  %6771 = vmatpush1.bf16.msra.mxu0 %v6706
  %6772 = vmatprep.subr.bf16.mxu0 %v6709
  %6773 = vmatpush1.bf16.msra.mxu0 %v6708
  %6774 = vmatprep.subr.bf16.mxu0 %v6711
  %6775 = vmatpush1.bf16.msra.mxu0 %v6710
  %6776 = vmatprep.subr.bf16.mxu0 %v6713
  %6777 = vmatpush1.bf16.msra.mxu0 %v6712
  %6778 = vmatprep.subr.bf16.mxu0 %v6715
  %6779 = vmatpush1.bf16.msra.mxu0 %v6714
  %6780 = vmatprep.subr.bf16.mxu0 %v6717
  %6781 = vmatpush1.bf16.msra.mxu0 %v6716
  %6782 = vmatprep.subr.bf16.mxu0 %v6719
  %6783 = vmatpush1.bf16.msra.mxu0 %v6718
  %6784 = vmatprep.mubr.bf16.mxu0 %v6591
  %6785 = vmatmul.mubr.bf16.gmra.mrb[0].mxu0 %v6590
  %v6786 = vpop.f32.mrb[0].mxu0
  %v6787 = vadd.f32 0.0, %v6786
  %v6788 = vpop.f32.mrb[0].mxu0
  %v6789 = vadd.f32 0.0, %v6788
  %v6790 = vpop.f32.mrb[0].mxu0
  %v6791 = vpop.f32.mrb[0].mxu0
  %6792 = vdwg.mxu0
  %s6793 = scalar_lea.vmem %s7, 256
  %v6794 = vld [vmem:[%s6793] sm:$0xff]
  %v6795 = vld [vmem:[%s6793 + $0x8] sm:$0xff]
  %v6796 = vld [vmem:[%s6793 + $0x10] sm:$0xff]
  %v6797 = vld [vmem:[%s6793 + $0x18] sm:$0xff]
  %v6798 = vld [vmem:[%s6793 + $0x20] sm:$0xff]
  %v6799 = vld [vmem:[%s6793 + $0x28] sm:$0xff]
  %v6800 = vld [vmem:[%s6793 + $0x30] sm:$0xff]
  %v6801 = vld [vmem:[%s6793 + $0x38] sm:$0xff]
  %v6802 = vld [vmem:[%s6793 + $0x40] sm:$0xff]
  %v6803 = vld [vmem:[%s6793 + $0x48] sm:$0xff]
  %v6804 = vld [vmem:[%s6793 + $0x50] sm:$0xff]
  %v6805 = vld [vmem:[%s6793 + $0x58] sm:$0xff]
  %v6806 = vld [vmem:[%s6793 + $0x60] sm:$0xff]
  %v6807 = vld [vmem:[%s6793 + $0x68] sm:$0xff]
  %v6808 = vld [vmem:[%s6793 + $0x70] sm:$0xff]
  %v6809 = vld [vmem:[%s6793 + $0x78] sm:$0xff]
  %v6810 = vld [vmem:[%s6793 + $0x80] sm:$0xff]
  %v6811 = vld [vmem:[%s6793 + $0x88] sm:$0xff]
  %v6812 = vld [vmem:[%s6793 + $0x90] sm:$0xff]
  %v6813 = vld [vmem:[%s6793 + $0x98] sm:$0xff]
  %v6814 = vld [vmem:[%s6793 + $0xa0] sm:$0xff]
  %v6815 = vld [vmem:[%s6793 + $0xa8] sm:$0xff]
  %v6816 = vld [vmem:[%s6793 + $0xb0] sm:$0xff]
  %v6817 = vld [vmem:[%s6793 + $0xb8] sm:$0xff]
  %v6818 = vld [vmem:[%s6793 + $0xc0] sm:$0xff]
  %v6819 = vld [vmem:[%s6793 + $0xc8] sm:$0xff]
  %v6820 = vld [vmem:[%s6793 + $0xd0] sm:$0xff]
  %v6821 = vld [vmem:[%s6793 + $0xd8] sm:$0xff]
  %v6822 = vld [vmem:[%s6793 + $0xe0] sm:$0xff]
  %v6823 = vld [vmem:[%s6793 + $0xe8] sm:$0xff]
  %v6824 = vld [vmem:[%s6793 + $0xf0] sm:$0xff]
  %v6825 = vld [vmem:[%s6793 + $0xf8] sm:$0xff]
  %v6826 = vpack.c.bf16 %v6556, %v6556
  %v6827 = vpack.c.bf16 %v6557, %v6557
  %v6860 = vunpack.c.l.b16 %v6794
  %v6861 = vunpack.c.h.b16 %v6794
  %v6862 = vunpack.c.l.b16 %v6795
  %v6863 = vunpack.c.h.b16 %v6795
  %v6864 = vunpack.c.l.b16 %v6796
  %v6865 = vunpack.c.h.b16 %v6796
  %v6866 = vunpack.c.l.b16 %v6797
  %v6867 = vunpack.c.h.b16 %v6797
  %v6868 = vunpack.c.l.b16 %v6798
  %v6869 = vunpack.c.h.b16 %v6798
  %v6870 = vunpack.c.l.b16 %v6799
  %v6871 = vunpack.c.h.b16 %v6799
  %v6872 = vunpack.c.l.b16 %v6800
  %v6873 = vunpack.c.h.b16 %v6800
  %v6874 = vunpack.c.l.b16 %v6801
  %v6875 = vunpack.c.h.b16 %v6801
  %v6876 = vunpack.c.l.b16 %v6802
  %v6877 = vunpack.c.h.b16 %v6802
  %v6878 = vunpack.c.l.b16 %v6803
  %v6879 = vunpack.c.h.b16 %v6803
  %v6880 = vunpack.c.l.b16 %v6804
  %v6881 = vunpack.c.h.b16 %v6804
  %v6882 = vunpack.c.l.b16 %v6805
  %v6883 = vunpack.c.h.b16 %v6805
  %v6884 = vunpack.c.l.b16 %v6806
  %v6885 = vunpack.c.h.b16 %v6806
  %v6886 = vunpack.c.l.b16 %v6807
  %v6887 = vunpack.c.h.b16 %v6807
  %v6888 = vunpack.c.l.b16 %v6808
  %v6889 = vunpack.c.h.b16 %v6808
  %v6890 = vunpack.c.l.b16 %v6809
  %v6891 = vunpack.c.h.b16 %v6809
  %v6892 = vunpack.c.l.b16 %v6810
  %v6893 = vunpack.c.h.b16 %v6810
  %v6894 = vunpack.c.l.b16 %v6811
  %v6895 = vunpack.c.h.b16 %v6811
  %v6896 = vunpack.c.l.b16 %v6812
  %v6897 = vunpack.c.h.b16 %v6812
  %v6898 = vunpack.c.l.b16 %v6813
  %v6899 = vunpack.c.h.b16 %v6813
  %v6900 = vunpack.c.l.b16 %v6814
  %v6901 = vunpack.c.h.b16 %v6814
  %v6902 = vunpack.c.l.b16 %v6815
  %v6903 = vunpack.c.h.b16 %v6815
  %v6904 = vunpack.c.l.b16 %v6816
  %v6905 = vunpack.c.h.b16 %v6816
  %v6906 = vunpack.c.l.b16 %v6817
  %v6907 = vunpack.c.h.b16 %v6817
  %v6908 = vunpack.c.l.b16 %v6818
  %v6909 = vunpack.c.h.b16 %v6818
  %v6910 = vunpack.c.l.b16 %v6819
  %v6911 = vunpack.c.h.b16 %v6819
  %v6912 = vunpack.c.l.b16 %v6820
  %v6913 = vunpack.c.h.b16 %v6820
  %v6914 = vunpack.c.l.b16 %v6821
  %v6915 = vunpack.c.h.b16 %v6821
  %v6916 = vunpack.c.l.b16 %v6822
  %v6917 = vunpack.c.h.b16 %v6822
  %v6918 = vunpack.c.l.b16 %v6823
  %v6919 = vunpack.c.h.b16 %v6823
  %v6920 = vunpack.c.l.b16 %v6824
  %v6921 = vunpack.c.h.b16 %v6824
  %v6922 = vunpack.c.l.b16 %v6825
  %v6923 = vunpack.c.h.b16 %v6825
  %v6924 = vpack.c.b16 %v6862, %v6860
  %v6925 = vpack.c.b16 %v6863, %v6861
  %v6926 = vpack.c.b16 %v6866, %v6864
  %v6927 = vpack.c.b16 %v6867, %v6865
  %v6928 = vpack.c.b16 %v6870, %v6868
  %v6929 = vpack.c.b16 %v6871, %v6869
  %v6930 = vpack.c.b16 %v6874, %v6872
  %v6931 = vpack.c.b16 %v6875, %v6873
  %v6932 = vpack.c.b16 %v6878, %v6876
  %v6933 = vpack.c.b16 %v6879, %v6877
  %v6934 = vpack.c.b16 %v6882, %v6880
  %v6935 = vpack.c.b16 %v6883, %v6881
  %v6936 = vpack.c.b16 %v6886, %v6884
  %v6937 = vpack.c.b16 %v6887, %v6885
  %v6938 = vpack.c.b16 %v6890, %v6888
  %v6939 = vpack.c.b16 %v6891, %v6889
  %v6940 = vpack.c.b16 %v6894, %v6892
  %v6941 = vpack.c.b16 %v6895, %v6893
  %v6942 = vpack.c.b16 %v6898, %v6896
  %v6943 = vpack.c.b16 %v6899, %v6897
  %v6944 = vpack.c.b16 %v6902, %v6900
  %v6945 = vpack.c.b16 %v6903, %v6901
  %v6946 = vpack.c.b16 %v6906, %v6904
  %v6947 = vpack.c.b16 %v6907, %v6905
  %v6948 = vpack.c.b16 %v6910, %v6908
  %v6949 = vpack.c.b16 %v6911, %v6909
  %v6950 = vpack.c.b16 %v6914, %v6912
  %v6951 = vpack.c.b16 %v6915, %v6913
  %v6952 = vpack.c.b16 %v6918, %v6916
  %v6953 = vpack.c.b16 %v6919, %v6917
  %v6954 = vpack.c.b16 %v6922, %v6920
  %v6955 = vpack.c.b16 %v6923, %v6921
  %6988 = vmatprep.subr.bf16.mxu0 %v6925
  %6989 = vmatpush1.bf16.msra.mxu0 %v6924
  %6990 = vmatprep.subr.bf16.mxu0 %v6927
  %6991 = vmatpush1.bf16.msra.mxu0 %v6926
  %6992 = vmatprep.subr.bf16.mxu0 %v6929
  %6993 = vmatpush1.bf16.msra.mxu0 %v6928
  %6994 = vmatprep.subr.bf16.mxu0 %v6931
  %6995 = vmatpush1.bf16.msra.mxu0 %v6930
  %6996 = vmatprep.subr.bf16.mxu0 %v6933
  %6997 = vmatpush1.bf16.msra.mxu0 %v6932
  %6998 = vmatprep.subr.bf16.mxu0 %v6935
  %6999 = vmatpush1.bf16.msra.mxu0 %v6934
  %7000 = vmatprep.subr.bf16.mxu0 %v6937
  %7001 = vmatpush1.bf16.msra.mxu0 %v6936
  %7002 = vmatprep.subr.bf16.mxu0 %v6939
  %7003 = vmatpush1.bf16.msra.mxu0 %v6938
  %7004 = vmatprep.subr.bf16.mxu0 %v6941
  %7005 = vmatpush1.bf16.msra.mxu0 %v6940
  %7006 = vmatprep.subr.bf16.mxu0 %v6943
  %7007 = vmatpush1.bf16.msra.mxu0 %v6942
  %7008 = vmatprep.subr.bf16.mxu0 %v6945
  %7009 = vmatpush1.bf16.msra.mxu0 %v6944
  %7010 = vmatprep.subr.bf16.mxu0 %v6947
  %7011 = vmatpush1.bf16.msra.mxu0 %v6946
  %7012 = vmatprep.subr.bf16.mxu0 %v6949
  %7013 = vmatpush1.bf16.msra.mxu0 %v6948
  %7014 = vmatprep.subr.bf16.mxu0 %v6951
  %7015 = vmatpush1.bf16.msra.mxu0 %v6950
  %7016 = vmatprep.subr.bf16.mxu0 %v6953
  %7017 = vmatpush1.bf16.msra.mxu0 %v6952
  %7018 = vmatprep.subr.bf16.mxu0 %v6955
  %7019 = vmatpush1.bf16.msra.mxu0 %v6954
  %7020 = vmatprep.mubr.bf16.mxu0 %v6827
  %7021 = vmatmul.mubr.bf16.gmra.mrb[0].mxu0 %v6826
  %v7022 = vpop.f32.mrb[0].mxu0
  %v7023 = vadd.f32 0.0, %v7022
  %v7024 = vpop.f32.mrb[0].mxu0
  %v7025 = vadd.f32 0.0, %v7024
  %v7026 = vpop.f32.mrb[0].mxu0
  %v7027 = vpop.f32.mrb[0].mxu0
  %7028 = vdwg.mxu0
  %v7029 = vrot.slane %v6787, 4
  %v7030 = vadd.f32 %v6787, %v7029
  %v7031 = vrot.slane %v7030, 2
  %v7032 = vadd.f32 %v7030, %v7031
  %v7033 = vrot.slane %v7032, 1
  %v7034 = vadd.f32 %v7032, %v7033
  %v7035 = vrot.slane %v6789, 4
  %v7036 = vadd.f32 %v6789, %v7035
  %v7037 = vrot.slane %v7036, 2
  %v7038 = vadd.f32 %v7036, %v7037
  %v7039 = vrot.slane %v7038, 1
  %v7040 = vadd.f32 %v7038, %v7039
  %v7041 = vrot.slane %v7023, 4
  %v7042 = vadd.f32 %v7023, %v7041
  %v7043 = vrot.slane %v7042, 2
  %v7044 = vadd.f32 %v7042, %v7043
  %v7045 = vrot.slane %v7044, 1
  %v7046 = vadd.f32 %v7044, %v7045
  %v7047 = vrot.slane %v7025, 4
  %v7048 = vadd.f32 %v7025, %v7047
  %v7049 = vrot.slane %v7048, 2
  %v7050 = vadd.f32 %v7048, %v7049
  %v7051 = vrot.slane %v7050, 1
  %v7052 = vadd.f32 %v7050, %v7051
  %v7053 = vmul.f32 %v6787, %v6787
  %v7054 = vmul.f32 %v6789, %v6789
  %v7055 = vmul.f32 %v7023, %v7023
  %v7056 = vmul.f32 %v7025, %v7025
  %v7057 = vrot.slane %v7053, 4
  %v7058 = vadd.f32 %v7053, %v7057
  %v7059 = vrot.slane %v7058, 2
  %v7060 = vadd.f32 %v7058, %v7059
  %v7061 = vrot.slane %v7060, 1
  %v7062 = vadd.f32 %v7060, %v7061
  %v7063 = vrot.slane %v7054, 4
  %v7064 = vadd.f32 %v7054, %v7063
  %v7065 = vrot.slane %v7064, 2
  %v7066 = vadd.f32 %v7064, %v7065
  %v7067 = vrot.slane %v7066, 1
  %v7068 = vadd.f32 %v7066, %v7067
  %v7069 = vrot.slane %v7055, 4
  %v7070 = vadd.f32 %v7055, %v7069
  %v7071 = vrot.slane %v7070, 2
  %v7072 = vadd.f32 %v7070, %v7071
  %v7073 = vrot.slane %v7072, 1
  %v7074 = vadd.f32 %v7072, %v7073
  %v7075 = vrot.slane %v7056, 4
  %v7076 = vadd.f32 %v7056, %v7075
  %v7077 = vrot.slane %v7076, 2
  %v7078 = vadd.f32 %v7076, %v7077
  %v7079 = vrot.slane %v7078, 1
  %v7080 = vadd.f32 %v7078, %v7079
  %v7081 = vmul.f32 %v7034, 0.125
  %v7082 = vmul.f32 %v7040, 0.125
  %v7083 = vmul.f32 %v7046, 0.125
  %v7084 = vmul.f32 %v7052, 0.125
  %v7085 = vmul.f32 %v7062, 0.125
  %v7086 = vmul.f32 %v7068, 0.125
  %v7087 = vmul.f32 %v7074, 0.125
  %v7088 = vmul.f32 %v7080, 0.125
  %v7089 = vmul.f32 %v7081, %v7081
  %v7090 = vmul.f32 %v7082, %v7082
  %v7091 = vmul.f32 %v7083, %v7083
  %v7092 = vmul.f32 %v7084, %v7084
  %v7093 = vsub.f32 %v7085, %v7089
  %v7094 = vsub.f32 %v7086, %v7090
  %v7095 = vsub.f32 %v7087, %v7091
  %v7096 = vsub.f32 %v7088, %v7092
  %v7097 = vmax.f32 %v7093, 0.0
  %v7098 = vmax.f32 %v7094, 0.0
  %v7099 = vmax.f32 %v7095, 0.0
  %v7100 = vmax.f32 %v7096, 0.0
  %v7101 = vsub.f32 %v6787, %v7081
  %v7102 = vsub.f32 %v6789, %v7082
  %v7103 = vsub.f32 %v7023, %v7083
  %v7104 = vsub.f32 %v7025, %v7084
  %v7105 = vadd.f32 %v7097, 1e-05
  %v7106 = vadd.f32 %v7098, 1e-05
  %v7107 = vadd.f32 %v7099, 1e-05
  %v7108 = vadd.f32 %v7100, 1e-05
  %v7109 = vrsqrt.pop %v7105
  %v7110 = vrsqrt.pop %v7106
  %v7111 = vrsqrt.pop %v7107
  %v7112 = vrsqrt.pop %v7108
  %v7113 = vmul.f32 %v7101, %v7109
  %v7114 = vmul.f32 %v7102, %v7110
  %v7115 = vmul.f32 %v7103, %v7111
  %v7116 = vmul.f32 %v7104, %v7112
  %v7117 = vld [vmem:[%s2 + $0x12] sm:$0xf]
  %v7119 = vlaneseq
  %v7120 = vshrl.u32 %v7119, 7
  %v7121 = vsub.s32 0, %v7120
  %v7122 = vrot.slane %v7117, %v7121
  %v7123 = vlaneseq
  %v7124 = vshrl.u32 %v7123, 7
  %v7125 = vsub.s32 1, %v7124
  %v7126 = vrot.slane %v7117, %v7125
  %v7127 = vlaneseq
  %v7128 = vshrl.u32 %v7127, 7
  %v7129 = vsub.s32 2, %v7128
  %v7130 = vrot.slane %v7117, %v7129
  %v7131 = vlaneseq
  %v7132 = vshrl.u32 %v7131, 7
  %v7133 = vsub.s32 3, %v7132
  %v7134 = vrot.slane %v7117, %v7133
  %v7139 = vmul.f32 %v7113, %v7122
  %v7140 = vmul.f32 %v7114, %v7126
  %v7141 = vmul.f32 %v7115, %v7130
  %v7142 = vmul.f32 %v7116, %v7134
  %v7143 = vld [vmem:[%s2 + $0x16] sm:$0xf]
  %v7145 = vlaneseq
  %v7146 = vshrl.u32 %v7145, 7
  %v7147 = vsub.s32 0, %v7146
  %v7148 = vrot.slane %v7143, %v7147
  %v7149 = vlaneseq
  %v7150 = vshrl.u32 %v7149, 7
  %v7151 = vsub.s32 1, %v7150
  %v7152 = vrot.slane %v7143, %v7151
  %v7153 = vlaneseq
  %v7154 = vshrl.u32 %v7153, 7
  %v7155 = vsub.s32 2, %v7154
  %v7156 = vrot.slane %v7143, %v7155
  %v7157 = vlaneseq
  %v7158 = vshrl.u32 %v7157, 7
  %v7159 = vsub.s32 3, %v7158
  %v7160 = vrot.slane %v7143, %v7159
  %v7165 = vadd.f32 %v7139, %v7148
  %v7166 = vadd.f32 %v7140, %v7152
  %v7167 = vadd.f32 %v7141, %v7156
  %v7168 = vadd.f32 %v7142, %v7160
  %v7169 = vadd.f32 %v7165, %v5994
  %v7170 = vadd.f32 %v7166, %v5996
  %v7171 = vadd.f32 %v7167, %v6133
  %v7172 = vadd.f32 %v7168, %v6135
  %v7173 = vmax.f32 %v7169, 0.0
  %v7174 = vmax.f32 %v7170, 0.0
  %v7175 = vmax.f32 %v7171, 0.0
  %v7176 = vmax.f32 %v7172, 0.0
  %s7177 = scalar_lea.vmem %s7, 512
  %v7178 = vld [vmem:[%s7177] sm:$0xff]
  %v7179 = vld [vmem:[%s7177 + $0x8] sm:$0xff]
  %v7180 = vld [vmem:[%s7177 + $0x10] sm:$0xff]
  %v7181 = vld [vmem:[%s7177 + $0x18] sm:$0xff]
  %v7182 = vld [vmem:[%s7177 + $0x20] sm:$0xff]
  %v7183 = vld [vmem:[%s7177 + $0x28] sm:$0xff]
  %v7184 = vld [vmem:[%s7177 + $0x30] sm:$0xff]
  %v7185 = vld [vmem:[%s7177 + $0x38] sm:$0xff]
  %v7186 = vld [vmem:[%s7177 + $0x40] sm:$0xff]
  %v7187 = vld [vmem:[%s7177 + $0x48] sm:$0xff]
  %v7188 = vld [vmem:[%s7177 + $0x50] sm:$0xff]
  %v7189 = vld [vmem:[%s7177 + $0x58] sm:$0xff]
  %v7190 = vld [vmem:[%s7177 + $0x60] sm:$0xff]
  %v7191 = vld [vmem:[%s7177 + $0x68] sm:$0xff]
  %v7192 = vld [vmem:[%s7177 + $0x70] sm:$0xff]
  %v7193 = vld [vmem:[%s7177 + $0x78] sm:$0xff]
  %v7194 = vld [vmem:[%s7177 + $0x80] sm:$0xff]
  %v7195 = vld [vmem:[%s7177 + $0x88] sm:$0xff]
  %v7196 = vld [vmem:[%s7177 + $0x90] sm:$0xff]
  %v7197 = vld [vmem:[%s7177 + $0x98] sm:$0xff]
  %v7198 = vld [vmem:[%s7177 + $0xa0] sm:$0xff]
  %v7199 = vld [vmem:[%s7177 + $0xa8] sm:$0xff]
  %v7200 = vld [vmem:[%s7177 + $0xb0] sm:$0xff]
  %v7201 = vld [vmem:[%s7177 + $0xb8] sm:$0xff]
  %v7202 = vld [vmem:[%s7177 + $0xc0] sm:$0xff]
  %v7203 = vld [vmem:[%s7177 + $0xc8] sm:$0xff]
  %v7204 = vld [vmem:[%s7177 + $0xd0] sm:$0xff]
  %v7205 = vld [vmem:[%s7177 + $0xd8] sm:$0xff]
  %v7206 = vld [vmem:[%s7177 + $0xe0] sm:$0xff]
  %v7207 = vld [vmem:[%s7177 + $0xe8] sm:$0xff]
  %v7208 = vld [vmem:[%s7177 + $0xf0] sm:$0xff]
  %v7209 = vld [vmem:[%s7177 + $0xf8] sm:$0xff]
  %v7210 = vpack.c.bf16 %v7173, %v7173
  %v7211 = vpack.c.bf16 %v7174, %v7174
  %v7244 = vunpack.c.l.b16 %v7178
  %v7245 = vunpack.c.h.b16 %v7178
  %v7246 = vunpack.c.l.b16 %v7179
  %v7247 = vunpack.c.h.b16 %v7179
  %v7248 = vunpack.c.l.b16 %v7180
  %v7249 = vunpack.c.h.b16 %v7180
  %v7250 = vunpack.c.l.b16 %v7181
  %v7251 = vunpack.c.h.b16 %v7181
  %v7252 = vunpack.c.l.b16 %v7182
  %v7253 = vunpack.c.h.b16 %v7182
  %v7254 = vunpack.c.l.b16 %v7183
  %v7255 = vunpack.c.h.b16 %v7183
  %v7256 = vunpack.c.l.b16 %v7184
  %v7257 = vunpack.c.h.b16 %v7184
  %v7258 = vunpack.c.l.b16 %v7185
  %v7259 = vunpack.c.h.b16 %v7185
  %v7260 = vunpack.c.l.b16 %v7186
  %v7261 = vunpack.c.h.b16 %v7186
  %v7262 = vunpack.c.l.b16 %v7187
  %v7263 = vunpack.c.h.b16 %v7187
  %v7264 = vunpack.c.l.b16 %v7188
  %v7265 = vunpack.c.h.b16 %v7188
  %v7266 = vunpack.c.l.b16 %v7189
  %v7267 = vunpack.c.h.b16 %v7189
  %v7268 = vunpack.c.l.b16 %v7190
  %v7269 = vunpack.c.h.b16 %v7190
  %v7270 = vunpack.c.l.b16 %v7191
  %v7271 = vunpack.c.h.b16 %v7191
  %v7272 = vunpack.c.l.b16 %v7192
  %v7273 = vunpack.c.h.b16 %v7192
  %v7274 = vunpack.c.l.b16 %v7193
  %v7275 = vunpack.c.h.b16 %v7193
  %v7276 = vunpack.c.l.b16 %v7194
  %v7277 = vunpack.c.h.b16 %v7194
  %v7278 = vunpack.c.l.b16 %v7195
  %v7279 = vunpack.c.h.b16 %v7195
  %v7280 = vunpack.c.l.b16 %v7196
  %v7281 = vunpack.c.h.b16 %v7196
  %v7282 = vunpack.c.l.b16 %v7197
  %v7283 = vunpack.c.h.b16 %v7197
  %v7284 = vunpack.c.l.b16 %v7198
  %v7285 = vunpack.c.h.b16 %v7198
  %v7286 = vunpack.c.l.b16 %v7199
  %v7287 = vunpack.c.h.b16 %v7199
  %v7288 = vunpack.c.l.b16 %v7200
  %v7289 = vunpack.c.h.b16 %v7200
  %v7290 = vunpack.c.l.b16 %v7201
  %v7291 = vunpack.c.h.b16 %v7201
  %v7292 = vunpack.c.l.b16 %v7202
  %v7293 = vunpack.c.h.b16 %v7202
  %v7294 = vunpack.c.l.b16 %v7203
  %v7295 = vunpack.c.h.b16 %v7203
  %v7296 = vunpack.c.l.b16 %v7204
  %v7297 = vunpack.c.h.b16 %v7204
  %v7298 = vunpack.c.l.b16 %v7205
  %v7299 = vunpack.c.h.b16 %v7205
  %v7300 = vunpack.c.l.b16 %v7206
  %v7301 = vunpack.c.h.b16 %v7206
  %v7302 = vunpack.c.l.b16 %v7207
  %v7303 = vunpack.c.h.b16 %v7207
  %v7304 = vunpack.c.l.b16 %v7208
  %v7305 = vunpack.c.h.b16 %v7208
  %v7306 = vunpack.c.l.b16 %v7209
  %v7307 = vunpack.c.h.b16 %v7209
  %v7308 = vpack.c.b16 %v7246, %v7244
  %v7309 = vpack.c.b16 %v7247, %v7245
  %v7310 = vpack.c.b16 %v7250, %v7248
  %v7311 = vpack.c.b16 %v7251, %v7249
  %v7312 = vpack.c.b16 %v7254, %v7252
  %v7313 = vpack.c.b16 %v7255, %v7253
  %v7314 = vpack.c.b16 %v7258, %v7256
  %v7315 = vpack.c.b16 %v7259, %v7257
  %v7316 = vpack.c.b16 %v7262, %v7260
  %v7317 = vpack.c.b16 %v7263, %v7261
  %v7318 = vpack.c.b16 %v7266, %v7264
  %v7319 = vpack.c.b16 %v7267, %v7265
  %v7320 = vpack.c.b16 %v7270, %v7268
  %v7321 = vpack.c.b16 %v7271, %v7269
  %v7322 = vpack.c.b16 %v7274, %v7272
  %v7323 = vpack.c.b16 %v7275, %v7273
  %v7324 = vpack.c.b16 %v7278, %v7276
  %v7325 = vpack.c.b16 %v7279, %v7277
  %v7326 = vpack.c.b16 %v7282, %v7280
  %v7327 = vpack.c.b16 %v7283, %v7281
  %v7328 = vpack.c.b16 %v7286, %v7284
  %v7329 = vpack.c.b16 %v7287, %v7285
  %v7330 = vpack.c.b16 %v7290, %v7288
  %v7331 = vpack.c.b16 %v7291, %v7289
  %v7332 = vpack.c.b16 %v7294, %v7292
  %v7333 = vpack.c.b16 %v7295, %v7293
  %v7334 = vpack.c.b16 %v7298, %v7296
  %v7335 = vpack.c.b16 %v7299, %v7297
  %v7336 = vpack.c.b16 %v7302, %v7300
  %v7337 = vpack.c.b16 %v7303, %v7301
  %v7338 = vpack.c.b16 %v7306, %v7304
  %v7339 = vpack.c.b16 %v7307, %v7305
  %7372 = vmatprep.subr.bf16.mxu0 %v7309
  %7373 = vmatpush1.bf16.msra.mxu0 %v7308
  %7374 = vmatprep.subr.bf16.mxu0 %v7311
  %7375 = vmatpush1.bf16.msra.mxu0 %v7310
  %7376 = vmatprep.subr.bf16.mxu0 %v7313
  %7377 = vmatpush1.bf16.msra.mxu0 %v7312
  %7378 = vmatprep.subr.bf16.mxu0 %v7315
  %7379 = vmatpush1.bf16.msra.mxu0 %v7314
  %7380 = vmatprep.subr.bf16.mxu0 %v7317
  %7381 = vmatpush1.bf16.msra.mxu0 %v7316
  %7382 = vmatprep.subr.bf16.mxu0 %v7319
  %7383 = vmatpush1.bf16.msra.mxu0 %v7318
  %7384 = vmatprep.subr.bf16.mxu0 %v7321
  %7385 = vmatpush1.bf16.msra.mxu0 %v7320
  %7386 = vmatprep.subr.bf16.mxu0 %v7323
  %7387 = vmatpush1.bf16.msra.mxu0 %v7322
  %7388 = vmatprep.subr.bf16.mxu0 %v7325
  %7389 = vmatpush1.bf16.msra.mxu0 %v7324
  %7390 = vmatprep.subr.bf16.mxu0 %v7327
  %7391 = vmatpush1.bf16.msra.mxu0 %v7326
  %7392 = vmatprep.subr.bf16.mxu0 %v7329
  %7393 = vmatpush1.bf16.msra.mxu0 %v7328
  %7394 = vmatprep.subr.bf16.mxu0 %v7331
  %7395 = vmatpush1.bf16.msra.mxu0 %v7330
  %7396 = vmatprep.subr.bf16.mxu0 %v7333
  %7397 = vmatpush1.bf16.msra.mxu0 %v7332
  %7398 = vmatprep.subr.bf16.mxu0 %v7335
  %7399 = vmatpush1.bf16.msra.mxu0 %v7334
  %7400 = vmatprep.subr.bf16.mxu0 %v7337
  %7401 = vmatpush1.bf16.msra.mxu0 %v7336
  %7402 = vmatprep.subr.bf16.mxu0 %v7339
  %7403 = vmatpush1.bf16.msra.mxu0 %v7338
  %7404 = vmatprep.mubr.bf16.mxu0 %v7211
  %7405 = vmatmul.mubr.bf16.gmra.mrb[0].mxu0 %v7210
  %v7406 = vpop.f32.mrb[0].mxu0
  %v7407 = vadd.f32 0.0, %v7406
  %v7408 = vpop.f32.mrb[0].mxu0
  %v7409 = vadd.f32 0.0, %v7408
  %v7410 = vpop.f32.mrb[0].mxu0
  %v7411 = vpop.f32.mrb[0].mxu0
  %7412 = vdwg.mxu0
  %s7413 = scalar_lea.vmem %s7, 768
  %v7414 = vld [vmem:[%s7413] sm:$0xff]
  %v7415 = vld [vmem:[%s7413 + $0x8] sm:$0xff]
  %v7416 = vld [vmem:[%s7413 + $0x10] sm:$0xff]
  %v7417 = vld [vmem:[%s7413 + $0x18] sm:$0xff]
  %v7418 = vld [vmem:[%s7413 + $0x20] sm:$0xff]
  %v7419 = vld [vmem:[%s7413 + $0x28] sm:$0xff]
  %v7420 = vld [vmem:[%s7413 + $0x30] sm:$0xff]
  %v7421 = vld [vmem:[%s7413 + $0x38] sm:$0xff]
  %v7422 = vld [vmem:[%s7413 + $0x40] sm:$0xff]
  %v7423 = vld [vmem:[%s7413 + $0x48] sm:$0xff]
  %v7424 = vld [vmem:[%s7413 + $0x50] sm:$0xff]
  %v7425 = vld [vmem:[%s7413 + $0x58] sm:$0xff]
  %v7426 = vld [vmem:[%s7413 + $0x60] sm:$0xff]
  %v7427 = vld [vmem:[%s7413 + $0x68] sm:$0xff]
  %v7428 = vld [vmem:[%s7413 + $0x70] sm:$0xff]
  %v7429 = vld [vmem:[%s7413 + $0x78] sm:$0xff]
  %v7430 = vld [vmem:[%s7413 + $0x80] sm:$0xff]
  %v7431 = vld [vmem:[%s7413 + $0x88] sm:$0xff]
  %v7432 = vld [vmem:[%s7413 + $0x90] sm:$0xff]
  %v7433 = vld [vmem:[%s7413 + $0x98] sm:$0xff]
  %v7434 = vld [vmem:[%s7413 + $0xa0] sm:$0xff]
  %v7435 = vld [vmem:[%s7413 + $0xa8] sm:$0xff]
  %v7436 = vld [vmem:[%s7413 + $0xb0] sm:$0xff]
  %v7437 = vld [vmem:[%s7413 + $0xb8] sm:$0xff]
  %v7438 = vld [vmem:[%s7413 + $0xc0] sm:$0xff]
  %v7439 = vld [vmem:[%s7413 + $0xc8] sm:$0xff]
  %v7440 = vld [vmem:[%s7413 + $0xd0] sm:$0xff]
  %v7441 = vld [vmem:[%s7413 + $0xd8] sm:$0xff]
  %v7442 = vld [vmem:[%s7413 + $0xe0] sm:$0xff]
  %v7443 = vld [vmem:[%s7413 + $0xe8] sm:$0xff]
  %v7444 = vld [vmem:[%s7413 + $0xf0] sm:$0xff]
  %v7445 = vld [vmem:[%s7413 + $0xf8] sm:$0xff]
  %v7446 = vpack.c.bf16 %v7175, %v7175
  %v7447 = vpack.c.bf16 %v7176, %v7176
  %v7480 = vunpack.c.l.b16 %v7414
  %v7481 = vunpack.c.h.b16 %v7414
  %v7482 = vunpack.c.l.b16 %v7415
  %v7483 = vunpack.c.h.b16 %v7415
  %v7484 = vunpack.c.l.b16 %v7416
  %v7485 = vunpack.c.h.b16 %v7416
  %v7486 = vunpack.c.l.b16 %v7417
  %v7487 = vunpack.c.h.b16 %v7417
  %v7488 = vunpack.c.l.b16 %v7418
  %v7489 = vunpack.c.h.b16 %v7418
  %v7490 = vunpack.c.l.b16 %v7419
  %v7491 = vunpack.c.h.b16 %v7419
  %v7492 = vunpack.c.l.b16 %v7420
  %v7493 = vunpack.c.h.b16 %v7420
  %v7494 = vunpack.c.l.b16 %v7421
  %v7495 = vunpack.c.h.b16 %v7421
  %v7496 = vunpack.c.l.b16 %v7422
  %v7497 = vunpack.c.h.b16 %v7422
  %v7498 = vunpack.c.l.b16 %v7423
  %v7499 = vunpack.c.h.b16 %v7423
  %v7500 = vunpack.c.l.b16 %v7424
  %v7501 = vunpack.c.h.b16 %v7424
  %v7502 = vunpack.c.l.b16 %v7425
  %v7503 = vunpack.c.h.b16 %v7425
  %v7504 = vunpack.c.l.b16 %v7426
  %v7505 = vunpack.c.h.b16 %v7426
  %v7506 = vunpack.c.l.b16 %v7427
  %v7507 = vunpack.c.h.b16 %v7427
  %v7508 = vunpack.c.l.b16 %v7428
  %v7509 = vunpack.c.h.b16 %v7428
  %v7510 = vunpack.c.l.b16 %v7429
  %v7511 = vunpack.c.h.b16 %v7429
  %v7512 = vunpack.c.l.b16 %v7430
  %v7513 = vunpack.c.h.b16 %v7430
  %v7514 = vunpack.c.l.b16 %v7431
  %v7515 = vunpack.c.h.b16 %v7431
  %v7516 = vunpack.c.l.b16 %v7432
  %v7517 = vunpack.c.h.b16 %v7432
  %v7518 = vunpack.c.l.b16 %v7433
  %v7519 = vunpack.c.h.b16 %v7433
  %v7520 = vunpack.c.l.b16 %v7434
  %v7521 = vunpack.c.h.b16 %v7434
  %v7522 = vunpack.c.l.b16 %v7435
  %v7523 = vunpack.c.h.b16 %v7435
  %v7524 = vunpack.c.l.b16 %v7436
  %v7525 = vunpack.c.h.b16 %v7436
  %v7526 = vunpack.c.l.b16 %v7437
  %v7527 = vunpack.c.h.b16 %v7437
  %v7528 = vunpack.c.l.b16 %v7438
  %v7529 = vunpack.c.h.b16 %v7438
  %v7530 = vunpack.c.l.b16 %v7439
  %v7531 = vunpack.c.h.b16 %v7439
  %v7532 = vunpack.c.l.b16 %v7440
  %v7533 = vunpack.c.h.b16 %v7440
  %v7534 = vunpack.c.l.b16 %v7441
  %v7535 = vunpack.c.h.b16 %v7441
  %v7536 = vunpack.c.l.b16 %v7442
  %v7537 = vunpack.c.h.b16 %v7442
  %v7538 = vunpack.c.l.b16 %v7443
  %v7539 = vunpack.c.h.b16 %v7443
  %v7540 = vunpack.c.l.b16 %v7444
  %v7541 = vunpack.c.h.b16 %v7444
  %v7542 = vunpack.c.l.b16 %v7445
  %v7543 = vunpack.c.h.b16 %v7445
  %v7544 = vpack.c.b16 %v7482, %v7480
  %v7545 = vpack.c.b16 %v7483, %v7481
  %v7546 = vpack.c.b16 %v7486, %v7484
  %v7547 = vpack.c.b16 %v7487, %v7485
  %v7548 = vpack.c.b16 %v7490, %v7488
  %v7549 = vpack.c.b16 %v7491, %v7489
  %v7550 = vpack.c.b16 %v7494, %v7492
  %v7551 = vpack.c.b16 %v7495, %v7493
  %v7552 = vpack.c.b16 %v7498, %v7496
  %v7553 = vpack.c.b16 %v7499, %v7497
  %v7554 = vpack.c.b16 %v7502, %v7500
  %v7555 = vpack.c.b16 %v7503, %v7501
  %v7556 = vpack.c.b16 %v7506, %v7504
  %v7557 = vpack.c.b16 %v7507, %v7505
  %v7558 = vpack.c.b16 %v7510, %v7508
  %v7559 = vpack.c.b16 %v7511, %v7509
  %v7560 = vpack.c.b16 %v7514, %v7512
  %v7561 = vpack.c.b16 %v7515, %v7513
  %v7562 = vpack.c.b16 %v7518, %v7516
  %v7563 = vpack.c.b16 %v7519, %v7517
  %v7564 = vpack.c.b16 %v7522, %v7520
  %v7565 = vpack.c.b16 %v7523, %v7521
  %v7566 = vpack.c.b16 %v7526, %v7524
  %v7567 = vpack.c.b16 %v7527, %v7525
  %v7568 = vpack.c.b16 %v7530, %v7528
  %v7569 = vpack.c.b16 %v7531, %v7529
  %v7570 = vpack.c.b16 %v7534, %v7532
  %v7571 = vpack.c.b16 %v7535, %v7533
  %v7572 = vpack.c.b16 %v7538, %v7536
  %v7573 = vpack.c.b16 %v7539, %v7537
  %v7574 = vpack.c.b16 %v7542, %v7540
  %v7575 = vpack.c.b16 %v7543, %v7541
  %7608 = vmatprep.subr.bf16.mxu0 %v7545
  %7609 = vmatpush1.bf16.msra.mxu0 %v7544
  %7610 = vmatprep.subr.bf16.mxu0 %v7547
  %7611 = vmatpush1.bf16.msra.mxu0 %v7546
  %7612 = vmatprep.subr.bf16.mxu0 %v7549
  %7613 = vmatpush1.bf16.msra.mxu0 %v7548
  %7614 = vmatprep.subr.bf16.mxu0 %v7551
  %7615 = vmatpush1.bf16.msra.mxu0 %v7550
  %7616 = vmatprep.subr.bf16.mxu0 %v7553
  %7617 = vmatpush1.bf16.msra.mxu0 %v7552
  %7618 = vmatprep.subr.bf16.mxu0 %v7555
  %7619 = vmatpush1.bf16.msra.mxu0 %v7554
  %7620 = vmatprep.subr.bf16.mxu0 %v7557
  %7621 = vmatpush1.bf16.msra.mxu0 %v7556
  %7622 = vmatprep.subr.bf16.mxu0 %v7559
  %7623 = vmatpush1.bf16.msra.mxu0 %v7558
  %7624 = vmatprep.subr.bf16.mxu0 %v7561
  %7625 = vmatpush1.bf16.msra.mxu0 %v7560
  %7626 = vmatprep.subr.bf16.mxu0 %v7563
  %7627 = vmatpush1.bf16.msra.mxu0 %v7562
  %7628 = vmatprep.subr.bf16.mxu0 %v7565
  %7629 = vmatpush1.bf16.msra.mxu0 %v7564
  %7630 = vmatprep.subr.bf16.mxu0 %v7567
  %7631 = vmatpush1.bf16.msra.mxu0 %v7566
  %7632 = vmatprep.subr.bf16.mxu0 %v7569
  %7633 = vmatpush1.bf16.msra.mxu0 %v7568
  %7634 = vmatprep.subr.bf16.mxu0 %v7571
  %7635 = vmatpush1.bf16.msra.mxu0 %v7570
  %7636 = vmatprep.subr.bf16.mxu0 %v7573
  %7637 = vmatpush1.bf16.msra.mxu0 %v7572
  %7638 = vmatprep.subr.bf16.mxu0 %v7575
  %7639 = vmatpush1.bf16.msra.mxu0 %v7574
  %7640 = vmatprep.mubr.bf16.mxu0 %v7447
  %7641 = vmatmul.mubr.bf16.gmra.mrb[0].mxu0 %v7446
  %v7642 = vpop.f32.mrb[0].mxu0
  %v7643 = vadd.f32 0.0, %v7642
  %v7644 = vpop.f32.mrb[0].mxu0
  %v7645 = vadd.f32 0.0, %v7644
  %v7646 = vpop.f32.mrb[0].mxu0
  %v7647 = vpop.f32.mrb[0].mxu0
  %7648 = vdwg.mxu0
  %v7649 = vrot.slane %v7407, 4
  %v7650 = vadd.f32 %v7407, %v7649
  %v7651 = vrot.slane %v7650, 2
  %v7652 = vadd.f32 %v7650, %v7651
  %v7653 = vrot.slane %v7652, 1
  %v7654 = vadd.f32 %v7652, %v7653
  %v7655 = vrot.slane %v7409, 4
  %v7656 = vadd.f32 %v7409, %v7655
  %v7657 = vrot.slane %v7656, 2
  %v7658 = vadd.f32 %v7656, %v7657
  %v7659 = vrot.slane %v7658, 1
  %v7660 = vadd.f32 %v7658, %v7659
  %v7661 = vrot.slane %v7643, 4
  %v7662 = vadd.f32 %v7643, %v7661
  %v7663 = vrot.slane %v7662, 2
  %v7664 = vadd.f32 %v7662, %v7663
  %v7665 = vrot.slane %v7664, 1
  %v7666 = vadd.f32 %v7664, %v7665
  %v7667 = vrot.slane %v7645, 4
  %v7668 = vadd.f32 %v7645, %v7667
  %v7669 = vrot.slane %v7668, 2
  %v7670 = vadd.f32 %v7668, %v7669
  %v7671 = vrot.slane %v7670, 1
  %v7672 = vadd.f32 %v7670, %v7671
  %v7673 = vmul.f32 %v7407, %v7407
  %v7674 = vmul.f32 %v7409, %v7409
  %v7675 = vmul.f32 %v7643, %v7643
  %v7676 = vmul.f32 %v7645, %v7645
  %v7677 = vrot.slane %v7673, 4
  %v7678 = vadd.f32 %v7673, %v7677
  %v7679 = vrot.slane %v7678, 2
  %v7680 = vadd.f32 %v7678, %v7679
  %v7681 = vrot.slane %v7680, 1
  %v7682 = vadd.f32 %v7680, %v7681
  %v7683 = vrot.slane %v7674, 4
  %v7684 = vadd.f32 %v7674, %v7683
  %v7685 = vrot.slane %v7684, 2
  %v7686 = vadd.f32 %v7684, %v7685
  %v7687 = vrot.slane %v7686, 1
  %v7688 = vadd.f32 %v7686, %v7687
  %v7689 = vrot.slane %v7675, 4
  %v7690 = vadd.f32 %v7675, %v7689
  %v7691 = vrot.slane %v7690, 2
  %v7692 = vadd.f32 %v7690, %v7691
  %v7693 = vrot.slane %v7692, 1
  %v7694 = vadd.f32 %v7692, %v7693
  %v7695 = vrot.slane %v7676, 4
  %v7696 = vadd.f32 %v7676, %v7695
  %v7697 = vrot.slane %v7696, 2
  %v7698 = vadd.f32 %v7696, %v7697
  %v7699 = vrot.slane %v7698, 1
  %v7700 = vadd.f32 %v7698, %v7699
  %v7701 = vmul.f32 %v7654, 0.125
  %v7702 = vmul.f32 %v7660, 0.125
  %v7703 = vmul.f32 %v7666, 0.125
  %v7704 = vmul.f32 %v7672, 0.125
  %v7705 = vmul.f32 %v7682, 0.125
  %v7706 = vmul.f32 %v7688, 0.125
  %v7707 = vmul.f32 %v7694, 0.125
  %v7708 = vmul.f32 %v7700, 0.125
  %v7709 = vmul.f32 %v7701, %v7701
  %v7710 = vmul.f32 %v7702, %v7702
  %v7711 = vmul.f32 %v7703, %v7703
  %v7712 = vmul.f32 %v7704, %v7704
  %v7713 = vsub.f32 %v7705, %v7709
  %v7714 = vsub.f32 %v7706, %v7710
  %v7715 = vsub.f32 %v7707, %v7711
  %v7716 = vsub.f32 %v7708, %v7712
  %v7717 = vmax.f32 %v7713, 0.0
  %v7718 = vmax.f32 %v7714, 0.0
  %v7719 = vmax.f32 %v7715, 0.0
  %v7720 = vmax.f32 %v7716, 0.0
  %v7721 = vsub.f32 %v7407, %v7701
  %v7722 = vsub.f32 %v7409, %v7702
  %v7723 = vsub.f32 %v7643, %v7703
  %v7724 = vsub.f32 %v7645, %v7704
  %v7725 = vadd.f32 %v7717, 1e-05
  %v7726 = vadd.f32 %v7718, 1e-05
  %v7727 = vadd.f32 %v7719, 1e-05
  %v7728 = vadd.f32 %v7720, 1e-05
  %v7729 = vrsqrt.pop %v7725
  %v7730 = vrsqrt.pop %v7726
  %v7731 = vrsqrt.pop %v7727
  %v7732 = vrsqrt.pop %v7728
  %v7733 = vmul.f32 %v7721, %v7729
  %v7734 = vmul.f32 %v7722, %v7730
  %v7735 = vmul.f32 %v7723, %v7731
  %v7736 = vmul.f32 %v7724, %v7732
  %v7737 = vld [vmem:[%s2 + $0x1a] sm:$0xf]
  %v7739 = vlaneseq
  %v7740 = vshrl.u32 %v7739, 7
  %v7741 = vsub.s32 0, %v7740
  %v7742 = vrot.slane %v7737, %v7741
  %v7743 = vlaneseq
  %v7744 = vshrl.u32 %v7743, 7
  %v7745 = vsub.s32 1, %v7744
  %v7746 = vrot.slane %v7737, %v7745
  %v7747 = vlaneseq
  %v7748 = vshrl.u32 %v7747, 7
  %v7749 = vsub.s32 2, %v7748
  %v7750 = vrot.slane %v7737, %v7749
  %v7751 = vlaneseq
  %v7752 = vshrl.u32 %v7751, 7
  %v7753 = vsub.s32 3, %v7752
  %v7754 = vrot.slane %v7737, %v7753
  %v7759 = vmul.f32 %v7733, %v7742
  %v7760 = vmul.f32 %v7734, %v7746
  %v7761 = vmul.f32 %v7735, %v7750
  %v7762 = vmul.f32 %v7736, %v7754
  %v7763 = vld [vmem:[%s2 + $0x1e] sm:$0xf]
  %v7765 = vlaneseq
  %v7766 = vshrl.u32 %v7765, 7
  %v7767 = vsub.s32 0, %v7766
  %v7768 = vrot.slane %v7763, %v7767
  %v7769 = vlaneseq
  %v7770 = vshrl.u32 %v7769, 7
  %v7771 = vsub.s32 1, %v7770
  %v7772 = vrot.slane %v7763, %v7771
  %v7773 = vlaneseq
  %v7774 = vshrl.u32 %v7773, 7
  %v7775 = vsub.s32 2, %v7774
  %v7776 = vrot.slane %v7763, %v7775
  %v7777 = vlaneseq
  %v7778 = vshrl.u32 %v7777, 7
  %v7779 = vsub.s32 3, %v7778
  %v7780 = vrot.slane %v7763, %v7779
  %v7785 = vadd.f32 %v7759, %v7768
  %v7786 = vadd.f32 %v7760, %v7772
  %v7787 = vadd.f32 %v7761, %v7776
  %v7788 = vadd.f32 %v7762, %v7780
  %v7789 = vmax.f32 %v7785, 0.0
  %v7790 = vmax.f32 %v7786, 0.0
  %v7791 = vmax.f32 %v7787, 0.0
  %v7792 = vmax.f32 %v7788, 0.0
  %s7793 = scalar_lea.vmem %s7, 1024
  %v7794 = vld [vmem:[%s7793] sm:$0xff]
  %v7795 = vld [vmem:[%s7793 + $0x8] sm:$0xff]
  %v7796 = vld [vmem:[%s7793 + $0x10] sm:$0xff]
  %v7797 = vld [vmem:[%s7793 + $0x18] sm:$0xff]
  %v7798 = vld [vmem:[%s7793 + $0x20] sm:$0xff]
  %v7799 = vld [vmem:[%s7793 + $0x28] sm:$0xff]
  %v7800 = vld [vmem:[%s7793 + $0x30] sm:$0xff]
  %v7801 = vld [vmem:[%s7793 + $0x38] sm:$0xff]
  %v7802 = vld [vmem:[%s7793 + $0x40] sm:$0xff]
  %v7803 = vld [vmem:[%s7793 + $0x48] sm:$0xff]
  %v7804 = vld [vmem:[%s7793 + $0x50] sm:$0xff]
  %v7805 = vld [vmem:[%s7793 + $0x58] sm:$0xff]
  %v7806 = vld [vmem:[%s7793 + $0x60] sm:$0xff]
  %v7807 = vld [vmem:[%s7793 + $0x68] sm:$0xff]
  %v7808 = vld [vmem:[%s7793 + $0x70] sm:$0xff]
  %v7809 = vld [vmem:[%s7793 + $0x78] sm:$0xff]
  %v7810 = vld [vmem:[%s7793 + $0x80] sm:$0xff]
  %v7811 = vld [vmem:[%s7793 + $0x88] sm:$0xff]
  %v7812 = vld [vmem:[%s7793 + $0x90] sm:$0xff]
  %v7813 = vld [vmem:[%s7793 + $0x98] sm:$0xff]
  %v7814 = vld [vmem:[%s7793 + $0xa0] sm:$0xff]
  %v7815 = vld [vmem:[%s7793 + $0xa8] sm:$0xff]
  %v7816 = vld [vmem:[%s7793 + $0xb0] sm:$0xff]
  %v7817 = vld [vmem:[%s7793 + $0xb8] sm:$0xff]
  %v7818 = vld [vmem:[%s7793 + $0xc0] sm:$0xff]
  %v7819 = vld [vmem:[%s7793 + $0xc8] sm:$0xff]
  %v7820 = vld [vmem:[%s7793 + $0xd0] sm:$0xff]
  %v7821 = vld [vmem:[%s7793 + $0xd8] sm:$0xff]
  %v7822 = vld [vmem:[%s7793 + $0xe0] sm:$0xff]
  %v7823 = vld [vmem:[%s7793 + $0xe8] sm:$0xff]
  %v7824 = vld [vmem:[%s7793 + $0xf0] sm:$0xff]
  %v7825 = vld [vmem:[%s7793 + $0xf8] sm:$0xff]
  %v7826 = vpack.c.bf16 %v7789, %v7789
  %v7827 = vpack.c.bf16 %v7790, %v7790
  %v7860 = vunpack.c.l.b16 %v7794
  %v7861 = vunpack.c.h.b16 %v7794
  %v7862 = vunpack.c.l.b16 %v7795
  %v7863 = vunpack.c.h.b16 %v7795
  %v7864 = vunpack.c.l.b16 %v7796
  %v7865 = vunpack.c.h.b16 %v7796
  %v7866 = vunpack.c.l.b16 %v7797
  %v7867 = vunpack.c.h.b16 %v7797
  %v7868 = vunpack.c.l.b16 %v7798
  %v7869 = vunpack.c.h.b16 %v7798
  %v7870 = vunpack.c.l.b16 %v7799
  %v7871 = vunpack.c.h.b16 %v7799
  %v7872 = vunpack.c.l.b16 %v7800
  %v7873 = vunpack.c.h.b16 %v7800
  %v7874 = vunpack.c.l.b16 %v7801
  %v7875 = vunpack.c.h.b16 %v7801
  %v7876 = vunpack.c.l.b16 %v7802
  %v7877 = vunpack.c.h.b16 %v7802
  %v7878 = vunpack.c.l.b16 %v7803
  %v7879 = vunpack.c.h.b16 %v7803
  %v7880 = vunpack.c.l.b16 %v7804
  %v7881 = vunpack.c.h.b16 %v7804
  %v7882 = vunpack.c.l.b16 %v7805
  %v7883 = vunpack.c.h.b16 %v7805
  %v7884 = vunpack.c.l.b16 %v7806
  %v7885 = vunpack.c.h.b16 %v7806
  %v7886 = vunpack.c.l.b16 %v7807
  %v7887 = vunpack.c.h.b16 %v7807
  %v7888 = vunpack.c.l.b16 %v7808
  %v7889 = vunpack.c.h.b16 %v7808
  %v7890 = vunpack.c.l.b16 %v7809
  %v7891 = vunpack.c.h.b16 %v7809
  %v7892 = vunpack.c.l.b16 %v7810
  %v7893 = vunpack.c.h.b16 %v7810
  %v7894 = vunpack.c.l.b16 %v7811
  %v7895 = vunpack.c.h.b16 %v7811
  %v7896 = vunpack.c.l.b16 %v7812
  %v7897 = vunpack.c.h.b16 %v7812
  %v7898 = vunpack.c.l.b16 %v7813
  %v7899 = vunpack.c.h.b16 %v7813
  %v7900 = vunpack.c.l.b16 %v7814
  %v7901 = vunpack.c.h.b16 %v7814
  %v7902 = vunpack.c.l.b16 %v7815
  %v7903 = vunpack.c.h.b16 %v7815
  %v7904 = vunpack.c.l.b16 %v7816
  %v7905 = vunpack.c.h.b16 %v7816
  %v7906 = vunpack.c.l.b16 %v7817
  %v7907 = vunpack.c.h.b16 %v7817
  %v7908 = vunpack.c.l.b16 %v7818
  %v7909 = vunpack.c.h.b16 %v7818
  %v7910 = vunpack.c.l.b16 %v7819
  %v7911 = vunpack.c.h.b16 %v7819
  %v7912 = vunpack.c.l.b16 %v7820
  %v7913 = vunpack.c.h.b16 %v7820
  %v7914 = vunpack.c.l.b16 %v7821
  %v7915 = vunpack.c.h.b16 %v7821
  %v7916 = vunpack.c.l.b16 %v7822
  %v7917 = vunpack.c.h.b16 %v7822
  %v7918 = vunpack.c.l.b16 %v7823
  %v7919 = vunpack.c.h.b16 %v7823
  %v7920 = vunpack.c.l.b16 %v7824
  %v7921 = vunpack.c.h.b16 %v7824
  %v7922 = vunpack.c.l.b16 %v7825
  %v7923 = vunpack.c.h.b16 %v7825
  %v7924 = vpack.c.b16 %v7862, %v7860
  %v7925 = vpack.c.b16 %v7863, %v7861
  %v7926 = vpack.c.b16 %v7866, %v7864
  %v7927 = vpack.c.b16 %v7867, %v7865
  %v7928 = vpack.c.b16 %v7870, %v7868
  %v7929 = vpack.c.b16 %v7871, %v7869
  %v7930 = vpack.c.b16 %v7874, %v7872
  %v7931 = vpack.c.b16 %v7875, %v7873
  %v7932 = vpack.c.b16 %v7878, %v7876
  %v7933 = vpack.c.b16 %v7879, %v7877
  %v7934 = vpack.c.b16 %v7882, %v7880
  %v7935 = vpack.c.b16 %v7883, %v7881
  %v7936 = vpack.c.b16 %v7886, %v7884
  %v7937 = vpack.c.b16 %v7887, %v7885
  %v7938 = vpack.c.b16 %v7890, %v7888
  %v7939 = vpack.c.b16 %v7891, %v7889
  %v7940 = vpack.c.b16 %v7894, %v7892
  %v7941 = vpack.c.b16 %v7895, %v7893
  %v7942 = vpack.c.b16 %v7898, %v7896
  %v7943 = vpack.c.b16 %v7899, %v7897
  %v7944 = vpack.c.b16 %v7902, %v7900
  %v7945 = vpack.c.b16 %v7903, %v7901
  %v7946 = vpack.c.b16 %v7906, %v7904
  %v7947 = vpack.c.b16 %v7907, %v7905
  %v7948 = vpack.c.b16 %v7910, %v7908
  %v7949 = vpack.c.b16 %v7911, %v7909
  %v7950 = vpack.c.b16 %v7914, %v7912
  %v7951 = vpack.c.b16 %v7915, %v7913
  %v7952 = vpack.c.b16 %v7918, %v7916
  %v7953 = vpack.c.b16 %v7919, %v7917
  %v7954 = vpack.c.b16 %v7922, %v7920
  %v7955 = vpack.c.b16 %v7923, %v7921
  %7988 = vmatprep.subr.bf16.mxu0 %v7925
  %7989 = vmatpush1.bf16.msra.mxu0 %v7924
  %7990 = vmatprep.subr.bf16.mxu0 %v7927
  %7991 = vmatpush1.bf16.msra.mxu0 %v7926
  %7992 = vmatprep.subr.bf16.mxu0 %v7929
  %7993 = vmatpush1.bf16.msra.mxu0 %v7928
  %7994 = vmatprep.subr.bf16.mxu0 %v7931
  %7995 = vmatpush1.bf16.msra.mxu0 %v7930
  %7996 = vmatprep.subr.bf16.mxu0 %v7933
  %7997 = vmatpush1.bf16.msra.mxu0 %v7932
  %7998 = vmatprep.subr.bf16.mxu0 %v7935
  %7999 = vmatpush1.bf16.msra.mxu0 %v7934
  %8000 = vmatprep.subr.bf16.mxu0 %v7937
  %8001 = vmatpush1.bf16.msra.mxu0 %v7936
  %8002 = vmatprep.subr.bf16.mxu0 %v7939
  %8003 = vmatpush1.bf16.msra.mxu0 %v7938
  %8004 = vmatprep.subr.bf16.mxu0 %v7941
  %8005 = vmatpush1.bf16.msra.mxu0 %v7940
  %8006 = vmatprep.subr.bf16.mxu0 %v7943
  %8007 = vmatpush1.bf16.msra.mxu0 %v7942
  %8008 = vmatprep.subr.bf16.mxu0 %v7945
  %8009 = vmatpush1.bf16.msra.mxu0 %v7944
  %8010 = vmatprep.subr.bf16.mxu0 %v7947
  %8011 = vmatpush1.bf16.msra.mxu0 %v7946
  %8012 = vmatprep.subr.bf16.mxu0 %v7949
  %8013 = vmatpush1.bf16.msra.mxu0 %v7948
  %8014 = vmatprep.subr.bf16.mxu0 %v7951
  %8015 = vmatpush1.bf16.msra.mxu0 %v7950
  %8016 = vmatprep.subr.bf16.mxu0 %v7953
  %8017 = vmatpush1.bf16.msra.mxu0 %v7952
  %8018 = vmatprep.subr.bf16.mxu0 %v7955
  %8019 = vmatpush1.bf16.msra.mxu0 %v7954
  %8020 = vmatprep.mubr.bf16.mxu0 %v7827
  %8021 = vmatmul.mubr.bf16.gmra.mrb[0].mxu0 %v7826
  %v8022 = vpop.f32.mrb[0].mxu0
  %v8023 = vadd.f32 0.0, %v8022
  %v8024 = vpop.f32.mrb[0].mxu0
  %v8025 = vadd.f32 0.0, %v8024
  %v8026 = vpop.f32.mrb[0].mxu0
  %v8027 = vpop.f32.mrb[0].mxu0
  %8028 = vdwg.mxu0
  %s8029 = scalar_lea.vmem %s7, 1280
  %v8030 = vld [vmem:[%s8029] sm:$0xff]
  %v8031 = vld [vmem:[%s8029 + $0x8] sm:$0xff]
  %v8032 = vld [vmem:[%s8029 + $0x10] sm:$0xff]
  %v8033 = vld [vmem:[%s8029 + $0x18] sm:$0xff]
  %v8034 = vld [vmem:[%s8029 + $0x20] sm:$0xff]
  %v8035 = vld [vmem:[%s8029 + $0x28] sm:$0xff]
  %v8036 = vld [vmem:[%s8029 + $0x30] sm:$0xff]
  %v8037 = vld [vmem:[%s8029 + $0x38] sm:$0xff]
  %v8038 = vld [vmem:[%s8029 + $0x40] sm:$0xff]
  %v8039 = vld [vmem:[%s8029 + $0x48] sm:$0xff]
  %v8040 = vld [vmem:[%s8029 + $0x50] sm:$0xff]
  %v8041 = vld [vmem:[%s8029 + $0x58] sm:$0xff]
  %v8042 = vld [vmem:[%s8029 + $0x60] sm:$0xff]
  %v8043 = vld [vmem:[%s8029 + $0x68] sm:$0xff]
  %v8044 = vld [vmem:[%s8029 + $0x70] sm:$0xff]
  %v8045 = vld [vmem:[%s8029 + $0x78] sm:$0xff]
  %v8046 = vld [vmem:[%s8029 + $0x80] sm:$0xff]
  %v8047 = vld [vmem:[%s8029 + $0x88] sm:$0xff]
  %v8048 = vld [vmem:[%s8029 + $0x90] sm:$0xff]
  %v8049 = vld [vmem:[%s8029 + $0x98] sm:$0xff]
  %v8050 = vld [vmem:[%s8029 + $0xa0] sm:$0xff]
  %v8051 = vld [vmem:[%s8029 + $0xa8] sm:$0xff]
  %v8052 = vld [vmem:[%s8029 + $0xb0] sm:$0xff]
  %v8053 = vld [vmem:[%s8029 + $0xb8] sm:$0xff]
  %v8054 = vld [vmem:[%s8029 + $0xc0] sm:$0xff]
  %v8055 = vld [vmem:[%s8029 + $0xc8] sm:$0xff]
  %v8056 = vld [vmem:[%s8029 + $0xd0] sm:$0xff]
  %v8057 = vld [vmem:[%s8029 + $0xd8] sm:$0xff]
  %v8058 = vld [vmem:[%s8029 + $0xe0] sm:$0xff]
  %v8059 = vld [vmem:[%s8029 + $0xe8] sm:$0xff]
  %v8060 = vld [vmem:[%s8029 + $0xf0] sm:$0xff]
  %v8061 = vld [vmem:[%s8029 + $0xf8] sm:$0xff]
  %v8062 = vpack.c.bf16 %v7791, %v7791
  %v8063 = vpack.c.bf16 %v7792, %v7792
  %v8096 = vunpack.c.l.b16 %v8030
  %v8097 = vunpack.c.h.b16 %v8030
  %v8098 = vunpack.c.l.b16 %v8031
  %v8099 = vunpack.c.h.b16 %v8031
  %v8100 = vunpack.c.l.b16 %v8032
  %v8101 = vunpack.c.h.b16 %v8032
  %v8102 = vunpack.c.l.b16 %v8033
  %v8103 = vunpack.c.h.b16 %v8033
  %v8104 = vunpack.c.l.b16 %v8034
  %v8105 = vunpack.c.h.b16 %v8034
  %v8106 = vunpack.c.l.b16 %v8035
  %v8107 = vunpack.c.h.b16 %v8035
  %v8108 = vunpack.c.l.b16 %v8036
  %v8109 = vunpack.c.h.b16 %v8036
  %v8110 = vunpack.c.l.b16 %v8037
  %v8111 = vunpack.c.h.b16 %v8037
  %v8112 = vunpack.c.l.b16 %v8038
  %v8113 = vunpack.c.h.b16 %v8038
  %v8114 = vunpack.c.l.b16 %v8039
  %v8115 = vunpack.c.h.b16 %v8039
  %v8116 = vunpack.c.l.b16 %v8040
  %v8117 = vunpack.c.h.b16 %v8040
  %v8118 = vunpack.c.l.b16 %v8041
  %v8119 = vunpack.c.h.b16 %v8041
  %v8120 = vunpack.c.l.b16 %v8042
  %v8121 = vunpack.c.h.b16 %v8042
  %v8122 = vunpack.c.l.b16 %v8043
  %v8123 = vunpack.c.h.b16 %v8043
  %v8124 = vunpack.c.l.b16 %v8044
  %v8125 = vunpack.c.h.b16 %v8044
  %v8126 = vunpack.c.l.b16 %v8045
  %v8127 = vunpack.c.h.b16 %v8045
  %v8128 = vunpack.c.l.b16 %v8046
  %v8129 = vunpack.c.h.b16 %v8046
  %v8130 = vunpack.c.l.b16 %v8047
  %v8131 = vunpack.c.h.b16 %v8047
  %v8132 = vunpack.c.l.b16 %v8048
  %v8133 = vunpack.c.h.b16 %v8048
  %v8134 = vunpack.c.l.b16 %v8049
  %v8135 = vunpack.c.h.b16 %v8049
  %v8136 = vunpack.c.l.b16 %v8050
  %v8137 = vunpack.c.h.b16 %v8050
  %v8138 = vunpack.c.l.b16 %v8051
  %v8139 = vunpack.c.h.b16 %v8051
  %v8140 = vunpack.c.l.b16 %v8052
  %v8141 = vunpack.c.h.b16 %v8052
  %v8142 = vunpack.c.l.b16 %v8053
  %v8143 = vunpack.c.h.b16 %v8053
  %v8144 = vunpack.c.l.b16 %v8054
  %v8145 = vunpack.c.h.b16 %v8054
  %v8146 = vunpack.c.l.b16 %v8055
  %v8147 = vunpack.c.h.b16 %v8055
  %v8148 = vunpack.c.l.b16 %v8056
  %v8149 = vunpack.c.h.b16 %v8056
  %v8150 = vunpack.c.l.b16 %v8057
  %v8151 = vunpack.c.h.b16 %v8057
  %v8152 = vunpack.c.l.b16 %v8058
  %v8153 = vunpack.c.h.b16 %v8058
  %v8154 = vunpack.c.l.b16 %v8059
  %v8155 = vunpack.c.h.b16 %v8059
  %v8156 = vunpack.c.l.b16 %v8060
  %v8157 = vunpack.c.h.b16 %v8060
  %v8158 = vunpack.c.l.b16 %v8061
  %v8159 = vunpack.c.h.b16 %v8061
  %v8160 = vpack.c.b16 %v8098, %v8096
  %v8161 = vpack.c.b16 %v8099, %v8097
  %v8162 = vpack.c.b16 %v8102, %v8100
  %v8163 = vpack.c.b16 %v8103, %v8101
  %v8164 = vpack.c.b16 %v8106, %v8104
  %v8165 = vpack.c.b16 %v8107, %v8105
  %v8166 = vpack.c.b16 %v8110, %v8108
  %v8167 = vpack.c.b16 %v8111, %v8109
  %v8168 = vpack.c.b16 %v8114, %v8112
  %v8169 = vpack.c.b16 %v8115, %v8113
  %v8170 = vpack.c.b16 %v8118, %v8116
  %v8171 = vpack.c.b16 %v8119, %v8117
  %v8172 = vpack.c.b16 %v8122, %v8120
  %v8173 = vpack.c.b16 %v8123, %v8121
  %v8174 = vpack.c.b16 %v8126, %v8124
  %v8175 = vpack.c.b16 %v8127, %v8125
  %v8176 = vpack.c.b16 %v8130, %v8128
  %v8177 = vpack.c.b16 %v8131, %v8129
  %v8178 = vpack.c.b16 %v8134, %v8132
  %v8179 = vpack.c.b16 %v8135, %v8133
  %v8180 = vpack.c.b16 %v8138, %v8136
  %v8181 = vpack.c.b16 %v8139, %v8137
  %v8182 = vpack.c.b16 %v8142, %v8140
  %v8183 = vpack.c.b16 %v8143, %v8141
  %v8184 = vpack.c.b16 %v8146, %v8144
  %v8185 = vpack.c.b16 %v8147, %v8145
  %v8186 = vpack.c.b16 %v8150, %v8148
  %v8187 = vpack.c.b16 %v8151, %v8149
  %v8188 = vpack.c.b16 %v8154, %v8152
  %v8189 = vpack.c.b16 %v8155, %v8153
  %v8190 = vpack.c.b16 %v8158, %v8156
  %v8191 = vpack.c.b16 %v8159, %v8157
  %8224 = vmatprep.subr.bf16.mxu0 %v8161
  %8225 = vmatpush1.bf16.msra.mxu0 %v8160
  %8226 = vmatprep.subr.bf16.mxu0 %v8163
  %8227 = vmatpush1.bf16.msra.mxu0 %v8162
  %8228 = vmatprep.subr.bf16.mxu0 %v8165
  %8229 = vmatpush1.bf16.msra.mxu0 %v8164
  %8230 = vmatprep.subr.bf16.mxu0 %v8167
  %8231 = vmatpush1.bf16.msra.mxu0 %v8166
  %8232 = vmatprep.subr.bf16.mxu0 %v8169
  %8233 = vmatpush1.bf16.msra.mxu0 %v8168
  %8234 = vmatprep.subr.bf16.mxu0 %v8171
  %8235 = vmatpush1.bf16.msra.mxu0 %v8170
  %8236 = vmatprep.subr.bf16.mxu0 %v8173
  %8237 = vmatpush1.bf16.msra.mxu0 %v8172
  %8238 = vmatprep.subr.bf16.mxu0 %v8175
  %8239 = vmatpush1.bf16.msra.mxu0 %v8174
  %8240 = vmatprep.subr.bf16.mxu0 %v8177
  %8241 = vmatpush1.bf16.msra.mxu0 %v8176
  %8242 = vmatprep.subr.bf16.mxu0 %v8179
  %8243 = vmatpush1.bf16.msra.mxu0 %v8178
  %8244 = vmatprep.subr.bf16.mxu0 %v8181
  %8245 = vmatpush1.bf16.msra.mxu0 %v8180
  %8246 = vmatprep.subr.bf16.mxu0 %v8183
  %8247 = vmatpush1.bf16.msra.mxu0 %v8182
  %8248 = vmatprep.subr.bf16.mxu0 %v8185
  %8249 = vmatpush1.bf16.msra.mxu0 %v8184
  %8250 = vmatprep.subr.bf16.mxu0 %v8187
  %8251 = vmatpush1.bf16.msra.mxu0 %v8186
  %8252 = vmatprep.subr.bf16.mxu0 %v8189
  %8253 = vmatpush1.bf16.msra.mxu0 %v8188
  %8254 = vmatprep.subr.bf16.mxu0 %v8191
  %8255 = vmatpush1.bf16.msra.mxu0 %v8190
  %8256 = vmatprep.mubr.bf16.mxu0 %v8063
  %8257 = vmatmul.mubr.bf16.gmra.mrb[0].mxu0 %v8062
  %v8258 = vpop.f32.mrb[0].mxu0
  %v8259 = vadd.f32 0.0, %v8258
  %v8260 = vpop.f32.mrb[0].mxu0
  %v8261 = vadd.f32 0.0, %v8260
  %v8262 = vpop.f32.mrb[0].mxu0
  %v8263 = vpop.f32.mrb[0].mxu0
  %8264 = vdwg.mxu0
  %v8265 = vrot.slane %v8023, 4
  %v8266 = vadd.f32 %v8023, %v8265
  %v8267 = vrot.slane %v8266, 2
  %v8268 = vadd.f32 %v8266, %v8267
  %v8269 = vrot.slane %v8268, 1
  %v8270 = vadd.f32 %v8268, %v8269
  %v8271 = vrot.slane %v8025, 4
  %v8272 = vadd.f32 %v8025, %v8271
  %v8273 = vrot.slane %v8272, 2
  %v8274 = vadd.f32 %v8272, %v8273
  %v8275 = vrot.slane %v8274, 1
  %v8276 = vadd.f32 %v8274, %v8275
  %v8277 = vrot.slane %v8259, 4
  %v8278 = vadd.f32 %v8259, %v8277
  %v8279 = vrot.slane %v8278, 2
  %v8280 = vadd.f32 %v8278, %v8279
  %v8281 = vrot.slane %v8280, 1
  %v8282 = vadd.f32 %v8280, %v8281
  %v8283 = vrot.slane %v8261, 4
  %v8284 = vadd.f32 %v8261, %v8283
  %v8285 = vrot.slane %v8284, 2
  %v8286 = vadd.f32 %v8284, %v8285
  %v8287 = vrot.slane %v8286, 1
  %v8288 = vadd.f32 %v8286, %v8287
  %v8289 = vmul.f32 %v8023, %v8023
  %v8290 = vmul.f32 %v8025, %v8025
  %v8291 = vmul.f32 %v8259, %v8259
  %v8292 = vmul.f32 %v8261, %v8261
  %v8293 = vrot.slane %v8289, 4
  %v8294 = vadd.f32 %v8289, %v8293
  %v8295 = vrot.slane %v8294, 2
  %v8296 = vadd.f32 %v8294, %v8295
  %v8297 = vrot.slane %v8296, 1
  %v8298 = vadd.f32 %v8296, %v8297
  %v8299 = vrot.slane %v8290, 4
  %v8300 = vadd.f32 %v8290, %v8299
  %v8301 = vrot.slane %v8300, 2
  %v8302 = vadd.f32 %v8300, %v8301
  %v8303 = vrot.slane %v8302, 1
  %v8304 = vadd.f32 %v8302, %v8303
  %v8305 = vrot.slane %v8291, 4
  %v8306 = vadd.f32 %v8291, %v8305
  %v8307 = vrot.slane %v8306, 2
  %v8308 = vadd.f32 %v8306, %v8307
  %v8309 = vrot.slane %v8308, 1
  %v8310 = vadd.f32 %v8308, %v8309
  %v8311 = vrot.slane %v8292, 4
  %v8312 = vadd.f32 %v8292, %v8311
  %v8313 = vrot.slane %v8312, 2
  %v8314 = vadd.f32 %v8312, %v8313
  %v8315 = vrot.slane %v8314, 1
  %v8316 = vadd.f32 %v8314, %v8315
  %v8317 = vmul.f32 %v8270, 0.125
  %v8318 = vmul.f32 %v8276, 0.125
  %v8319 = vmul.f32 %v8282, 0.125
  %v8320 = vmul.f32 %v8288, 0.125
  %v8321 = vmul.f32 %v8298, 0.125
  %v8322 = vmul.f32 %v8304, 0.125
  %v8323 = vmul.f32 %v8310, 0.125
  %v8324 = vmul.f32 %v8316, 0.125
  %v8325 = vmul.f32 %v8317, %v8317
  %v8326 = vmul.f32 %v8318, %v8318
  %v8327 = vmul.f32 %v8319, %v8319
  %v8328 = vmul.f32 %v8320, %v8320
  %v8329 = vsub.f32 %v8321, %v8325
  %v8330 = vsub.f32 %v8322, %v8326
  %v8331 = vsub.f32 %v8323, %v8327
  %v8332 = vsub.f32 %v8324, %v8328
  %v8333 = vmax.f32 %v8329, 0.0
  %v8334 = vmax.f32 %v8330, 0.0
  %v8335 = vmax.f32 %v8331, 0.0
  %v8336 = vmax.f32 %v8332, 0.0
  %v8337 = vsub.f32 %v8023, %v8317
  %v8338 = vsub.f32 %v8025, %v8318
  %v8339 = vsub.f32 %v8259, %v8319
  %v8340 = vsub.f32 %v8261, %v8320
  %v8341 = vadd.f32 %v8333, 1e-05
  %v8342 = vadd.f32 %v8334, 1e-05
  %v8343 = vadd.f32 %v8335, 1e-05
  %v8344 = vadd.f32 %v8336, 1e-05
  %v8345 = vrsqrt.pop %v8341
  %v8346 = vrsqrt.pop %v8342
  %v8347 = vrsqrt.pop %v8343
  %v8348 = vrsqrt.pop %v8344
  %v8349 = vmul.f32 %v8337, %v8345
  %v8350 = vmul.f32 %v8338, %v8346
  %v8351 = vmul.f32 %v8339, %v8347
  %v8352 = vmul.f32 %v8340, %v8348
  %v8353 = vld [vmem:[%s2 + $0x22] sm:$0xf]
  %v8355 = vlaneseq
  %v8356 = vshrl.u32 %v8355, 7
  %v8357 = vsub.s32 0, %v8356
  %v8358 = vrot.slane %v8353, %v8357
  %v8359 = vlaneseq
  %v8360 = vshrl.u32 %v8359, 7
  %v8361 = vsub.s32 1, %v8360
  %v8362 = vrot.slane %v8353, %v8361
  %v8363 = vlaneseq
  %v8364 = vshrl.u32 %v8363, 7
  %v8365 = vsub.s32 2, %v8364
  %v8366 = vrot.slane %v8353, %v8365
  %v8367 = vlaneseq
  %v8368 = vshrl.u32 %v8367, 7
  %v8369 = vsub.s32 3, %v8368
  %v8370 = vrot.slane %v8353, %v8369
  %v8375 = vmul.f32 %v8349, %v8358
  %v8376 = vmul.f32 %v8350, %v8362
  %v8377 = vmul.f32 %v8351, %v8366
  %v8378 = vmul.f32 %v8352, %v8370
  %v8379 = vld [vmem:[%s2 + $0x26] sm:$0xf]
  %v8381 = vlaneseq
  %v8382 = vshrl.u32 %v8381, 7
  %v8383 = vsub.s32 0, %v8382
  %v8384 = vrot.slane %v8379, %v8383
  %v8385 = vlaneseq
  %v8386 = vshrl.u32 %v8385, 7
  %v8387 = vsub.s32 1, %v8386
  %v8388 = vrot.slane %v8379, %v8387
  %v8389 = vlaneseq
  %v8390 = vshrl.u32 %v8389, 7
  %v8391 = vsub.s32 2, %v8390
  %v8392 = vrot.slane %v8379, %v8391
  %v8393 = vlaneseq
  %v8394 = vshrl.u32 %v8393, 7
  %v8395 = vsub.s32 3, %v8394
  %v8396 = vrot.slane %v8379, %v8395
  %v8401 = vadd.f32 %v8375, %v8384
  %v8402 = vadd.f32 %v8376, %v8388
  %v8403 = vadd.f32 %v8377, %v8392
  %v8404 = vadd.f32 %v8378, %v8396
  %v8405 = vadd.f32 %v8401, %v7173
  %v8406 = vadd.f32 %v8402, %v7174
  %v8407 = vadd.f32 %v8403, %v7175
  %v8408 = vadd.f32 %v8404, %v7176
  %v8409 = vmax.f32 %v8405, 0.0
  %v8410 = vmax.f32 %v8406, 0.0
  %v8411 = vmax.f32 %v8407, 0.0
  %v8412 = vmax.f32 %v8408, 0.0
  %v8413 = vld [vmem:[%s8] sm:$0xff]
  %v8414 = vld [vmem:[%s8 + $0x8] sm:$0xff]
  %v8415 = vld [vmem:[%s8 + $0x10] sm:$0xff]
  %v8416 = vld [vmem:[%s8 + $0x18] sm:$0xff]
  %v8417 = vld [vmem:[%s8 + $0x20] sm:$0xff]
  %v8418 = vld [vmem:[%s8 + $0x28] sm:$0xff]
  %v8419 = vld [vmem:[%s8 + $0x30] sm:$0xff]
  %v8420 = vld [vmem:[%s8 + $0x38] sm:$0xff]
  %v8421 = vld [vmem:[%s8 + $0x40] sm:$0xff]
  %v8422 = vld [vmem:[%s8 + $0x48] sm:$0xff]
  %v8423 = vld [vmem:[%s8 + $0x50] sm:$0xff]
  %v8424 = vld [vmem:[%s8 + $0x58] sm:$0xff]
  %v8425 = vld [vmem:[%s8 + $0x60] sm:$0xff]
  %v8426 = vld [vmem:[%s8 + $0x68] sm:$0xff]
  %v8427 = vld [vmem:[%s8 + $0x70] sm:$0xff]
  %v8428 = vld [vmem:[%s8 + $0x78] sm:$0xff]
  %v8429 = vld [vmem:[%s8 + $0x80] sm:$0xff]
  %v8430 = vld [vmem:[%s8 + $0x88] sm:$0xff]
  %v8431 = vld [vmem:[%s8 + $0x90] sm:$0xff]
  %v8432 = vld [vmem:[%s8 + $0x98] sm:$0xff]
  %v8433 = vld [vmem:[%s8 + $0xa0] sm:$0xff]
  %v8434 = vld [vmem:[%s8 + $0xa8] sm:$0xff]
  %v8435 = vld [vmem:[%s8 + $0xb0] sm:$0xff]
  %v8436 = vld [vmem:[%s8 + $0xb8] sm:$0xff]
  %v8437 = vld [vmem:[%s8 + $0xc0] sm:$0xff]
  %v8438 = vld [vmem:[%s8 + $0xc8] sm:$0xff]
  %v8439 = vld [vmem:[%s8 + $0xd0] sm:$0xff]
  %v8440 = vld [vmem:[%s8 + $0xd8] sm:$0xff]
  %v8441 = vld [vmem:[%s8 + $0xe0] sm:$0xff]
  %v8442 = vld [vmem:[%s8 + $0xe8] sm:$0xff]
  %v8443 = vld [vmem:[%s8 + $0xf0] sm:$0xff]
  %v8444 = vld [vmem:[%s8 + $0xf8] sm:$0xff]
  %v8445 = vld [vmem:[%s8 + $0x100] sm:$0xff]
  %v8446 = vld [vmem:[%s8 + $0x108] sm:$0xff]
  %v8447 = vld [vmem:[%s8 + $0x110] sm:$0xff]
  %v8448 = vld [vmem:[%s8 + $0x118] sm:$0xff]
  %v8449 = vld [vmem:[%s8 + $0x120] sm:$0xff]
  %v8450 = vld [vmem:[%s8 + $0x128] sm:$0xff]
  %v8451 = vld [vmem:[%s8 + $0x130] sm:$0xff]
  %v8452 = vld [vmem:[%s8 + $0x138] sm:$0xff]
  %v8453 = vld [vmem:[%s8 + $0x140] sm:$0xff]
  %v8454 = vld [vmem:[%s8 + $0x148] sm:$0xff]
  %v8455 = vld [vmem:[%s8 + $0x150] sm:$0xff]
  %v8456 = vld [vmem:[%s8 + $0x158] sm:$0xff]
  %v8457 = vld [vmem:[%s8 + $0x160] sm:$0xff]
  %v8458 = vld [vmem:[%s8 + $0x168] sm:$0xff]
  %v8459 = vld [vmem:[%s8 + $0x170] sm:$0xff]
  %v8460 = vld [vmem:[%s8 + $0x178] sm:$0xff]
  %v8461 = vld [vmem:[%s8 + $0x180] sm:$0xff]
  %v8462 = vld [vmem:[%s8 + $0x188] sm:$0xff]
  %v8463 = vld [vmem:[%s8 + $0x190] sm:$0xff]
  %v8464 = vld [vmem:[%s8 + $0x198] sm:$0xff]
  %v8465 = vld [vmem:[%s8 + $0x1a0] sm:$0xff]
  %v8466 = vld [vmem:[%s8 + $0x1a8] sm:$0xff]
  %v8467 = vld [vmem:[%s8 + $0x1b0] sm:$0xff]
  %v8468 = vld [vmem:[%s8 + $0x1b8] sm:$0xff]
  %v8469 = vld [vmem:[%s8 + $0x1c0] sm:$0xff]
  %v8470 = vld [vmem:[%s8 + $0x1c8] sm:$0xff]
  %v8471 = vld [vmem:[%s8 + $0x1d0] sm:$0xff]
  %v8472 = vld [vmem:[%s8 + $0x1d8] sm:$0xff]
  %v8473 = vld [vmem:[%s8 + $0x1e0] sm:$0xff]
  %v8474 = vld [vmem:[%s8 + $0x1e8] sm:$0xff]
  %v8475 = vld [vmem:[%s8 + $0x1f0] sm:$0xff]
  %v8476 = vld [vmem:[%s8 + $0x1f8] sm:$0xff]
  %v8477 = vld [vmem:[%s8 + $0x200] sm:$0xff]
  %v8478 = vld [vmem:[%s8 + $0x208] sm:$0xff]
  %v8479 = vld [vmem:[%s8 + $0x210] sm:$0xff]
  %v8480 = vld [vmem:[%s8 + $0x218] sm:$0xff]
  %v8481 = vld [vmem:[%s8 + $0x220] sm:$0xff]
  %v8482 = vld [vmem:[%s8 + $0x228] sm:$0xff]
  %v8483 = vld [vmem:[%s8 + $0x230] sm:$0xff]
  %v8484 = vld [vmem:[%s8 + $0x238] sm:$0xff]
  %v8485 = vld [vmem:[%s8 + $0x240] sm:$0xff]
  %v8486 = vld [vmem:[%s8 + $0x248] sm:$0xff]
  %v8487 = vld [vmem:[%s8 + $0x250] sm:$0xff]
  %v8488 = vld [vmem:[%s8 + $0x258] sm:$0xff]
  %v8489 = vld [vmem:[%s8 + $0x260] sm:$0xff]
  %v8490 = vld [vmem:[%s8 + $0x268] sm:$0xff]
  %v8491 = vld [vmem:[%s8 + $0x270] sm:$0xff]
  %v8492 = vld [vmem:[%s8 + $0x278] sm:$0xff]
  %v8493 = vld [vmem:[%s8 + $0x280] sm:$0xff]
  %v8494 = vld [vmem:[%s8 + $0x288] sm:$0xff]
  %v8495 = vld [vmem:[%s8 + $0x290] sm:$0xff]
  %v8496 = vld [vmem:[%s8 + $0x298] sm:$0xff]
  %v8497 = vld [vmem:[%s8 + $0x2a0] sm:$0xff]
  %v8498 = vld [vmem:[%s8 + $0x2a8] sm:$0xff]
  %v8499 = vld [vmem:[%s8 + $0x2b0] sm:$0xff]
  %v8500 = vld [vmem:[%s8 + $0x2b8] sm:$0xff]
  %v8501 = vld [vmem:[%s8 + $0x2c0] sm:$0xff]
  %v8502 = vld [vmem:[%s8 + $0x2c8] sm:$0xff]
  %v8503 = vld [vmem:[%s8 + $0x2d0] sm:$0xff]
  %v8504 = vld [vmem:[%s8 + $0x2d8] sm:$0xff]
  %v8505 = vld [vmem:[%s8 + $0x2e0] sm:$0xff]
  %v8506 = vld [vmem:[%s8 + $0x2e8] sm:$0xff]
  %v8507 = vld [vmem:[%s8 + $0x2f0] sm:$0xff]
  %v8508 = vld [vmem:[%s8 + $0x2f8] sm:$0xff]
  %v8509 = vld [vmem:[%s8 + $0x300] sm:$0xff]
  %v8510 = vld [vmem:[%s8 + $0x308] sm:$0xff]
  %v8511 = vld [vmem:[%s8 + $0x310] sm:$0xff]
  %v8512 = vld [vmem:[%s8 + $0x318] sm:$0xff]
  %v8513 = vld [vmem:[%s8 + $0x320] sm:$0xff]
  %v8514 = vld [vmem:[%s8 + $0x328] sm:$0xff]
  %v8515 = vld [vmem:[%s8 + $0x330] sm:$0xff]
  %v8516 = vld [vmem:[%s8 + $0x338] sm:$0xff]
  %v8517 = vld [vmem:[%s8 + $0x340] sm:$0xff]
  %v8518 = vld [vmem:[%s8 + $0x348] sm:$0xff]
  %v8519 = vld [vmem:[%s8 + $0x350] sm:$0xff]
  %v8520 = vld [vmem:[%s8 + $0x358] sm:$0xff]
  %v8521 = vld [vmem:[%s8 + $0x360] sm:$0xff]
  %v8522 = vld [vmem:[%s8 + $0x368] sm:$0xff]
  %v8523 = vld [vmem:[%s8 + $0x370] sm:$0xff]
  %v8524 = vld [vmem:[%s8 + $0x378] sm:$0xff]
  %v8525 = vld [vmem:[%s8 + $0x380] sm:$0xff]
  %v8526 = vld [vmem:[%s8 + $0x388] sm:$0xff]
  %v8527 = vld [vmem:[%s8 + $0x390] sm:$0xff]
  %v8528 = vld [vmem:[%s8 + $0x398] sm:$0xff]
  %v8529 = vld [vmem:[%s8 + $0x3a0] sm:$0xff]
  %v8530 = vld [vmem:[%s8 + $0x3a8] sm:$0xff]
  %v8531 = vld [vmem:[%s8 + $0x3b0] sm:$0xff]
  %v8532 = vld [vmem:[%s8 + $0x3b8] sm:$0xff]
  %v8533 = vld [vmem:[%s8 + $0x3c0] sm:$0xff]
  %v8534 = vld [vmem:[%s8 + $0x3c8] sm:$0xff]
  %v8535 = vld [vmem:[%s8 + $0x3d0] sm:$0xff]
  %v8536 = vld [vmem:[%s8 + $0x3d8] sm:$0xff]
  %v8537 = vld [vmem:[%s8 + $0x3e0] sm:$0xff]
  %v8538 = vld [vmem:[%s8 + $0x3e8] sm:$0xff]
  %v8539 = vld [vmem:[%s8 + $0x3f0] sm:$0xff]
  %v8540 = vld [vmem:[%s8 + $0x3f8] sm:$0xff]
  %v8541 = vpack.c.bf16 %v8409, %v8409
  %v8542 = vpack.c.bf16 %v8410, %v8410
  %v8543 = vpack.c.bf16 %v8411, %v8411
  %v8544 = vpack.c.bf16 %v8412, %v8412
  %v8673 = vunpack.c.l.b16 %v8413
  %v8674 = vunpack.c.h.b16 %v8413
  %v8675 = vunpack.c.l.b16 %v8414
  %v8676 = vunpack.c.h.b16 %v8414
  %v8677 = vunpack.c.l.b16 %v8415
  %v8678 = vunpack.c.h.b16 %v8415
  %v8679 = vunpack.c.l.b16 %v8416
  %v8680 = vunpack.c.h.b16 %v8416
  %v8681 = vunpack.c.l.b16 %v8417
  %v8682 = vunpack.c.h.b16 %v8417
  %v8683 = vunpack.c.l.b16 %v8418
  %v8684 = vunpack.c.h.b16 %v8418
  %v8685 = vunpack.c.l.b16 %v8419
  %v8686 = vunpack.c.h.b16 %v8419
  %v8687 = vunpack.c.l.b16 %v8420
  %v8688 = vunpack.c.h.b16 %v8420
  %v8689 = vunpack.c.l.b16 %v8421
  %v8690 = vunpack.c.h.b16 %v8421
  %v8691 = vunpack.c.l.b16 %v8422
  %v8692 = vunpack.c.h.b16 %v8422
  %v8693 = vunpack.c.l.b16 %v8423
  %v8694 = vunpack.c.h.b16 %v8423
  %v8695 = vunpack.c.l.b16 %v8424
  %v8696 = vunpack.c.h.b16 %v8424
  %v8697 = vunpack.c.l.b16 %v8425
  %v8698 = vunpack.c.h.b16 %v8425
  %v8699 = vunpack.c.l.b16 %v8426
  %v8700 = vunpack.c.h.b16 %v8426
  %v8701 = vunpack.c.l.b16 %v8427
  %v8702 = vunpack.c.h.b16 %v8427
  %v8703 = vunpack.c.l.b16 %v8428
  %v8704 = vunpack.c.h.b16 %v8428
  %v8705 = vunpack.c.l.b16 %v8429
  %v8706 = vunpack.c.h.b16 %v8429
  %v8707 = vunpack.c.l.b16 %v8430
  %v8708 = vunpack.c.h.b16 %v8430
  %v8709 = vunpack.c.l.b16 %v8431
  %v8710 = vunpack.c.h.b16 %v8431
  %v8711 = vunpack.c.l.b16 %v8432
  %v8712 = vunpack.c.h.b16 %v8432
  %v8713 = vunpack.c.l.b16 %v8433
  %v8714 = vunpack.c.h.b16 %v8433
  %v8715 = vunpack.c.l.b16 %v8434
  %v8716 = vunpack.c.h.b16 %v8434
  %v8717 = vunpack.c.l.b16 %v8435
  %v8718 = vunpack.c.h.b16 %v8435
  %v8719 = vunpack.c.l.b16 %v8436
  %v8720 = vunpack.c.h.b16 %v8436
  %v8721 = vunpack.c.l.b16 %v8437
  %v8722 = vunpack.c.h.b16 %v8437
  %v8723 = vunpack.c.l.b16 %v8438
  %v8724 = vunpack.c.h.b16 %v8438
  %v8725 = vunpack.c.l.b16 %v8439
  %v8726 = vunpack.c.h.b16 %v8439
  %v8727 = vunpack.c.l.b16 %v8440
  %v8728 = vunpack.c.h.b16 %v8440
  %v8729 = vunpack.c.l.b16 %v8441
  %v8730 = vunpack.c.h.b16 %v8441
  %v8731 = vunpack.c.l.b16 %v8442
  %v8732 = vunpack.c.h.b16 %v8442
  %v8733 = vunpack.c.l.b16 %v8443
  %v8734 = vunpack.c.h.b16 %v8443
  %v8735 = vunpack.c.l.b16 %v8444
  %v8736 = vunpack.c.h.b16 %v8444
  %v8737 = vunpack.c.l.b16 %v8445
  %v8738 = vunpack.c.h.b16 %v8445
  %v8739 = vunpack.c.l.b16 %v8446
  %v8740 = vunpack.c.h.b16 %v8446
  %v8741 = vunpack.c.l.b16 %v8447
  %v8742 = vunpack.c.h.b16 %v8447
  %v8743 = vunpack.c.l.b16 %v8448
  %v8744 = vunpack.c.h.b16 %v8448
  %v8745 = vunpack.c.l.b16 %v8449
  %v8746 = vunpack.c.h.b16 %v8449
  %v8747 = vunpack.c.l.b16 %v8450
  %v8748 = vunpack.c.h.b16 %v8450
  %v8749 = vunpack.c.l.b16 %v8451
  %v8750 = vunpack.c.h.b16 %v8451
  %v8751 = vunpack.c.l.b16 %v8452
  %v8752 = vunpack.c.h.b16 %v8452
  %v8753 = vunpack.c.l.b16 %v8453
  %v8754 = vunpack.c.h.b16 %v8453
  %v8755 = vunpack.c.l.b16 %v8454
  %v8756 = vunpack.c.h.b16 %v8454
  %v8757 = vunpack.c.l.b16 %v8455
  %v8758 = vunpack.c.h.b16 %v8455
  %v8759 = vunpack.c.l.b16 %v8456
  %v8760 = vunpack.c.h.b16 %v8456
  %v8761 = vunpack.c.l.b16 %v8457
  %v8762 = vunpack.c.h.b16 %v8457
  %v8763 = vunpack.c.l.b16 %v8458
  %v8764 = vunpack.c.h.b16 %v8458
  %v8765 = vunpack.c.l.b16 %v8459
  %v8766 = vunpack.c.h.b16 %v8459
  %v8767 = vunpack.c.l.b16 %v8460
  %v8768 = vunpack.c.h.b16 %v8460
  %v8769 = vunpack.c.l.b16 %v8461
  %v8770 = vunpack.c.h.b16 %v8461
  %v8771 = vunpack.c.l.b16 %v8462
  %v8772 = vunpack.c.h.b16 %v8462
  %v8773 = vunpack.c.l.b16 %v8463
  %v8774 = vunpack.c.h.b16 %v8463
  %v8775 = vunpack.c.l.b16 %v8464
  %v8776 = vunpack.c.h.b16 %v8464
  %v8777 = vunpack.c.l.b16 %v8465
  %v8778 = vunpack.c.h.b16 %v8465
  %v8779 = vunpack.c.l.b16 %v8466
  %v8780 = vunpack.c.h.b16 %v8466
  %v8781 = vunpack.c.l.b16 %v8467
  %v8782 = vunpack.c.h.b16 %v8467
  %v8783 = vunpack.c.l.b16 %v8468
  %v8784 = vunpack.c.h.b16 %v8468
  %v8785 = vunpack.c.l.b16 %v8469
  %v8786 = vunpack.c.h.b16 %v8469
  %v8787 = vunpack.c.l.b16 %v8470
  %v8788 = vunpack.c.h.b16 %v8470
  %v8789 = vunpack.c.l.b16 %v8471
  %v8790 = vunpack.c.h.b16 %v8471
  %v8791 = vunpack.c.l.b16 %v8472
  %v8792 = vunpack.c.h.b16 %v8472
  %v8793 = vunpack.c.l.b16 %v8473
  %v8794 = vunpack.c.h.b16 %v8473
  %v8795 = vunpack.c.l.b16 %v8474
  %v8796 = vunpack.c.h.b16 %v8474
  %v8797 = vunpack.c.l.b16 %v8475
  %v8798 = vunpack.c.h.b16 %v8475
  %v8799 = vunpack.c.l.b16 %v8476
  %v8800 = vunpack.c.h.b16 %v8476
  %v8801 = vunpack.c.l.b16 %v8477
  %v8802 = vunpack.c.h.b16 %v8477
  %v8803 = vunpack.c.l.b16 %v8478
  %v8804 = vunpack.c.h.b16 %v8478
  %v8805 = vunpack.c.l.b16 %v8479
  %v8806 = vunpack.c.h.b16 %v8479
  %v8807 = vunpack.c.l.b16 %v8480
  %v8808 = vunpack.c.h.b16 %v8480
  %v8809 = vunpack.c.l.b16 %v8481
  %v8810 = vunpack.c.h.b16 %v8481
  %v8811 = vunpack.c.l.b16 %v8482
  %v8812 = vunpack.c.h.b16 %v8482
  %v8813 = vunpack.c.l.b16 %v8483
  %v8814 = vunpack.c.h.b16 %v8483
  %v8815 = vunpack.c.l.b16 %v8484
  %v8816 = vunpack.c.h.b16 %v8484
  %v8817 = vunpack.c.l.b16 %v8485
  %v8818 = vunpack.c.h.b16 %v8485
  %v8819 = vunpack.c.l.b16 %v8486
  %v8820 = vunpack.c.h.b16 %v8486
  %v8821 = vunpack.c.l.b16 %v8487
  %v8822 = vunpack.c.h.b16 %v8487
  %v8823 = vunpack.c.l.b16 %v8488
  %v8824 = vunpack.c.h.b16 %v8488
  %v8825 = vunpack.c.l.b16 %v8489
  %v8826 = vunpack.c.h.b16 %v8489
  %v8827 = vunpack.c.l.b16 %v8490
  %v8828 = vunpack.c.h.b16 %v8490
  %v8829 = vunpack.c.l.b16 %v8491
  %v8830 = vunpack.c.h.b16 %v8491
  %v8831 = vunpack.c.l.b16 %v8492
  %v8832 = vunpack.c.h.b16 %v8492
  %v8833 = vunpack.c.l.b16 %v8493
  %v8834 = vunpack.c.h.b16 %v8493
  %v8835 = vunpack.c.l.b16 %v8494
  %v8836 = vunpack.c.h.b16 %v8494
  %v8837 = vunpack.c.l.b16 %v8495
  %v8838 = vunpack.c.h.b16 %v8495
  %v8839 = vunpack.c.l.b16 %v8496
  %v8840 = vunpack.c.h.b16 %v8496
  %v8841 = vunpack.c.l.b16 %v8497
  %v8842 = vunpack.c.h.b16 %v8497
  %v8843 = vunpack.c.l.b16 %v8498
  %v8844 = vunpack.c.h.b16 %v8498
  %v8845 = vunpack.c.l.b16 %v8499
  %v8846 = vunpack.c.h.b16 %v8499
  %v8847 = vunpack.c.l.b16 %v8500
  %v8848 = vunpack.c.h.b16 %v8500
  %v8849 = vunpack.c.l.b16 %v8501
  %v8850 = vunpack.c.h.b16 %v8501
  %v8851 = vunpack.c.l.b16 %v8502
  %v8852 = vunpack.c.h.b16 %v8502
  %v8853 = vunpack.c.l.b16 %v8503
  %v8854 = vunpack.c.h.b16 %v8503
  %v8855 = vunpack.c.l.b16 %v8504
  %v8856 = vunpack.c.h.b16 %v8504
  %v8857 = vunpack.c.l.b16 %v8505
  %v8858 = vunpack.c.h.b16 %v8505
  %v8859 = vunpack.c.l.b16 %v8506
  %v8860 = vunpack.c.h.b16 %v8506
  %v8861 = vunpack.c.l.b16 %v8507
  %v8862 = vunpack.c.h.b16 %v8507
  %v8863 = vunpack.c.l.b16 %v8508
  %v8864 = vunpack.c.h.b16 %v8508
  %v8865 = vunpack.c.l.b16 %v8509
  %v8866 = vunpack.c.h.b16 %v8509
  %v8867 = vunpack.c.l.b16 %v8510
  %v8868 = vunpack.c.h.b16 %v8510
  %v8869 = vunpack.c.l.b16 %v8511
  %v8870 = vunpack.c.h.b16 %v8511
  %v8871 = vunpack.c.l.b16 %v8512
  %v8872 = vunpack.c.h.b16 %v8512
  %v8873 = vunpack.c.l.b16 %v8513
  %v8874 = vunpack.c.h.b16 %v8513
  %v8875 = vunpack.c.l.b16 %v8514
  %v8876 = vunpack.c.h.b16 %v8514
  %v8877 = vunpack.c.l.b16 %v8515
  %v8878 = vunpack.c.h.b16 %v8515
  %v8879 = vunpack.c.l.b16 %v8516
  %v8880 = vunpack.c.h.b16 %v8516
  %v8881 = vunpack.c.l.b16 %v8517
  %v8882 = vunpack.c.h.b16 %v8517
  %v8883 = vunpack.c.l.b16 %v8518
  %v8884 = vunpack.c.h.b16 %v8518
  %v8885 = vunpack.c.l.b16 %v8519
  %v8886 = vunpack.c.h.b16 %v8519
  %v8887 = vunpack.c.l.b16 %v8520
  %v8888 = vunpack.c.h.b16 %v8520
  %v8889 = vunpack.c.l.b16 %v8521
  %v8890 = vunpack.c.h.b16 %v8521
  %v8891 = vunpack.c.l.b16 %v8522
  %v8892 = vunpack.c.h.b16 %v8522
  %v8893 = vunpack.c.l.b16 %v8523
  %v8894 = vunpack.c.h.b16 %v8523
  %v8895 = vunpack.c.l.b16 %v8524
  %v8896 = vunpack.c.h.b16 %v8524
  %v8897 = vunpack.c.l.b16 %v8525
  %v8898 = vunpack.c.h.b16 %v8525
  %v8899 = vunpack.c.l.b16 %v8526
  %v8900 = vunpack.c.h.b16 %v8526
  %v8901 = vunpack.c.l.b16 %v8527
  %v8902 = vunpack.c.h.b16 %v8527
  %v8903 = vunpack.c.l.b16 %v8528
  %v8904 = vunpack.c.h.b16 %v8528
  %v8905 = vunpack.c.l.b16 %v8529
  %v8906 = vunpack.c.h.b16 %v8529
  %v8907 = vunpack.c.l.b16 %v8530
  %v8908 = vunpack.c.h.b16 %v8530
  %v8909 = vunpack.c.l.b16 %v8531
  %v8910 = vunpack.c.h.b16 %v8531
  %v8911 = vunpack.c.l.b16 %v8532
  %v8912 = vunpack.c.h.b16 %v8532
  %v8913 = vunpack.c.l.b16 %v8533
  %v8914 = vunpack.c.h.b16 %v8533
  %v8915 = vunpack.c.l.b16 %v8534
  %v8916 = vunpack.c.h.b16 %v8534
  %v8917 = vunpack.c.l.b16 %v8535
  %v8918 = vunpack.c.h.b16 %v8535
  %v8919 = vunpack.c.l.b16 %v8536
  %v8920 = vunpack.c.h.b16 %v8536
  %v8921 = vunpack.c.l.b16 %v8537
  %v8922 = vunpack.c.h.b16 %v8537
  %v8923 = vunpack.c.l.b16 %v8538
  %v8924 = vunpack.c.h.b16 %v8538
  %v8925 = vunpack.c.l.b16 %v8539
  %v8926 = vunpack.c.h.b16 %v8539
  %v8927 = vunpack.c.l.b16 %v8540
  %v8928 = vunpack.c.h.b16 %v8540
  %v8929 = vpack.c.b16 %v8677, %v8673
  %v8930 = vpack.c.b16 %v8678, %v8674
  %v8931 = vpack.c.b16 %v8679, %v8675
  %v8932 = vpack.c.b16 %v8680, %v8676
  %v8933 = vpack.c.b16 %v8685, %v8681
  %v8934 = vpack.c.b16 %v8686, %v8682
  %v8935 = vpack.c.b16 %v8687, %v8683
  %v8936 = vpack.c.b16 %v8688, %v8684
  %v8937 = vpack.c.b16 %v8693, %v8689
  %v8938 = vpack.c.b16 %v8694, %v8690
  %v8939 = vpack.c.b16 %v8695, %v8691
  %v8940 = vpack.c.b16 %v8696, %v8692
  %v8941 = vpack.c.b16 %v8701, %v8697
  %v8942 = vpack.c.b16 %v8702, %v8698
  %v8943 = vpack.c.b16 %v8703, %v8699
  %v8944 = vpack.c.b16 %v8704, %v8700
  %v8945 = vpack.c.b16 %v8709, %v8705
  %v8946 = vpack.c.b16 %v8710, %v8706
  %v8947 = vpack.c.b16 %v8711, %v8707
  %v8948 = vpack.c.b16 %v8712, %v8708
  %v8949 = vpack.c.b16 %v8717, %v8713
  %v8950 = vpack.c.b16 %v8718, %v8714
  %v8951 = vpack.c.b16 %v8719, %v8715
  %v8952 = vpack.c.b16 %v8720, %v8716
  %v8953 = vpack.c.b16 %v8725, %v8721
  %v8954 = vpack.c.b16 %v8726, %v8722
  %v8955 = vpack.c.b16 %v8727, %v8723
  %v8956 = vpack.c.b16 %v8728, %v8724
  %v8957 = vpack.c.b16 %v8733, %v8729
  %v8958 = vpack.c.b16 %v8734, %v8730
  %v8959 = vpack.c.b16 %v8735, %v8731
  %v8960 = vpack.c.b16 %v8736, %v8732
  %v8961 = vpack.c.b16 %v8741, %v8737
  %v8962 = vpack.c.b16 %v8742, %v8738
  %v8963 = vpack.c.b16 %v8743, %v8739
  %v8964 = vpack.c.b16 %v8744, %v8740
  %v8965 = vpack.c.b16 %v8749, %v8745
  %v8966 = vpack.c.b16 %v8750, %v8746
  %v8967 = vpack.c.b16 %v8751, %v8747
  %v8968 = vpack.c.b16 %v8752, %v8748
  %v8969 = vpack.c.b16 %v8757, %v8753
  %v8970 = vpack.c.b16 %v8758, %v8754
  %v8971 = vpack.c.b16 %v8759, %v8755
  %v8972 = vpack.c.b16 %v8760, %v8756
  %v8973 = vpack.c.b16 %v8765, %v8761
  %v8974 = vpack.c.b16 %v8766, %v8762
  %v8975 = vpack.c.b16 %v8767, %v8763
  %v8976 = vpack.c.b16 %v8768, %v8764
  %v8977 = vpack.c.b16 %v8773, %v8769
  %v8978 = vpack.c.b16 %v8774, %v8770
  %v8979 = vpack.c.b16 %v8775, %v8771
  %v8980 = vpack.c.b16 %v8776, %v8772
  %v8981 = vpack.c.b16 %v8781, %v8777
  %v8982 = vpack.c.b16 %v8782, %v8778
  %v8983 = vpack.c.b16 %v8783, %v8779
  %v8984 = vpack.c.b16 %v8784, %v8780
  %v8985 = vpack.c.b16 %v8789, %v8785
  %v8986 = vpack.c.b16 %v8790, %v8786
  %v8987 = vpack.c.b16 %v8791, %v8787
  %v8988 = vpack.c.b16 %v8792, %v8788
  %v8989 = vpack.c.b16 %v8797, %v8793
  %v8990 = vpack.c.b16 %v8798, %v8794
  %v8991 = vpack.c.b16 %v8799, %v8795
  %v8992 = vpack.c.b16 %v8800, %v8796
  %v8993 = vpack.c.b16 %v8805, %v8801
  %v8994 = vpack.c.b16 %v8806, %v8802
  %v8995 = vpack.c.b16 %v8807, %v8803
  %v8996 = vpack.c.b16 %v8808, %v8804
  %v8997 = vpack.c.b16 %v8813, %v8809
  %v8998 = vpack.c.b16 %v8814, %v8810
  %v8999 = vpack.c.b16 %v8815, %v8811
  %v9000 = vpack.c.b16 %v8816, %v8812
  %v9001 = vpack.c.b16 %v8821, %v8817
  %v9002 = vpack.c.b16 %v8822, %v8818
  %v9003 = vpack.c.b16 %v8823, %v8819
  %v9004 = vpack.c.b16 %v8824, %v8820
  %v9005 = vpack.c.b16 %v8829, %v8825
  %v9006 = vpack.c.b16 %v8830, %v8826
  %v9007 = vpack.c.b16 %v8831, %v8827
  %v9008 = vpack.c.b16 %v8832, %v8828
  %v9009 = vpack.c.b16 %v8837, %v8833
  %v9010 = vpack.c.b16 %v8838, %v8834
  %v9011 = vpack.c.b16 %v8839, %v8835
  %v9012 = vpack.c.b16 %v8840, %v8836
  %v9013 = vpack.c.b16 %v8845, %v8841
  %v9014 = vpack.c.b16 %v8846, %v8842
  %v9015 = vpack.c.b16 %v8847, %v8843
  %v9016 = vpack.c.b16 %v8848, %v8844
  %v9017 = vpack.c.b16 %v8853, %v8849
  %v9018 = vpack.c.b16 %v8854, %v8850
  %v9019 = vpack.c.b16 %v8855, %v8851
  %v9020 = vpack.c.b16 %v8856, %v8852
  %v9021 = vpack.c.b16 %v8861, %v8857
  %v9022 = vpack.c.b16 %v8862, %v8858
  %v9023 = vpack.c.b16 %v8863, %v8859
  %v9024 = vpack.c.b16 %v8864, %v8860
  %v9025 = vpack.c.b16 %v8869, %v8865
  %v9026 = vpack.c.b16 %v8870, %v8866
  %v9027 = vpack.c.b16 %v8871, %v8867
  %v9028 = vpack.c.b16 %v8872, %v8868
  %v9029 = vpack.c.b16 %v8877, %v8873
  %v9030 = vpack.c.b16 %v8878, %v8874
  %v9031 = vpack.c.b16 %v8879, %v8875
  %v9032 = vpack.c.b16 %v8880, %v8876
  %v9033 = vpack.c.b16 %v8885, %v8881
  %v9034 = vpack.c.b16 %v8886, %v8882
  %v9035 = vpack.c.b16 %v8887, %v8883
  %v9036 = vpack.c.b16 %v8888, %v8884
  %v9037 = vpack.c.b16 %v8893, %v8889
  %v9038 = vpack.c.b16 %v8894, %v8890
  %v9039 = vpack.c.b16 %v8895, %v8891
  %v9040 = vpack.c.b16 %v8896, %v8892
  %v9041 = vpack.c.b16 %v8901, %v8897
  %v9042 = vpack.c.b16 %v8902, %v8898
  %v9043 = vpack.c.b16 %v8903, %v8899
  %v9044 = vpack.c.b16 %v8904, %v8900
  %v9045 = vpack.c.b16 %v8909, %v8905
  %v9046 = vpack.c.b16 %v8910, %v8906
  %v9047 = vpack.c.b16 %v8911, %v8907
  %v9048 = vpack.c.b16 %v8912, %v8908
  %v9049 = vpack.c.b16 %v8917, %v8913
  %v9050 = vpack.c.b16 %v8918, %v8914
  %v9051 = vpack.c.b16 %v8919, %v8915
  %v9052 = vpack.c.b16 %v8920, %v8916
  %v9053 = vpack.c.b16 %v8925, %v8921
  %v9054 = vpack.c.b16 %v8926, %v8922
  %v9055 = vpack.c.b16 %v8927, %v8923
  %v9056 = vpack.c.b16 %v8928, %v8924
  %9185 = vmatprep.subr.bf16.mxu0 %v8930
  %9186 = vmatpush1.bf16.msra.mxu0 %v8929
  %9187 = vmatprep.subr.bf16.mxu0 %v8934
  %9188 = vmatpush1.bf16.msra.mxu0 %v8933
  %9189 = vmatprep.subr.bf16.mxu0 %v8938
  %9190 = vmatpush1.bf16.msra.mxu0 %v8937
  %9191 = vmatprep.subr.bf16.mxu0 %v8942
  %9192 = vmatpush1.bf16.msra.mxu0 %v8941
  %9193 = vmatprep.subr.bf16.mxu0 %v8946
  %9194 = vmatpush1.bf16.msra.mxu0 %v8945
  %9195 = vmatprep.subr.bf16.mxu0 %v8950
  %9196 = vmatpush1.bf16.msra.mxu0 %v8949
  %9197 = vmatprep.subr.bf16.mxu0 %v8954
  %9198 = vmatpush1.bf16.msra.mxu0 %v8953
  %9199 = vmatprep.subr.bf16.mxu0 %v8958
  %9200 = vmatpush1.bf16.msra.mxu0 %v8957
  %9201 = vmatprep.subr.bf16.mxu0 %v8962
  %9202 = vmatpush1.bf16.msra.mxu0 %v8961
  %9203 = vmatprep.subr.bf16.mxu0 %v8966
  %9204 = vmatpush1.bf16.msra.mxu0 %v8965
  %9205 = vmatprep.subr.bf16.mxu0 %v8970
  %9206 = vmatpush1.bf16.msra.mxu0 %v8969
  %9207 = vmatprep.subr.bf16.mxu0 %v8974
  %9208 = vmatpush1.bf16.msra.mxu0 %v8973
  %9209 = vmatprep.subr.bf16.mxu0 %v8978
  %9210 = vmatpush1.bf16.msra.mxu0 %v8977
  %9211 = vmatprep.subr.bf16.mxu0 %v8982
  %9212 = vmatpush1.bf16.msra.mxu0 %v8981
  %9213 = vmatprep.subr.bf16.mxu0 %v8986
  %9214 = vmatpush1.bf16.msra.mxu0 %v8985
  %9215 = vmatprep.subr.bf16.mxu0 %v8990
  %9216 = vmatpush1.bf16.msra.mxu0 %v8989
  %9217 = vmatprep.mubr.bf16.mxu0 %v8542
  %9218 = vmatmul.mubr.bf16.gmra.mrb[0].mxu0 %v8541
  %v9219 = vpop.f32.mrb[0].mxu0
  %v9220 = vadd.f32 0.0, %v9219
  %v9221 = vpop.f32.mrb[0].mxu0
  %v9222 = vadd.f32 0.0, %v9221
  %v9223 = vpop.f32.mrb[0].mxu0
  %v9224 = vpop.f32.mrb[0].mxu0
  %9225 = vdwg.mxu0
  %9226 = vmatprep.subr.bf16.mxu0 %v8994
  %9227 = vmatpush1.bf16.msra.mxu0 %v8993
  %9228 = vmatprep.subr.bf16.mxu0 %v8998
  %9229 = vmatpush1.bf16.msra.mxu0 %v8997
  %9230 = vmatprep.subr.bf16.mxu0 %v9002
  %9231 = vmatpush1.bf16.msra.mxu0 %v9001
  %9232 = vmatprep.subr.bf16.mxu0 %v9006
  %9233 = vmatpush1.bf16.msra.mxu0 %v9005
  %9234 = vmatprep.subr.bf16.mxu0 %v9010
  %9235 = vmatpush1.bf16.msra.mxu0 %v9009
  %9236 = vmatprep.subr.bf16.mxu0 %v9014
  %9237 = vmatpush1.bf16.msra.mxu0 %v9013
  %9238 = vmatprep.subr.bf16.mxu0 %v9018
  %9239 = vmatpush1.bf16.msra.mxu0 %v9017
  %9240 = vmatprep.subr.bf16.mxu0 %v9022
  %9241 = vmatpush1.bf16.msra.mxu0 %v9021
  %9242 = vmatprep.subr.bf16.mxu0 %v9026
  %9243 = vmatpush1.bf16.msra.mxu0 %v9025
  %9244 = vmatprep.subr.bf16.mxu0 %v9030
  %9245 = vmatpush1.bf16.msra.mxu0 %v9029
  %9246 = vmatprep.subr.bf16.mxu0 %v9034
  %9247 = vmatpush1.bf16.msra.mxu0 %v9033
  %9248 = vmatprep.subr.bf16.mxu0 %v9038
  %9249 = vmatpush1.bf16.msra.mxu0 %v9037
  %9250 = vmatprep.subr.bf16.mxu0 %v9042
  %9251 = vmatpush1.bf16.msra.mxu0 %v9041
  %9252 = vmatprep.subr.bf16.mxu0 %v9046
  %9253 = vmatpush1.bf16.msra.mxu0 %v9045
  %9254 = vmatprep.subr.bf16.mxu0 %v9050
  %9255 = vmatpush1.bf16.msra.mxu0 %v9049
  %9256 = vmatprep.subr.bf16.mxu0 %v9054
  %9257 = vmatpush1.bf16.msra.mxu0 %v9053
  %9258 = vmatprep.mubr.bf16.mxu0 %v8544
  %9259 = vmatmul.mubr.bf16.gmra.mrb[0].mxu0 %v8543
  %v9260 = vpop.f32.mrb[0].mxu0
  %v9261 = vadd.f32 %v9220, %v9260
  %v9262 = vpop.f32.mrb[0].mxu0
  %v9263 = vadd.f32 %v9222, %v9262
  %v9264 = vpop.f32.mrb[0].mxu0
  %v9265 = vpop.f32.mrb[0].mxu0
  %9266 = vdwg.mxu0
  %9267 = vmatprep.subr.bf16.mxu0 %v8932
  %9268 = vmatpush1.bf16.msra.mxu0 %v8931
  %9269 = vmatprep.subr.bf16.mxu0 %v8936
  %9270 = vmatpush1.bf16.msra.mxu0 %v8935
  %9271 = vmatprep.subr.bf16.mxu0 %v8940
  %9272 = vmatpush1.bf16.msra.mxu0 %v8939
  %9273 = vmatprep.subr.bf16.mxu0 %v8944
  %9274 = vmatpush1.bf16.msra.mxu0 %v8943
  %9275 = vmatprep.subr.bf16.mxu0 %v8948
  %9276 = vmatpush1.bf16.msra.mxu0 %v8947
  %9277 = vmatprep.subr.bf16.mxu0 %v8952
  %9278 = vmatpush1.bf16.msra.mxu0 %v8951
  %9279 = vmatprep.subr.bf16.mxu0 %v8956
  %9280 = vmatpush1.bf16.msra.mxu0 %v8955
  %9281 = vmatprep.subr.bf16.mxu0 %v8960
  %9282 = vmatpush1.bf16.msra.mxu0 %v8959
  %9283 = vmatprep.subr.bf16.mxu0 %v8964
  %9284 = vmatpush1.bf16.msra.mxu0 %v8963
  %9285 = vmatprep.subr.bf16.mxu0 %v8968
  %9286 = vmatpush1.bf16.msra.mxu0 %v8967
  %9287 = vmatprep.subr.bf16.mxu0 %v8972
  %9288 = vmatpush1.bf16.msra.mxu0 %v8971
  %9289 = vmatprep.subr.bf16.mxu0 %v8976
  %9290 = vmatpush1.bf16.msra.mxu0 %v8975
  %9291 = vmatprep.subr.bf16.mxu0 %v8980
  %9292 = vmatpush1.bf16.msra.mxu0 %v8979
  %9293 = vmatprep.subr.bf16.mxu0 %v8984
  %9294 = vmatpush1.bf16.msra.mxu0 %v8983
  %9295 = vmatprep.subr.bf16.mxu0 %v8988
  %9296 = vmatpush1.bf16.msra.mxu0 %v8987
  %9297 = vmatprep.subr.bf16.mxu0 %v8992
  %9298 = vmatpush1.bf16.msra.mxu0 %v8991
  %9299 = vmatprep.mubr.bf16.mxu0 %v8542
  %9300 = vmatmul.mubr.bf16.gmra.mrb[0].mxu0 %v8541
  %v9301 = vpop.f32.mrb[0].mxu0
  %v9302 = vadd.f32 0.0, %v9301
  %v9303 = vpop.f32.mrb[0].mxu0
  %v9304 = vadd.f32 0.0, %v9303
  %v9305 = vpop.f32.mrb[0].mxu0
  %v9306 = vpop.f32.mrb[0].mxu0
  %9307 = vdwg.mxu0
  %9308 = vmatprep.subr.bf16.mxu0 %v8996
  %9309 = vmatpush1.bf16.msra.mxu0 %v8995
  %9310 = vmatprep.subr.bf16.mxu0 %v9000
  %9311 = vmatpush1.bf16.msra.mxu0 %v8999
  %9312 = vmatprep.subr.bf16.mxu0 %v9004
  %9313 = vmatpush1.bf16.msra.mxu0 %v9003
  %9314 = vmatprep.subr.bf16.mxu0 %v9008
  %9315 = vmatpush1.bf16.msra.mxu0 %v9007
  %9316 = vmatprep.subr.bf16.mxu0 %v9012
  %9317 = vmatpush1.bf16.msra.mxu0 %v9011
  %9318 = vmatprep.subr.bf16.mxu0 %v9016
  %9319 = vmatpush1.bf16.msra.mxu0 %v9015
  %9320 = vmatprep.subr.bf16.mxu0 %v9020
  %9321 = vmatpush1.bf16.msra.mxu0 %v9019
  %9322 = vmatprep.subr.bf16.mxu0 %v9024
  %9323 = vmatpush1.bf16.msra.mxu0 %v9023
  %9324 = vmatprep.subr.bf16.mxu0 %v9028
  %9325 = vmatpush1.bf16.msra.mxu0 %v9027
  %9326 = vmatprep.subr.bf16.mxu0 %v9032
  %9327 = vmatpush1.bf16.msra.mxu0 %v9031
  %9328 = vmatprep.subr.bf16.mxu0 %v9036
  %9329 = vmatpush1.bf16.msra.mxu0 %v9035
  %9330 = vmatprep.subr.bf16.mxu0 %v9040
  %9331 = vmatpush1.bf16.msra.mxu0 %v9039
  %9332 = vmatprep.subr.bf16.mxu0 %v9044
  %9333 = vmatpush1.bf16.msra.mxu0 %v9043
  %9334 = vmatprep.subr.bf16.mxu0 %v9048
  %9335 = vmatpush1.bf16.msra.mxu0 %v9047
  %9336 = vmatprep.subr.bf16.mxu0 %v9052
  %9337 = vmatpush1.bf16.msra.mxu0 %v9051
  %9338 = vmatprep.subr.bf16.mxu0 %v9056
  %9339 = vmatpush1.bf16.msra.mxu0 %v9055
  %9340 = vmatprep.mubr.bf16.mxu0 %v8544
  %9341 = vmatmul.mubr.bf16.gmra.mrb[0].mxu0 %v8543
  %v9342 = vpop.f32.mrb[0].mxu0
  %v9343 = vadd.f32 %v9302, %v9342
  %v9344 = vpop.f32.mrb[0].mxu0
  %v9345 = vadd.f32 %v9304, %v9344
  %v9346 = vpop.f32.mrb[0].mxu0
  %v9347 = vpop.f32.mrb[0].mxu0
  %9348 = vdwg.mxu0
  %v9349 = vrot.slane %v9261, 4
  %v9350 = vadd.f32 %v9261, %v9349
  %v9351 = vrot.slane %v9350, 2
  %v9352 = vadd.f32 %v9350, %v9351
  %v9353 = vrot.slane %v9352, 1
  %v9354 = vadd.f32 %v9352, %v9353
  %v9355 = vrot.slane %v9263, 4
  %v9356 = vadd.f32 %v9263, %v9355
  %v9357 = vrot.slane %v9356, 2
  %v9358 = vadd.f32 %v9356, %v9357
  %v9359 = vrot.slane %v9358, 1
  %v9360 = vadd.f32 %v9358, %v9359
  %v9361 = vrot.slane %v9343, 4
  %v9362 = vadd.f32 %v9343, %v9361
  %v9363 = vrot.slane %v9362, 2
  %v9364 = vadd.f32 %v9362, %v9363
  %v9365 = vrot.slane %v9364, 1
  %v9366 = vadd.f32 %v9364, %v9365
  %v9367 = vrot.slane %v9345, 4
  %v9368 = vadd.f32 %v9345, %v9367
  %v9369 = vrot.slane %v9368, 2
  %v9370 = vadd.f32 %v9368, %v9369
  %v9371 = vrot.slane %v9370, 1
  %v9372 = vadd.f32 %v9370, %v9371
  %v9373 = vmul.f32 %v9261, %v9261
  %v9374 = vmul.f32 %v9263, %v9263
  %v9375 = vmul.f32 %v9343, %v9343
  %v9376 = vmul.f32 %v9345, %v9345
  %v9377 = vrot.slane %v9373, 4
  %v9378 = vadd.f32 %v9373, %v9377
  %v9379 = vrot.slane %v9378, 2
  %v9380 = vadd.f32 %v9378, %v9379
  %v9381 = vrot.slane %v9380, 1
  %v9382 = vadd.f32 %v9380, %v9381
  %v9383 = vrot.slane %v9374, 4
  %v9384 = vadd.f32 %v9374, %v9383
  %v9385 = vrot.slane %v9384, 2
  %v9386 = vadd.f32 %v9384, %v9385
  %v9387 = vrot.slane %v9386, 1
  %v9388 = vadd.f32 %v9386, %v9387
  %v9389 = vrot.slane %v9375, 4
  %v9390 = vadd.f32 %v9375, %v9389
  %v9391 = vrot.slane %v9390, 2
  %v9392 = vadd.f32 %v9390, %v9391
  %v9393 = vrot.slane %v9392, 1
  %v9394 = vadd.f32 %v9392, %v9393
  %v9395 = vrot.slane %v9376, 4
  %v9396 = vadd.f32 %v9376, %v9395
  %v9397 = vrot.slane %v9396, 2
  %v9398 = vadd.f32 %v9396, %v9397
  %v9399 = vrot.slane %v9398, 1
  %v9400 = vadd.f32 %v9398, %v9399
  %v9401 = vmul.f32 %v9354, 0.125
  %v9402 = vmul.f32 %v9360, 0.125
  %v9403 = vmul.f32 %v9366, 0.125
  %v9404 = vmul.f32 %v9372, 0.125
  %v9405 = vmul.f32 %v9382, 0.125
  %v9406 = vmul.f32 %v9388, 0.125
  %v9407 = vmul.f32 %v9394, 0.125
  %v9408 = vmul.f32 %v9400, 0.125
  %v9409 = vmul.f32 %v9401, %v9401
  %v9410 = vmul.f32 %v9402, %v9402
  %v9411 = vmul.f32 %v9403, %v9403
  %v9412 = vmul.f32 %v9404, %v9404
  %v9413 = vsub.f32 %v9405, %v9409
  %v9414 = vsub.f32 %v9406, %v9410
  %v9415 = vsub.f32 %v9407, %v9411
  %v9416 = vsub.f32 %v9408, %v9412
  %v9417 = vmax.f32 %v9413, 0.0
  %v9418 = vmax.f32 %v9414, 0.0
  %v9419 = vmax.f32 %v9415, 0.0
  %v9420 = vmax.f32 %v9416, 0.0
  %v9421 = vsub.f32 %v9261, %v9401
  %v9422 = vsub.f32 %v9263, %v9402
  %v9423 = vsub.f32 %v9343, %v9403
  %v9424 = vsub.f32 %v9345, %v9404
  %v9425 = vadd.f32 %v9417, 1e-05
  %v9426 = vadd.f32 %v9418, 1e-05
  %v9427 = vadd.f32 %v9419, 1e-05
  %v9428 = vadd.f32 %v9420, 1e-05
  %v9429 = vrsqrt.pop %v9425
  %v9430 = vrsqrt.pop %v9426
  %v9431 = vrsqrt.pop %v9427
  %v9432 = vrsqrt.pop %v9428
  %v9433 = vmul.f32 %v9421, %v9429
  %v9434 = vmul.f32 %v9422, %v9430
  %v9435 = vmul.f32 %v9423, %v9431
  %v9436 = vmul.f32 %v9424, %v9432
  %v9437 = vld [vmem:[%s2 + $0x2a] sm:$0xf]
  %v9439 = vlaneseq
  %v9440 = vshrl.u32 %v9439, 7
  %v9441 = vsub.s32 0, %v9440
  %v9442 = vrot.slane %v9437, %v9441
  %v9443 = vlaneseq
  %v9444 = vshrl.u32 %v9443, 7
  %v9445 = vsub.s32 1, %v9444
  %v9446 = vrot.slane %v9437, %v9445
  %v9447 = vlaneseq
  %v9448 = vshrl.u32 %v9447, 7
  %v9449 = vsub.s32 2, %v9448
  %v9450 = vrot.slane %v9437, %v9449
  %v9451 = vlaneseq
  %v9452 = vshrl.u32 %v9451, 7
  %v9453 = vsub.s32 3, %v9452
  %v9454 = vrot.slane %v9437, %v9453
  %v9459 = vmul.f32 %v9433, %v9442
  %v9460 = vmul.f32 %v9434, %v9446
  %v9461 = vmul.f32 %v9435, %v9450
  %v9462 = vmul.f32 %v9436, %v9454
  %v9463 = vld [vmem:[%s2 + $0x2e] sm:$0xf]
  %v9465 = vlaneseq
  %v9466 = vshrl.u32 %v9465, 7
  %v9467 = vsub.s32 0, %v9466
  %v9468 = vrot.slane %v9463, %v9467
  %v9469 = vlaneseq
  %v9470 = vshrl.u32 %v9469, 7
  %v9471 = vsub.s32 1, %v9470
  %v9472 = vrot.slane %v9463, %v9471
  %v9473 = vlaneseq
  %v9474 = vshrl.u32 %v9473, 7
  %v9475 = vsub.s32 2, %v9474
  %v9476 = vrot.slane %v9463, %v9475
  %v9477 = vlaneseq
  %v9478 = vshrl.u32 %v9477, 7
  %v9479 = vsub.s32 3, %v9478
  %v9480 = vrot.slane %v9463, %v9479
  %v9485 = vadd.f32 %v9459, %v9468
  %v9486 = vadd.f32 %v9460, %v9472
  %v9487 = vadd.f32 %v9461, %v9476
  %v9488 = vadd.f32 %v9462, %v9480
  %v9489 = vmax.f32 %v9485, 0.0
  %v9490 = vmax.f32 %v9486, 0.0
  %v9491 = vmax.f32 %v9487, 0.0
  %v9492 = vmax.f32 %v9488, 0.0
  %s9493 = scalar_lea.vmem %s8, 1024
  %v9494 = vld [vmem:[%s9493] sm:$0xff]
  %v9495 = vld [vmem:[%s9493 + $0x8] sm:$0xff]
  %v9496 = vld [vmem:[%s9493 + $0x10] sm:$0xff]
  %v9497 = vld [vmem:[%s9493 + $0x18] sm:$0xff]
  %v9498 = vld [vmem:[%s9493 + $0x20] sm:$0xff]
  %v9499 = vld [vmem:[%s9493 + $0x28] sm:$0xff]
  %v9500 = vld [vmem:[%s9493 + $0x30] sm:$0xff]
  %v9501 = vld [vmem:[%s9493 + $0x38] sm:$0xff]
  %v9502 = vld [vmem:[%s9493 + $0x40] sm:$0xff]
  %v9503 = vld [vmem:[%s9493 + $0x48] sm:$0xff]
  %v9504 = vld [vmem:[%s9493 + $0x50] sm:$0xff]
  %v9505 = vld [vmem:[%s9493 + $0x58] sm:$0xff]
  %v9506 = vld [vmem:[%s9493 + $0x60] sm:$0xff]
  %v9507 = vld [vmem:[%s9493 + $0x68] sm:$0xff]
  %v9508 = vld [vmem:[%s9493 + $0x70] sm:$0xff]
  %v9509 = vld [vmem:[%s9493 + $0x78] sm:$0xff]
  %v9510 = vld [vmem:[%s9493 + $0x80] sm:$0xff]
  %v9511 = vld [vmem:[%s9493 + $0x88] sm:$0xff]
  %v9512 = vld [vmem:[%s9493 + $0x90] sm:$0xff]
  %v9513 = vld [vmem:[%s9493 + $0x98] sm:$0xff]
  %v9514 = vld [vmem:[%s9493 + $0xa0] sm:$0xff]
  %v9515 = vld [vmem:[%s9493 + $0xa8] sm:$0xff]
  %v9516 = vld [vmem:[%s9493 + $0xb0] sm:$0xff]
  %v9517 = vld [vmem:[%s9493 + $0xb8] sm:$0xff]
  %v9518 = vld [vmem:[%s9493 + $0xc0] sm:$0xff]
  %v9519 = vld [vmem:[%s9493 + $0xc8] sm:$0xff]
  %v9520 = vld [vmem:[%s9493 + $0xd0] sm:$0xff]
  %v9521 = vld [vmem:[%s9493 + $0xd8] sm:$0xff]
  %v9522 = vld [vmem:[%s9493 + $0xe0] sm:$0xff]
  %v9523 = vld [vmem:[%s9493 + $0xe8] sm:$0xff]
  %v9524 = vld [vmem:[%s9493 + $0xf0] sm:$0xff]
  %v9525 = vld [vmem:[%s9493 + $0xf8] sm:$0xff]
  %v9526 = vld [vmem:[%s9493 + $0x100] sm:$0xff]
  %v9527 = vld [vmem:[%s9493 + $0x108] sm:$0xff]
  %v9528 = vld [vmem:[%s9493 + $0x110] sm:$0xff]
  %v9529 = vld [vmem:[%s9493 + $0x118] sm:$0xff]
  %v9530 = vld [vmem:[%s9493 + $0x120] sm:$0xff]
  %v9531 = vld [vmem:[%s9493 + $0x128] sm:$0xff]
  %v9532 = vld [vmem:[%s9493 + $0x130] sm:$0xff]
  %v9533 = vld [vmem:[%s9493 + $0x138] sm:$0xff]
  %v9534 = vld [vmem:[%s9493 + $0x140] sm:$0xff]
  %v9535 = vld [vmem:[%s9493 + $0x148] sm:$0xff]
  %v9536 = vld [vmem:[%s9493 + $0x150] sm:$0xff]
  %v9537 = vld [vmem:[%s9493 + $0x158] sm:$0xff]
  %v9538 = vld [vmem:[%s9493 + $0x160] sm:$0xff]
  %v9539 = vld [vmem:[%s9493 + $0x168] sm:$0xff]
  %v9540 = vld [vmem:[%s9493 + $0x170] sm:$0xff]
  %v9541 = vld [vmem:[%s9493 + $0x178] sm:$0xff]
  %v9542 = vld [vmem:[%s9493 + $0x180] sm:$0xff]
  %v9543 = vld [vmem:[%s9493 + $0x188] sm:$0xff]
  %v9544 = vld [vmem:[%s9493 + $0x190] sm:$0xff]
  %v9545 = vld [vmem:[%s9493 + $0x198] sm:$0xff]
  %v9546 = vld [vmem:[%s9493 + $0x1a0] sm:$0xff]
  %v9547 = vld [vmem:[%s9493 + $0x1a8] sm:$0xff]
  %v9548 = vld [vmem:[%s9493 + $0x1b0] sm:$0xff]
  %v9549 = vld [vmem:[%s9493 + $0x1b8] sm:$0xff]
  %v9550 = vld [vmem:[%s9493 + $0x1c0] sm:$0xff]
  %v9551 = vld [vmem:[%s9493 + $0x1c8] sm:$0xff]
  %v9552 = vld [vmem:[%s9493 + $0x1d0] sm:$0xff]
  %v9553 = vld [vmem:[%s9493 + $0x1d8] sm:$0xff]
  %v9554 = vld [vmem:[%s9493 + $0x1e0] sm:$0xff]
  %v9555 = vld [vmem:[%s9493 + $0x1e8] sm:$0xff]
  %v9556 = vld [vmem:[%s9493 + $0x1f0] sm:$0xff]
  %v9557 = vld [vmem:[%s9493 + $0x1f8] sm:$0xff]
  %v9558 = vld [vmem:[%s9493 + $0x200] sm:$0xff]
  %v9559 = vld [vmem:[%s9493 + $0x208] sm:$0xff]
  %v9560 = vld [vmem:[%s9493 + $0x210] sm:$0xff]
  %v9561 = vld [vmem:[%s9493 + $0x218] sm:$0xff]
  %v9562 = vld [vmem:[%s9493 + $0x220] sm:$0xff]
  %v9563 = vld [vmem:[%s9493 + $0x228] sm:$0xff]
  %v9564 = vld [vmem:[%s9493 + $0x230] sm:$0xff]
  %v9565 = vld [vmem:[%s9493 + $0x238] sm:$0xff]
  %v9566 = vld [vmem:[%s9493 + $0x240] sm:$0xff]
  %v9567 = vld [vmem:[%s9493 + $0x248] sm:$0xff]
  %v9568 = vld [vmem:[%s9493 + $0x250] sm:$0xff]
  %v9569 = vld [vmem:[%s9493 + $0x258] sm:$0xff]
  %v9570 = vld [vmem:[%s9493 + $0x260] sm:$0xff]
  %v9571 = vld [vmem:[%s9493 + $0x268] sm:$0xff]
  %v9572 = vld [vmem:[%s9493 + $0x270] sm:$0xff]
  %v9573 = vld [vmem:[%s9493 + $0x278] sm:$0xff]
  %v9574 = vld [vmem:[%s9493 + $0x280] sm:$0xff]
  %v9575 = vld [vmem:[%s9493 + $0x288] sm:$0xff]
  %v9576 = vld [vmem:[%s9493 + $0x290] sm:$0xff]
  %v9577 = vld [vmem:[%s9493 + $0x298] sm:$0xff]
  %v9578 = vld [vmem:[%s9493 + $0x2a0] sm:$0xff]
  %v9579 = vld [vmem:[%s9493 + $0x2a8] sm:$0xff]
  %v9580 = vld [vmem:[%s9493 + $0x2b0] sm:$0xff]
  %v9581 = vld [vmem:[%s9493 + $0x2b8] sm:$0xff]
  %v9582 = vld [vmem:[%s9493 + $0x2c0] sm:$0xff]
  %v9583 = vld [vmem:[%s9493 + $0x2c8] sm:$0xff]
  %v9584 = vld [vmem:[%s9493 + $0x2d0] sm:$0xff]
  %v9585 = vld [vmem:[%s9493 + $0x2d8] sm:$0xff]
  %v9586 = vld [vmem:[%s9493 + $0x2e0] sm:$0xff]
  %v9587 = vld [vmem:[%s9493 + $0x2e8] sm:$0xff]
  %v9588 = vld [vmem:[%s9493 + $0x2f0] sm:$0xff]
  %v9589 = vld [vmem:[%s9493 + $0x2f8] sm:$0xff]
  %v9590 = vld [vmem:[%s9493 + $0x300] sm:$0xff]
  %v9591 = vld [vmem:[%s9493 + $0x308] sm:$0xff]
  %v9592 = vld [vmem:[%s9493 + $0x310] sm:$0xff]
  %v9593 = vld [vmem:[%s9493 + $0x318] sm:$0xff]
  %v9594 = vld [vmem:[%s9493 + $0x320] sm:$0xff]
  %v9595 = vld [vmem:[%s9493 + $0x328] sm:$0xff]
  %v9596 = vld [vmem:[%s9493 + $0x330] sm:$0xff]
  %v9597 = vld [vmem:[%s9493 + $0x338] sm:$0xff]
  %v9598 = vld [vmem:[%s9493 + $0x340] sm:$0xff]
  %v9599 = vld [vmem:[%s9493 + $0x348] sm:$0xff]
  %v9600 = vld [vmem:[%s9493 + $0x350] sm:$0xff]
  %v9601 = vld [vmem:[%s9493 + $0x358] sm:$0xff]
  %v9602 = vld [vmem:[%s9493 + $0x360] sm:$0xff]
  %v9603 = vld [vmem:[%s9493 + $0x368] sm:$0xff]
  %v9604 = vld [vmem:[%s9493 + $0x370] sm:$0xff]
  %v9605 = vld [vmem:[%s9493 + $0x378] sm:$0xff]
  %v9606 = vld [vmem:[%s9493 + $0x380] sm:$0xff]
  %v9607 = vld [vmem:[%s9493 + $0x388] sm:$0xff]
  %v9608 = vld [vmem:[%s9493 + $0x390] sm:$0xff]
  %v9609 = vld [vmem:[%s9493 + $0x398] sm:$0xff]
  %v9610 = vld [vmem:[%s9493 + $0x3a0] sm:$0xff]
  %v9611 = vld [vmem:[%s9493 + $0x3a8] sm:$0xff]
  %v9612 = vld [vmem:[%s9493 + $0x3b0] sm:$0xff]
  %v9613 = vld [vmem:[%s9493 + $0x3b8] sm:$0xff]
  %v9614 = vld [vmem:[%s9493 + $0x3c0] sm:$0xff]
  %v9615 = vld [vmem:[%s9493 + $0x3c8] sm:$0xff]
  %v9616 = vld [vmem:[%s9493 + $0x3d0] sm:$0xff]
  %v9617 = vld [vmem:[%s9493 + $0x3d8] sm:$0xff]
  %v9618 = vld [vmem:[%s9493 + $0x3e0] sm:$0xff]
  %v9619 = vld [vmem:[%s9493 + $0x3e8] sm:$0xff]
  %v9620 = vld [vmem:[%s9493 + $0x3f0] sm:$0xff]
  %v9621 = vld [vmem:[%s9493 + $0x3f8] sm:$0xff]
  %v9622 = vpack.c.bf16 %v9489, %v9489
  %v9623 = vpack.c.bf16 %v9490, %v9490
  %v9624 = vpack.c.bf16 %v9491, %v9491
  %v9625 = vpack.c.bf16 %v9492, %v9492
  %v9754 = vunpack.c.l.b16 %v9494
  %v9755 = vunpack.c.h.b16 %v9494
  %v9756 = vunpack.c.l.b16 %v9495
  %v9757 = vunpack.c.h.b16 %v9495
  %v9758 = vunpack.c.l.b16 %v9496
  %v9759 = vunpack.c.h.b16 %v9496
  %v9760 = vunpack.c.l.b16 %v9497
  %v9761 = vunpack.c.h.b16 %v9497
  %v9762 = vunpack.c.l.b16 %v9498
  %v9763 = vunpack.c.h.b16 %v9498
  %v9764 = vunpack.c.l.b16 %v9499
  %v9765 = vunpack.c.h.b16 %v9499
  %v9766 = vunpack.c.l.b16 %v9500
  %v9767 = vunpack.c.h.b16 %v9500
  %v9768 = vunpack.c.l.b16 %v9501
  %v9769 = vunpack.c.h.b16 %v9501
  %v9770 = vunpack.c.l.b16 %v9502
  %v9771 = vunpack.c.h.b16 %v9502
  %v9772 = vunpack.c.l.b16 %v9503
  %v9773 = vunpack.c.h.b16 %v9503
  %v9774 = vunpack.c.l.b16 %v9504
  %v9775 = vunpack.c.h.b16 %v9504
  %v9776 = vunpack.c.l.b16 %v9505
  %v9777 = vunpack.c.h.b16 %v9505
  %v9778 = vunpack.c.l.b16 %v9506
  %v9779 = vunpack.c.h.b16 %v9506
  %v9780 = vunpack.c.l.b16 %v9507
  %v9781 = vunpack.c.h.b16 %v9507
  %v9782 = vunpack.c.l.b16 %v9508
  %v9783 = vunpack.c.h.b16 %v9508
  %v9784 = vunpack.c.l.b16 %v9509
  %v9785 = vunpack.c.h.b16 %v9509
  %v9786 = vunpack.c.l.b16 %v9510
  %v9787 = vunpack.c.h.b16 %v9510
  %v9788 = vunpack.c.l.b16 %v9511
  %v9789 = vunpack.c.h.b16 %v9511
  %v9790 = vunpack.c.l.b16 %v9512
  %v9791 = vunpack.c.h.b16 %v9512
  %v9792 = vunpack.c.l.b16 %v9513
  %v9793 = vunpack.c.h.b16 %v9513
  %v9794 = vunpack.c.l.b16 %v9514
  %v9795 = vunpack.c.h.b16 %v9514
  %v9796 = vunpack.c.l.b16 %v9515
  %v9797 = vunpack.c.h.b16 %v9515
  %v9798 = vunpack.c.l.b16 %v9516
  %v9799 = vunpack.c.h.b16 %v9516
  %v9800 = vunpack.c.l.b16 %v9517
  %v9801 = vunpack.c.h.b16 %v9517
  %v9802 = vunpack.c.l.b16 %v9518
  %v9803 = vunpack.c.h.b16 %v9518
  %v9804 = vunpack.c.l.b16 %v9519
  %v9805 = vunpack.c.h.b16 %v9519
  %v9806 = vunpack.c.l.b16 %v9520
  %v9807 = vunpack.c.h.b16 %v9520
  %v9808 = vunpack.c.l.b16 %v9521
  %v9809 = vunpack.c.h.b16 %v9521
  %v9810 = vunpack.c.l.b16 %v9522
  %v9811 = vunpack.c.h.b16 %v9522
  %v9812 = vunpack.c.l.b16 %v9523
  %v9813 = vunpack.c.h.b16 %v9523
  %v9814 = vunpack.c.l.b16 %v9524
  %v9815 = vunpack.c.h.b16 %v9524
  %v9816 = vunpack.c.l.b16 %v9525
  %v9817 = vunpack.c.h.b16 %v9525
  %v9818 = vunpack.c.l.b16 %v9526
  %v9819 = vunpack.c.h.b16 %v9526
  %v9820 = vunpack.c.l.b16 %v9527
  %v9821 = vunpack.c.h.b16 %v9527
  %v9822 = vunpack.c.l.b16 %v9528
  %v9823 = vunpack.c.h.b16 %v9528
  %v9824 = vunpack.c.l.b16 %v9529
  %v9825 = vunpack.c.h.b16 %v9529
  %v9826 = vunpack.c.l.b16 %v9530
  %v9827 = vunpack.c.h.b16 %v9530
  %v9828 = vunpack.c.l.b16 %v9531
  %v9829 = vunpack.c.h.b16 %v9531
  %v9830 = vunpack.c.l.b16 %v9532
  %v9831 = vunpack.c.h.b16 %v9532
  %v9832 = vunpack.c.l.b16 %v9533
  %v9833 = vunpack.c.h.b16 %v9533
  %v9834 = vunpack.c.l.b16 %v9534
  %v9835 = vunpack.c.h.b16 %v9534
  %v9836 = vunpack.c.l.b16 %v9535
  %v9837 = vunpack.c.h.b16 %v9535
  %v9838 = vunpack.c.l.b16 %v9536
  %v9839 = vunpack.c.h.b16 %v9536
  %v9840 = vunpack.c.l.b16 %v9537
  %v9841 = vunpack.c.h.b16 %v9537
  %v9842 = vunpack.c.l.b16 %v9538
  %v9843 = vunpack.c.h.b16 %v9538
  %v9844 = vunpack.c.l.b16 %v9539
  %v9845 = vunpack.c.h.b16 %v9539
  %v9846 = vunpack.c.l.b16 %v9540
  %v9847 = vunpack.c.h.b16 %v9540
  %v9848 = vunpack.c.l.b16 %v9541
  %v9849 = vunpack.c.h.b16 %v9541
  %v9850 = vunpack.c.l.b16 %v9542
  %v9851 = vunpack.c.h.b16 %v9542
  %v9852 = vunpack.c.l.b16 %v9543
  %v9853 = vunpack.c.h.b16 %v9543
  %v9854 = vunpack.c.l.b16 %v9544
  %v9855 = vunpack.c.h.b16 %v9544
  %v9856 = vunpack.c.l.b16 %v9545
  %v9857 = vunpack.c.h.b16 %v9545
  %v9858 = vunpack.c.l.b16 %v9546
  %v9859 = vunpack.c.h.b16 %v9546
  %v9860 = vunpack.c.l.b16 %v9547
  %v9861 = vunpack.c.h.b16 %v9547
  %v9862 = vunpack.c.l.b16 %v9548
  %v9863 = vunpack.c.h.b16 %v9548
  %v9864 = vunpack.c.l.b16 %v9549
  %v9865 = vunpack.c.h.b16 %v9549
  %v9866 = vunpack.c.l.b16 %v9550
  %v9867 = vunpack.c.h.b16 %v9550
  %v9868 = vunpack.c.l.b16 %v9551
  %v9869 = vunpack.c.h.b16 %v9551
  %v9870 = vunpack.c.l.b16 %v9552
  %v9871 = vunpack.c.h.b16 %v9552
  %v9872 = vunpack.c.l.b16 %v9553
  %v9873 = vunpack.c.h.b16 %v9553
  %v9874 = vunpack.c.l.b16 %v9554
  %v9875 = vunpack.c.h.b16 %v9554
  %v9876 = vunpack.c.l.b16 %v9555
  %v9877 = vunpack.c.h.b16 %v9555
  %v9878 = vunpack.c.l.b16 %v9556
  %v9879 = vunpack.c.h.b16 %v9556
  %v9880 = vunpack.c.l.b16 %v9557
  %v9881 = vunpack.c.h.b16 %v9557
  %v9882 = vunpack.c.l.b16 %v9558
  %v9883 = vunpack.c.h.b16 %v9558
  %v9884 = vunpack.c.l.b16 %v9559
  %v9885 = vunpack.c.h.b16 %v9559
  %v9886 = vunpack.c.l.b16 %v9560
  %v9887 = vunpack.c.h.b16 %v9560
  %v9888 = vunpack.c.l.b16 %v9561
  %v9889 = vunpack.c.h.b16 %v9561
  %v9890 = vunpack.c.l.b16 %v9562
  %v9891 = vunpack.c.h.b16 %v9562
  %v9892 = vunpack.c.l.b16 %v9563
  %v9893 = vunpack.c.h.b16 %v9563
  %v9894 = vunpack.c.l.b16 %v9564
  %v9895 = vunpack.c.h.b16 %v9564
  %v9896 = vunpack.c.l.b16 %v9565
  %v9897 = vunpack.c.h.b16 %v9565
  %v9898 = vunpack.c.l.b16 %v9566
  %v9899 = vunpack.c.h.b16 %v9566
  %v9900 = vunpack.c.l.b16 %v9567
  %v9901 = vunpack.c.h.b16 %v9567
  %v9902 = vunpack.c.l.b16 %v9568
  %v9903 = vunpack.c.h.b16 %v9568
  %v9904 = vunpack.c.l.b16 %v9569
  %v9905 = vunpack.c.h.b16 %v9569
  %v9906 = vunpack.c.l.b16 %v9570
  %v9907 = vunpack.c.h.b16 %v9570
  %v9908 = vunpack.c.l.b16 %v9571
  %v9909 = vunpack.c.h.b16 %v9571
  %v9910 = vunpack.c.l.b16 %v9572
  %v9911 = vunpack.c.h.b16 %v9572
  %v9912 = vunpack.c.l.b16 %v9573
  %v9913 = vunpack.c.h.b16 %v9573
  %v9914 = vunpack.c.l.b16 %v9574
  %v9915 = vunpack.c.h.b16 %v9574
  %v9916 = vunpack.c.l.b16 %v9575
  %v9917 = vunpack.c.h.b16 %v9575
  %v9918 = vunpack.c.l.b16 %v9576
  %v9919 = vunpack.c.h.b16 %v9576
  %v9920 = vunpack.c.l.b16 %v9577
  %v9921 = vunpack.c.h.b16 %v9577
  %v9922 = vunpack.c.l.b16 %v9578
  %v9923 = vunpack.c.h.b16 %v9578
  %v9924 = vunpack.c.l.b16 %v9579
  %v9925 = vunpack.c.h.b16 %v9579
  %v9926 = vunpack.c.l.b16 %v9580
  %v9927 = vunpack.c.h.b16 %v9580
  %v9928 = vunpack.c.l.b16 %v9581
  %v9929 = vunpack.c.h.b16 %v9581
  %v9930 = vunpack.c.l.b16 %v9582
  %v9931 = vunpack.c.h.b16 %v9582
  %v9932 = vunpack.c.l.b16 %v9583
  %v9933 = vunpack.c.h.b16 %v9583
  %v9934 = vunpack.c.l.b16 %v9584
  %v9935 = vunpack.c.h.b16 %v9584
  %v9936 = vunpack.c.l.b16 %v9585
  %v9937 = vunpack.c.h.b16 %v9585
  %v9938 = vunpack.c.l.b16 %v9586
  %v9939 = vunpack.c.h.b16 %v9586
  %v9940 = vunpack.c.l.b16 %v9587
  %v9941 = vunpack.c.h.b16 %v9587
  %v9942 = vunpack.c.l.b16 %v9588
  %v9943 = vunpack.c.h.b16 %v9588
  %v9944 = vunpack.c.l.b16 %v9589
  %v9945 = vunpack.c.h.b16 %v9589
  %v9946 = vunpack.c.l.b16 %v9590
  %v9947 = vunpack.c.h.b16 %v9590
  %v9948 = vunpack.c.l.b16 %v9591
  %v9949 = vunpack.c.h.b16 %v9591
  %v9950 = vunpack.c.l.b16 %v9592
  %v9951 = vunpack.c.h.b16 %v9592
  %v9952 = vunpack.c.l.b16 %v9593
  %v9953 = vunpack.c.h.b16 %v9593
  %v9954 = vunpack.c.l.b16 %v9594
  %v9955 = vunpack.c.h.b16 %v9594
  %v9956 = vunpack.c.l.b16 %v9595
  %v9957 = vunpack.c.h.b16 %v9595
  %v9958 = vunpack.c.l.b16 %v9596
  %v9959 = vunpack.c.h.b16 %v9596
  %v9960 = vunpack.c.l.b16 %v9597
  %v9961 = vunpack.c.h.b16 %v9597
  %v9962 = vunpack.c.l.b16 %v9598
  %v9963 = vunpack.c.h.b16 %v9598
  %v9964 = vunpack.c.l.b16 %v9599
  %v9965 = vunpack.c.h.b16 %v9599
  %v9966 = vunpack.c.l.b16 %v9600
  %v9967 = vunpack.c.h.b16 %v9600
  %v9968 = vunpack.c.l.b16 %v9601
  %v9969 = vunpack.c.h.b16 %v9601
  %v9970 = vunpack.c.l.b16 %v9602
  %v9971 = vunpack.c.h.b16 %v9602
  %v9972 = vunpack.c.l.b16 %v9603
  %v9973 = vunpack.c.h.b16 %v9603
  %v9974 = vunpack.c.l.b16 %v9604
  %v9975 = vunpack.c.h.b16 %v9604
  %v9976 = vunpack.c.l.b16 %v9605
  %v9977 = vunpack.c.h.b16 %v9605
  %v9978 = vunpack.c.l.b16 %v9606
  %v9979 = vunpack.c.h.b16 %v9606
  %v9980 = vunpack.c.l.b16 %v9607
  %v9981 = vunpack.c.h.b16 %v9607
  %v9982 = vunpack.c.l.b16 %v9608
  %v9983 = vunpack.c.h.b16 %v9608
  %v9984 = vunpack.c.l.b16 %v9609
  %v9985 = vunpack.c.h.b16 %v9609
  %v9986 = vunpack.c.l.b16 %v9610
  %v9987 = vunpack.c.h.b16 %v9610
  %v9988 = vunpack.c.l.b16 %v9611
  %v9989 = vunpack.c.h.b16 %v9611
  %v9990 = vunpack.c.l.b16 %v9612
  %v9991 = vunpack.c.h.b16 %v9612
  %v9992 = vunpack.c.l.b16 %v9613
  %v9993 = vunpack.c.h.b16 %v9613
  %v9994 = vunpack.c.l.b16 %v9614
  %v9995 = vunpack.c.h.b16 %v9614
  %v9996 = vunpack.c.l.b16 %v9615
  %v9997 = vunpack.c.h.b16 %v9615
  %v9998 = vunpack.c.l.b16 %v9616
  %v9999 = vunpack.c.h.b16 %v9616
  %v10000 = vunpack.c.l.b16 %v9617
  %v10001 = vunpack.c.h.b16 %v9617
  %v10002 = vunpack.c.l.b16 %v9618
  %v10003 = vunpack.c.h.b16 %v9618
  %v10004 = vunpack.c.l.b16 %v9619
  %v10005 = vunpack.c.h.b16 %v9619
  %v10006 = vunpack.c.l.b16 %v9620
  %v10007 = vunpack.c.h.b16 %v9620
  %v10008 = vunpack.c.l.b16 %v9621
  %v10009 = vunpack.c.h.b16 %v9621
  %v10010 = vpack.c.b16 %v9758, %v9754
  %v10011 = vpack.c.b16 %v9759, %v9755
  %v10012 = vpack.c.b16 %v9760, %v9756
  %v10013 = vpack.c.b16 %v9761, %v9757
  %v10014 = vpack.c.b16 %v9766, %v9762
  %v10015 = vpack.c.b16 %v9767, %v9763
  %v10016 = vpack.c.b16 %v9768, %v9764
  %v10017 = vpack.c.b16 %v9769, %v9765
  %v10018 = vpack.c.b16 %v9774, %v9770
  %v10019 = vpack.c.b16 %v9775, %v9771
  %v10020 = vpack.c.b16 %v9776, %v9772
  %v10021 = vpack.c.b16 %v9777, %v9773
  %v10022 = vpack.c.b16 %v9782, %v9778
  %v10023 = vpack.c.b16 %v9783, %v9779
  %v10024 = vpack.c.b16 %v9784, %v9780
  %v10025 = vpack.c.b16 %v9785, %v9781
  %v10026 = vpack.c.b16 %v9790, %v9786
  %v10027 = vpack.c.b16 %v9791, %v9787
  %v10028 = vpack.c.b16 %v9792, %v9788
  %v10029 = vpack.c.b16 %v9793, %v9789
  %v10030 = vpack.c.b16 %v9798, %v9794
  %v10031 = vpack.c.b16 %v9799, %v9795
  %v10032 = vpack.c.b16 %v9800, %v9796
  %v10033 = vpack.c.b16 %v9801, %v9797
  %v10034 = vpack.c.b16 %v9806, %v9802
  %v10035 = vpack.c.b16 %v9807, %v9803
  %v10036 = vpack.c.b16 %v9808, %v9804
  %v10037 = vpack.c.b16 %v9809, %v9805
  %v10038 = vpack.c.b16 %v9814, %v9810
  %v10039 = vpack.c.b16 %v9815, %v9811
  %v10040 = vpack.c.b16 %v9816, %v9812
  %v10041 = vpack.c.b16 %v9817, %v9813
  %v10042 = vpack.c.b16 %v9822, %v9818
  %v10043 = vpack.c.b16 %v9823, %v9819
  %v10044 = vpack.c.b16 %v9824, %v9820
  %v10045 = vpack.c.b16 %v9825, %v9821
  %v10046 = vpack.c.b16 %v9830, %v9826
  %v10047 = vpack.c.b16 %v9831, %v9827
  %v10048 = vpack.c.b16 %v9832, %v9828
  %v10049 = vpack.c.b16 %v9833, %v9829
  %v10050 = vpack.c.b16 %v9838, %v9834
  %v10051 = vpack.c.b16 %v9839, %v9835
  %v10052 = vpack.c.b16 %v9840, %v9836
  %v10053 = vpack.c.b16 %v9841, %v9837
  %v10054 = vpack.c.b16 %v9846, %v9842
  %v10055 = vpack.c.b16 %v9847, %v9843
  %v10056 = vpack.c.b16 %v9848, %v9844
  %v10057 = vpack.c.b16 %v9849, %v9845
  %v10058 = vpack.c.b16 %v9854, %v9850
  %v10059 = vpack.c.b16 %v9855, %v9851
  %v10060 = vpack.c.b16 %v9856, %v9852
  %v10061 = vpack.c.b16 %v9857, %v9853
  %v10062 = vpack.c.b16 %v9862, %v9858
  %v10063 = vpack.c.b16 %v9863, %v9859
  %v10064 = vpack.c.b16 %v9864, %v9860
  %v10065 = vpack.c.b16 %v9865, %v9861
  %v10066 = vpack.c.b16 %v9870, %v9866
  %v10067 = vpack.c.b16 %v9871, %v9867
  %v10068 = vpack.c.b16 %v9872, %v9868
  %v10069 = vpack.c.b16 %v9873, %v9869
  %v10070 = vpack.c.b16 %v9878, %v9874
  %v10071 = vpack.c.b16 %v9879, %v9875
  %v10072 = vpack.c.b16 %v9880, %v9876
  %v10073 = vpack.c.b16 %v9881, %v9877
  %v10074 = vpack.c.b16 %v9886, %v9882
  %v10075 = vpack.c.b16 %v9887, %v9883
  %v10076 = vpack.c.b16 %v9888, %v9884
  %v10077 = vpack.c.b16 %v9889, %v9885
  %v10078 = vpack.c.b16 %v9894, %v9890
  %v10079 = vpack.c.b16 %v9895, %v9891
  %v10080 = vpack.c.b16 %v9896, %v9892
  %v10081 = vpack.c.b16 %v9897, %v9893
  %v10082 = vpack.c.b16 %v9902, %v9898
  %v10083 = vpack.c.b16 %v9903, %v9899
  %v10084 = vpack.c.b16 %v9904, %v9900
  %v10085 = vpack.c.b16 %v9905, %v9901
  %v10086 = vpack.c.b16 %v9910, %v9906
  %v10087 = vpack.c.b16 %v9911, %v9907
  %v10088 = vpack.c.b16 %v9912, %v9908
  %v10089 = vpack.c.b16 %v9913, %v9909
  %v10090 = vpack.c.b16 %v9918, %v9914
  %v10091 = vpack.c.b16 %v9919, %v9915
  %v10092 = vpack.c.b16 %v9920, %v9916
  %v10093 = vpack.c.b16 %v9921, %v9917
  %v10094 = vpack.c.b16 %v9926, %v9922
  %v10095 = vpack.c.b16 %v9927, %v9923
  %v10096 = vpack.c.b16 %v9928, %v9924
  %v10097 = vpack.c.b16 %v9929, %v9925
  %v10098 = vpack.c.b16 %v9934, %v9930
  %v10099 = vpack.c.b16 %v9935, %v9931
  %v10100 = vpack.c.b16 %v9936, %v9932
  %v10101 = vpack.c.b16 %v9937, %v9933
  %v10102 = vpack.c.b16 %v9942, %v9938
  %v10103 = vpack.c.b16 %v9943, %v9939
  %v10104 = vpack.c.b16 %v9944, %v9940
  %v10105 = vpack.c.b16 %v9945, %v9941
  %v10106 = vpack.c.b16 %v9950, %v9946
  %v10107 = vpack.c.b16 %v9951, %v9947
  %v10108 = vpack.c.b16 %v9952, %v9948
  %v10109 = vpack.c.b16 %v9953, %v9949
  %v10110 = vpack.c.b16 %v9958, %v9954
  %v10111 = vpack.c.b16 %v9959, %v9955
  %v10112 = vpack.c.b16 %v9960, %v9956
  %v10113 = vpack.c.b16 %v9961, %v9957
  %v10114 = vpack.c.b16 %v9966, %v9962
  %v10115 = vpack.c.b16 %v9967, %v9963
  %v10116 = vpack.c.b16 %v9968, %v9964
  %v10117 = vpack.c.b16 %v9969, %v9965
  %v10118 = vpack.c.b16 %v9974, %v9970
  %v10119 = vpack.c.b16 %v9975, %v9971
  %v10120 = vpack.c.b16 %v9976, %v9972
  %v10121 = vpack.c.b16 %v9977, %v9973
  %v10122 = vpack.c.b16 %v9982, %v9978
  %v10123 = vpack.c.b16 %v9983, %v9979
  %v10124 = vpack.c.b16 %v9984, %v9980
  %v10125 = vpack.c.b16 %v9985, %v9981
  %v10126 = vpack.c.b16 %v9990, %v9986
  %v10127 = vpack.c.b16 %v9991, %v9987
  %v10128 = vpack.c.b16 %v9992, %v9988
  %v10129 = vpack.c.b16 %v9993, %v9989
  %v10130 = vpack.c.b16 %v9998, %v9994
  %v10131 = vpack.c.b16 %v9999, %v9995
  %v10132 = vpack.c.b16 %v10000, %v9996
  %v10133 = vpack.c.b16 %v10001, %v9997
  %v10134 = vpack.c.b16 %v10006, %v10002
  %v10135 = vpack.c.b16 %v10007, %v10003
  %v10136 = vpack.c.b16 %v10008, %v10004
  %v10137 = vpack.c.b16 %v10009, %v10005
  %10266 = vmatprep.subr.bf16.mxu0 %v10011
  %10267 = vmatpush1.bf16.msra.mxu0 %v10010
  %10268 = vmatprep.subr.bf16.mxu0 %v10015
  %10269 = vmatpush1.bf16.msra.mxu0 %v10014
  %10270 = vmatprep.subr.bf16.mxu0 %v10019
  %10271 = vmatpush1.bf16.msra.mxu0 %v10018
  %10272 = vmatprep.subr.bf16.mxu0 %v10023
  %10273 = vmatpush1.bf16.msra.mxu0 %v10022
  %10274 = vmatprep.subr.bf16.mxu0 %v10027
  %10275 = vmatpush1.bf16.msra.mxu0 %v10026
  %10276 = vmatprep.subr.bf16.mxu0 %v10031
  %10277 = vmatpush1.bf16.msra.mxu0 %v10030
  %10278 = vmatprep.subr.bf16.mxu0 %v10035
  %10279 = vmatpush1.bf16.msra.mxu0 %v10034
  %10280 = vmatprep.subr.bf16.mxu0 %v10039
  %10281 = vmatpush1.bf16.msra.mxu0 %v10038
  %10282 = vmatprep.subr.bf16.mxu0 %v10043
  %10283 = vmatpush1.bf16.msra.mxu0 %v10042
  %10284 = vmatprep.subr.bf16.mxu0 %v10047
  %10285 = vmatpush1.bf16.msra.mxu0 %v10046
  %10286 = vmatprep.subr.bf16.mxu0 %v10051
  %10287 = vmatpush1.bf16.msra.mxu0 %v10050
  %10288 = vmatprep.subr.bf16.mxu0 %v10055
  %10289 = vmatpush1.bf16.msra.mxu0 %v10054
  %10290 = vmatprep.subr.bf16.mxu0 %v10059
  %10291 = vmatpush1.bf16.msra.mxu0 %v10058
  %10292 = vmatprep.subr.bf16.mxu0 %v10063
  %10293 = vmatpush1.bf16.msra.mxu0 %v10062
  %10294 = vmatprep.subr.bf16.mxu0 %v10067
  %10295 = vmatpush1.bf16.msra.mxu0 %v10066
  %10296 = vmatprep.subr.bf16.mxu0 %v10071
  %10297 = vmatpush1.bf16.msra.mxu0 %v10070
  %10298 = vmatprep.mubr.bf16.mxu0 %v9623
  %10299 = vmatmul.mubr.bf16.gmra.mrb[0].mxu0 %v9622
  %v10300 = vpop.f32.mrb[0].mxu0
  %v10301 = vadd.f32 0.0, %v10300
  %v10302 = vpop.f32.mrb[0].mxu0
  %v10303 = vadd.f32 0.0, %v10302
  %v10304 = vpop.f32.mrb[0].mxu0
  %v10305 = vpop.f32.mrb[0].mxu0
  %10306 = vdwg.mxu0
  %10307 = vmatprep.subr.bf16.mxu0 %v10075
  %10308 = vmatpush1.bf16.msra.mxu0 %v10074
  %10309 = vmatprep.subr.bf16.mxu0 %v10079
  %10310 = vmatpush1.bf16.msra.mxu0 %v10078
  %10311 = vmatprep.subr.bf16.mxu0 %v10083
  %10312 = vmatpush1.bf16.msra.mxu0 %v10082
  %10313 = vmatprep.subr.bf16.mxu0 %v10087
  %10314 = vmatpush1.bf16.msra.mxu0 %v10086
  %10315 = vmatprep.subr.bf16.mxu0 %v10091
  %10316 = vmatpush1.bf16.msra.mxu0 %v10090
  %10317 = vmatprep.subr.bf16.mxu0 %v10095
  %10318 = vmatpush1.bf16.msra.mxu0 %v10094
  %10319 = vmatprep.subr.bf16.mxu0 %v10099
  %10320 = vmatpush1.bf16.msra.mxu0 %v10098
  %10321 = vmatprep.subr.bf16.mxu0 %v10103
  %10322 = vmatpush1.bf16.msra.mxu0 %v10102
  %10323 = vmatprep.subr.bf16.mxu0 %v10107
  %10324 = vmatpush1.bf16.msra.mxu0 %v10106
  %10325 = vmatprep.subr.bf16.mxu0 %v10111
  %10326 = vmatpush1.bf16.msra.mxu0 %v10110
  %10327 = vmatprep.subr.bf16.mxu0 %v10115
  %10328 = vmatpush1.bf16.msra.mxu0 %v10114
  %10329 = vmatprep.subr.bf16.mxu0 %v10119
  %10330 = vmatpush1.bf16.msra.mxu0 %v10118
  %10331 = vmatprep.subr.bf16.mxu0 %v10123
  %10332 = vmatpush1.bf16.msra.mxu0 %v10122
  %10333 = vmatprep.subr.bf16.mxu0 %v10127
  %10334 = vmatpush1.bf16.msra.mxu0 %v10126
  %10335 = vmatprep.subr.bf16.mxu0 %v10131
  %10336 = vmatpush1.bf16.msra.mxu0 %v10130
  %10337 = vmatprep.subr.bf16.mxu0 %v10135
  %10338 = vmatpush1.bf16.msra.mxu0 %v10134
  %10339 = vmatprep.mubr.bf16.mxu0 %v9625
  %10340 = vmatmul.mubr.bf16.gmra.mrb[0].mxu0 %v9624
  %v10341 = vpop.f32.mrb[0].mxu0
  %v10342 = vadd.f32 %v10301, %v10341
  %v10343 = vpop.f32.mrb[0].mxu0
  %v10344 = vadd.f32 %v10303, %v10343
  %v10345 = vpop.f32.mrb[0].mxu0
  %v10346 = vpop.f32.mrb[0].mxu0
  %10347 = vdwg.mxu0
  %10348 = vmatprep.subr.bf16.mxu0 %v10013
  %10349 = vmatpush1.bf16.msra.mxu0 %v10012
  %10350 = vmatprep.subr.bf16.mxu0 %v10017
  %10351 = vmatpush1.bf16.msra.mxu0 %v10016
  %10352 = vmatprep.subr.bf16.mxu0 %v10021
  %10353 = vmatpush1.bf16.msra.mxu0 %v10020
  %10354 = vmatprep.subr.bf16.mxu0 %v10025
  %10355 = vmatpush1.bf16.msra.mxu0 %v10024
  %10356 = vmatprep.subr.bf16.mxu0 %v10029
  %10357 = vmatpush1.bf16.msra.mxu0 %v10028
  %10358 = vmatprep.subr.bf16.mxu0 %v10033
  %10359 = vmatpush1.bf16.msra.mxu0 %v10032
  %10360 = vmatprep.subr.bf16.mxu0 %v10037
  %10361 = vmatpush1.bf16.msra.mxu0 %v10036
  %10362 = vmatprep.subr.bf16.mxu0 %v10041
  %10363 = vmatpush1.bf16.msra.mxu0 %v10040
  %10364 = vmatprep.subr.bf16.mxu0 %v10045
  %10365 = vmatpush1.bf16.msra.mxu0 %v10044
  %10366 = vmatprep.subr.bf16.mxu0 %v10049
  %10367 = vmatpush1.bf16.msra.mxu0 %v10048
  %10368 = vmatprep.subr.bf16.mxu0 %v10053
  %10369 = vmatpush1.bf16.msra.mxu0 %v10052
  %10370 = vmatprep.subr.bf16.mxu0 %v10057
  %10371 = vmatpush1.bf16.msra.mxu0 %v10056
  %10372 = vmatprep.subr.bf16.mxu0 %v10061
  %10373 = vmatpush1.bf16.msra.mxu0 %v10060
  %10374 = vmatprep.subr.bf16.mxu0 %v10065
  %10375 = vmatpush1.bf16.msra.mxu0 %v10064
  %10376 = vmatprep.subr.bf16.mxu0 %v10069
  %10377 = vmatpush1.bf16.msra.mxu0 %v10068
  %10378 = vmatprep.subr.bf16.mxu0 %v10073
  %10379 = vmatpush1.bf16.msra.mxu0 %v10072
  %10380 = vmatprep.mubr.bf16.mxu0 %v9623
  %10381 = vmatmul.mubr.bf16.gmra.mrb[0].mxu0 %v9622
  %v10382 = vpop.f32.mrb[0].mxu0
  %v10383 = vadd.f32 0.0, %v10382
  %v10384 = vpop.f32.mrb[0].mxu0
  %v10385 = vadd.f32 0.0, %v10384
  %v10386 = vpop.f32.mrb[0].mxu0
  %v10387 = vpop.f32.mrb[0].mxu0
  %10388 = vdwg.mxu0
  %10389 = vmatprep.subr.bf16.mxu0 %v10077
  %10390 = vmatpush1.bf16.msra.mxu0 %v10076
  %10391 = vmatprep.subr.bf16.mxu0 %v10081
  %10392 = vmatpush1.bf16.msra.mxu0 %v10080
  %10393 = vmatprep.subr.bf16.mxu0 %v10085
  %10394 = vmatpush1.bf16.msra.mxu0 %v10084
  %10395 = vmatprep.subr.bf16.mxu0 %v10089
  %10396 = vmatpush1.bf16.msra.mxu0 %v10088
  %10397 = vmatprep.subr.bf16.mxu0 %v10093
  %10398 = vmatpush1.bf16.msra.mxu0 %v10092
  %10399 = vmatprep.subr.bf16.mxu0 %v10097
  %10400 = vmatpush1.bf16.msra.mxu0 %v10096
  %10401 = vmatprep.subr.bf16.mxu0 %v10101
  %10402 = vmatpush1.bf16.msra.mxu0 %v10100
  %10403 = vmatprep.subr.bf16.mxu0 %v10105
  %10404 = vmatpush1.bf16.msra.mxu0 %v10104
  %10405 = vmatprep.subr.bf16.mxu0 %v10109
  %10406 = vmatpush1.bf16.msra.mxu0 %v10108
  %10407 = vmatprep.subr.bf16.mxu0 %v10113
  %10408 = vmatpush1.bf16.msra.mxu0 %v10112
  %10409 = vmatprep.subr.bf16.mxu0 %v10117
  %10410 = vmatpush1.bf16.msra.mxu0 %v10116
  %10411 = vmatprep.subr.bf16.mxu0 %v10121
  %10412 = vmatpush1.bf16.msra.mxu0 %v10120
  %10413 = vmatprep.subr.bf16.mxu0 %v10125
  %10414 = vmatpush1.bf16.msra.mxu0 %v10124
  %10415 = vmatprep.subr.bf16.mxu0 %v10129
  %10416 = vmatpush1.bf16.msra.mxu0 %v10128
  %10417 = vmatprep.subr.bf16.mxu0 %v10133
  %10418 = vmatpush1.bf16.msra.mxu0 %v10132
  %10419 = vmatprep.subr.bf16.mxu0 %v10137
  %10420 = vmatpush1.bf16.msra.mxu0 %v10136
  %10421 = vmatprep.mubr.bf16.mxu0 %v9625
  %10422 = vmatmul.mubr.bf16.gmra.mrb[0].mxu0 %v9624
  %v10423 = vpop.f32.mrb[0].mxu0
  %v10424 = vadd.f32 %v10383, %v10423
  %v10425 = vpop.f32.mrb[0].mxu0
  %v10426 = vadd.f32 %v10385, %v10425
  %v10427 = vpop.f32.mrb[0].mxu0
  %v10428 = vpop.f32.mrb[0].mxu0
  %10429 = vdwg.mxu0
  %v10430 = vrot.slane %v10342, 4
  %v10431 = vadd.f32 %v10342, %v10430
  %v10432 = vrot.slane %v10431, 2
  %v10433 = vadd.f32 %v10431, %v10432
  %v10434 = vrot.slane %v10433, 1
  %v10435 = vadd.f32 %v10433, %v10434
  %v10436 = vrot.slane %v10344, 4
  %v10437 = vadd.f32 %v10344, %v10436
  %v10438 = vrot.slane %v10437, 2
  %v10439 = vadd.f32 %v10437, %v10438
  %v10440 = vrot.slane %v10439, 1
  %v10441 = vadd.f32 %v10439, %v10440
  %v10442 = vrot.slane %v10424, 4
  %v10443 = vadd.f32 %v10424, %v10442
  %v10444 = vrot.slane %v10443, 2
  %v10445 = vadd.f32 %v10443, %v10444
  %v10446 = vrot.slane %v10445, 1
  %v10447 = vadd.f32 %v10445, %v10446
  %v10448 = vrot.slane %v10426, 4
  %v10449 = vadd.f32 %v10426, %v10448
  %v10450 = vrot.slane %v10449, 2
  %v10451 = vadd.f32 %v10449, %v10450
  %v10452 = vrot.slane %v10451, 1
  %v10453 = vadd.f32 %v10451, %v10452
  %v10454 = vmul.f32 %v10342, %v10342
  %v10455 = vmul.f32 %v10344, %v10344
  %v10456 = vmul.f32 %v10424, %v10424
  %v10457 = vmul.f32 %v10426, %v10426
  %v10458 = vrot.slane %v10454, 4
  %v10459 = vadd.f32 %v10454, %v10458
  %v10460 = vrot.slane %v10459, 2
  %v10461 = vadd.f32 %v10459, %v10460
  %v10462 = vrot.slane %v10461, 1
  %v10463 = vadd.f32 %v10461, %v10462
  %v10464 = vrot.slane %v10455, 4
  %v10465 = vadd.f32 %v10455, %v10464
  %v10466 = vrot.slane %v10465, 2
  %v10467 = vadd.f32 %v10465, %v10466
  %v10468 = vrot.slane %v10467, 1
  %v10469 = vadd.f32 %v10467, %v10468
  %v10470 = vrot.slane %v10456, 4
  %v10471 = vadd.f32 %v10456, %v10470
  %v10472 = vrot.slane %v10471, 2
  %v10473 = vadd.f32 %v10471, %v10472
  %v10474 = vrot.slane %v10473, 1
  %v10475 = vadd.f32 %v10473, %v10474
  %v10476 = vrot.slane %v10457, 4
  %v10477 = vadd.f32 %v10457, %v10476
  %v10478 = vrot.slane %v10477, 2
  %v10479 = vadd.f32 %v10477, %v10478
  %v10480 = vrot.slane %v10479, 1
  %v10481 = vadd.f32 %v10479, %v10480
  %v10482 = vmul.f32 %v10435, 0.125
  %v10483 = vmul.f32 %v10441, 0.125
  %v10484 = vmul.f32 %v10447, 0.125
  %v10485 = vmul.f32 %v10453, 0.125
  %v10486 = vmul.f32 %v10463, 0.125
  %v10487 = vmul.f32 %v10469, 0.125
  %v10488 = vmul.f32 %v10475, 0.125
  %v10489 = vmul.f32 %v10481, 0.125
  %v10490 = vmul.f32 %v10482, %v10482
  %v10491 = vmul.f32 %v10483, %v10483
  %v10492 = vmul.f32 %v10484, %v10484
  %v10493 = vmul.f32 %v10485, %v10485
  %v10494 = vsub.f32 %v10486, %v10490
  %v10495 = vsub.f32 %v10487, %v10491
  %v10496 = vsub.f32 %v10488, %v10492
  %v10497 = vsub.f32 %v10489, %v10493
  %v10498 = vmax.f32 %v10494, 0.0
  %v10499 = vmax.f32 %v10495, 0.0
  %v10500 = vmax.f32 %v10496, 0.0
  %v10501 = vmax.f32 %v10497, 0.0
  %v10502 = vsub.f32 %v10342, %v10482
  %v10503 = vsub.f32 %v10344, %v10483
  %v10504 = vsub.f32 %v10424, %v10484
  %v10505 = vsub.f32 %v10426, %v10485
  %v10506 = vadd.f32 %v10498, 1e-05
  %v10507 = vadd.f32 %v10499, 1e-05
  %v10508 = vadd.f32 %v10500, 1e-05
  %v10509 = vadd.f32 %v10501, 1e-05
  %v10510 = vrsqrt.pop %v10506
  %v10511 = vrsqrt.pop %v10507
  %v10512 = vrsqrt.pop %v10508
  %v10513 = vrsqrt.pop %v10509
  %v10514 = vmul.f32 %v10502, %v10510
  %v10515 = vmul.f32 %v10503, %v10511
  %v10516 = vmul.f32 %v10504, %v10512
  %v10517 = vmul.f32 %v10505, %v10513
  %v10518 = vld [vmem:[%s2 + $0x32] sm:$0xf]
  %v10520 = vlaneseq
  %v10521 = vshrl.u32 %v10520, 7
  %v10522 = vsub.s32 0, %v10521
  %v10523 = vrot.slane %v10518, %v10522
  %v10524 = vlaneseq
  %v10525 = vshrl.u32 %v10524, 7
  %v10526 = vsub.s32 1, %v10525
  %v10527 = vrot.slane %v10518, %v10526
  %v10528 = vlaneseq
  %v10529 = vshrl.u32 %v10528, 7
  %v10530 = vsub.s32 2, %v10529
  %v10531 = vrot.slane %v10518, %v10530
  %v10532 = vlaneseq
  %v10533 = vshrl.u32 %v10532, 7
  %v10534 = vsub.s32 3, %v10533
  %v10535 = vrot.slane %v10518, %v10534
  %v10540 = vmul.f32 %v10514, %v10523
  %v10541 = vmul.f32 %v10515, %v10527
  %v10542 = vmul.f32 %v10516, %v10531
  %v10543 = vmul.f32 %v10517, %v10535
  %v10544 = vld [vmem:[%s2 + $0x36] sm:$0xf]
  %v10546 = vlaneseq
  %v10547 = vshrl.u32 %v10546, 7
  %v10548 = vsub.s32 0, %v10547
  %v10549 = vrot.slane %v10544, %v10548
  %v10550 = vlaneseq
  %v10551 = vshrl.u32 %v10550, 7
  %v10552 = vsub.s32 1, %v10551
  %v10553 = vrot.slane %v10544, %v10552
  %v10554 = vlaneseq
  %v10555 = vshrl.u32 %v10554, 7
  %v10556 = vsub.s32 2, %v10555
  %v10557 = vrot.slane %v10544, %v10556
  %v10558 = vlaneseq
  %v10559 = vshrl.u32 %v10558, 7
  %v10560 = vsub.s32 3, %v10559
  %v10561 = vrot.slane %v10544, %v10560
  %v10566 = vadd.f32 %v10540, %v10549
  %v10567 = vadd.f32 %v10541, %v10553
  %v10568 = vadd.f32 %v10542, %v10557
  %v10569 = vadd.f32 %v10543, %v10561
  %v10570 = vadd.f32 %v10566, %v8409
  %v10571 = vadd.f32 %v10567, %v8410
  %v10572 = vadd.f32 %v10568, %v8411
  %v10573 = vadd.f32 %v10569, %v8412
  %v10574 = vmax.f32 %v10570, 0.0
  %v10575 = vmax.f32 %v10571, 0.0
  %v10576 = vmax.f32 %v10572, 0.0
  %v10577 = vmax.f32 %v10573, 0.0
  %s10578 = scalar_lea.vmem %s9, 512
  %v10579 = vld [vmem:[%s10578] sm:$0xff]
  %v10580 = vld [vmem:[%s10578 + $0x8] sm:$0xff]
  %v10581 = vld [vmem:[%s10578 + $0x10] sm:$0xff]
  %v10582 = vld [vmem:[%s10578 + $0x18] sm:$0xff]
  %v10583 = vld [vmem:[%s10578 + $0x20] sm:$0xff]
  %v10584 = vld [vmem:[%s10578 + $0x28] sm:$0xff]
  %v10585 = vld [vmem:[%s10578 + $0x30] sm:$0xff]
  %v10586 = vld [vmem:[%s10578 + $0x38] sm:$0xff]
  %v10587 = vld [vmem:[%s10578 + $0x40] sm:$0xff]
  %v10588 = vld [vmem:[%s10578 + $0x48] sm:$0xff]
  %v10589 = vld [vmem:[%s10578 + $0x50] sm:$0xff]
  %v10590 = vld [vmem:[%s10578 + $0x58] sm:$0xff]
  %v10591 = vld [vmem:[%s10578 + $0x60] sm:$0xff]
  %v10592 = vld [vmem:[%s10578 + $0x68] sm:$0xff]
  %v10593 = vld [vmem:[%s10578 + $0x70] sm:$0xff]
  %v10594 = vld [vmem:[%s10578 + $0x78] sm:$0xff]
  %v10595 = vld [vmem:[%s10578 + $0x80] sm:$0xff]
  %v10596 = vld [vmem:[%s10578 + $0x88] sm:$0xff]
  %v10597 = vld [vmem:[%s10578 + $0x90] sm:$0xff]
  %v10598 = vld [vmem:[%s10578 + $0x98] sm:$0xff]
  %v10599 = vld [vmem:[%s10578 + $0xa0] sm:$0xff]
  %v10600 = vld [vmem:[%s10578 + $0xa8] sm:$0xff]
  %v10601 = vld [vmem:[%s10578 + $0xb0] sm:$0xff]
  %v10602 = vld [vmem:[%s10578 + $0xb8] sm:$0xff]
  %v10603 = vld [vmem:[%s10578 + $0xc0] sm:$0xff]
  %v10604 = vld [vmem:[%s10578 + $0xc8] sm:$0xff]
  %v10605 = vld [vmem:[%s10578 + $0xd0] sm:$0xff]
  %v10606 = vld [vmem:[%s10578 + $0xd8] sm:$0xff]
  %v10607 = vld [vmem:[%s10578 + $0xe0] sm:$0xff]
  %v10608 = vld [vmem:[%s10578 + $0xe8] sm:$0xff]
  %v10609 = vld [vmem:[%s10578 + $0xf0] sm:$0xff]
  %v10610 = vld [vmem:[%s10578 + $0xf8] sm:$0xff]
  %v10611 = vld [vmem:[%s10578 + $0x100] sm:$0xff]
  %v10612 = vld [vmem:[%s10578 + $0x108] sm:$0xff]
  %v10613 = vld [vmem:[%s10578 + $0x110] sm:$0xff]
  %v10614 = vld [vmem:[%s10578 + $0x118] sm:$0xff]
  %v10615 = vld [vmem:[%s10578 + $0x120] sm:$0xff]
  %v10616 = vld [vmem:[%s10578 + $0x128] sm:$0xff]
  %v10617 = vld [vmem:[%s10578 + $0x130] sm:$0xff]
  %v10618 = vld [vmem:[%s10578 + $0x138] sm:$0xff]
  %v10619 = vld [vmem:[%s10578 + $0x140] sm:$0xff]
  %v10620 = vld [vmem:[%s10578 + $0x148] sm:$0xff]
  %v10621 = vld [vmem:[%s10578 + $0x150] sm:$0xff]
  %v10622 = vld [vmem:[%s10578 + $0x158] sm:$0xff]
  %v10623 = vld [vmem:[%s10578 + $0x160] sm:$0xff]
  %v10624 = vld [vmem:[%s10578 + $0x168] sm:$0xff]
  %v10625 = vld [vmem:[%s10578 + $0x170] sm:$0xff]
  %v10626 = vld [vmem:[%s10578 + $0x178] sm:$0xff]
  %v10627 = vld [vmem:[%s10578 + $0x180] sm:$0xff]
  %v10628 = vld [vmem:[%s10578 + $0x188] sm:$0xff]
  %v10629 = vld [vmem:[%s10578 + $0x190] sm:$0xff]
  %v10630 = vld [vmem:[%s10578 + $0x198] sm:$0xff]
  %v10631 = vld [vmem:[%s10578 + $0x1a0] sm:$0xff]
  %v10632 = vld [vmem:[%s10578 + $0x1a8] sm:$0xff]
  %v10633 = vld [vmem:[%s10578 + $0x1b0] sm:$0xff]
  %v10634 = vld [vmem:[%s10578 + $0x1b8] sm:$0xff]
  %v10635 = vld [vmem:[%s10578 + $0x1c0] sm:$0xff]
  %v10636 = vld [vmem:[%s10578 + $0x1c8] sm:$0xff]
  %v10637 = vld [vmem:[%s10578 + $0x1d0] sm:$0xff]
  %v10638 = vld [vmem:[%s10578 + $0x1d8] sm:$0xff]
  %v10639 = vld [vmem:[%s10578 + $0x1e0] sm:$0xff]
  %v10640 = vld [vmem:[%s10578 + $0x1e8] sm:$0xff]
  %v10641 = vld [vmem:[%s10578 + $0x1f0] sm:$0xff]
  %v10642 = vld [vmem:[%s10578 + $0x1f8] sm:$0xff]
  %v10643 = vpack.c.bf16 %v10574, %v10574
  %v10644 = vpack.c.bf16 %v10575, %v10575
  %v10645 = vpack.c.bf16 %v10576, %v10576
  %v10646 = vpack.c.bf16 %v10577, %v10577
  %v10711 = vunpack.c.l.b16 %v10579
  %v10712 = vunpack.c.h.b16 %v10579
  %v10713 = vunpack.c.l.b16 %v10580
  %v10714 = vunpack.c.h.b16 %v10580
  %v10715 = vunpack.c.l.b16 %v10581
  %v10716 = vunpack.c.h.b16 %v10581
  %v10717 = vunpack.c.l.b16 %v10582
  %v10718 = vunpack.c.h.b16 %v10582
  %v10719 = vunpack.c.l.b16 %v10583
  %v10720 = vunpack.c.h.b16 %v10583
  %v10721 = vunpack.c.l.b16 %v10584
  %v10722 = vunpack.c.h.b16 %v10584
  %v10723 = vunpack.c.l.b16 %v10585
  %v10724 = vunpack.c.h.b16 %v10585
  %v10725 = vunpack.c.l.b16 %v10586
  %v10726 = vunpack.c.h.b16 %v10586
  %v10727 = vunpack.c.l.b16 %v10587
  %v10728 = vunpack.c.h.b16 %v10587
  %v10729 = vunpack.c.l.b16 %v10588
  %v10730 = vunpack.c.h.b16 %v10588
  %v10731 = vunpack.c.l.b16 %v10589
  %v10732 = vunpack.c.h.b16 %v10589
  %v10733 = vunpack.c.l.b16 %v10590
  %v10734 = vunpack.c.h.b16 %v10590
  %v10735 = vunpack.c.l.b16 %v10591
  %v10736 = vunpack.c.h.b16 %v10591
  %v10737 = vunpack.c.l.b16 %v10592
  %v10738 = vunpack.c.h.b16 %v10592
  %v10739 = vunpack.c.l.b16 %v10593
  %v10740 = vunpack.c.h.b16 %v10593
  %v10741 = vunpack.c.l.b16 %v10594
  %v10742 = vunpack.c.h.b16 %v10594
  %v10743 = vunpack.c.l.b16 %v10595
  %v10744 = vunpack.c.h.b16 %v10595
  %v10745 = vunpack.c.l.b16 %v10596
  %v10746 = vunpack.c.h.b16 %v10596
  %v10747 = vunpack.c.l.b16 %v10597
  %v10748 = vunpack.c.h.b16 %v10597
  %v10749 = vunpack.c.l.b16 %v10598
  %v10750 = vunpack.c.h.b16 %v10598
  %v10751 = vunpack.c.l.b16 %v10599
  %v10752 = vunpack.c.h.b16 %v10599
  %v10753 = vunpack.c.l.b16 %v10600
  %v10754 = vunpack.c.h.b16 %v10600
  %v10755 = vunpack.c.l.b16 %v10601
  %v10756 = vunpack.c.h.b16 %v10601
  %v10757 = vunpack.c.l.b16 %v10602
  %v10758 = vunpack.c.h.b16 %v10602
  %v10759 = vunpack.c.l.b16 %v10603
  %v10760 = vunpack.c.h.b16 %v10603
  %v10761 = vunpack.c.l.b16 %v10604
  %v10762 = vunpack.c.h.b16 %v10604
  %v10763 = vunpack.c.l.b16 %v10605
  %v10764 = vunpack.c.h.b16 %v10605
  %v10765 = vunpack.c.l.b16 %v10606
  %v10766 = vunpack.c.h.b16 %v10606
  %v10767 = vunpack.c.l.b16 %v10607
  %v10768 = vunpack.c.h.b16 %v10607
  %v10769 = vunpack.c.l.b16 %v10608
  %v10770 = vunpack.c.h.b16 %v10608
  %v10771 = vunpack.c.l.b16 %v10609
  %v10772 = vunpack.c.h.b16 %v10609
  %v10773 = vunpack.c.l.b16 %v10610
  %v10774 = vunpack.c.h.b16 %v10610
  %v10775 = vunpack.c.l.b16 %v10611
  %v10776 = vunpack.c.h.b16 %v10611
  %v10777 = vunpack.c.l.b16 %v10612
  %v10778 = vunpack.c.h.b16 %v10612
  %v10779 = vunpack.c.l.b16 %v10613
  %v10780 = vunpack.c.h.b16 %v10613
  %v10781 = vunpack.c.l.b16 %v10614
  %v10782 = vunpack.c.h.b16 %v10614
  %v10783 = vunpack.c.l.b16 %v10615
  %v10784 = vunpack.c.h.b16 %v10615
  %v10785 = vunpack.c.l.b16 %v10616
  %v10786 = vunpack.c.h.b16 %v10616
  %v10787 = vunpack.c.l.b16 %v10617
  %v10788 = vunpack.c.h.b16 %v10617
  %v10789 = vunpack.c.l.b16 %v10618
  %v10790 = vunpack.c.h.b16 %v10618
  %v10791 = vunpack.c.l.b16 %v10619
  %v10792 = vunpack.c.h.b16 %v10619
  %v10793 = vunpack.c.l.b16 %v10620
  %v10794 = vunpack.c.h.b16 %v10620
  %v10795 = vunpack.c.l.b16 %v10621
  %v10796 = vunpack.c.h.b16 %v10621
  %v10797 = vunpack.c.l.b16 %v10622
  %v10798 = vunpack.c.h.b16 %v10622
  %v10799 = vunpack.c.l.b16 %v10623
  %v10800 = vunpack.c.h.b16 %v10623
  %v10801 = vunpack.c.l.b16 %v10624
  %v10802 = vunpack.c.h.b16 %v10624
  %v10803 = vunpack.c.l.b16 %v10625
  %v10804 = vunpack.c.h.b16 %v10625
  %v10805 = vunpack.c.l.b16 %v10626
  %v10806 = vunpack.c.h.b16 %v10626
  %v10807 = vunpack.c.l.b16 %v10627
  %v10808 = vunpack.c.h.b16 %v10627
  %v10809 = vunpack.c.l.b16 %v10628
  %v10810 = vunpack.c.h.b16 %v10628
  %v10811 = vunpack.c.l.b16 %v10629
  %v10812 = vunpack.c.h.b16 %v10629
  %v10813 = vunpack.c.l.b16 %v10630
  %v10814 = vunpack.c.h.b16 %v10630
  %v10815 = vunpack.c.l.b16 %v10631
  %v10816 = vunpack.c.h.b16 %v10631
  %v10817 = vunpack.c.l.b16 %v10632
  %v10818 = vunpack.c.h.b16 %v10632
  %v10819 = vunpack.c.l.b16 %v10633
  %v10820 = vunpack.c.h.b16 %v10633
  %v10821 = vunpack.c.l.b16 %v10634
  %v10822 = vunpack.c.h.b16 %v10634
  %v10823 = vunpack.c.l.b16 %v10635
  %v10824 = vunpack.c.h.b16 %v10635
  %v10825 = vunpack.c.l.b16 %v10636
  %v10826 = vunpack.c.h.b16 %v10636
  %v10827 = vunpack.c.l.b16 %v10637
  %v10828 = vunpack.c.h.b16 %v10637
  %v10829 = vunpack.c.l.b16 %v10638
  %v10830 = vunpack.c.h.b16 %v10638
  %v10831 = vunpack.c.l.b16 %v10639
  %v10832 = vunpack.c.h.b16 %v10639
  %v10833 = vunpack.c.l.b16 %v10640
  %v10834 = vunpack.c.h.b16 %v10640
  %v10835 = vunpack.c.l.b16 %v10641
  %v10836 = vunpack.c.h.b16 %v10641
  %v10837 = vunpack.c.l.b16 %v10642
  %v10838 = vunpack.c.h.b16 %v10642
  %v10839 = vpack.c.b16 %v10713, %v10711
  %v10840 = vpack.c.b16 %v10714, %v10712
  %v10841 = vpack.c.b16 %v10717, %v10715
  %v10842 = vpack.c.b16 %v10718, %v10716
  %v10843 = vpack.c.b16 %v10721, %v10719
  %v10844 = vpack.c.b16 %v10722, %v10720
  %v10845 = vpack.c.b16 %v10725, %v10723
  %v10846 = vpack.c.b16 %v10726, %v10724
  %v10847 = vpack.c.b16 %v10729, %v10727
  %v10848 = vpack.c.b16 %v10730, %v10728
  %v10849 = vpack.c.b16 %v10733, %v10731
  %v10850 = vpack.c.b16 %v10734, %v10732
  %v10851 = vpack.c.b16 %v10737, %v10735
  %v10852 = vpack.c.b16 %v10738, %v10736
  %v10853 = vpack.c.b16 %v10741, %v10739
  %v10854 = vpack.c.b16 %v10742, %v10740
  %v10855 = vpack.c.b16 %v10745, %v10743
  %v10856 = vpack.c.b16 %v10746, %v10744
  %v10857 = vpack.c.b16 %v10749, %v10747
  %v10858 = vpack.c.b16 %v10750, %v10748
  %v10859 = vpack.c.b16 %v10753, %v10751
  %v10860 = vpack.c.b16 %v10754, %v10752
  %v10861 = vpack.c.b16 %v10757, %v10755
  %v10862 = vpack.c.b16 %v10758, %v10756
  %v10863 = vpack.c.b16 %v10761, %v10759
  %v10864 = vpack.c.b16 %v10762, %v10760
  %v10865 = vpack.c.b16 %v10765, %v10763
  %v10866 = vpack.c.b16 %v10766, %v10764
  %v10867 = vpack.c.b16 %v10769, %v10767
  %v10868 = vpack.c.b16 %v10770, %v10768
  %v10869 = vpack.c.b16 %v10773, %v10771
  %v10870 = vpack.c.b16 %v10774, %v10772
  %v10871 = vpack.c.b16 %v10777, %v10775
  %v10872 = vpack.c.b16 %v10778, %v10776
  %v10873 = vpack.c.b16 %v10781, %v10779
  %v10874 = vpack.c.b16 %v10782, %v10780
  %v10875 = vpack.c.b16 %v10785, %v10783
  %v10876 = vpack.c.b16 %v10786, %v10784
  %v10877 = vpack.c.b16 %v10789, %v10787
  %v10878 = vpack.c.b16 %v10790, %v10788
  %v10879 = vpack.c.b16 %v10793, %v10791
  %v10880 = vpack.c.b16 %v10794, %v10792
  %v10881 = vpack.c.b16 %v10797, %v10795
  %v10882 = vpack.c.b16 %v10798, %v10796
  %v10883 = vpack.c.b16 %v10801, %v10799
  %v10884 = vpack.c.b16 %v10802, %v10800
  %v10885 = vpack.c.b16 %v10805, %v10803
  %v10886 = vpack.c.b16 %v10806, %v10804
  %v10887 = vpack.c.b16 %v10809, %v10807
  %v10888 = vpack.c.b16 %v10810, %v10808
  %v10889 = vpack.c.b16 %v10813, %v10811
  %v10890 = vpack.c.b16 %v10814, %v10812
  %v10891 = vpack.c.b16 %v10817, %v10815
  %v10892 = vpack.c.b16 %v10818, %v10816
  %v10893 = vpack.c.b16 %v10821, %v10819
  %v10894 = vpack.c.b16 %v10822, %v10820
  %v10895 = vpack.c.b16 %v10825, %v10823
  %v10896 = vpack.c.b16 %v10826, %v10824
  %v10897 = vpack.c.b16 %v10829, %v10827
  %v10898 = vpack.c.b16 %v10830, %v10828
  %v10899 = vpack.c.b16 %v10833, %v10831
  %v10900 = vpack.c.b16 %v10834, %v10832
  %v10901 = vpack.c.b16 %v10837, %v10835
  %v10902 = vpack.c.b16 %v10838, %v10836
  %10967 = vmatprep.subr.bf16.mxu0 %v10840
  %10968 = vmatpush1.bf16.msra.mxu0 %v10839
  %10969 = vmatprep.subr.bf16.mxu0 %v10842
  %10970 = vmatpush1.bf16.msra.mxu0 %v10841
  %10971 = vmatprep.subr.bf16.mxu0 %v10844
  %10972 = vmatpush1.bf16.msra.mxu0 %v10843
  %10973 = vmatprep.subr.bf16.mxu0 %v10846
  %10974 = vmatpush1.bf16.msra.mxu0 %v10845
  %10975 = vmatprep.subr.bf16.mxu0 %v10848
  %10976 = vmatpush1.bf16.msra.mxu0 %v10847
  %10977 = vmatprep.subr.bf16.mxu0 %v10850
  %10978 = vmatpush1.bf16.msra.mxu0 %v10849
  %10979 = vmatprep.subr.bf16.mxu0 %v10852
  %10980 = vmatpush1.bf16.msra.mxu0 %v10851
  %10981 = vmatprep.subr.bf16.mxu0 %v10854
  %10982 = vmatpush1.bf16.msra.mxu0 %v10853
  %10983 = vmatprep.subr.bf16.mxu0 %v10856
  %10984 = vmatpush1.bf16.msra.mxu0 %v10855
  %10985 = vmatprep.subr.bf16.mxu0 %v10858
  %10986 = vmatpush1.bf16.msra.mxu0 %v10857
  %10987 = vmatprep.subr.bf16.mxu0 %v10860
  %10988 = vmatpush1.bf16.msra.mxu0 %v10859
  %10989 = vmatprep.subr.bf16.mxu0 %v10862
  %10990 = vmatpush1.bf16.msra.mxu0 %v10861
  %10991 = vmatprep.subr.bf16.mxu0 %v10864
  %10992 = vmatpush1.bf16.msra.mxu0 %v10863
  %10993 = vmatprep.subr.bf16.mxu0 %v10866
  %10994 = vmatpush1.bf16.msra.mxu0 %v10865
  %10995 = vmatprep.subr.bf16.mxu0 %v10868
  %10996 = vmatpush1.bf16.msra.mxu0 %v10867
  %10997 = vmatprep.subr.bf16.mxu0 %v10870
  %10998 = vmatpush1.bf16.msra.mxu0 %v10869
  %10999 = vmatprep.mubr.bf16.mxu0 %v10644
  %11000 = vmatmul.mubr.bf16.gmra.mrb[0].mxu0 %v10643
  %v11001 = vpop.f32.mrb[0].mxu0
  %v11002 = vadd.f32 0.0, %v11001
  %v11003 = vpop.f32.mrb[0].mxu0
  %v11004 = vadd.f32 0.0, %v11003
  %v11005 = vpop.f32.mrb[0].mxu0
  %v11006 = vpop.f32.mrb[0].mxu0
  %11007 = vdwg.mxu0
  %11008 = vmatprep.subr.bf16.mxu0 %v10872
  %11009 = vmatpush1.bf16.msra.mxu0 %v10871
  %11010 = vmatprep.subr.bf16.mxu0 %v10874
  %11011 = vmatpush1.bf16.msra.mxu0 %v10873
  %11012 = vmatprep.subr.bf16.mxu0 %v10876
  %11013 = vmatpush1.bf16.msra.mxu0 %v10875
  %11014 = vmatprep.subr.bf16.mxu0 %v10878
  %11015 = vmatpush1.bf16.msra.mxu0 %v10877
  %11016 = vmatprep.subr.bf16.mxu0 %v10880
  %11017 = vmatpush1.bf16.msra.mxu0 %v10879
  %11018 = vmatprep.subr.bf16.mxu0 %v10882
  %11019 = vmatpush1.bf16.msra.mxu0 %v10881
  %11020 = vmatprep.subr.bf16.mxu0 %v10884
  %11021 = vmatpush1.bf16.msra.mxu0 %v10883
  %11022 = vmatprep.subr.bf16.mxu0 %v10886
  %11023 = vmatpush1.bf16.msra.mxu0 %v10885
  %11024 = vmatprep.subr.bf16.mxu0 %v10888
  %11025 = vmatpush1.bf16.msra.mxu0 %v10887
  %11026 = vmatprep.subr.bf16.mxu0 %v10890
  %11027 = vmatpush1.bf16.msra.mxu0 %v10889
  %11028 = vmatprep.subr.bf16.mxu0 %v10892
  %11029 = vmatpush1.bf16.msra.mxu0 %v10891
  %11030 = vmatprep.subr.bf16.mxu0 %v10894
  %11031 = vmatpush1.bf16.msra.mxu0 %v10893
  %11032 = vmatprep.subr.bf16.mxu0 %v10896
  %11033 = vmatpush1.bf16.msra.mxu0 %v10895
  %11034 = vmatprep.subr.bf16.mxu0 %v10898
  %11035 = vmatpush1.bf16.msra.mxu0 %v10897
  %11036 = vmatprep.subr.bf16.mxu0 %v10900
  %11037 = vmatpush1.bf16.msra.mxu0 %v10899
  %11038 = vmatprep.subr.bf16.mxu0 %v10902
  %11039 = vmatpush1.bf16.msra.mxu0 %v10901
  %11040 = vmatprep.mubr.bf16.mxu0 %v10646
  %11041 = vmatmul.mubr.bf16.gmra.mrb[0].mxu0 %v10645
  %v11042 = vpop.f32.mrb[0].mxu0
  %v11043 = vadd.f32 %v11002, %v11042
  %v11044 = vpop.f32.mrb[0].mxu0
  %v11045 = vadd.f32 %v11004, %v11044
  %v11046 = vpop.f32.mrb[0].mxu0
  %v11047 = vpop.f32.mrb[0].mxu0
  %11048 = vdwg.mxu0
  %v11049 = vld [vmem:[%s9] sm:$0xff]
  %v11050 = vld [vmem:[%s9 + $0x8] sm:$0xff]
  %v11051 = vld [vmem:[%s9 + $0x10] sm:$0xff]
  %v11052 = vld [vmem:[%s9 + $0x18] sm:$0xff]
  %v11053 = vld [vmem:[%s9 + $0x20] sm:$0xff]
  %v11054 = vld [vmem:[%s9 + $0x28] sm:$0xff]
  %v11055 = vld [vmem:[%s9 + $0x30] sm:$0xff]
  %v11056 = vld [vmem:[%s9 + $0x38] sm:$0xff]
  %v11057 = vld [vmem:[%s9 + $0x40] sm:$0xff]
  %v11058 = vld [vmem:[%s9 + $0x48] sm:$0xff]
  %v11059 = vld [vmem:[%s9 + $0x50] sm:$0xff]
  %v11060 = vld [vmem:[%s9 + $0x58] sm:$0xff]
  %v11061 = vld [vmem:[%s9 + $0x60] sm:$0xff]
  %v11062 = vld [vmem:[%s9 + $0x68] sm:$0xff]
  %v11063 = vld [vmem:[%s9 + $0x70] sm:$0xff]
  %v11064 = vld [vmem:[%s9 + $0x78] sm:$0xff]
  %v11065 = vld [vmem:[%s9 + $0x80] sm:$0xff]
  %v11066 = vld [vmem:[%s9 + $0x88] sm:$0xff]
  %v11067 = vld [vmem:[%s9 + $0x90] sm:$0xff]
  %v11068 = vld [vmem:[%s9 + $0x98] sm:$0xff]
  %v11069 = vld [vmem:[%s9 + $0xa0] sm:$0xff]
  %v11070 = vld [vmem:[%s9 + $0xa8] sm:$0xff]
  %v11071 = vld [vmem:[%s9 + $0xb0] sm:$0xff]
  %v11072 = vld [vmem:[%s9 + $0xb8] sm:$0xff]
  %v11073 = vld [vmem:[%s9 + $0xc0] sm:$0xff]
  %v11074 = vld [vmem:[%s9 + $0xc8] sm:$0xff]
  %v11075 = vld [vmem:[%s9 + $0xd0] sm:$0xff]
  %v11076 = vld [vmem:[%s9 + $0xd8] sm:$0xff]
  %v11077 = vld [vmem:[%s9 + $0xe0] sm:$0xff]
  %v11078 = vld [vmem:[%s9 + $0xe8] sm:$0xff]
  %v11079 = vld [vmem:[%s9 + $0xf0] sm:$0xff]
  %v11080 = vld [vmem:[%s9 + $0xf8] sm:$0xff]
  %v11081 = vld [vmem:[%s9 + $0x100] sm:$0xff]
  %v11082 = vld [vmem:[%s9 + $0x108] sm:$0xff]
  %v11083 = vld [vmem:[%s9 + $0x110] sm:$0xff]
  %v11084 = vld [vmem:[%s9 + $0x118] sm:$0xff]
  %v11085 = vld [vmem:[%s9 + $0x120] sm:$0xff]
  %v11086 = vld [vmem:[%s9 + $0x128] sm:$0xff]
  %v11087 = vld [vmem:[%s9 + $0x130] sm:$0xff]
  %v11088 = vld [vmem:[%s9 + $0x138] sm:$0xff]
  %v11089 = vld [vmem:[%s9 + $0x140] sm:$0xff]
  %v11090 = vld [vmem:[%s9 + $0x148] sm:$0xff]
  %v11091 = vld [vmem:[%s9 + $0x150] sm:$0xff]
  %v11092 = vld [vmem:[%s9 + $0x158] sm:$0xff]
  %v11093 = vld [vmem:[%s9 + $0x160] sm:$0xff]
  %v11094 = vld [vmem:[%s9 + $0x168] sm:$0xff]
  %v11095 = vld [vmem:[%s9 + $0x170] sm:$0xff]
  %v11096 = vld [vmem:[%s9 + $0x178] sm:$0xff]
  %v11097 = vld [vmem:[%s9 + $0x180] sm:$0xff]
  %v11098 = vld [vmem:[%s9 + $0x188] sm:$0xff]
  %v11099 = vld [vmem:[%s9 + $0x190] sm:$0xff]
  %v11100 = vld [vmem:[%s9 + $0x198] sm:$0xff]
  %v11101 = vld [vmem:[%s9 + $0x1a0] sm:$0xff]
  %v11102 = vld [vmem:[%s9 + $0x1a8] sm:$0xff]
  %v11103 = vld [vmem:[%s9 + $0x1b0] sm:$0xff]
  %v11104 = vld [vmem:[%s9 + $0x1b8] sm:$0xff]
  %v11105 = vld [vmem:[%s9 + $0x1c0] sm:$0xff]
  %v11106 = vld [vmem:[%s9 + $0x1c8] sm:$0xff]
  %v11107 = vld [vmem:[%s9 + $0x1d0] sm:$0xff]
  %v11108 = vld [vmem:[%s9 + $0x1d8] sm:$0xff]
  %v11109 = vld [vmem:[%s9 + $0x1e0] sm:$0xff]
  %v11110 = vld [vmem:[%s9 + $0x1e8] sm:$0xff]
  %v11111 = vld [vmem:[%s9 + $0x1f0] sm:$0xff]
  %v11112 = vld [vmem:[%s9 + $0x1f8] sm:$0xff]
  %v11177 = vunpack.c.l.b16 %v11049
  %v11178 = vunpack.c.h.b16 %v11049
  %v11179 = vunpack.c.l.b16 %v11050
  %v11180 = vunpack.c.h.b16 %v11050
  %v11181 = vunpack.c.l.b16 %v11051
  %v11182 = vunpack.c.h.b16 %v11051
  %v11183 = vunpack.c.l.b16 %v11052
  %v11184 = vunpack.c.h.b16 %v11052
  %v11185 = vunpack.c.l.b16 %v11053
  %v11186 = vunpack.c.h.b16 %v11053
  %v11187 = vunpack.c.l.b16 %v11054
  %v11188 = vunpack.c.h.b16 %v11054
  %v11189 = vunpack.c.l.b16 %v11055
  %v11190 = vunpack.c.h.b16 %v11055
  %v11191 = vunpack.c.l.b16 %v11056
  %v11192 = vunpack.c.h.b16 %v11056
  %v11193 = vunpack.c.l.b16 %v11057
  %v11194 = vunpack.c.h.b16 %v11057
  %v11195 = vunpack.c.l.b16 %v11058
  %v11196 = vunpack.c.h.b16 %v11058
  %v11197 = vunpack.c.l.b16 %v11059
  %v11198 = vunpack.c.h.b16 %v11059
  %v11199 = vunpack.c.l.b16 %v11060
  %v11200 = vunpack.c.h.b16 %v11060
  %v11201 = vunpack.c.l.b16 %v11061
  %v11202 = vunpack.c.h.b16 %v11061
  %v11203 = vunpack.c.l.b16 %v11062
  %v11204 = vunpack.c.h.b16 %v11062
  %v11205 = vunpack.c.l.b16 %v11063
  %v11206 = vunpack.c.h.b16 %v11063
  %v11207 = vunpack.c.l.b16 %v11064
  %v11208 = vunpack.c.h.b16 %v11064
  %v11209 = vunpack.c.l.b16 %v11065
  %v11210 = vunpack.c.h.b16 %v11065
  %v11211 = vunpack.c.l.b16 %v11066
  %v11212 = vunpack.c.h.b16 %v11066
  %v11213 = vunpack.c.l.b16 %v11067
  %v11214 = vunpack.c.h.b16 %v11067
  %v11215 = vunpack.c.l.b16 %v11068
  %v11216 = vunpack.c.h.b16 %v11068
  %v11217 = vunpack.c.l.b16 %v11069
  %v11218 = vunpack.c.h.b16 %v11069
  %v11219 = vunpack.c.l.b16 %v11070
  %v11220 = vunpack.c.h.b16 %v11070
  %v11221 = vunpack.c.l.b16 %v11071
  %v11222 = vunpack.c.h.b16 %v11071
  %v11223 = vunpack.c.l.b16 %v11072
  %v11224 = vunpack.c.h.b16 %v11072
  %v11225 = vunpack.c.l.b16 %v11073
  %v11226 = vunpack.c.h.b16 %v11073
  %v11227 = vunpack.c.l.b16 %v11074
  %v11228 = vunpack.c.h.b16 %v11074
  %v11229 = vunpack.c.l.b16 %v11075
  %v11230 = vunpack.c.h.b16 %v11075
  %v11231 = vunpack.c.l.b16 %v11076
  %v11232 = vunpack.c.h.b16 %v11076
  %v11233 = vunpack.c.l.b16 %v11077
  %v11234 = vunpack.c.h.b16 %v11077
  %v11235 = vunpack.c.l.b16 %v11078
  %v11236 = vunpack.c.h.b16 %v11078
  %v11237 = vunpack.c.l.b16 %v11079
  %v11238 = vunpack.c.h.b16 %v11079
  %v11239 = vunpack.c.l.b16 %v11080
  %v11240 = vunpack.c.h.b16 %v11080
  %v11241 = vunpack.c.l.b16 %v11081
  %v11242 = vunpack.c.h.b16 %v11081
  %v11243 = vunpack.c.l.b16 %v11082
  %v11244 = vunpack.c.h.b16 %v11082
  %v11245 = vunpack.c.l.b16 %v11083
  %v11246 = vunpack.c.h.b16 %v11083
  %v11247 = vunpack.c.l.b16 %v11084
  %v11248 = vunpack.c.h.b16 %v11084
  %v11249 = vunpack.c.l.b16 %v11085
  %v11250 = vunpack.c.h.b16 %v11085
  %v11251 = vunpack.c.l.b16 %v11086
  %v11252 = vunpack.c.h.b16 %v11086
  %v11253 = vunpack.c.l.b16 %v11087
  %v11254 = vunpack.c.h.b16 %v11087
  %v11255 = vunpack.c.l.b16 %v11088
  %v11256 = vunpack.c.h.b16 %v11088
  %v11257 = vunpack.c.l.b16 %v11089
  %v11258 = vunpack.c.h.b16 %v11089
  %v11259 = vunpack.c.l.b16 %v11090
  %v11260 = vunpack.c.h.b16 %v11090
  %v11261 = vunpack.c.l.b16 %v11091
  %v11262 = vunpack.c.h.b16 %v11091
  %v11263 = vunpack.c.l.b16 %v11092
  %v11264 = vunpack.c.h.b16 %v11092
  %v11265 = vunpack.c.l.b16 %v11093
  %v11266 = vunpack.c.h.b16 %v11093
  %v11267 = vunpack.c.l.b16 %v11094
  %v11268 = vunpack.c.h.b16 %v11094
  %v11269 = vunpack.c.l.b16 %v11095
  %v11270 = vunpack.c.h.b16 %v11095
  %v11271 = vunpack.c.l.b16 %v11096
  %v11272 = vunpack.c.h.b16 %v11096
  %v11273 = vunpack.c.l.b16 %v11097
  %v11274 = vunpack.c.h.b16 %v11097
  %v11275 = vunpack.c.l.b16 %v11098
  %v11276 = vunpack.c.h.b16 %v11098
  %v11277 = vunpack.c.l.b16 %v11099
  %v11278 = vunpack.c.h.b16 %v11099
  %v11279 = vunpack.c.l.b16 %v11100
  %v11280 = vunpack.c.h.b16 %v11100
  %v11281 = vunpack.c.l.b16 %v11101
  %v11282 = vunpack.c.h.b16 %v11101
  %v11283 = vunpack.c.l.b16 %v11102
  %v11284 = vunpack.c.h.b16 %v11102
  %v11285 = vunpack.c.l.b16 %v11103
  %v11286 = vunpack.c.h.b16 %v11103
  %v11287 = vunpack.c.l.b16 %v11104
  %v11288 = vunpack.c.h.b16 %v11104
  %v11289 = vunpack.c.l.b16 %v11105
  %v11290 = vunpack.c.h.b16 %v11105
  %v11291 = vunpack.c.l.b16 %v11106
  %v11292 = vunpack.c.h.b16 %v11106
  %v11293 = vunpack.c.l.b16 %v11107
  %v11294 = vunpack.c.h.b16 %v11107
  %v11295 = vunpack.c.l.b16 %v11108
  %v11296 = vunpack.c.h.b16 %v11108
  %v11297 = vunpack.c.l.b16 %v11109
  %v11298 = vunpack.c.h.b16 %v11109
  %v11299 = vunpack.c.l.b16 %v11110
  %v11300 = vunpack.c.h.b16 %v11110
  %v11301 = vunpack.c.l.b16 %v11111
  %v11302 = vunpack.c.h.b16 %v11111
  %v11303 = vunpack.c.l.b16 %v11112
  %v11304 = vunpack.c.h.b16 %v11112
  %v11305 = vpack.c.b16 %v11179, %v11177
  %v11306 = vpack.c.b16 %v11180, %v11178
  %v11307 = vpack.c.b16 %v11183, %v11181
  %v11308 = vpack.c.b16 %v11184, %v11182
  %v11309 = vpack.c.b16 %v11187, %v11185
  %v11310 = vpack.c.b16 %v11188, %v11186
  %v11311 = vpack.c.b16 %v11191, %v11189
  %v11312 = vpack.c.b16 %v11192, %v11190
  %v11313 = vpack.c.b16 %v11195, %v11193
  %v11314 = vpack.c.b16 %v11196, %v11194
  %v11315 = vpack.c.b16 %v11199, %v11197
  %v11316 = vpack.c.b16 %v11200, %v11198
  %v11317 = vpack.c.b16 %v11203, %v11201
  %v11318 = vpack.c.b16 %v11204, %v11202
  %v11319 = vpack.c.b16 %v11207, %v11205
  %v11320 = vpack.c.b16 %v11208, %v11206
  %v11321 = vpack.c.b16 %v11211, %v11209
  %v11322 = vpack.c.b16 %v11212, %v11210
  %v11323 = vpack.c.b16 %v11215, %v11213
  %v11324 = vpack.c.b16 %v11216, %v11214
  %v11325 = vpack.c.b16 %v11219, %v11217
  %v11326 = vpack.c.b16 %v11220, %v11218
  %v11327 = vpack.c.b16 %v11223, %v11221
  %v11328 = vpack.c.b16 %v11224, %v11222
  %v11329 = vpack.c.b16 %v11227, %v11225
  %v11330 = vpack.c.b16 %v11228, %v11226
  %v11331 = vpack.c.b16 %v11231, %v11229
  %v11332 = vpack.c.b16 %v11232, %v11230
  %v11333 = vpack.c.b16 %v11235, %v11233
  %v11334 = vpack.c.b16 %v11236, %v11234
  %v11335 = vpack.c.b16 %v11239, %v11237
  %v11336 = vpack.c.b16 %v11240, %v11238
  %v11337 = vpack.c.b16 %v11243, %v11241
  %v11338 = vpack.c.b16 %v11244, %v11242
  %v11339 = vpack.c.b16 %v11247, %v11245
  %v11340 = vpack.c.b16 %v11248, %v11246
  %v11341 = vpack.c.b16 %v11251, %v11249
  %v11342 = vpack.c.b16 %v11252, %v11250
  %v11343 = vpack.c.b16 %v11255, %v11253
  %v11344 = vpack.c.b16 %v11256, %v11254
  %v11345 = vpack.c.b16 %v11259, %v11257
  %v11346 = vpack.c.b16 %v11260, %v11258
  %v11347 = vpack.c.b16 %v11263, %v11261
  %v11348 = vpack.c.b16 %v11264, %v11262
  %v11349 = vpack.c.b16 %v11267, %v11265
  %v11350 = vpack.c.b16 %v11268, %v11266
  %v11351 = vpack.c.b16 %v11271, %v11269
  %v11352 = vpack.c.b16 %v11272, %v11270
  %v11353 = vpack.c.b16 %v11275, %v11273
  %v11354 = vpack.c.b16 %v11276, %v11274
  %v11355 = vpack.c.b16 %v11279, %v11277
  %v11356 = vpack.c.b16 %v11280, %v11278
  %v11357 = vpack.c.b16 %v11283, %v11281
  %v11358 = vpack.c.b16 %v11284, %v11282
  %v11359 = vpack.c.b16 %v11287, %v11285
  %v11360 = vpack.c.b16 %v11288, %v11286
  %v11361 = vpack.c.b16 %v11291, %v11289
  %v11362 = vpack.c.b16 %v11292, %v11290
  %v11363 = vpack.c.b16 %v11295, %v11293
  %v11364 = vpack.c.b16 %v11296, %v11294
  %v11365 = vpack.c.b16 %v11299, %v11297
  %v11366 = vpack.c.b16 %v11300, %v11298
  %v11367 = vpack.c.b16 %v11303, %v11301
  %v11368 = vpack.c.b16 %v11304, %v11302
  %11433 = vmatprep.subr.bf16.mxu0 %v11306
  %11434 = vmatpush1.bf16.msra.mxu0 %v11305
  %11435 = vmatprep.subr.bf16.mxu0 %v11308
  %11436 = vmatpush1.bf16.msra.mxu0 %v11307
  %11437 = vmatprep.subr.bf16.mxu0 %v11310
  %11438 = vmatpush1.bf16.msra.mxu0 %v11309
  %11439 = vmatprep.subr.bf16.mxu0 %v11312
  %11440 = vmatpush1.bf16.msra.mxu0 %v11311
  %11441 = vmatprep.subr.bf16.mxu0 %v11314
  %11442 = vmatpush1.bf16.msra.mxu0 %v11313
  %11443 = vmatprep.subr.bf16.mxu0 %v11316
  %11444 = vmatpush1.bf16.msra.mxu0 %v11315
  %11445 = vmatprep.subr.bf16.mxu0 %v11318
  %11446 = vmatpush1.bf16.msra.mxu0 %v11317
  %11447 = vmatprep.subr.bf16.mxu0 %v11320
  %11448 = vmatpush1.bf16.msra.mxu0 %v11319
  %11449 = vmatprep.subr.bf16.mxu0 %v11322
  %11450 = vmatpush1.bf16.msra.mxu0 %v11321
  %11451 = vmatprep.subr.bf16.mxu0 %v11324
  %11452 = vmatpush1.bf16.msra.mxu0 %v11323
  %11453 = vmatprep.subr.bf16.mxu0 %v11326
  %11454 = vmatpush1.bf16.msra.mxu0 %v11325
  %11455 = vmatprep.subr.bf16.mxu0 %v11328
  %11456 = vmatpush1.bf16.msra.mxu0 %v11327
  %11457 = vmatprep.subr.bf16.mxu0 %v11330
  %11458 = vmatpush1.bf16.msra.mxu0 %v11329
  %11459 = vmatprep.subr.bf16.mxu0 %v11332
  %11460 = vmatpush1.bf16.msra.mxu0 %v11331
  %11461 = vmatprep.subr.bf16.mxu0 %v11334
  %11462 = vmatpush1.bf16.msra.mxu0 %v11333
  %11463 = vmatprep.subr.bf16.mxu0 %v11336
  %11464 = vmatpush1.bf16.msra.mxu0 %v11335
  %11465 = vmatprep.mubr.bf16.mxu0 %v10644
  %11466 = vmatmul.mubr.bf16.gmra.mrb[0].mxu0 %v10643
  %v11467 = vpop.f32.mrb[0].mxu0
  %v11468 = vadd.f32 0.0, %v11467
  %v11469 = vpop.f32.mrb[0].mxu0
  %v11470 = vadd.f32 0.0, %v11469
  %v11471 = vpop.f32.mrb[0].mxu0
  %v11472 = vpop.f32.mrb[0].mxu0
  %11473 = vdwg.mxu0
  %11474 = vmatprep.subr.bf16.mxu0 %v11338
  %11475 = vmatpush1.bf16.msra.mxu0 %v11337
  %11476 = vmatprep.subr.bf16.mxu0 %v11340
  %11477 = vmatpush1.bf16.msra.mxu0 %v11339
  %11478 = vmatprep.subr.bf16.mxu0 %v11342
  %11479 = vmatpush1.bf16.msra.mxu0 %v11341
  %11480 = vmatprep.subr.bf16.mxu0 %v11344
  %11481 = vmatpush1.bf16.msra.mxu0 %v11343
  %11482 = vmatprep.subr.bf16.mxu0 %v11346
  %11483 = vmatpush1.bf16.msra.mxu0 %v11345
  %11484 = vmatprep.subr.bf16.mxu0 %v11348
  %11485 = vmatpush1.bf16.msra.mxu0 %v11347
  %11486 = vmatprep.subr.bf16.mxu0 %v11350
  %11487 = vmatpush1.bf16.msra.mxu0 %v11349
  %11488 = vmatprep.subr.bf16.mxu0 %v11352
  %11489 = vmatpush1.bf16.msra.mxu0 %v11351
  %11490 = vmatprep.subr.bf16.mxu0 %v11354
  %11491 = vmatpush1.bf16.msra.mxu0 %v11353
  %11492 = vmatprep.subr.bf16.mxu0 %v11356
  %11493 = vmatpush1.bf16.msra.mxu0 %v11355
  %11494 = vmatprep.subr.bf16.mxu0 %v11358
  %11495 = vmatpush1.bf16.msra.mxu0 %v11357
  %11496 = vmatprep.subr.bf16.mxu0 %v11360
  %11497 = vmatpush1.bf16.msra.mxu0 %v11359
  %11498 = vmatprep.subr.bf16.mxu0 %v11362
  %11499 = vmatpush1.bf16.msra.mxu0 %v11361
  %11500 = vmatprep.subr.bf16.mxu0 %v11364
  %11501 = vmatpush1.bf16.msra.mxu0 %v11363
  %11502 = vmatprep.subr.bf16.mxu0 %v11366
  %11503 = vmatpush1.bf16.msra.mxu0 %v11365
  %11504 = vmatprep.subr.bf16.mxu0 %v11368
  %11505 = vmatpush1.bf16.msra.mxu0 %v11367
  %11506 = vmatprep.mubr.bf16.mxu0 %v10646
  %11507 = vmatmul.mubr.bf16.gmra.mrb[0].mxu0 %v10645
  %v11508 = vpop.f32.mrb[0].mxu0
  %v11509 = vadd.f32 %v11468, %v11508
  %v11510 = vpop.f32.mrb[0].mxu0
  %v11511 = vadd.f32 %v11470, %v11510
  %v11512 = vpop.f32.mrb[0].mxu0
  %v11513 = vpop.f32.mrb[0].mxu0
  %11514 = vdwg.mxu0
  %v11515 = vrot.slane %v11509, 4
  %v11516 = vadd.f32 %v11509, %v11515
  %v11517 = vrot.slane %v11516, 2
  %v11518 = vadd.f32 %v11516, %v11517
  %v11519 = vrot.slane %v11518, 1
  %v11520 = vadd.f32 %v11518, %v11519
  %v11521 = vrot.slane %v11511, 4
  %v11522 = vadd.f32 %v11511, %v11521
  %v11523 = vrot.slane %v11522, 2
  %v11524 = vadd.f32 %v11522, %v11523
  %v11525 = vrot.slane %v11524, 1
  %v11526 = vadd.f32 %v11524, %v11525
  %v11527 = vmul.f32 %v11509, %v11509
  %v11528 = vmul.f32 %v11511, %v11511
  %v11529 = vrot.slane %v11527, 4
  %v11530 = vadd.f32 %v11527, %v11529
  %v11531 = vrot.slane %v11530, 2
  %v11532 = vadd.f32 %v11530, %v11531
  %v11533 = vrot.slane %v11532, 1
  %v11534 = vadd.f32 %v11532, %v11533
  %v11535 = vrot.slane %v11528, 4
  %v11536 = vadd.f32 %v11528, %v11535
  %v11537 = vrot.slane %v11536, 2
  %v11538 = vadd.f32 %v11536, %v11537
  %v11539 = vrot.slane %v11538, 1
  %v11540 = vadd.f32 %v11538, %v11539
  %v11541 = vmul.f32 %v11520, 0.125
  %v11542 = vmul.f32 %v11526, 0.125
  %v11543 = vmul.f32 %v11534, 0.125
  %v11544 = vmul.f32 %v11540, 0.125
  %v11545 = vmul.f32 %v11541, %v11541
  %v11546 = vmul.f32 %v11542, %v11542
  %v11547 = vsub.f32 %v11543, %v11545
  %v11548 = vsub.f32 %v11544, %v11546
  %v11549 = vmax.f32 %v11547, 0.0
  %v11550 = vmax.f32 %v11548, 0.0
  %v11551 = vsub.f32 %v11509, %v11541
  %v11552 = vsub.f32 %v11511, %v11542
  %v11553 = vadd.f32 %v11549, 1e-05
  %v11554 = vadd.f32 %v11550, 1e-05
  %v11555 = vrsqrt.pop %v11553
  %v11556 = vrsqrt.pop %v11554
  %v11557 = vmul.f32 %v11551, %v11555
  %v11558 = vmul.f32 %v11552, %v11556
  %v11559 = vld [vmem:[%s2 + $0x3a] sm:$0x3]
  %v11561 = vlaneseq
  %v11562 = vshrl.u32 %v11561, 7
  %v11563 = vsub.s32 0, %v11562
  %v11564 = vrot.slane %v11559, %v11563
  %v11565 = vlaneseq
  %v11566 = vshrl.u32 %v11565, 7
  %v11567 = vsub.s32 1, %v11566
  %v11568 = vrot.slane %v11559, %v11567
  %v11571 = vmul.f32 %v11557, %v11564
  %v11572 = vmul.f32 %v11558, %v11568
  %v11573 = vld [vmem:[%s2 + $0x3c] sm:$0x3]
  %v11575 = vlaneseq
  %v11576 = vshrl.u32 %v11575, 7
  %v11577 = vsub.s32 0, %v11576
  %v11578 = vrot.slane %v11573, %v11577
  %v11579 = vlaneseq
  %v11580 = vshrl.u32 %v11579, 7
  %v11581 = vsub.s32 1, %v11580
  %v11582 = vrot.slane %v11573, %v11581
  %v11585 = vadd.f32 %v11571, %v11578
  %v11586 = vadd.f32 %v11572, %v11582
  %v11587 = vmax.f32 %v11585, 0.0
  %v11588 = vmax.f32 %v11586, 0.0
  %s11589 = scalar_lea.vmem %s7, 1536
  %v11590 = vld [vmem:[%s11589] sm:$0xff]
  %v11591 = vld [vmem:[%s11589 + $0x8] sm:$0xff]
  %v11592 = vld [vmem:[%s11589 + $0x10] sm:$0xff]
  %v11593 = vld [vmem:[%s11589 + $0x18] sm:$0xff]
  %v11594 = vld [vmem:[%s11589 + $0x20] sm:$0xff]
  %v11595 = vld [vmem:[%s11589 + $0x28] sm:$0xff]
  %v11596 = vld [vmem:[%s11589 + $0x30] sm:$0xff]
  %v11597 = vld [vmem:[%s11589 + $0x38] sm:$0xff]
  %v11598 = vld [vmem:[%s11589 + $0x40] sm:$0xff]
  %v11599 = vld [vmem:[%s11589 + $0x48] sm:$0xff]
  %v11600 = vld [vmem:[%s11589 + $0x50] sm:$0xff]
  %v11601 = vld [vmem:[%s11589 + $0x58] sm:$0xff]
  %v11602 = vld [vmem:[%s11589 + $0x60] sm:$0xff]
  %v11603 = vld [vmem:[%s11589 + $0x68] sm:$0xff]
  %v11604 = vld [vmem:[%s11589 + $0x70] sm:$0xff]
  %v11605 = vld [vmem:[%s11589 + $0x78] sm:$0xff]
  %v11606 = vld [vmem:[%s11589 + $0x80] sm:$0xff]
  %v11607 = vld [vmem:[%s11589 + $0x88] sm:$0xff]
  %v11608 = vld [vmem:[%s11589 + $0x90] sm:$0xff]
  %v11609 = vld [vmem:[%s11589 + $0x98] sm:$0xff]
  %v11610 = vld [vmem:[%s11589 + $0xa0] sm:$0xff]
  %v11611 = vld [vmem:[%s11589 + $0xa8] sm:$0xff]
  %v11612 = vld [vmem:[%s11589 + $0xb0] sm:$0xff]
  %v11613 = vld [vmem:[%s11589 + $0xb8] sm:$0xff]
  %v11614 = vld [vmem:[%s11589 + $0xc0] sm:$0xff]
  %v11615 = vld [vmem:[%s11589 + $0xc8] sm:$0xff]
  %v11616 = vld [vmem:[%s11589 + $0xd0] sm:$0xff]
  %v11617 = vld [vmem:[%s11589 + $0xd8] sm:$0xff]
  %v11618 = vld [vmem:[%s11589 + $0xe0] sm:$0xff]
  %v11619 = vld [vmem:[%s11589 + $0xe8] sm:$0xff]
  %v11620 = vld [vmem:[%s11589 + $0xf0] sm:$0xff]
  %v11621 = vld [vmem:[%s11589 + $0xf8] sm:$0xff]
  %v11622 = vpack.c.bf16 %v11587, %v11587
  %v11623 = vpack.c.bf16 %v11588, %v11588
  %v11656 = vunpack.c.l.b16 %v11590
  %v11657 = vunpack.c.h.b16 %v11590
  %v11658 = vunpack.c.l.b16 %v11591
  %v11659 = vunpack.c.h.b16 %v11591
  %v11660 = vunpack.c.l.b16 %v11592
  %v11661 = vunpack.c.h.b16 %v11592
  %v11662 = vunpack.c.l.b16 %v11593
  %v11663 = vunpack.c.h.b16 %v11593
  %v11664 = vunpack.c.l.b16 %v11594
  %v11665 = vunpack.c.h.b16 %v11594
  %v11666 = vunpack.c.l.b16 %v11595
  %v11667 = vunpack.c.h.b16 %v11595
  %v11668 = vunpack.c.l.b16 %v11596
  %v11669 = vunpack.c.h.b16 %v11596
  %v11670 = vunpack.c.l.b16 %v11597
  %v11671 = vunpack.c.h.b16 %v11597
  %v11672 = vunpack.c.l.b16 %v11598
  %v11673 = vunpack.c.h.b16 %v11598
  %v11674 = vunpack.c.l.b16 %v11599
  %v11675 = vunpack.c.h.b16 %v11599
  %v11676 = vunpack.c.l.b16 %v11600
  %v11677 = vunpack.c.h.b16 %v11600
  %v11678 = vunpack.c.l.b16 %v11601
  %v11679 = vunpack.c.h.b16 %v11601
  %v11680 = vunpack.c.l.b16 %v11602
  %v11681 = vunpack.c.h.b16 %v11602
  %v11682 = vunpack.c.l.b16 %v11603
  %v11683 = vunpack.c.h.b16 %v11603
  %v11684 = vunpack.c.l.b16 %v11604
  %v11685 = vunpack.c.h.b16 %v11604
  %v11686 = vunpack.c.l.b16 %v11605
  %v11687 = vunpack.c.h.b16 %v11605
  %v11688 = vunpack.c.l.b16 %v11606
  %v11689 = vunpack.c.h.b16 %v11606
  %v11690 = vunpack.c.l.b16 %v11607
  %v11691 = vunpack.c.h.b16 %v11607
  %v11692 = vunpack.c.l.b16 %v11608
  %v11693 = vunpack.c.h.b16 %v11608
  %v11694 = vunpack.c.l.b16 %v11609
  %v11695 = vunpack.c.h.b16 %v11609
  %v11696 = vunpack.c.l.b16 %v11610
  %v11697 = vunpack.c.h.b16 %v11610
  %v11698 = vunpack.c.l.b16 %v11611
  %v11699 = vunpack.c.h.b16 %v11611
  %v11700 = vunpack.c.l.b16 %v11612
  %v11701 = vunpack.c.h.b16 %v11612
  %v11702 = vunpack.c.l.b16 %v11613
  %v11703 = vunpack.c.h.b16 %v11613
  %v11704 = vunpack.c.l.b16 %v11614
  %v11705 = vunpack.c.h.b16 %v11614
  %v11706 = vunpack.c.l.b16 %v11615
  %v11707 = vunpack.c.h.b16 %v11615
  %v11708 = vunpack.c.l.b16 %v11616
  %v11709 = vunpack.c.h.b16 %v11616
  %v11710 = vunpack.c.l.b16 %v11617
  %v11711 = vunpack.c.h.b16 %v11617
  %v11712 = vunpack.c.l.b16 %v11618
  %v11713 = vunpack.c.h.b16 %v11618
  %v11714 = vunpack.c.l.b16 %v11619
  %v11715 = vunpack.c.h.b16 %v11619
  %v11716 = vunpack.c.l.b16 %v11620
  %v11717 = vunpack.c.h.b16 %v11620
  %v11718 = vunpack.c.l.b16 %v11621
  %v11719 = vunpack.c.h.b16 %v11621
  %v11720 = vpack.c.b16 %v11658, %v11656
  %v11721 = vpack.c.b16 %v11659, %v11657
  %v11722 = vpack.c.b16 %v11662, %v11660
  %v11723 = vpack.c.b16 %v11663, %v11661
  %v11724 = vpack.c.b16 %v11666, %v11664
  %v11725 = vpack.c.b16 %v11667, %v11665
  %v11726 = vpack.c.b16 %v11670, %v11668
  %v11727 = vpack.c.b16 %v11671, %v11669
  %v11728 = vpack.c.b16 %v11674, %v11672
  %v11729 = vpack.c.b16 %v11675, %v11673
  %v11730 = vpack.c.b16 %v11678, %v11676
  %v11731 = vpack.c.b16 %v11679, %v11677
  %v11732 = vpack.c.b16 %v11682, %v11680
  %v11733 = vpack.c.b16 %v11683, %v11681
  %v11734 = vpack.c.b16 %v11686, %v11684
  %v11735 = vpack.c.b16 %v11687, %v11685
  %v11736 = vpack.c.b16 %v11690, %v11688
  %v11737 = vpack.c.b16 %v11691, %v11689
  %v11738 = vpack.c.b16 %v11694, %v11692
  %v11739 = vpack.c.b16 %v11695, %v11693
  %v11740 = vpack.c.b16 %v11698, %v11696
  %v11741 = vpack.c.b16 %v11699, %v11697
  %v11742 = vpack.c.b16 %v11702, %v11700
  %v11743 = vpack.c.b16 %v11703, %v11701
  %v11744 = vpack.c.b16 %v11706, %v11704
  %v11745 = vpack.c.b16 %v11707, %v11705
  %v11746 = vpack.c.b16 %v11710, %v11708
  %v11747 = vpack.c.b16 %v11711, %v11709
  %v11748 = vpack.c.b16 %v11714, %v11712
  %v11749 = vpack.c.b16 %v11715, %v11713
  %v11750 = vpack.c.b16 %v11718, %v11716
  %v11751 = vpack.c.b16 %v11719, %v11717
  %11784 = vmatprep.subr.bf16.mxu0 %v11721
  %11785 = vmatpush1.bf16.msra.mxu0 %v11720
  %11786 = vmatprep.subr.bf16.mxu0 %v11723
  %11787 = vmatpush1.bf16.msra.mxu0 %v11722
  %11788 = vmatprep.subr.bf16.mxu0 %v11725
  %11789 = vmatpush1.bf16.msra.mxu0 %v11724
  %11790 = vmatprep.subr.bf16.mxu0 %v11727
  %11791 = vmatpush1.bf16.msra.mxu0 %v11726
  %11792 = vmatprep.subr.bf16.mxu0 %v11729
  %11793 = vmatpush1.bf16.msra.mxu0 %v11728
  %11794 = vmatprep.subr.bf16.mxu0 %v11731
  %11795 = vmatpush1.bf16.msra.mxu0 %v11730
  %11796 = vmatprep.subr.bf16.mxu0 %v11733
  %11797 = vmatpush1.bf16.msra.mxu0 %v11732
  %11798 = vmatprep.subr.bf16.mxu0 %v11735
  %11799 = vmatpush1.bf16.msra.mxu0 %v11734
  %11800 = vmatprep.subr.bf16.mxu0 %v11737
  %11801 = vmatpush1.bf16.msra.mxu0 %v11736
  %11802 = vmatprep.subr.bf16.mxu0 %v11739
  %11803 = vmatpush1.bf16.msra.mxu0 %v11738
  %11804 = vmatprep.subr.bf16.mxu0 %v11741
  %11805 = vmatpush1.bf16.msra.mxu0 %v11740
  %11806 = vmatprep.subr.bf16.mxu0 %v11743
  %11807 = vmatpush1.bf16.msra.mxu0 %v11742
  %11808 = vmatprep.subr.bf16.mxu0 %v11745
  %11809 = vmatpush1.bf16.msra.mxu0 %v11744
  %11810 = vmatprep.subr.bf16.mxu0 %v11747
  %11811 = vmatpush1.bf16.msra.mxu0 %v11746
  %11812 = vmatprep.subr.bf16.mxu0 %v11749
  %11813 = vmatpush1.bf16.msra.mxu0 %v11748
  %11814 = vmatprep.subr.bf16.mxu0 %v11751
  %11815 = vmatpush1.bf16.msra.mxu0 %v11750
  %11816 = vmatprep.mubr.bf16.mxu0 %v11623
  %11817 = vmatmul.mubr.bf16.gmra.mrb[0].mxu0 %v11622
  %v11818 = vpop.f32.mrb[0].mxu0
  %v11819 = vadd.f32 0.0, %v11818
  %v11820 = vpop.f32.mrb[0].mxu0
  %v11821 = vadd.f32 0.0, %v11820
  %v11822 = vpop.f32.mrb[0].mxu0
  %v11823 = vpop.f32.mrb[0].mxu0
  %11824 = vdwg.mxu0
  %v11825 = vrot.slane %v11819, 4
  %v11826 = vadd.f32 %v11819, %v11825
  %v11827 = vrot.slane %v11826, 2
  %v11828 = vadd.f32 %v11826, %v11827
  %v11829 = vrot.slane %v11828, 1
  %v11830 = vadd.f32 %v11828, %v11829
  %v11831 = vrot.slane %v11821, 4
  %v11832 = vadd.f32 %v11821, %v11831
  %v11833 = vrot.slane %v11832, 2
  %v11834 = vadd.f32 %v11832, %v11833
  %v11835 = vrot.slane %v11834, 1
  %v11836 = vadd.f32 %v11834, %v11835
  %v11837 = vmul.f32 %v11819, %v11819
  %v11838 = vmul.f32 %v11821, %v11821
  %v11839 = vrot.slane %v11837, 4
  %v11840 = vadd.f32 %v11837, %v11839
  %v11841 = vrot.slane %v11840, 2
  %v11842 = vadd.f32 %v11840, %v11841
  %v11843 = vrot.slane %v11842, 1
  %v11844 = vadd.f32 %v11842, %v11843
  %v11845 = vrot.slane %v11838, 4
  %v11846 = vadd.f32 %v11838, %v11845
  %v11847 = vrot.slane %v11846, 2
  %v11848 = vadd.f32 %v11846, %v11847
  %v11849 = vrot.slane %v11848, 1
  %v11850 = vadd.f32 %v11848, %v11849
  %v11851 = vmul.f32 %v11830, 0.125
  %v11852 = vmul.f32 %v11836, 0.125
  %v11853 = vmul.f32 %v11844, 0.125
  %v11854 = vmul.f32 %v11850, 0.125
  %v11855 = vmul.f32 %v11851, %v11851
  %v11856 = vmul.f32 %v11852, %v11852
  %v11857 = vsub.f32 %v11853, %v11855
  %v11858 = vsub.f32 %v11854, %v11856
  %v11859 = vmax.f32 %v11857, 0.0
  %v11860 = vmax.f32 %v11858, 0.0
  %v11861 = vsub.f32 %v11819, %v11851
  %v11862 = vsub.f32 %v11821, %v11852
  %v11863 = vadd.f32 %v11859, 1e-05
  %v11864 = vadd.f32 %v11860, 1e-05
  %v11865 = vrsqrt.pop %v11863
  %v11866 = vrsqrt.pop %v11864
  %v11867 = vmul.f32 %v11861, %v11865
  %v11868 = vmul.f32 %v11862, %v11866
  %v11869 = vld [vmem:[%s2 + $0x3e] sm:$0x3]
  %v11871 = vlaneseq
  %v11872 = vshrl.u32 %v11871, 7
  %v11873 = vsub.s32 0, %v11872
  %v11874 = vrot.slane %v11869, %v11873
  %v11875 = vlaneseq
  %v11876 = vshrl.u32 %v11875, 7
  %v11877 = vsub.s32 1, %v11876
  %v11878 = vrot.slane %v11869, %v11877
  %v11881 = vmul.f32 %v11867, %v11874
  %v11882 = vmul.f32 %v11868, %v11878
  %v11883 = vld [vmem:[%s2 + $0x40] sm:$0x3]
  %v11885 = vlaneseq
  %v11886 = vshrl.u32 %v11885, 7
  %v11887 = vsub.s32 0, %v11886
  %v11888 = vrot.slane %v11883, %v11887
  %v11889 = vlaneseq
  %v11890 = vshrl.u32 %v11889, 7
  %v11891 = vsub.s32 1, %v11890
  %v11892 = vrot.slane %v11883, %v11891
  %v11895 = vadd.f32 %v11881, %v11888
  %v11896 = vadd.f32 %v11882, %v11892
  %v11897 = vadd.f32 %v11895, %v11043
  %v11898 = vadd.f32 %v11896, %v11045
  %v11899 = vmax.f32 %v11897, 0.0
  %v11900 = vmax.f32 %v11898, 0.0
  %s11901 = scalar_lea.vmem %s7, 1792
  %v11902 = vld [vmem:[%s11901] sm:$0xff]
  %v11903 = vld [vmem:[%s11901 + $0x8] sm:$0xff]
  %v11904 = vld [vmem:[%s11901 + $0x10] sm:$0xff]
  %v11905 = vld [vmem:[%s11901 + $0x18] sm:$0xff]
  %v11906 = vld [vmem:[%s11901 + $0x20] sm:$0xff]
  %v11907 = vld [vmem:[%s11901 + $0x28] sm:$0xff]
  %v11908 = vld [vmem:[%s11901 + $0x30] sm:$0xff]
  %v11909 = vld [vmem:[%s11901 + $0x38] sm:$0xff]
  %v11910 = vld [vmem:[%s11901 + $0x40] sm:$0xff]
  %v11911 = vld [vmem:[%s11901 + $0x48] sm:$0xff]
  %v11912 = vld [vmem:[%s11901 + $0x50] sm:$0xff]
  %v11913 = vld [vmem:[%s11901 + $0x58] sm:$0xff]
  %v11914 = vld [vmem:[%s11901 + $0x60] sm:$0xff]
  %v11915 = vld [vmem:[%s11901 + $0x68] sm:$0xff]
  %v11916 = vld [vmem:[%s11901 + $0x70] sm:$0xff]
  %v11917 = vld [vmem:[%s11901 + $0x78] sm:$0xff]
  %v11918 = vld [vmem:[%s11901 + $0x80] sm:$0xff]
  %v11919 = vld [vmem:[%s11901 + $0x88] sm:$0xff]
  %v11920 = vld [vmem:[%s11901 + $0x90] sm:$0xff]
  %v11921 = vld [vmem:[%s11901 + $0x98] sm:$0xff]
  %v11922 = vld [vmem:[%s11901 + $0xa0] sm:$0xff]
  %v11923 = vld [vmem:[%s11901 + $0xa8] sm:$0xff]
  %v11924 = vld [vmem:[%s11901 + $0xb0] sm:$0xff]
  %v11925 = vld [vmem:[%s11901 + $0xb8] sm:$0xff]
  %v11926 = vld [vmem:[%s11901 + $0xc0] sm:$0xff]
  %v11927 = vld [vmem:[%s11901 + $0xc8] sm:$0xff]
  %v11928 = vld [vmem:[%s11901 + $0xd0] sm:$0xff]
  %v11929 = vld [vmem:[%s11901 + $0xd8] sm:$0xff]
  %v11930 = vld [vmem:[%s11901 + $0xe0] sm:$0xff]
  %v11931 = vld [vmem:[%s11901 + $0xe8] sm:$0xff]
  %v11932 = vld [vmem:[%s11901 + $0xf0] sm:$0xff]
  %v11933 = vld [vmem:[%s11901 + $0xf8] sm:$0xff]
  %v11934 = vpack.c.bf16 %v11899, %v11899
  %v11935 = vpack.c.bf16 %v11900, %v11900
  %v11968 = vunpack.c.l.b16 %v11902
  %v11969 = vunpack.c.h.b16 %v11902
  %v11970 = vunpack.c.l.b16 %v11903
  %v11971 = vunpack.c.h.b16 %v11903
  %v11972 = vunpack.c.l.b16 %v11904
  %v11973 = vunpack.c.h.b16 %v11904
  %v11974 = vunpack.c.l.b16 %v11905
  %v11975 = vunpack.c.h.b16 %v11905
  %v11976 = vunpack.c.l.b16 %v11906
  %v11977 = vunpack.c.h.b16 %v11906
  %v11978 = vunpack.c.l.b16 %v11907
  %v11979 = vunpack.c.h.b16 %v11907
  %v11980 = vunpack.c.l.b16 %v11908
  %v11981 = vunpack.c.h.b16 %v11908
  %v11982 = vunpack.c.l.b16 %v11909
  %v11983 = vunpack.c.h.b16 %v11909
  %v11984 = vunpack.c.l.b16 %v11910
  %v11985 = vunpack.c.h.b16 %v11910
  %v11986 = vunpack.c.l.b16 %v11911
  %v11987 = vunpack.c.h.b16 %v11911
  %v11988 = vunpack.c.l.b16 %v11912
  %v11989 = vunpack.c.h.b16 %v11912
  %v11990 = vunpack.c.l.b16 %v11913
  %v11991 = vunpack.c.h.b16 %v11913
  %v11992 = vunpack.c.l.b16 %v11914
  %v11993 = vunpack.c.h.b16 %v11914
  %v11994 = vunpack.c.l.b16 %v11915
  %v11995 = vunpack.c.h.b16 %v11915
  %v11996 = vunpack.c.l.b16 %v11916
  %v11997 = vunpack.c.h.b16 %v11916
  %v11998 = vunpack.c.l.b16 %v11917
  %v11999 = vunpack.c.h.b16 %v11917
  %v12000 = vunpack.c.l.b16 %v11918
  %v12001 = vunpack.c.h.b16 %v11918
  %v12002 = vunpack.c.l.b16 %v11919
  %v12003 = vunpack.c.h.b16 %v11919
  %v12004 = vunpack.c.l.b16 %v11920
  %v12005 = vunpack.c.h.b16 %v11920
  %v12006 = vunpack.c.l.b16 %v11921
  %v12007 = vunpack.c.h.b16 %v11921
  %v12008 = vunpack.c.l.b16 %v11922
  %v12009 = vunpack.c.h.b16 %v11922
  %v12010 = vunpack.c.l.b16 %v11923
  %v12011 = vunpack.c.h.b16 %v11923
  %v12012 = vunpack.c.l.b16 %v11924
  %v12013 = vunpack.c.h.b16 %v11924
  %v12014 = vunpack.c.l.b16 %v11925
  %v12015 = vunpack.c.h.b16 %v11925
  %v12016 = vunpack.c.l.b16 %v11926
  %v12017 = vunpack.c.h.b16 %v11926
  %v12018 = vunpack.c.l.b16 %v11927
  %v12019 = vunpack.c.h.b16 %v11927
  %v12020 = vunpack.c.l.b16 %v11928
  %v12021 = vunpack.c.h.b16 %v11928
  %v12022 = vunpack.c.l.b16 %v11929
  %v12023 = vunpack.c.h.b16 %v11929
  %v12024 = vunpack.c.l.b16 %v11930
  %v12025 = vunpack.c.h.b16 %v11930
  %v12026 = vunpack.c.l.b16 %v11931
  %v12027 = vunpack.c.h.b16 %v11931
  %v12028 = vunpack.c.l.b16 %v11932
  %v12029 = vunpack.c.h.b16 %v11932
  %v12030 = vunpack.c.l.b16 %v11933
  %v12031 = vunpack.c.h.b16 %v11933
  %v12032 = vpack.c.b16 %v11970, %v11968
  %v12033 = vpack.c.b16 %v11971, %v11969
  %v12034 = vpack.c.b16 %v11974, %v11972
  %v12035 = vpack.c.b16 %v11975, %v11973
  %v12036 = vpack.c.b16 %v11978, %v11976
  %v12037 = vpack.c.b16 %v11979, %v11977
  %v12038 = vpack.c.b16 %v11982, %v11980
  %v12039 = vpack.c.b16 %v11983, %v11981
  %v12040 = vpack.c.b16 %v11986, %v11984
  %v12041 = vpack.c.b16 %v11987, %v11985
  %v12042 = vpack.c.b16 %v11990, %v11988
  %v12043 = vpack.c.b16 %v11991, %v11989
  %v12044 = vpack.c.b16 %v11994, %v11992
  %v12045 = vpack.c.b16 %v11995, %v11993
  %v12046 = vpack.c.b16 %v11998, %v11996
  %v12047 = vpack.c.b16 %v11999, %v11997
  %v12048 = vpack.c.b16 %v12002, %v12000
  %v12049 = vpack.c.b16 %v12003, %v12001
  %v12050 = vpack.c.b16 %v12006, %v12004
  %v12051 = vpack.c.b16 %v12007, %v12005
  %v12052 = vpack.c.b16 %v12010, %v12008
  %v12053 = vpack.c.b16 %v12011, %v12009
  %v12054 = vpack.c.b16 %v12014, %v12012
  %v12055 = vpack.c.b16 %v12015, %v12013
  %v12056 = vpack.c.b16 %v12018, %v12016
  %v12057 = vpack.c.b16 %v12019, %v12017
  %v12058 = vpack.c.b16 %v12022, %v12020
  %v12059 = vpack.c.b16 %v12023, %v12021
  %v12060 = vpack.c.b16 %v12026, %v12024
  %v12061 = vpack.c.b16 %v12027, %v12025
  %v12062 = vpack.c.b16 %v12030, %v12028
  %v12063 = vpack.c.b16 %v12031, %v12029
  %12096 = vmatprep.subr.bf16.mxu0 %v12033
  %12097 = vmatpush1.bf16.msra.mxu0 %v12032
  %12098 = vmatprep.subr.bf16.mxu0 %v12035
  %12099 = vmatpush1.bf16.msra.mxu0 %v12034
  %12100 = vmatprep.subr.bf16.mxu0 %v12037
  %12101 = vmatpush1.bf16.msra.mxu0 %v12036
  %12102 = vmatprep.subr.bf16.mxu0 %v12039
  %12103 = vmatpush1.bf16.msra.mxu0 %v12038
  %12104 = vmatprep.subr.bf16.mxu0 %v12041
  %12105 = vmatpush1.bf16.msra.mxu0 %v12040
  %12106 = vmatprep.subr.bf16.mxu0 %v12043
  %12107 = vmatpush1.bf16.msra.mxu0 %v12042
  %12108 = vmatprep.subr.bf16.mxu0 %v12045
  %12109 = vmatpush1.bf16.msra.mxu0 %v12044
  %12110 = vmatprep.subr.bf16.mxu0 %v12047
  %12111 = vmatpush1.bf16.msra.mxu0 %v12046
  %12112 = vmatprep.subr.bf16.mxu0 %v12049
  %12113 = vmatpush1.bf16.msra.mxu0 %v12048
  %12114 = vmatprep.subr.bf16.mxu0 %v12051
  %12115 = vmatpush1.bf16.msra.mxu0 %v12050
  %12116 = vmatprep.subr.bf16.mxu0 %v12053
  %12117 = vmatpush1.bf16.msra.mxu0 %v12052
  %12118 = vmatprep.subr.bf16.mxu0 %v12055
  %12119 = vmatpush1.bf16.msra.mxu0 %v12054
  %12120 = vmatprep.subr.bf16.mxu0 %v12057
  %12121 = vmatpush1.bf16.msra.mxu0 %v12056
  %12122 = vmatprep.subr.bf16.mxu0 %v12059
  %12123 = vmatpush1.bf16.msra.mxu0 %v12058
  %12124 = vmatprep.subr.bf16.mxu0 %v12061
  %12125 = vmatpush1.bf16.msra.mxu0 %v12060
  %12126 = vmatprep.subr.bf16.mxu0 %v12063
  %12127 = vmatpush1.bf16.msra.mxu0 %v12062
  %12128 = vmatprep.mubr.bf16.mxu0 %v11935
  %12129 = vmatmul.mubr.bf16.gmra.mrb[0].mxu0 %v11934
  %v12130 = vpop.f32.mrb[0].mxu0
  %v12131 = vadd.f32 0.0, %v12130
  %v12132 = vpop.f32.mrb[0].mxu0
  %v12133 = vadd.f32 0.0, %v12132
  %v12134 = vpop.f32.mrb[0].mxu0
  %v12135 = vpop.f32.mrb[0].mxu0
  %12136 = vdwg.mxu0
  %v12137 = vrot.slane %v12131, 4
  %v12138 = vadd.f32 %v12131, %v12137
  %v12139 = vrot.slane %v12138, 2
  %v12140 = vadd.f32 %v12138, %v12139
  %v12141 = vrot.slane %v12140, 1
  %v12142 = vadd.f32 %v12140, %v12141
  %v12143 = vrot.slane %v12133, 4
  %v12144 = vadd.f32 %v12133, %v12143
  %v12145 = vrot.slane %v12144, 2
  %v12146 = vadd.f32 %v12144, %v12145
  %v12147 = vrot.slane %v12146, 1
  %v12148 = vadd.f32 %v12146, %v12147
  %v12149 = vmul.f32 %v12131, %v12131
  %v12150 = vmul.f32 %v12133, %v12133
  %v12151 = vrot.slane %v12149, 4
  %v12152 = vadd.f32 %v12149, %v12151
  %v12153 = vrot.slane %v12152, 2
  %v12154 = vadd.f32 %v12152, %v12153
  %v12155 = vrot.slane %v12154, 1
  %v12156 = vadd.f32 %v12154, %v12155
  %v12157 = vrot.slane %v12150, 4
  %v12158 = vadd.f32 %v12150, %v12157
  %v12159 = vrot.slane %v12158, 2
  %v12160 = vadd.f32 %v12158, %v12159
  %v12161 = vrot.slane %v12160, 1
  %v12162 = vadd.f32 %v12160, %v12161
  %v12163 = vmul.f32 %v12142, 0.125
  %v12164 = vmul.f32 %v12148, 0.125
  %v12165 = vmul.f32 %v12156, 0.125
  %v12166 = vmul.f32 %v12162, 0.125
  %v12167 = vmul.f32 %v12163, %v12163
  %v12168 = vmul.f32 %v12164, %v12164
  %v12169 = vsub.f32 %v12165, %v12167
  %v12170 = vsub.f32 %v12166, %v12168
  %v12171 = vmax.f32 %v12169, 0.0
  %v12172 = vmax.f32 %v12170, 0.0
  %v12173 = vsub.f32 %v12131, %v12163
  %v12174 = vsub.f32 %v12133, %v12164
  %v12175 = vadd.f32 %v12171, 1e-05
  %v12176 = vadd.f32 %v12172, 1e-05
  %v12177 = vrsqrt.pop %v12175
  %v12178 = vrsqrt.pop %v12176
  %v12179 = vmul.f32 %v12173, %v12177
  %v12180 = vmul.f32 %v12174, %v12178
  %v12181 = vld [vmem:[%s2 + $0x42] sm:$0x3]
  %v12183 = vlaneseq
  %v12184 = vshrl.u32 %v12183, 7
  %v12185 = vsub.s32 0, %v12184
  %v12186 = vrot.slane %v12181, %v12185
  %v12187 = vlaneseq
  %v12188 = vshrl.u32 %v12187, 7
  %v12189 = vsub.s32 1, %v12188
  %v12190 = vrot.slane %v12181, %v12189
  %v12193 = vmul.f32 %v12179, %v12186
  %v12194 = vmul.f32 %v12180, %v12190
  %v12195 = vld [vmem:[%s2 + $0x44] sm:$0x3]
  %v12197 = vlaneseq
  %v12198 = vshrl.u32 %v12197, 7
  %v12199 = vsub.s32 0, %v12198
  %v12200 = vrot.slane %v12195, %v12199
  %v12201 = vlaneseq
  %v12202 = vshrl.u32 %v12201, 7
  %v12203 = vsub.s32 1, %v12202
  %v12204 = vrot.slane %v12195, %v12203
  %v12207 = vadd.f32 %v12193, %v12200
  %v12208 = vadd.f32 %v12194, %v12204
  %v12209 = vmax.f32 %v12207, 0.0
  %v12210 = vmax.f32 %v12208, 0.0
  %s12211 = scalar_lea.vmem %s7, 2048
  %v12212 = vld [vmem:[%s12211] sm:$0xff]
  %v12213 = vld [vmem:[%s12211 + $0x8] sm:$0xff]
  %v12214 = vld [vmem:[%s12211 + $0x10] sm:$0xff]
  %v12215 = vld [vmem:[%s12211 + $0x18] sm:$0xff]
  %v12216 = vld [vmem:[%s12211 + $0x20] sm:$0xff]
  %v12217 = vld [vmem:[%s12211 + $0x28] sm:$0xff]
  %v12218 = vld [vmem:[%s12211 + $0x30] sm:$0xff]
  %v12219 = vld [vmem:[%s12211 + $0x38] sm:$0xff]
  %v12220 = vld [vmem:[%s12211 + $0x40] sm:$0xff]
  %v12221 = vld [vmem:[%s12211 + $0x48] sm:$0xff]
  %v12222 = vld [vmem:[%s12211 + $0x50] sm:$0xff]
  %v12223 = vld [vmem:[%s12211 + $0x58] sm:$0xff]
  %v12224 = vld [vmem:[%s12211 + $0x60] sm:$0xff]
  %v12225 = vld [vmem:[%s12211 + $0x68] sm:$0xff]
  %v12226 = vld [vmem:[%s12211 + $0x70] sm:$0xff]
  %v12227 = vld [vmem:[%s12211 + $0x78] sm:$0xff]
  %v12228 = vld [vmem:[%s12211 + $0x80] sm:$0xff]
  %v12229 = vld [vmem:[%s12211 + $0x88] sm:$0xff]
  %v12230 = vld [vmem:[%s12211 + $0x90] sm:$0xff]
  %v12231 = vld [vmem:[%s12211 + $0x98] sm:$0xff]
  %v12232 = vld [vmem:[%s12211 + $0xa0] sm:$0xff]
  %v12233 = vld [vmem:[%s12211 + $0xa8] sm:$0xff]
  %v12234 = vld [vmem:[%s12211 + $0xb0] sm:$0xff]
  %v12235 = vld [vmem:[%s12211 + $0xb8] sm:$0xff]
  %v12236 = vld [vmem:[%s12211 + $0xc0] sm:$0xff]
  %v12237 = vld [vmem:[%s12211 + $0xc8] sm:$0xff]
  %v12238 = vld [vmem:[%s12211 + $0xd0] sm:$0xff]
  %v12239 = vld [vmem:[%s12211 + $0xd8] sm:$0xff]
  %v12240 = vld [vmem:[%s12211 + $0xe0] sm:$0xff]
  %v12241 = vld [vmem:[%s12211 + $0xe8] sm:$0xff]
  %v12242 = vld [vmem:[%s12211 + $0xf0] sm:$0xff]
  %v12243 = vld [vmem:[%s12211 + $0xf8] sm:$0xff]
  %v12244 = vpack.c.bf16 %v12209, %v12209
  %v12245 = vpack.c.bf16 %v12210, %v12210
  %v12278 = vunpack.c.l.b16 %v12212
  %v12279 = vunpack.c.h.b16 %v12212
  %v12280 = vunpack.c.l.b16 %v12213
  %v12281 = vunpack.c.h.b16 %v12213
  %v12282 = vunpack.c.l.b16 %v12214
  %v12283 = vunpack.c.h.b16 %v12214
  %v12284 = vunpack.c.l.b16 %v12215
  %v12285 = vunpack.c.h.b16 %v12215
  %v12286 = vunpack.c.l.b16 %v12216
  %v12287 = vunpack.c.h.b16 %v12216
  %v12288 = vunpack.c.l.b16 %v12217
  %v12289 = vunpack.c.h.b16 %v12217
  %v12290 = vunpack.c.l.b16 %v12218
  %v12291 = vunpack.c.h.b16 %v12218
  %v12292 = vunpack.c.l.b16 %v12219
  %v12293 = vunpack.c.h.b16 %v12219
  %v12294 = vunpack.c.l.b16 %v12220
  %v12295 = vunpack.c.h.b16 %v12220
  %v12296 = vunpack.c.l.b16 %v12221
  %v12297 = vunpack.c.h.b16 %v12221
  %v12298 = vunpack.c.l.b16 %v12222
  %v12299 = vunpack.c.h.b16 %v12222
  %v12300 = vunpack.c.l.b16 %v12223
  %v12301 = vunpack.c.h.b16 %v12223
  %v12302 = vunpack.c.l.b16 %v12224
  %v12303 = vunpack.c.h.b16 %v12224
  %v12304 = vunpack.c.l.b16 %v12225
  %v12305 = vunpack.c.h.b16 %v12225
  %v12306 = vunpack.c.l.b16 %v12226
  %v12307 = vunpack.c.h.b16 %v12226
  %v12308 = vunpack.c.l.b16 %v12227
  %v12309 = vunpack.c.h.b16 %v12227
  %v12310 = vunpack.c.l.b16 %v12228
  %v12311 = vunpack.c.h.b16 %v12228
  %v12312 = vunpack.c.l.b16 %v12229
  %v12313 = vunpack.c.h.b16 %v12229
  %v12314 = vunpack.c.l.b16 %v12230
  %v12315 = vunpack.c.h.b16 %v12230
  %v12316 = vunpack.c.l.b16 %v12231
  %v12317 = vunpack.c.h.b16 %v12231
  %v12318 = vunpack.c.l.b16 %v12232
  %v12319 = vunpack.c.h.b16 %v12232
  %v12320 = vunpack.c.l.b16 %v12233
  %v12321 = vunpack.c.h.b16 %v12233
  %v12322 = vunpack.c.l.b16 %v12234
  %v12323 = vunpack.c.h.b16 %v12234
  %v12324 = vunpack.c.l.b16 %v12235
  %v12325 = vunpack.c.h.b16 %v12235
  %v12326 = vunpack.c.l.b16 %v12236
  %v12327 = vunpack.c.h.b16 %v12236
  %v12328 = vunpack.c.l.b16 %v12237
  %v12329 = vunpack.c.h.b16 %v12237
  %v12330 = vunpack.c.l.b16 %v12238
  %v12331 = vunpack.c.h.b16 %v12238
  %v12332 = vunpack.c.l.b16 %v12239
  %v12333 = vunpack.c.h.b16 %v12239
  %v12334 = vunpack.c.l.b16 %v12240
  %v12335 = vunpack.c.h.b16 %v12240
  %v12336 = vunpack.c.l.b16 %v12241
  %v12337 = vunpack.c.h.b16 %v12241
  %v12338 = vunpack.c.l.b16 %v12242
  %v12339 = vunpack.c.h.b16 %v12242
  %v12340 = vunpack.c.l.b16 %v12243
  %v12341 = vunpack.c.h.b16 %v12243
  %v12342 = vpack.c.b16 %v12280, %v12278
  %v12343 = vpack.c.b16 %v12281, %v12279
  %v12344 = vpack.c.b16 %v12284, %v12282
  %v12345 = vpack.c.b16 %v12285, %v12283
  %v12346 = vpack.c.b16 %v12288, %v12286
  %v12347 = vpack.c.b16 %v12289, %v12287
  %v12348 = vpack.c.b16 %v12292, %v12290
  %v12349 = vpack.c.b16 %v12293, %v12291
  %v12350 = vpack.c.b16 %v12296, %v12294
  %v12351 = vpack.c.b16 %v12297, %v12295
  %v12352 = vpack.c.b16 %v12300, %v12298
  %v12353 = vpack.c.b16 %v12301, %v12299
  %v12354 = vpack.c.b16 %v12304, %v12302
  %v12355 = vpack.c.b16 %v12305, %v12303
  %v12356 = vpack.c.b16 %v12308, %v12306
  %v12357 = vpack.c.b16 %v12309, %v12307
  %v12358 = vpack.c.b16 %v12312, %v12310
  %v12359 = vpack.c.b16 %v12313, %v12311
  %v12360 = vpack.c.b16 %v12316, %v12314
  %v12361 = vpack.c.b16 %v12317, %v12315
  %v12362 = vpack.c.b16 %v12320, %v12318
  %v12363 = vpack.c.b16 %v12321, %v12319
  %v12364 = vpack.c.b16 %v12324, %v12322
  %v12365 = vpack.c.b16 %v12325, %v12323
  %v12366 = vpack.c.b16 %v12328, %v12326
  %v12367 = vpack.c.b16 %v12329, %v12327
  %v12368 = vpack.c.b16 %v12332, %v12330
  %v12369 = vpack.c.b16 %v12333, %v12331
  %v12370 = vpack.c.b16 %v12336, %v12334
  %v12371 = vpack.c.b16 %v12337, %v12335
  %v12372 = vpack.c.b16 %v12340, %v12338
  %v12373 = vpack.c.b16 %v12341, %v12339
  %12406 = vmatprep.subr.bf16.mxu0 %v12343
  %12407 = vmatpush1.bf16.msra.mxu0 %v12342
  %12408 = vmatprep.subr.bf16.mxu0 %v12345
  %12409 = vmatpush1.bf16.msra.mxu0 %v12344
  %12410 = vmatprep.subr.bf16.mxu0 %v12347
  %12411 = vmatpush1.bf16.msra.mxu0 %v12346
  %12412 = vmatprep.subr.bf16.mxu0 %v12349
  %12413 = vmatpush1.bf16.msra.mxu0 %v12348
  %12414 = vmatprep.subr.bf16.mxu0 %v12351
  %12415 = vmatpush1.bf16.msra.mxu0 %v12350
  %12416 = vmatprep.subr.bf16.mxu0 %v12353
  %12417 = vmatpush1.bf16.msra.mxu0 %v12352
  %12418 = vmatprep.subr.bf16.mxu0 %v12355
  %12419 = vmatpush1.bf16.msra.mxu0 %v12354
  %12420 = vmatprep.subr.bf16.mxu0 %v12357
  %12421 = vmatpush1.bf16.msra.mxu0 %v12356
  %12422 = vmatprep.subr.bf16.mxu0 %v12359
  %12423 = vmatpush1.bf16.msra.mxu0 %v12358
  %12424 = vmatprep.subr.bf16.mxu0 %v12361
  %12425 = vmatpush1.bf16.msra.mxu0 %v12360
  %12426 = vmatprep.subr.bf16.mxu0 %v12363
  %12427 = vmatpush1.bf16.msra.mxu0 %v12362
  %12428 = vmatprep.subr.bf16.mxu0 %v12365
  %12429 = vmatpush1.bf16.msra.mxu0 %v12364
  %12430 = vmatprep.subr.bf16.mxu0 %v12367
  %12431 = vmatpush1.bf16.msra.mxu0 %v12366
  %12432 = vmatprep.subr.bf16.mxu0 %v12369
  %12433 = vmatpush1.bf16.msra.mxu0 %v12368
  %12434 = vmatprep.subr.bf16.mxu0 %v12371
  %12435 = vmatpush1.bf16.msra.mxu0 %v12370
  %12436 = vmatprep.subr.bf16.mxu0 %v12373
  %12437 = vmatpush1.bf16.msra.mxu0 %v12372
  %12438 = vmatprep.mubr.bf16.mxu0 %v12245
  %12439 = vmatmul.mubr.bf16.gmra.mrb[0].mxu0 %v12244
  %v12440 = vpop.f32.mrb[0].mxu0
  %v12441 = vadd.f32 0.0, %v12440
  %v12442 = vpop.f32.mrb[0].mxu0
  %v12443 = vadd.f32 0.0, %v12442
  %v12444 = vpop.f32.mrb[0].mxu0
  %v12445 = vpop.f32.mrb[0].mxu0
  %12446 = vdwg.mxu0
  %v12447 = vrot.slane %v12441, 4
  %v12448 = vadd.f32 %v12441, %v12447
  %v12449 = vrot.slane %v12448, 2
  %v12450 = vadd.f32 %v12448, %v12449
  %v12451 = vrot.slane %v12450, 1
  %v12452 = vadd.f32 %v12450, %v12451
  %v12453 = vrot.slane %v12443, 4
  %v12454 = vadd.f32 %v12443, %v12453
  %v12455 = vrot.slane %v12454, 2
  %v12456 = vadd.f32 %v12454, %v12455
  %v12457 = vrot.slane %v12456, 1
  %v12458 = vadd.f32 %v12456, %v12457
  %v12459 = vmul.f32 %v12441, %v12441
  %v12460 = vmul.f32 %v12443, %v12443
  %v12461 = vrot.slane %v12459, 4
  %v12462 = vadd.f32 %v12459, %v12461
  %v12463 = vrot.slane %v12462, 2
  %v12464 = vadd.f32 %v12462, %v12463
  %v12465 = vrot.slane %v12464, 1
  %v12466 = vadd.f32 %v12464, %v12465
  %v12467 = vrot.slane %v12460, 4
  %v12468 = vadd.f32 %v12460, %v12467
  %v12469 = vrot.slane %v12468, 2
  %v12470 = vadd.f32 %v12468, %v12469
  %v12471 = vrot.slane %v12470, 1
  %v12472 = vadd.f32 %v12470, %v12471
  %v12473 = vmul.f32 %v12452, 0.125
  %v12474 = vmul.f32 %v12458, 0.125
  %v12475 = vmul.f32 %v12466, 0.125
  %v12476 = vmul.f32 %v12472, 0.125
  %v12477 = vmul.f32 %v12473, %v12473
  %v12478 = vmul.f32 %v12474, %v12474
  %v12479 = vsub.f32 %v12475, %v12477
  %v12480 = vsub.f32 %v12476, %v12478
  %v12481 = vmax.f32 %v12479, 0.0
  %v12482 = vmax.f32 %v12480, 0.0
  %v12483 = vsub.f32 %v12441, %v12473
  %v12484 = vsub.f32 %v12443, %v12474
  %v12485 = vadd.f32 %v12481, 1e-05
  %v12486 = vadd.f32 %v12482, 1e-05
  %v12487 = vrsqrt.pop %v12485
  %v12488 = vrsqrt.pop %v12486
  %v12489 = vmul.f32 %v12483, %v12487
  %v12490 = vmul.f32 %v12484, %v12488
  %v12491 = vld [vmem:[%s2 + $0x46] sm:$0x3]
  %v12493 = vlaneseq
  %v12494 = vshrl.u32 %v12493, 7
  %v12495 = vsub.s32 0, %v12494
  %v12496 = vrot.slane %v12491, %v12495
  %v12497 = vlaneseq
  %v12498 = vshrl.u32 %v12497, 7
  %v12499 = vsub.s32 1, %v12498
  %v12500 = vrot.slane %v12491, %v12499
  %v12503 = vmul.f32 %v12489, %v12496
  %v12504 = vmul.f32 %v12490, %v12500
  %v12505 = vld [vmem:[%s2 + $0x48] sm:$0x3]
  %v12507 = vlaneseq
  %v12508 = vshrl.u32 %v12507, 7
  %v12509 = vsub.s32 0, %v12508
  %v12510 = vrot.slane %v12505, %v12509
  %v12511 = vlaneseq
  %v12512 = vshrl.u32 %v12511, 7
  %v12513 = vsub.s32 1, %v12512
  %v12514 = vrot.slane %v12505, %v12513
  %v12517 = vadd.f32 %v12503, %v12510
  %v12518 = vadd.f32 %v12504, %v12514
  %v12519 = vadd.f32 %v12517, %v11899
  %v12520 = vadd.f32 %v12518, %v11900
  %v12521 = vmax.f32 %v12519, 0.0
  %v12522 = vmax.f32 %v12520, 0.0
  %s12523 = scalar_lea.vmem %s10, 128
  %v12524 = vld [vmem:[%s12523] sm:$0xf]
  %v12525 = vld [vmem:[%s12523 + $0x4] sm:$0xf]
  %v12526 = vld [vmem:[%s12523 + $0x8] sm:$0xf]
  %v12527 = vld [vmem:[%s12523 + $0xc] sm:$0xf]
  %v12528 = vld [vmem:[%s12523 + $0x10] sm:$0xf]
  %v12529 = vld [vmem:[%s12523 + $0x14] sm:$0xf]
  %v12530 = vld [vmem:[%s12523 + $0x18] sm:$0xf]
  %v12531 = vld [vmem:[%s12523 + $0x1c] sm:$0xf]
  %v12532 = vld [vmem:[%s12523 + $0x20] sm:$0xf]
  %v12533 = vld [vmem:[%s12523 + $0x24] sm:$0xf]
  %v12534 = vld [vmem:[%s12523 + $0x28] sm:$0xf]
  %v12535 = vld [vmem:[%s12523 + $0x2c] sm:$0xf]
  %v12536 = vld [vmem:[%s12523 + $0x30] sm:$0xf]
  %v12537 = vld [vmem:[%s12523 + $0x34] sm:$0xf]
  %v12538 = vld [vmem:[%s12523 + $0x38] sm:$0xf]
  %v12539 = vld [vmem:[%s12523 + $0x3c] sm:$0xf]
  %v12540 = vld [vmem:[%s12523 + $0x40] sm:$0xf]
  %v12541 = vld [vmem:[%s12523 + $0x44] sm:$0xf]
  %v12542 = vld [vmem:[%s12523 + $0x48] sm:$0xf]
  %v12543 = vld [vmem:[%s12523 + $0x4c] sm:$0xf]
  %v12544 = vld [vmem:[%s12523 + $0x50] sm:$0xf]
  %v12545 = vld [vmem:[%s12523 + $0x54] sm:$0xf]
  %v12546 = vld [vmem:[%s12523 + $0x58] sm:$0xf]
  %v12547 = vld [vmem:[%s12523 + $0x5c] sm:$0xf]
  %v12548 = vld [vmem:[%s12523 + $0x60] sm:$0xf]
  %v12549 = vld [vmem:[%s12523 + $0x64] sm:$0xf]
  %v12550 = vld [vmem:[%s12523 + $0x68] sm:$0xf]
  %v12551 = vld [vmem:[%s12523 + $0x6c] sm:$0xf]
  %v12552 = vld [vmem:[%s12523 + $0x70] sm:$0xf]
  %v12553 = vld [vmem:[%s12523 + $0x74] sm:$0xf]
  %v12554 = vld [vmem:[%s12523 + $0x78] sm:$0xf]
  %v12555 = vld [vmem:[%s12523 + $0x7c] sm:$0xf]
  %v12556 = vpack.c.bf16 %v12521, %v12521
  %v12557 = vpack.c.bf16 %v12522, %v12522
  %v12590 = vunpack.c.l.b16 %v12524
  %v12591 = vunpack.c.l.b16 %v12525
  %v12592 = vunpack.c.l.b16 %v12526
  %v12593 = vunpack.c.l.b16 %v12527
  %v12594 = vunpack.c.l.b16 %v12528
  %v12595 = vunpack.c.l.b16 %v12529
  %v12596 = vunpack.c.l.b16 %v12530
  %v12597 = vunpack.c.l.b16 %v12531
  %v12598 = vunpack.c.l.b16 %v12532
  %v12599 = vunpack.c.l.b16 %v12533
  %v12600 = vunpack.c.l.b16 %v12534
  %v12601 = vunpack.c.l.b16 %v12535
  %v12602 = vunpack.c.l.b16 %v12536
  %v12603 = vunpack.c.l.b16 %v12537
  %v12604 = vunpack.c.l.b16 %v12538
  %v12605 = vunpack.c.l.b16 %v12539
  %v12606 = vunpack.c.l.b16 %v12540
  %v12607 = vunpack.c.l.b16 %v12541
  %v12608 = vunpack.c.l.b16 %v12542
  %v12609 = vunpack.c.l.b16 %v12543
  %v12610 = vunpack.c.l.b16 %v12544
  %v12611 = vunpack.c.l.b16 %v12545
  %v12612 = vunpack.c.l.b16 %v12546
  %v12613 = vunpack.c.l.b16 %v12547
  %v12614 = vunpack.c.l.b16 %v12548
  %v12615 = vunpack.c.l.b16 %v12549
  %v12616 = vunpack.c.l.b16 %v12550
  %v12617 = vunpack.c.l.b16 %v12551
  %v12618 = vunpack.c.l.b16 %v12552
  %v12619 = vunpack.c.l.b16 %v12553
  %v12620 = vunpack.c.l.b16 %v12554
  %v12621 = vunpack.c.l.b16 %v12555
  %v12622 = vpack.c.b16 %v12591, %v12590
  %v12623 = vpack.c.b16 %v12593, %v12592
  %v12624 = vpack.c.b16 %v12595, %v12594
  %v12625 = vpack.c.b16 %v12597, %v12596
  %v12626 = vpack.c.b16 %v12599, %v12598
  %v12627 = vpack.c.b16 %v12601, %v12600
  %v12628 = vpack.c.b16 %v12603, %v12602
  %v12629 = vpack.c.b16 %v12605, %v12604
  %v12630 = vpack.c.b16 %v12607, %v12606
  %v12631 = vpack.c.b16 %v12609, %v12608
  %v12632 = vpack.c.b16 %v12611, %v12610
  %v12633 = vpack.c.b16 %v12613, %v12612
  %v12634 = vpack.c.b16 %v12615, %v12614
  %v12635 = vpack.c.b16 %v12617, %v12616
  %v12636 = vpack.c.b16 %v12619, %v12618
  %v12637 = vpack.c.b16 %v12621, %v12620
  %12654 = vmatprep.subr.bf16.mxu0 0
  %12655 = vmatpush1.bf16.msra.mxu0 %v12622
  %12656 = vmatprep.subr.bf16.mxu0 0
  %12657 = vmatpush1.bf16.msra.mxu0 %v12623
  %12658 = vmatprep.subr.bf16.mxu0 0
  %12659 = vmatpush1.bf16.msra.mxu0 %v12624
  %12660 = vmatprep.subr.bf16.mxu0 0
  %12661 = vmatpush1.bf16.msra.mxu0 %v12625
  %12662 = vmatprep.subr.bf16.mxu0 0
  %12663 = vmatpush1.bf16.msra.mxu0 %v12626
  %12664 = vmatprep.subr.bf16.mxu0 0
  %12665 = vmatpush1.bf16.msra.mxu0 %v12627
  %12666 = vmatprep.subr.bf16.mxu0 0
  %12667 = vmatpush1.bf16.msra.mxu0 %v12628
  %12668 = vmatprep.subr.bf16.mxu0 0
  %12669 = vmatpush1.bf16.msra.mxu0 %v12629
  %12670 = vmatprep.subr.bf16.mxu0 0
  %12671 = vmatpush1.bf16.msra.mxu0 %v12630
  %12672 = vmatprep.subr.bf16.mxu0 0
  %12673 = vmatpush1.bf16.msra.mxu0 %v12631
  %12674 = vmatprep.subr.bf16.mxu0 0
  %12675 = vmatpush1.bf16.msra.mxu0 %v12632
  %12676 = vmatprep.subr.bf16.mxu0 0
  %12677 = vmatpush1.bf16.msra.mxu0 %v12633
  %12678 = vmatprep.subr.bf16.mxu0 0
  %12679 = vmatpush1.bf16.msra.mxu0 %v12634
  %12680 = vmatprep.subr.bf16.mxu0 0
  %12681 = vmatpush1.bf16.msra.mxu0 %v12635
  %12682 = vmatprep.subr.bf16.mxu0 0
  %12683 = vmatpush1.bf16.msra.mxu0 %v12636
  %12684 = vmatprep.subr.bf16.mxu0 0
  %12685 = vmatpush1.bf16.msra.mxu0 %v12637
  %12686 = vmatprep.mubr.bf16.mxu0 %v12557
  %12687 = vmatmul.mubr.bf16.gmra.mrb[0].mxu0 %v12556
  %v12688 = vpop.f32.mrb[0].mxu0
  %v12689 = vadd.f32 0.0, %v12688
  %v12690 = vpop.f32.mrb[0].mxu0
  %v12691 = vpop.f32.mrb[0].mxu0
  %v12692 = vpop.f32.mrb[0].mxu0
  %12693 = vdwg.mxu0
  %v12694 = vld [vmem:[%s10] sm:$0xf]
  %v12695 = vld [vmem:[%s10 + $0x4] sm:$0xf]
  %v12696 = vld [vmem:[%s10 + $0x8] sm:$0xf]
  %v12697 = vld [vmem:[%s10 + $0xc] sm:$0xf]
  %v12698 = vld [vmem:[%s10 + $0x10] sm:$0xf]
  %v12699 = vld [vmem:[%s10 + $0x14] sm:$0xf]
  %v12700 = vld [vmem:[%s10 + $0x18] sm:$0xf]
  %v12701 = vld [vmem:[%s10 + $0x1c] sm:$0xf]
  %v12702 = vld [vmem:[%s10 + $0x20] sm:$0xf]
  %v12703 = vld [vmem:[%s10 + $0x24] sm:$0xf]
  %v12704 = vld [vmem:[%s10 + $0x28] sm:$0xf]
  %v12705 = vld [vmem:[%s10 + $0x2c] sm:$0xf]
  %v12706 = vld [vmem:[%s10 + $0x30] sm:$0xf]
  %v12707 = vld [vmem:[%s10 + $0x34] sm:$0xf]
  %v12708 = vld [vmem:[%s10 + $0x38] sm:$0xf]
  %v12709 = vld [vmem:[%s10 + $0x3c] sm:$0xf]
  %v12710 = vld [vmem:[%s10 + $0x40] sm:$0xf]
  %v12711 = vld [vmem:[%s10 + $0x44] sm:$0xf]
  %v12712 = vld [vmem:[%s10 + $0x48] sm:$0xf]
  %v12713 = vld [vmem:[%s10 + $0x4c] sm:$0xf]
  %v12714 = vld [vmem:[%s10 + $0x50] sm:$0xf]
  %v12715 = vld [vmem:[%s10 + $0x54] sm:$0xf]
  %v12716 = vld [vmem:[%s10 + $0x58] sm:$0xf]
  %v12717 = vld [vmem:[%s10 + $0x5c] sm:$0xf]
  %v12718 = vld [vmem:[%s10 + $0x60] sm:$0xf]
  %v12719 = vld [vmem:[%s10 + $0x64] sm:$0xf]
  %v12720 = vld [vmem:[%s10 + $0x68] sm:$0xf]
  %v12721 = vld [vmem:[%s10 + $0x6c] sm:$0xf]
  %v12722 = vld [vmem:[%s10 + $0x70] sm:$0xf]
  %v12723 = vld [vmem:[%s10 + $0x74] sm:$0xf]
  %v12724 = vld [vmem:[%s10 + $0x78] sm:$0xf]
  %v12725 = vld [vmem:[%s10 + $0x7c] sm:$0xf]
  %v12758 = vunpack.c.l.b16 %v12694
  %v12759 = vunpack.c.l.b16 %v12695
  %v12760 = vunpack.c.l.b16 %v12696
  %v12761 = vunpack.c.l.b16 %v12697
  %v12762 = vunpack.c.l.b16 %v12698
  %v12763 = vunpack.c.l.b16 %v12699
  %v12764 = vunpack.c.l.b16 %v12700
  %v12765 = vunpack.c.l.b16 %v12701
  %v12766 = vunpack.c.l.b16 %v12702
  %v12767 = vunpack.c.l.b16 %v12703
  %v12768 = vunpack.c.l.b16 %v12704
  %v12769 = vunpack.c.l.b16 %v12705
  %v12770 = vunpack.c.l.b16 %v12706
  %v12771 = vunpack.c.l.b16 %v12707
  %v12772 = vunpack.c.l.b16 %v12708
  %v12773 = vunpack.c.l.b16 %v12709
  %v12774 = vunpack.c.l.b16 %v12710
  %v12775 = vunpack.c.l.b16 %v12711
  %v12776 = vunpack.c.l.b16 %v12712
  %v12777 = vunpack.c.l.b16 %v12713
  %v12778 = vunpack.c.l.b16 %v12714
  %v12779 = vunpack.c.l.b16 %v12715
  %v12780 = vunpack.c.l.b16 %v12716
  %v12781 = vunpack.c.l.b16 %v12717
  %v12782 = vunpack.c.l.b16 %v12718
  %v12783 = vunpack.c.l.b16 %v12719
  %v12784 = vunpack.c.l.b16 %v12720
  %v12785 = vunpack.c.l.b16 %v12721
  %v12786 = vunpack.c.l.b16 %v12722
  %v12787 = vunpack.c.l.b16 %v12723
  %v12788 = vunpack.c.l.b16 %v12724
  %v12789 = vunpack.c.l.b16 %v12725
  %v12790 = vpack.c.b16 %v12759, %v12758
  %v12791 = vpack.c.b16 %v12761, %v12760
  %v12792 = vpack.c.b16 %v12763, %v12762
  %v12793 = vpack.c.b16 %v12765, %v12764
  %v12794 = vpack.c.b16 %v12767, %v12766
  %v12795 = vpack.c.b16 %v12769, %v12768
  %v12796 = vpack.c.b16 %v12771, %v12770
  %v12797 = vpack.c.b16 %v12773, %v12772
  %v12798 = vpack.c.b16 %v12775, %v12774
  %v12799 = vpack.c.b16 %v12777, %v12776
  %v12800 = vpack.c.b16 %v12779, %v12778
  %v12801 = vpack.c.b16 %v12781, %v12780
  %v12802 = vpack.c.b16 %v12783, %v12782
  %v12803 = vpack.c.b16 %v12785, %v12784
  %v12804 = vpack.c.b16 %v12787, %v12786
  %v12805 = vpack.c.b16 %v12789, %v12788
  %12822 = vmatprep.subr.bf16.mxu0 0
  %12823 = vmatpush1.bf16.msra.mxu0 %v12790
  %12824 = vmatprep.subr.bf16.mxu0 0
  %12825 = vmatpush1.bf16.msra.mxu0 %v12791
  %12826 = vmatprep.subr.bf16.mxu0 0
  %12827 = vmatpush1.bf16.msra.mxu0 %v12792
  %12828 = vmatprep.subr.bf16.mxu0 0
  %12829 = vmatpush1.bf16.msra.mxu0 %v12793
  %12830 = vmatprep.subr.bf16.mxu0 0
  %12831 = vmatpush1.bf16.msra.mxu0 %v12794
  %12832 = vmatprep.subr.bf16.mxu0 0
  %12833 = vmatpush1.bf16.msra.mxu0 %v12795
  %12834 = vmatprep.subr.bf16.mxu0 0
  %12835 = vmatpush1.bf16.msra.mxu0 %v12796
  %12836 = vmatprep.subr.bf16.mxu0 0
  %12837 = vmatpush1.bf16.msra.mxu0 %v12797
  %12838 = vmatprep.subr.bf16.mxu0 0
  %12839 = vmatpush1.bf16.msra.mxu0 %v12798
  %12840 = vmatprep.subr.bf16.mxu0 0
  %12841 = vmatpush1.bf16.msra.mxu0 %v12799
  %12842 = vmatprep.subr.bf16.mxu0 0
  %12843 = vmatpush1.bf16.msra.mxu0 %v12800
  %12844 = vmatprep.subr.bf16.mxu0 0
  %12845 = vmatpush1.bf16.msra.mxu0 %v12801
  %12846 = vmatprep.subr.bf16.mxu0 0
  %12847 = vmatpush1.bf16.msra.mxu0 %v12802
  %12848 = vmatprep.subr.bf16.mxu0 0
  %12849 = vmatpush1.bf16.msra.mxu0 %v12803
  %12850 = vmatprep.subr.bf16.mxu0 0
  %12851 = vmatpush1.bf16.msra.mxu0 %v12804
  %12852 = vmatprep.subr.bf16.mxu0 0
  %12853 = vmatpush1.bf16.msra.mxu0 %v12805
  %12854 = vmatprep.mubr.bf16.mxu0 %v12557
  %12855 = vmatmul.mubr.bf16.gmra.mrb[0].mxu0 %v12556
  %v12856 = vpop.f32.mrb[0].mxu0
  %v12857 = vadd.f32 0.0, %v12856
  %v12858 = vpop.f32.mrb[0].mxu0
  %v12859 = vpop.f32.mrb[0].mxu0
  %v12860 = vpop.f32.mrb[0].mxu0
  %12861 = vdwg.mxu0
  %v12862 = vrot.slane %v12857, 4
  %v12863 = vadd.f32 %v12857, %v12862
  %v12864 = vrot.slane %v12863, 2
  %v12865 = vadd.f32 %v12863, %v12864
  %v12866 = vrot.slane %v12865, 1
  %v12867 = vadd.f32 %v12865, %v12866
  %v12868 = vmul.f32 %v12857, %v12857
  %v12869 = vrot.slane %v12868, 4
  %v12870 = vadd.f32 %v12868, %v12869
  %v12871 = vrot.slane %v12870, 2
  %v12872 = vadd.f32 %v12870, %v12871
  %v12873 = vrot.slane %v12872, 1
  %v12874 = vadd.f32 %v12872, %v12873
  %v12875 = vmul.f32 %v12867, 0.125
  %v12876 = vmul.f32 %v12874, 0.125
  %v12877 = vmul.f32 %v12875, %v12875
  %v12878 = vsub.f32 %v12876, %v12877
  %v12879 = vmax.f32 %v12878, 0.0
  %v12880 = vsub.f32 %v12857, %v12875
  %v12881 = vadd.f32 %v12879, 1e-05
  %v12882 = vrsqrt.pop %v12881
  %v12883 = vmul.f32 %v12880, %v12882
  %v12884 = vld [vmem:[%s2 + $0x4a] sm:$0x1]
  %v12886 = vlaneseq
  %v12887 = vshrl.u32 %v12886, 7
  %v12888 = vsub.s32 0, %v12887
  %v12889 = vrot.slane %v12884, %v12888
  %v12891 = vmul.f32 %v12883, %v12889
  %v12892 = vld [vmem:[%s2 + $0x4b] sm:$0x1]
  %v12894 = vlaneseq
  %v12895 = vshrl.u32 %v12894, 7
  %v12896 = vsub.s32 0, %v12895
  %v12897 = vrot.slane %v12892, %v12896
  %v12899 = vadd.f32 %v12891, %v12897
  %v12900 = vmax.f32 %v12899, 0.0
  %s12901 = scalar_lea.vmem %s5, 128
  %v12902 = vld [vmem:[%s12901] sm:$0xf]
  %v12903 = vld [vmem:[%s12901 + $0x4] sm:$0xf]
  %v12904 = vld [vmem:[%s12901 + $0x8] sm:$0xf]
  %v12905 = vld [vmem:[%s12901 + $0xc] sm:$0xf]
  %v12906 = vld [vmem:[%s12901 + $0x10] sm:$0xf]
  %v12907 = vld [vmem:[%s12901 + $0x14] sm:$0xf]
  %v12908 = vld [vmem:[%s12901 + $0x18] sm:$0xf]
  %v12909 = vld [vmem:[%s12901 + $0x1c] sm:$0xf]
  %v12910 = vld [vmem:[%s12901 + $0x20] sm:$0xf]
  %v12911 = vld [vmem:[%s12901 + $0x24] sm:$0xf]
  %v12912 = vld [vmem:[%s12901 + $0x28] sm:$0xf]
  %v12913 = vld [vmem:[%s12901 + $0x2c] sm:$0xf]
  %v12914 = vld [vmem:[%s12901 + $0x30] sm:$0xf]
  %v12915 = vld [vmem:[%s12901 + $0x34] sm:$0xf]
  %v12916 = vld [vmem:[%s12901 + $0x38] sm:$0xf]
  %v12917 = vld [vmem:[%s12901 + $0x3c] sm:$0xf]
  %v12918 = vpack.c.bf16 %v12900, %v12900
  %v12935 = vunpack.c.l.b16 %v12902
  %v12936 = vunpack.c.l.b16 %v12903
  %v12937 = vunpack.c.l.b16 %v12904
  %v12938 = vunpack.c.l.b16 %v12905
  %v12939 = vunpack.c.l.b16 %v12906
  %v12940 = vunpack.c.l.b16 %v12907
  %v12941 = vunpack.c.l.b16 %v12908
  %v12942 = vunpack.c.l.b16 %v12909
  %v12943 = vunpack.c.l.b16 %v12910
  %v12944 = vunpack.c.l.b16 %v12911
  %v12945 = vunpack.c.l.b16 %v12912
  %v12946 = vunpack.c.l.b16 %v12913
  %v12947 = vunpack.c.l.b16 %v12914
  %v12948 = vunpack.c.l.b16 %v12915
  %v12949 = vunpack.c.l.b16 %v12916
  %v12950 = vunpack.c.l.b16 %v12917
  %v12951 = vpack.c.b16 %v12936, %v12935
  %v12952 = vpack.c.b16 %v12938, %v12937
  %v12953 = vpack.c.b16 %v12940, %v12939
  %v12954 = vpack.c.b16 %v12942, %v12941
  %v12955 = vpack.c.b16 %v12944, %v12943
  %v12956 = vpack.c.b16 %v12946, %v12945
  %v12957 = vpack.c.b16 %v12948, %v12947
  %v12958 = vpack.c.b16 %v12950, %v12949
  %12967 = vmatprep.subr.bf16.mxu0 0
  %12968 = vmatpush1.bf16.msra.mxu0 %v12951
  %12969 = vmatprep.subr.bf16.mxu0 0
  %12970 = vmatpush1.bf16.msra.mxu0 %v12952
  %12971 = vmatprep.subr.bf16.mxu0 0
  %12972 = vmatpush1.bf16.msra.mxu0 %v12953
  %12973 = vmatprep.subr.bf16.mxu0 0
  %12974 = vmatpush1.bf16.msra.mxu0 %v12954
  %12975 = vmatprep.subr.bf16.mxu0 0
  %12976 = vmatpush1.bf16.msra.mxu0 %v12955
  %12977 = vmatprep.subr.bf16.mxu0 0
  %12978 = vmatpush1.bf16.msra.mxu0 %v12956
  %12979 = vmatprep.subr.bf16.mxu0 0
  %12980 = vmatpush1.bf16.msra.mxu0 %v12957
  %12981 = vmatprep.subr.bf16.mxu0 0
  %12982 = vmatpush1.bf16.msra.mxu0 %v12958
  %12983 = vmatprep.subr.bf16.mxu0 0
  %12984 = vmatpush1.bf16.msra.mxu0 0
  %12985 = vmatprep.subr.bf16.mxu0 0
  %12986 = vmatpush1.bf16.msra.mxu0 0
  %12987 = vmatprep.subr.bf16.mxu0 0
  %12988 = vmatpush1.bf16.msra.mxu0 0
  %12989 = vmatprep.subr.bf16.mxu0 0
  %12990 = vmatpush1.bf16.msra.mxu0 0
  %12991 = vmatprep.subr.bf16.mxu0 0
  %12992 = vmatpush1.bf16.msra.mxu0 0
  %12993 = vmatprep.subr.bf16.mxu0 0
  %12994 = vmatpush1.bf16.msra.mxu0 0
  %12995 = vmatprep.subr.bf16.mxu0 0
  %12996 = vmatpush1.bf16.msra.mxu0 0
  %12997 = vmatprep.subr.bf16.mxu0 0
  %12998 = vmatpush1.bf16.msra.mxu0 0
  %12999 = vmatprep.mubr.bf16.mxu0 0
  %13000 = vmatmul.mubr.bf16.gmra.mrb[0].mxu0 %v12918
  %v13001 = vpop.f32.mrb[0].mxu0
  %v13002 = vadd.f32 0.0, %v13001
  %v13003 = vpop.f32.mrb[0].mxu0
  %v13004 = vpop.f32.mrb[0].mxu0
  %v13005 = vpop.f32.mrb[0].mxu0
  %13006 = vdwg.mxu0
  %v13007 = vrot.slane %v13002, 4
  %v13008 = vadd.f32 %v13002, %v13007
  %v13009 = vrot.slane %v13008, 2
  %v13010 = vadd.f32 %v13008, %v13009
  %v13011 = vrot.slane %v13010, 1
  %v13012 = vadd.f32 %v13010, %v13011
  %v13013 = vmul.f32 %v13002, %v13002
  %v13014 = vrot.slane %v13013, 4
  %v13015 = vadd.f32 %v13013, %v13014
  %v13016 = vrot.slane %v13015, 2
  %v13017 = vadd.f32 %v13015, %v13016
  %v13018 = vrot.slane %v13017, 1
  %v13019 = vadd.f32 %v13017, %v13018
  %v13020 = vmul.f32 %v13012, 0.125
  %v13021 = vmul.f32 %v13019, 0.125
  %v13022 = vmul.f32 %v13020, %v13020
  %v13023 = vsub.f32 %v13021, %v13022
  %v13024 = vmax.f32 %v13023, 0.0
  %v13025 = vsub.f32 %v13002, %v13020
  %v13026 = vadd.f32 %v13024, 1e-05
  %v13027 = vrsqrt.pop %v13026
  %v13028 = vmul.f32 %v13025, %v13027
  %v13029 = vld [vmem:[%s2 + $0x4c] sm:$0x1]
  %v13031 = vlaneseq
  %v13032 = vshrl.u32 %v13031, 7
  %v13033 = vsub.s32 0, %v13032
  %v13034 = vrot.slane %v13029, %v13033
  %v13036 = vmul.f32 %v13028, %v13034
  %v13037 = vld [vmem:[%s2 + $0x4d] sm:$0x1]
  %v13039 = vlaneseq
  %v13040 = vshrl.u32 %v13039, 7
  %v13041 = vsub.s32 0, %v13040
  %v13042 = vrot.slane %v13037, %v13041
  %v13044 = vadd.f32 %v13036, %v13042
  %v13045 = vadd.f32 %v13044, %v12689
  %v13046 = vmax.f32 %v13045, 0.0
  %s13047 = scalar_lea.vmem %s5, 192
  %v13048 = vld [vmem:[%s13047] sm:$0xf]
  %v13049 = vld [vmem:[%s13047 + $0x4] sm:$0xf]
  %v13050 = vld [vmem:[%s13047 + $0x8] sm:$0xf]
  %v13051 = vld [vmem:[%s13047 + $0xc] sm:$0xf]
  %v13052 = vld [vmem:[%s13047 + $0x10] sm:$0xf]
  %v13053 = vld [vmem:[%s13047 + $0x14] sm:$0xf]
  %v13054 = vld [vmem:[%s13047 + $0x18] sm:$0xf]
  %v13055 = vld [vmem:[%s13047 + $0x1c] sm:$0xf]
  %v13056 = vld [vmem:[%s13047 + $0x20] sm:$0xf]
  %v13057 = vld [vmem:[%s13047 + $0x24] sm:$0xf]
  %v13058 = vld [vmem:[%s13047 + $0x28] sm:$0xf]
  %v13059 = vld [vmem:[%s13047 + $0x2c] sm:$0xf]
  %v13060 = vld [vmem:[%s13047 + $0x30] sm:$0xf]
  %v13061 = vld [vmem:[%s13047 + $0x34] sm:$0xf]
  %v13062 = vld [vmem:[%s13047 + $0x38] sm:$0xf]
  %v13063 = vld [vmem:[%s13047 + $0x3c] sm:$0xf]
  %v13064 = vpack.c.bf16 %v13046, %v13046
  %v13081 = vunpack.c.l.b16 %v13048
  %v13082 = vunpack.c.l.b16 %v13049
  %v13083 = vunpack.c.l.b16 %v13050
  %v13084 = vunpack.c.l.b16 %v13051
  %v13085 = vunpack.c.l.b16 %v13052
  %v13086 = vunpack.c.l.b16 %v13053
  %v13087 = vunpack.c.l.b16 %v13054
  %v13088 = vunpack.c.l.b16 %v13055
  %v13089 = vunpack.c.l.b16 %v13056
  %v13090 = vunpack.c.l.b16 %v13057
  %v13091 = vunpack.c.l.b16 %v13058
  %v13092 = vunpack.c.l.b16 %v13059
  %v13093 = vunpack.c.l.b16 %v13060
  %v13094 = vunpack.c.l.b16 %v13061
  %v13095 = vunpack.c.l.b16 %v13062
  %v13096 = vunpack.c.l.b16 %v13063
  %v13097 = vpack.c.b16 %v13082, %v13081
  %v13098 = vpack.c.b16 %v13084, %v13083
  %v13099 = vpack.c.b16 %v13086, %v13085
  %v13100 = vpack.c.b16 %v13088, %v13087
  %v13101 = vpack.c.b16 %v13090, %v13089
  %v13102 = vpack.c.b16 %v13092, %v13091
  %v13103 = vpack.c.b16 %v13094, %v13093
  %v13104 = vpack.c.b16 %v13096, %v13095
  %13113 = vmatprep.subr.bf16.mxu0 0
  %13114 = vmatpush1.bf16.msra.mxu0 %v13097
  %13115 = vmatprep.subr.bf16.mxu0 0
  %13116 = vmatpush1.bf16.msra.mxu0 %v13098
  %13117 = vmatprep.subr.bf16.mxu0 0
  %13118 = vmatpush1.bf16.msra.mxu0 %v13099
  %13119 = vmatprep.subr.bf16.mxu0 0
  %13120 = vmatpush1.bf16.msra.mxu0 %v13100
  %13121 = vmatprep.subr.bf16.mxu0 0
  %13122 = vmatpush1.bf16.msra.mxu0 %v13101
  %13123 = vmatprep.subr.bf16.mxu0 0
  %13124 = vmatpush1.bf16.msra.mxu0 %v13102
  %13125 = vmatprep.subr.bf16.mxu0 0
  %13126 = vmatpush1.bf16.msra.mxu0 %v13103
  %13127 = vmatprep.subr.bf16.mxu0 0
  %13128 = vmatpush1.bf16.msra.mxu0 %v13104
  %13129 = vmatprep.subr.bf16.mxu0 0
  %13130 = vmatpush1.bf16.msra.mxu0 0
  %13131 = vmatprep.subr.bf16.mxu0 0
  %13132 = vmatpush1.bf16.msra.mxu0 0
  %13133 = vmatprep.subr.bf16.mxu0 0
  %13134 = vmatpush1.bf16.msra.mxu0 0
  %13135 = vmatprep.subr.bf16.mxu0 0
  %13136 = vmatpush1.bf16.msra.mxu0 0
  %13137 = vmatprep.subr.bf16.mxu0 0
  %13138 = vmatpush1.bf16.msra.mxu0 0
  %13139 = vmatprep.subr.bf16.mxu0 0
  %13140 = vmatpush1.bf16.msra.mxu0 0
  %13141 = vmatprep.subr.bf16.mxu0 0
  %13142 = vmatpush1.bf16.msra.mxu0 0
  %13143 = vmatprep.subr.bf16.mxu0 0
  %13144 = vmatpush1.bf16.msra.mxu0 0
  %13145 = vmatprep.mubr.bf16.mxu0 0
  %13146 = vmatmul.mubr.bf16.gmra.mrb[0].mxu0 %v13064
  %v13147 = vpop.f32.mrb[0].mxu0
  %v13148 = vadd.f32 0.0, %v13147
  %v13149 = vpop.f32.mrb[0].mxu0
  %v13150 = vpop.f32.mrb[0].mxu0
  %v13151 = vpop.f32.mrb[0].mxu0
  %13152 = vdwg.mxu0
  %v13153 = vrot.slane %v13148, 4
  %v13154 = vadd.f32 %v13148, %v13153
  %v13155 = vrot.slane %v13154, 2
  %v13156 = vadd.f32 %v13154, %v13155
  %v13157 = vrot.slane %v13156, 1
  %v13158 = vadd.f32 %v13156, %v13157
  %v13159 = vmul.f32 %v13148, %v13148
  %v13160 = vrot.slane %v13159, 4
  %v13161 = vadd.f32 %v13159, %v13160
  %v13162 = vrot.slane %v13161, 2
  %v13163 = vadd.f32 %v13161, %v13162
  %v13164 = vrot.slane %v13163, 1
  %v13165 = vadd.f32 %v13163, %v13164
  %v13166 = vmul.f32 %v13158, 0.125
  %v13167 = vmul.f32 %v13165, 0.125
  %v13168 = vmul.f32 %v13166, %v13166
  %v13169 = vsub.f32 %v13167, %v13168
  %v13170 = vmax.f32 %v13169, 0.0
  %v13171 = vsub.f32 %v13148, %v13166
  %v13172 = vadd.f32 %v13170, 1e-05
  %v13173 = vrsqrt.pop %v13172
  %v13174 = vmul.f32 %v13171, %v13173
  %v13175 = vld [vmem:[%s2 + $0x4e] sm:$0x1]
  %v13177 = vlaneseq
  %v13178 = vshrl.u32 %v13177, 7
  %v13179 = vsub.s32 0, %v13178
  %v13180 = vrot.slane %v13175, %v13179
  %v13182 = vmul.f32 %v13174, %v13180
  %v13183 = vld [vmem:[%s2 + $0x4f] sm:$0x1]
  %v13185 = vlaneseq
  %v13186 = vshrl.u32 %v13185, 7
  %v13187 = vsub.s32 0, %v13186
  %v13188 = vrot.slane %v13183, %v13187
  %v13190 = vadd.f32 %v13182, %v13188
  %v13191 = vmax.f32 %v13190, 0.0
  %s13192 = scalar_lea.vmem %s5, 256
  %v13193 = vld [vmem:[%s13192] sm:$0xf]
  %v13194 = vld [vmem:[%s13192 + $0x4] sm:$0xf]
  %v13195 = vld [vmem:[%s13192 + $0x8] sm:$0xf]
  %v13196 = vld [vmem:[%s13192 + $0xc] sm:$0xf]
  %v13197 = vld [vmem:[%s13192 + $0x10] sm:$0xf]
  %v13198 = vld [vmem:[%s13192 + $0x14] sm:$0xf]
  %v13199 = vld [vmem:[%s13192 + $0x18] sm:$0xf]
  %v13200 = vld [vmem:[%s13192 + $0x1c] sm:$0xf]
  %v13201 = vld [vmem:[%s13192 + $0x20] sm:$0xf]
  %v13202 = vld [vmem:[%s13192 + $0x24] sm:$0xf]
  %v13203 = vld [vmem:[%s13192 + $0x28] sm:$0xf]
  %v13204 = vld [vmem:[%s13192 + $0x2c] sm:$0xf]
  %v13205 = vld [vmem:[%s13192 + $0x30] sm:$0xf]
  %v13206 = vld [vmem:[%s13192 + $0x34] sm:$0xf]
  %v13207 = vld [vmem:[%s13192 + $0x38] sm:$0xf]
  %v13208 = vld [vmem:[%s13192 + $0x3c] sm:$0xf]
  %v13209 = vpack.c.bf16 %v13191, %v13191
  %v13226 = vunpack.c.l.b16 %v13193
  %v13227 = vunpack.c.l.b16 %v13194
  %v13228 = vunpack.c.l.b16 %v13195
  %v13229 = vunpack.c.l.b16 %v13196
  %v13230 = vunpack.c.l.b16 %v13197
  %v13231 = vunpack.c.l.b16 %v13198
  %v13232 = vunpack.c.l.b16 %v13199
  %v13233 = vunpack.c.l.b16 %v13200
  %v13234 = vunpack.c.l.b16 %v13201
  %v13235 = vunpack.c.l.b16 %v13202
  %v13236 = vunpack.c.l.b16 %v13203
  %v13237 = vunpack.c.l.b16 %v13204
  %v13238 = vunpack.c.l.b16 %v13205
  %v13239 = vunpack.c.l.b16 %v13206
  %v13240 = vunpack.c.l.b16 %v13207
  %v13241 = vunpack.c.l.b16 %v13208
  %v13242 = vpack.c.b16 %v13227, %v13226
  %v13243 = vpack.c.b16 %v13229, %v13228
  %v13244 = vpack.c.b16 %v13231, %v13230
  %v13245 = vpack.c.b16 %v13233, %v13232
  %v13246 = vpack.c.b16 %v13235, %v13234
  %v13247 = vpack.c.b16 %v13237, %v13236
  %v13248 = vpack.c.b16 %v13239, %v13238
  %v13249 = vpack.c.b16 %v13241, %v13240
  %13258 = vmatprep.subr.bf16.mxu0 0
  %13259 = vmatpush1.bf16.msra.mxu0 %v13242
  %13260 = vmatprep.subr.bf16.mxu0 0
  %13261 = vmatpush1.bf16.msra.mxu0 %v13243
  %13262 = vmatprep.subr.bf16.mxu0 0
  %13263 = vmatpush1.bf16.msra.mxu0 %v13244
  %13264 = vmatprep.subr.bf16.mxu0 0
  %13265 = vmatpush1.bf16.msra.mxu0 %v13245
  %13266 = vmatprep.subr.bf16.mxu0 0
  %13267 = vmatpush1.bf16.msra.mxu0 %v13246
  %13268 = vmatprep.subr.bf16.mxu0 0
  %13269 = vmatpush1.bf16.msra.mxu0 %v13247
  %13270 = vmatprep.subr.bf16.mxu0 0
  %13271 = vmatpush1.bf16.msra.mxu0 %v13248
  %13272 = vmatprep.subr.bf16.mxu0 0
  %13273 = vmatpush1.bf16.msra.mxu0 %v13249
  %13274 = vmatprep.subr.bf16.mxu0 0
  %13275 = vmatpush1.bf16.msra.mxu0 0
  %13276 = vmatprep.subr.bf16.mxu0 0
  %13277 = vmatpush1.bf16.msra.mxu0 0
  %13278 = vmatprep.subr.bf16.mxu0 0
  %13279 = vmatpush1.bf16.msra.mxu0 0
  %13280 = vmatprep.subr.bf16.mxu0 0
  %13281 = vmatpush1.bf16.msra.mxu0 0
  %13282 = vmatprep.subr.bf16.mxu0 0
  %13283 = vmatpush1.bf16.msra.mxu0 0
  %13284 = vmatprep.subr.bf16.mxu0 0
  %13285 = vmatpush1.bf16.msra.mxu0 0
  %13286 = vmatprep.subr.bf16.mxu0 0
  %13287 = vmatpush1.bf16.msra.mxu0 0
  %13288 = vmatprep.subr.bf16.mxu0 0
  %13289 = vmatpush1.bf16.msra.mxu0 0
  %13290 = vmatprep.mubr.bf16.mxu0 0
  %13291 = vmatmul.mubr.bf16.gmra.mrb[0].mxu0 %v13209
  %v13292 = vpop.f32.mrb[0].mxu0
  %v13293 = vadd.f32 0.0, %v13292
  %v13294 = vpop.f32.mrb[0].mxu0
  %v13295 = vpop.f32.mrb[0].mxu0
  %v13296 = vpop.f32.mrb[0].mxu0
  %13297 = vdwg.mxu0
  %v13298 = vrot.slane %v13293, 4
  %v13299 = vadd.f32 %v13293, %v13298
  %v13300 = vrot.slane %v13299, 2
  %v13301 = vadd.f32 %v13299, %v13300
  %v13302 = vrot.slane %v13301, 1
  %v13303 = vadd.f32 %v13301, %v13302
  %v13304 = vmul.f32 %v13293, %v13293
  %v13305 = vrot.slane %v13304, 4
  %v13306 = vadd.f32 %v13304, %v13305
  %v13307 = vrot.slane %v13306, 2
  %v13308 = vadd.f32 %v13306, %v13307
  %v13309 = vrot.slane %v13308, 1
  %v13310 = vadd.f32 %v13308, %v13309
  %v13311 = vmul.f32 %v13303, 0.125
  %v13312 = vmul.f32 %v13310, 0.125
  %v13313 = vmul.f32 %v13311, %v13311
  %v13314 = vsub.f32 %v13312, %v13313
  %v13315 = vmax.f32 %v13314, 0.0
  %v13316 = vsub.f32 %v13293, %v13311
  %v13317 = vadd.f32 %v13315, 1e-05
  %v13318 = vrsqrt.pop %v13317
  %v13319 = vmul.f32 %v13316, %v13318
  %v13320 = vld [vmem:[%s2 + $0x50] sm:$0x1]
  %v13322 = vlaneseq
  %v13323 = vshrl.u32 %v13322, 7
  %v13324 = vsub.s32 0, %v13323
  %v13325 = vrot.slane %v13320, %v13324
  %v13327 = vmul.f32 %v13319, %v13325
  %v13328 = vld [vmem:[%s2 + $0x51] sm:$0x1]
  %v13330 = vlaneseq
  %v13331 = vshrl.u32 %v13330, 7
  %v13332 = vsub.s32 0, %v13331
  %v13333 = vrot.slane %v13328, %v13332
  %v13335 = vadd.f32 %v13327, %v13333
  %v13336 = vadd.f32 %v13335, %v13046
  %v13337 = vmax.f32 %v13336, 0.0
  %v13338 = vld [vmem:[%s2 + $0x52] sm:$0x1]
  %v13340 = vlaneseq
  %v13341 = vshrl.u32 %v13340, 7
  %v13342 = vsub.s32 0, %v13341
  %v13343 = vrot.slane %v13338, %v13342
  %v13345 = vmul.f32 %v13337, %v13343
  %13346 = vadd.xlane.f32.xlu0 %v13345
  %v13347 = vpop.xlane.xlu0 %13346
  %v13348 = vld [vmem:[%s2 + $0x53] sm:$0x1]
  %v13350 = vlaneseq
  %v13351 = vshrl.u32 %v13350, 7
  %v13352 = vsub.s32 0, %v13351
  %v13353 = vrot.slane %v13348, %v13352
  %v13355 = vadd.f32 %v13347, %v13353
  %vm13356 = vcmask 7168
  %13357 = vst.msk [vmem:[%s11] sm:$0xff] %vm13356, %v13355
  // Predicated region
  $region46: #{d_forward.1} parent=0 // pred_check
    _
  $region47: #{d_forward.1} parent=0 // pred_check_branch
    %13359 = sbr.rel (0) target = $region49
  $region48: #{d_forward.1} parent=0 // pred_region
    _
  $region49: #{d_forward.1} parent=0 // pred_fallthru
    _
  // Predicated region
  $region50: #{d_forward.1} parent=0 // pred_check
    _
  $region51: #{d_forward.1} parent=0 // pred_check_branch
    %13361 = sbr.rel (0) target = $region53
  $region52: #{d_forward.1} parent=0 // pred_region
    _
  $region53: #{d_forward.1} parent=0 // pred_fallthru
    _

</llo_original>
